<compile_context>
chip_gen: v7x
topology: tpu7x:2x2x1
jax: 0.10.0
libtpu: 0.0.40
codegen_flags: <defaults>
</compile_context>

<pallas_src>
import jax
import jax.numpy as jnp
from jax.experimental import pallas as pl
from jax.experimental.pallas import tpu as pltpu

# ----------------------------- model sizes -----------------------------------
SRC_VOCAB = 32      # encoder input_dim
TRG_VOCAB = 32      # decoder output_dim
ENC_EMB = 16
DEC_EMB = 16
ENC_HID = 32
DEC_HID = 32
SRC_LEN = 8
TRG_LEN = 6
BATCH = 2
SRC_PAD_IDX = 0

_VMEM = pltpu.MemorySpace.VMEM
_SMEM = pltpu.MemorySpace.SMEM


# ----------------------------- shared GRU math --------------------------------
def _gru_update(gi, gh, h, H):
    """PyTorch GRUCell update given input gates gi and hidden gates gh."""
    r = jax.nn.sigmoid(gi[:, :H] + gh[:, :H])
    z = jax.nn.sigmoid(gi[:, H:2 * H] + gh[:, H:2 * H])
    n = jnp.tanh(gi[:, 2 * H:] + r * gh[:, 2 * H:])
    return (1.0 - z) * n + z * h


# ----------------------------- fused encoder kernel ---------------------------
def encoder_kernel(src_sm, len_ref,
                   emb_wih_ref, bih_ref,
                   whh_f_ref, bhh_f_ref, whh_b_ref, bhh_b_ref,
                   fc_wf_ref, fc_wb_ref, fc_b_ref,
                   enc_ref, hid_ref):
    S, B = src_sm.shape                       # SMEM int32 tokens
    H = whh_f_ref.shape[0]
    Vs = emb_wih_ref.shape[0]
    f32 = jnp.float32

    # ---- in-kernel embedding lookup: one-hot of src tokens, row = t*B + b -----
    row_iota = jax.lax.broadcasted_iota(jnp.int32, (S * B, Vs), 0)
    col_iota = jax.lax.broadcasted_iota(jnp.int32, (S * B, Vs), 1)
    oh = jnp.zeros((S * B, Vs), f32)
    for t in range(S):
        for b in range(B):
            tok = src_sm[t, b]
            oh = oh + ((row_iota == t * B + b) & (col_iota == tok)).astype(f32)

    # ---- hoisted input-gate projections for BOTH directions (embedding fused):
    # columns [:3H] = forward gates, [3H:] = backward gates; bias folded in once.
    gi_all = jnp.dot(oh, emb_wih_ref[...],
                     preferred_element_type=f32) + bih_ref[...]        # (S*B, 6H)

    # validity mask (B, S): 1.0 = real token (pack_padded semantics via masking)
    pos = jax.lax.broadcasted_iota(jnp.int32, (B, S), 1)
    bmask = (pos < len_ref[...]).astype(f32)                           # (B, S)

    whh_f = whh_f_ref[...]
    whh_b = whh_b_ref[...]
    bhh_f = jnp.broadcast_to(bhh_f_ref[...], (B, 3 * H))               # hoisted broadcasts
    bhh_b = jnp.broadcast_to(bhh_b_ref[...], (B, 3 * H))

    h_f = jnp.zeros((B, H), f32)
    h_b = jnp.zeros((B, H), f32)

    # Unrolled time loop (S small & static); both directions per iteration.
    for t in range(S):
        tb = S - 1 - t
        m = bmask[:, t:t + 1]                  # (B, 1)
        mb = bmask[:, tb:tb + 1]

        # forward direction, step t
        gi_f = gi_all[t * B:(t + 1) * B, :3 * H]
        gh_f = jnp.dot(h_f, whh_f, preferred_element_type=f32) + bhh_f
        h_new = _gru_update(gi_f, gh_f, h_f, H)
        h_f = m * h_new + (1.0 - m) * h_f      # freeze hidden at pads
        enc_ref[:, t, :H] = m * h_f            # forward half, padded positions -> 0

        # backward direction, step tb
        gi_b = gi_all[tb * B:(tb + 1) * B, 3 * H:]
        gh_b = jnp.dot(h_b, whh_b, preferred_element_type=f32) + bhh_b
        hb_new = _gru_update(gi_b, gh_b, h_b, H)
        h_b = mb * hb_new + (1.0 - mb) * h_b
        enc_ref[:, tb, H:] = mb * h_b          # backward half

    # hidden = tanh(fc(cat(h_fwd_final, h_bwd_final)))  (fc weight pre-split on host)
    hid_ref[...] = jnp.tanh(
        jnp.dot(h_f, fc_wf_ref[...], preferred_element_type=f32)
        + jnp.dot(h_b, fc_wb_ref[...], preferred_element_type=f32)
        + fc_b_ref[...])


def encode(src, len_col, p):
    # TODO(synk): dropout omitted (eval-mode forward).
    S, B = src.shape
    return pl.pallas_call(
        encoder_kernel,
        out_shape=(jax.ShapeDtypeStruct((B, S, 2 * ENC_HID), jnp.float32),
                   jax.ShapeDtypeStruct((B, DEC_HID), jnp.float32)),
        in_specs=[pl.BlockSpec(memory_space=_SMEM),       # src tokens (int32)
                  pl.BlockSpec(memory_space=_VMEM)]       # lengths (B, 1) int32
                 + [pl.BlockSpec(memory_space=_VMEM)] * 9,
        out_specs=(pl.BlockSpec(memory_space=_VMEM),
                   pl.BlockSpec(memory_space=_VMEM)),
    )(src, len_col,
      p['enc_emb_wih'], p['enc_bih_cat'],
      p['enc_whh_f'], p['enc_bhh_f'], p['enc_whh_b'], p['enc_bhh_b'],
      p['enc_fc_wf'], p['enc_fc_wb'], p['enc_fc_b'])


# ----------------------------- fused decoder kernel ---------------------------
def decoder_kernel(trg_sm, tf_sm,
                   h0_ref, enc_ref, len_ref,
                   awe_ref, awh_ref, ab_ref, av_ref,
                   wie_ref, wiw_ref, whh_ref, bih_ref, bhh_ref,
                   owh_ref, oww_ref, owe_ref, ob_ref,
                   out_ref):
    T = out_ref.shape[0]
    B, S, E2 = enc_ref.shape
    Hd = h0_ref.shape[1]
    V = ob_ref.shape[1]
    f32 = jnp.float32

    row_iota = jax.lax.broadcasted_iota(jnp.int32, (B, V), 0)
    col_iota = jax.lax.broadcasted_iota(jnp.int32, (B, V), 1)
    col_f = col_iota.astype(f32)

    # ---- resident reads & hoisted broadcasts (done ONCE for all steps) --------
    enc = enc_ref[...]                                                 # (B, S, 2*ENC_HID)
    awh = awh_ref[...]
    wie = wie_ref[...]
    wiw = wiw_ref[...]
    whh = whh_ref[...]
    owh = owh_ref[...]
    oww = oww_ref[...]
    owe = owe_ref[...]
    bih = jnp.broadcast_to(bih_ref[...], (B, 3 * Hd))
    bhh = jnp.broadcast_to(bhh_ref[...], (B, 3 * Hd))
    ob = jnp.broadcast_to(ob_ref[...], (B, V))
    ab = jnp.broadcast_to(ab_ref[...], (B, S, Hd))
    av = jnp.broadcast_to(av_ref[...], (B, S, Hd))

    # attention mask from lengths (== src != PAD for this data)
    pos = jax.lax.broadcasted_iota(jnp.int32, (B, S), 1)
    valid = pos < len_ref[...]                                         # (B, S) bool
    neg_big = jnp.full((B, S), -1e10, f32)

    # step-invariant attention projection of encoder outputs (computed ONCE)
    ee = jnp.dot(enc.reshape(B * S, E2), awe_ref[...],
                 preferred_element_type=f32).reshape(B, S, Hd)

    def token_onehot(row):
        """One-hot [B, V] of SMEM tokens trg_sm[row, :] (row static, B tiny)."""
        oh_ = jnp.zeros((B, V), f32)
        for b in range(B):
            tok = trg_sm[row, b]
            oh_ = oh_ + ((row_iota == b) & (col_iota == tok)).astype(f32)
        return oh_

    h = h0_ref[...]
    oh = token_onehot(0)                       # input = trg[0, :]

    out_ref[0] = jnp.zeros((B, V), f32)        # outputs[0] stays zero, like PyTorch

    # Unrolled target loop (T small & static) — single kernel invocation.
    for t in range(1, T):
        # ---- attention: energy = tanh(W_h h + W_e enc + b); score = v . energy
        e_h = jnp.dot(h, awh, preferred_element_type=f32)              # (B, Hd)
        energy = jnp.tanh(e_h[:, None, :] + ee + ab)                   # (B, S, Hd)
        scores = jnp.sum(energy * av, axis=2)                          # (B, S)
        scores = jnp.where(valid, scores, neg_big)                     # masked_fill
        mx = jnp.max(scores, axis=1, keepdims=True)
        ex = jnp.exp(scores - mx)
        a = ex * pl.reciprocal(jnp.sum(ex, axis=1, keepdims=True), approx=False)
        weighted = jnp.sum(a[:, :, None] * enc, axis=1)                # (B, 2*ENC_HID)

        # ---- decoder GRU cell, input = cat(embedded, weighted); embedding fused
        gi = (jnp.dot(oh, wie, preferred_element_type=f32)
              + jnp.dot(weighted, wiw, preferred_element_type=f32) + bih)
        gh = jnp.dot(h, whh, preferred_element_type=f32) + bhh
        h = _gru_update(gi, gh, h, Hd)

        # ---- fc_out(cat(output, weighted, embedded)); embedding fused into owe
        pred = (jnp.dot(h, owh, preferred_element_type=f32)
                + jnp.dot(weighted, oww, preferred_element_type=f32)
                + jnp.dot(oh, owe, preferred_element_type=f32) + ob)   # (B, V)
        out_ref[t] = pred

        if t < T - 1:
            # next input token: teacher forcing vs greedy argmax(pred)
            pmx = jnp.max(pred, axis=1, keepdims=True)
            cand = jnp.where(pred >= pmx, col_f, jnp.float32(V))
            first = jnp.min(cand, axis=1, keepdims=True)               # first max (torch ties)
            arg_oh = (col_f == first).astype(f32)
            teach_oh = token_onehot(t)
            tf_f = (tf_sm[t] > 0).astype(f32)
            oh = tf_f * teach_oh + (1.0 - tf_f) * arg_oh


def decode_all(trg, tf_flags, h0, enc_out, len_col, p):
    T, B = trg.shape
    V = TRG_VOCAB
    smem = pl.BlockSpec(memory_space=_SMEM)
    vmem = pl.BlockSpec(memory_space=_VMEM)
    return pl.pallas_call(
        decoder_kernel,
        out_shape=jax.ShapeDtypeStruct((T, B, V), jnp.float32),
        in_specs=[smem, smem] + [vmem] * 16,
        out_specs=vmem,
    )(trg, tf_flags, h0, enc_out, len_col,
      p['attn_we'], p['attn_wh'], p['attn_b'], p['attn_v'],
      p['dec_emb_wih'], p['dec_wih_w'], p['dec_whh'], p['dec_bih'], p['dec_bhh'],
      p['out_wh'], p['out_ww'], p['dec_emb_out'], p['out_b'])


# ----------------------------- full forward ----------------------------------
@jax.jit
def seq2seq_forward(src, src_lengths, trg, params, tf_key, teacher_forcing_ratio=0.5):
    T = trg.shape[0]
    len_col = src_lengths.astype(jnp.int32).reshape(-1, 1)             # (B, 1)

    enc_out, hidden = encode(src, len_col, params)                     # [B,S,2H], [B,Hd]

    # TODO(synk): per-step python random.random() replaced by one JAX PRNG draw per forward.
    tf_flags = (jax.random.uniform(tf_key, (T,)) < teacher_forcing_ratio).astype(jnp.int32)

    return decode_all(trg, tf_flags, hidden, enc_out, len_col, params)  # [T, B, TRG_VOCAB]


# ----------------------------- parameter init --------------------------------
def init_params(key):
    """Random params in the tutorial's shapes, pre-transposed ([in, out]) and pre-fused."""
    def u(k, shape, scale=0.1):
        return jax.random.uniform(k, shape, jnp.float32, -scale, scale)

    ks = iter(jax.random.split(key, 40))
    p = {}

    # ---- encoder: bidirectional GRU + fc(cat(h_fwd, h_bwd)) ----
    enc_emb = u(next(ks), (SRC_VOCAB, ENC_EMB))
    wih_f = u(next(ks), (ENC_EMB, 3 * ENC_HID))
    whh_f = u(next(ks), (ENC_HID, 3 * ENC_HID))
    bih_f = u(next(ks), (1, 3 * ENC_HID))
    bhh_f = u(next(ks), (1, 3 * ENC_HID))
    wih_b = u(next(ks), (ENC_EMB, 3 * ENC_HID))
    whh_b = u(next(ks), (ENC_HID, 3 * ENC_HID))
    bih_b = u(next(ks), (1, 3 * ENC_HID))
    bhh_b = u(next(ks), (1, 3 * ENC_HID))
    # embedding table fused into the (fwd|bwd-concatenated) input-hidden weights
    p['enc_emb_wih'] = enc_emb @ jnp.concatenate([wih_f, wih_b], axis=1)   # (SRC_VOCAB, 6H)
    p['enc_bih_cat'] = jnp.concatenate([bih_f, bih_b], axis=1)             # (1, 6H)
    p['enc_whh_f'], p['enc_bhh_f'] = whh_f, bhh_f
    p['enc_whh_b'], p['enc_bhh_b'] = whh_b, bhh_b
    p['enc_fc_wf'] = u(next(ks), (ENC_HID, DEC_HID))
    p['enc_fc_wb'] = u(next(ks), (ENC_HID, DEC_HID))
    p['enc_fc_b'] = u(next(ks), (1, DEC_HID))

    # ---- attention: Linear(DEC_HID + 2*ENC_HID, DEC_HID), v: Linear(DEC_HID, 1) ----
    p['attn_wh'] = u(next(ks), (DEC_HID, DEC_HID))
    p['attn_we'] = u(next(ks), (2 * ENC_HID, DEC_HID))
    p['attn_b'] = u(next(ks), (1, 1, DEC_HID))
    p['attn_v'] = u(next(ks), (1, 1, DEC_HID))

    # ---- decoder: GRU(input=cat(embedded, weighted)) + fc_out ----
    dec_emb = u(next(ks), (TRG_VOCAB, DEC_EMB))
    dec_wih_e = u(next(ks), (DEC_EMB, 3 * DEC_HID))
    p['dec_emb_wih'] = dec_emb @ dec_wih_e                                 # (TRG_VOCAB, 3*DEC_HID)
    p['dec_wih_w'] = u(next(ks), (2 * ENC_HID, 3 * DEC_HID))
    p['dec_whh'] = u(next(ks), (DEC_HID, 3 * DEC_HID))
    p['dec_bih'] = u(next(ks), (1, 3 * DEC_HID))
    p['dec_bhh'] = u(next(ks), (1, 3 * DEC_HID))
    p['out_wh'] = u(next(ks), (DEC_HID, TRG_VOCAB))
    p['out_ww'] = u(next(ks), (2 * ENC_HID, TRG_VOCAB))
    out_we = u(next(ks), (DEC_EMB, TRG_VOCAB))
    p['dec_emb_out'] = dec_emb @ out_we                                    # (TRG_VOCAB, TRG_VOCAB)
    p['out_b'] = u(next(ks), (1, TRG_VOCAB))
    return p


# ----------------------------- main -------------------------------------------
if __name__ == "__main__":
    key = jax.random.PRNGKey(0)
    k_par, k_src, k_trg, k_tf = jax.random.split(key, 4)

    params = init_params(k_par)

    # src: [SRC_LEN, BATCH], lengths [8, 5]; padded positions == SRC_PAD_IDX
    src_lengths = jnp.array([SRC_LEN, 5], dtype=jnp.int32)
    src = jax.random.randint(k_src, (SRC_LEN, BATCH), 1, SRC_VOCAB, dtype=jnp.int32)
    pos = jnp.arange(SRC_LEN)[:, None]
    src = jnp.where(pos < src_lengths[None, :], src, SRC_PAD_IDX)

    # trg: [TRG_LEN, BATCH]
    trg = jax.random.randint(k_trg, (TRG_LEN, BATCH), 1, TRG_VOCAB, dtype=jnp.int32)

    outputs = seq2seq_forward(src, src_lengths, trg, params, k_tf, 0.5)
    outputs = jax.block_until_ready(outputs)

    assert outputs.shape == (TRG_LEN, BATCH, TRG_VOCAB)
    assert bool(jnp.all(jnp.isfinite(outputs)))
    assert bool(jnp.all(outputs[0] == 0.0))
    print("KERNEL_OK")
</pallas_src>

<mosaic_0001>
module attributes {stable_mosaic.version = 11 : i64} {
  func.func @encoder_kernel(%arg0: memref<8x2xi32, #tpu.memory_space<smem>>, %arg1: memref<2x1xi32, #tpu.memory_space<vmem>>, %arg2: memref<32x192xf32, #tpu.memory_space<vmem>>, %arg3: memref<1x192xf32, #tpu.memory_space<vmem>>, %arg4: memref<32x96xf32, #tpu.memory_space<vmem>>, %arg5: memref<1x96xf32, #tpu.memory_space<vmem>>, %arg6: memref<32x96xf32, #tpu.memory_space<vmem>>, %arg7: memref<1x96xf32, #tpu.memory_space<vmem>>, %arg8: memref<32x32xf32, #tpu.memory_space<vmem>>, %arg9: memref<32x32xf32, #tpu.memory_space<vmem>>, %arg10: memref<1x32xf32, #tpu.memory_space<vmem>>, %arg11: memref<2x8x64xf32, #tpu.memory_space<vmem>>, %arg12: memref<2x32xf32, #tpu.memory_space<vmem>>) attributes {dimension_semantics = [], scalar_prefetch = 0 : i64, scratch_operands = 0 : i64, tpu.core_type = #tpu.core_type<tc>} {
    %0 = tpu.iota {dimensions = array<i32: 0>} : vector<16x32xi32>
    %1 = tpu.iota {dimensions = array<i32: 1>} : vector<16x32xi32>
    %cst = arith.constant 0.000000e+00 : f32
    %2 = vector.broadcast %cst : f32 to vector<16x32xf32>
    %c0 = arith.constant 0 : index
    %c0_0 = arith.constant 0 : index
    %3 = memref.load %arg0[%c0, %c0_0] : memref<8x2xi32, #tpu.memory_space<smem>>
    %c0_i32 = arith.constant 0 : i32
    %4 = vector.broadcast %c0_i32 : i32 to vector<16x32xi32>
    %5 = arith.cmpi eq, %0, %4 : vector<16x32xi32>
    %6 = vector.broadcast %3 : i32 to vector<16x32xi32>
    %7 = arith.cmpi eq, %1, %6 : vector<16x32xi32>
    %8 = arith.andi %5, %7 : vector<16x32xi1>
    %9 = arith.extui %8 : vector<16x32xi1> to vector<16x32xi32>
    %10 = arith.sitofp %9 : vector<16x32xi32> to vector<16x32xf32>
    %11 = arith.addf %2, %10 : vector<16x32xf32>
    %c0_1 = arith.constant 0 : index
    %c1 = arith.constant 1 : index
    %12 = memref.load %arg0[%c0_1, %c1] : memref<8x2xi32, #tpu.memory_space<smem>>
    %c1_i32 = arith.constant 1 : i32
    %13 = vector.broadcast %c1_i32 : i32 to vector<16x32xi32>
    %14 = arith.cmpi eq, %0, %13 : vector<16x32xi32>
    %15 = vector.broadcast %12 : i32 to vector<16x32xi32>
    %16 = arith.cmpi eq, %1, %15 : vector<16x32xi32>
    %17 = arith.andi %14, %16 : vector<16x32xi1>
    %18 = arith.extui %17 : vector<16x32xi1> to vector<16x32xi32>
    %19 = arith.sitofp %18 : vector<16x32xi32> to vector<16x32xf32>
    %20 = arith.addf %11, %19 : vector<16x32xf32>
    %c1_2 = arith.constant 1 : index
    %c0_3 = arith.constant 0 : index
    %21 = memref.load %arg0[%c1_2, %c0_3] : memref<8x2xi32, #tpu.memory_space<smem>>
    %c2_i32 = arith.constant 2 : i32
    %22 = vector.broadcast %c2_i32 : i32 to vector<16x32xi32>
    %23 = arith.cmpi eq, %0, %22 : vector<16x32xi32>
    %24 = vector.broadcast %21 : i32 to vector<16x32xi32>
    %25 = arith.cmpi eq, %1, %24 : vector<16x32xi32>
    %26 = arith.andi %23, %25 : vector<16x32xi1>
    %27 = arith.extui %26 : vector<16x32xi1> to vector<16x32xi32>
    %28 = arith.sitofp %27 : vector<16x32xi32> to vector<16x32xf32>
    %29 = arith.addf %20, %28 : vector<16x32xf32>
    %c1_4 = arith.constant 1 : index
    %c1_5 = arith.constant 1 : index
    %30 = memref.load %arg0[%c1_4, %c1_5] : memref<8x2xi32, #tpu.memory_space<smem>>
    %c3_i32 = arith.constant 3 : i32
    %31 = vector.broadcast %c3_i32 : i32 to vector<16x32xi32>
    %32 = arith.cmpi eq, %0, %31 : vector<16x32xi32>
    %33 = vector.broadcast %30 : i32 to vector<16x32xi32>
    %34 = arith.cmpi eq, %1, %33 : vector<16x32xi32>
    %35 = arith.andi %32, %34 : vector<16x32xi1>
    %36 = arith.extui %35 : vector<16x32xi1> to vector<16x32xi32>
    %37 = arith.sitofp %36 : vector<16x32xi32> to vector<16x32xf32>
    %38 = arith.addf %29, %37 : vector<16x32xf32>
    %c2 = arith.constant 2 : index
    %c0_6 = arith.constant 0 : index
    %39 = memref.load %arg0[%c2, %c0_6] : memref<8x2xi32, #tpu.memory_space<smem>>
    %c4_i32 = arith.constant 4 : i32
    %40 = vector.broadcast %c4_i32 : i32 to vector<16x32xi32>
    %41 = arith.cmpi eq, %0, %40 : vector<16x32xi32>
    %42 = vector.broadcast %39 : i32 to vector<16x32xi32>
    %43 = arith.cmpi eq, %1, %42 : vector<16x32xi32>
    %44 = arith.andi %41, %43 : vector<16x32xi1>
    %45 = arith.extui %44 : vector<16x32xi1> to vector<16x32xi32>
    %46 = arith.sitofp %45 : vector<16x32xi32> to vector<16x32xf32>
    %47 = arith.addf %38, %46 : vector<16x32xf32>
    %c2_7 = arith.constant 2 : index
    %c1_8 = arith.constant 1 : index
    %48 = memref.load %arg0[%c2_7, %c1_8] : memref<8x2xi32, #tpu.memory_space<smem>>
    %c5_i32 = arith.constant 5 : i32
    %49 = vector.broadcast %c5_i32 : i32 to vector<16x32xi32>
    %50 = arith.cmpi eq, %0, %49 : vector<16x32xi32>
    %51 = vector.broadcast %48 : i32 to vector<16x32xi32>
    %52 = arith.cmpi eq, %1, %51 : vector<16x32xi32>
    %53 = arith.andi %50, %52 : vector<16x32xi1>
    %54 = arith.extui %53 : vector<16x32xi1> to vector<16x32xi32>
    %55 = arith.sitofp %54 : vector<16x32xi32> to vector<16x32xf32>
    %56 = arith.addf %47, %55 : vector<16x32xf32>
    %c3 = arith.constant 3 : index
    %c0_9 = arith.constant 0 : index
    %57 = memref.load %arg0[%c3, %c0_9] : memref<8x2xi32, #tpu.memory_space<smem>>
    %c6_i32 = arith.constant 6 : i32
    %58 = vector.broadcast %c6_i32 : i32 to vector<16x32xi32>
    %59 = arith.cmpi eq, %0, %58 : vector<16x32xi32>
    %60 = vector.broadcast %57 : i32 to vector<16x32xi32>
    %61 = arith.cmpi eq, %1, %60 : vector<16x32xi32>
    %62 = arith.andi %59, %61 : vector<16x32xi1>
    %63 = arith.extui %62 : vector<16x32xi1> to vector<16x32xi32>
    %64 = arith.sitofp %63 : vector<16x32xi32> to vector<16x32xf32>
    %65 = arith.addf %56, %64 : vector<16x32xf32>
    %c3_10 = arith.constant 3 : index
    %c1_11 = arith.constant 1 : index
    %66 = memref.load %arg0[%c3_10, %c1_11] : memref<8x2xi32, #tpu.memory_space<smem>>
    %c7_i32 = arith.constant 7 : i32
    %67 = vector.broadcast %c7_i32 : i32 to vector<16x32xi32>
    %68 = arith.cmpi eq, %0, %67 : vector<16x32xi32>
    %69 = vector.broadcast %66 : i32 to vector<16x32xi32>
    %70 = arith.cmpi eq, %1, %69 : vector<16x32xi32>
    %71 = arith.andi %68, %70 : vector<16x32xi1>
    %72 = arith.extui %71 : vector<16x32xi1> to vector<16x32xi32>
    %73 = arith.sitofp %72 : vector<16x32xi32> to vector<16x32xf32>
    %74 = arith.addf %65, %73 : vector<16x32xf32>
    %c4 = arith.constant 4 : index
    %c0_12 = arith.constant 0 : index
    %75 = memref.load %arg0[%c4, %c0_12] : memref<8x2xi32, #tpu.memory_space<smem>>
    %c8_i32 = arith.constant 8 : i32
    %76 = vector.broadcast %c8_i32 : i32 to vector<16x32xi32>
    %77 = arith.cmpi eq, %0, %76 : vector<16x32xi32>
    %78 = vector.broadcast %75 : i32 to vector<16x32xi32>
    %79 = arith.cmpi eq, %1, %78 : vector<16x32xi32>
    %80 = arith.andi %77, %79 : vector<16x32xi1>
    %81 = arith.extui %80 : vector<16x32xi1> to vector<16x32xi32>
    %82 = arith.sitofp %81 : vector<16x32xi32> to vector<16x32xf32>
    %83 = arith.addf %74, %82 : vector<16x32xf32>
    %c4_13 = arith.constant 4 : index
    %c1_14 = arith.constant 1 : index
    %84 = memref.load %arg0[%c4_13, %c1_14] : memref<8x2xi32, #tpu.memory_space<smem>>
    %c9_i32 = arith.constant 9 : i32
    %85 = vector.broadcast %c9_i32 : i32 to vector<16x32xi32>
    %86 = arith.cmpi eq, %0, %85 : vector<16x32xi32>
    %87 = vector.broadcast %84 : i32 to vector<16x32xi32>
    %88 = arith.cmpi eq, %1, %87 : vector<16x32xi32>
    %89 = arith.andi %86, %88 : vector<16x32xi1>
    %90 = arith.extui %89 : vector<16x32xi1> to vector<16x32xi32>
    %91 = arith.sitofp %90 : vector<16x32xi32> to vector<16x32xf32>
    %92 = arith.addf %83, %91 : vector<16x32xf32>
    %c5 = arith.constant 5 : index
    %c0_15 = arith.constant 0 : index
    %93 = memref.load %arg0[%c5, %c0_15] : memref<8x2xi32, #tpu.memory_space<smem>>
    %c10_i32 = arith.constant 10 : i32
    %94 = vector.broadcast %c10_i32 : i32 to vector<16x32xi32>
    %95 = arith.cmpi eq, %0, %94 : vector<16x32xi32>
    %96 = vector.broadcast %93 : i32 to vector<16x32xi32>
    %97 = arith.cmpi eq, %1, %96 : vector<16x32xi32>
    %98 = arith.andi %95, %97 : vector<16x32xi1>
    %99 = arith.extui %98 : vector<16x32xi1> to vector<16x32xi32>
    %100 = arith.sitofp %99 : vector<16x32xi32> to vector<16x32xf32>
    %101 = arith.addf %92, %100 : vector<16x32xf32>
    %c5_16 = arith.constant 5 : index
    %c1_17 = arith.constant 1 : index
    %102 = memref.load %arg0[%c5_16, %c1_17] : memref<8x2xi32, #tpu.memory_space<smem>>
    %c11_i32 = arith.constant 11 : i32
    %103 = vector.broadcast %c11_i32 : i32 to vector<16x32xi32>
    %104 = arith.cmpi eq, %0, %103 : vector<16x32xi32>
    %105 = vector.broadcast %102 : i32 to vector<16x32xi32>
    %106 = arith.cmpi eq, %1, %105 : vector<16x32xi32>
    %107 = arith.andi %104, %106 : vector<16x32xi1>
    %108 = arith.extui %107 : vector<16x32xi1> to vector<16x32xi32>
    %109 = arith.sitofp %108 : vector<16x32xi32> to vector<16x32xf32>
    %110 = arith.addf %101, %109 : vector<16x32xf32>
    %c6 = arith.constant 6 : index
    %c0_18 = arith.constant 0 : index
    %111 = memref.load %arg0[%c6, %c0_18] : memref<8x2xi32, #tpu.memory_space<smem>>
    %c12_i32 = arith.constant 12 : i32
    %112 = vector.broadcast %c12_i32 : i32 to vector<16x32xi32>
    %113 = arith.cmpi eq, %0, %112 : vector<16x32xi32>
    %114 = vector.broadcast %111 : i32 to vector<16x32xi32>
    %115 = arith.cmpi eq, %1, %114 : vector<16x32xi32>
    %116 = arith.andi %113, %115 : vector<16x32xi1>
    %117 = arith.extui %116 : vector<16x32xi1> to vector<16x32xi32>
    %118 = arith.sitofp %117 : vector<16x32xi32> to vector<16x32xf32>
    %119 = arith.addf %110, %118 : vector<16x32xf32>
    %c6_19 = arith.constant 6 : index
    %c1_20 = arith.constant 1 : index
    %120 = memref.load %arg0[%c6_19, %c1_20] : memref<8x2xi32, #tpu.memory_space<smem>>
    %c13_i32 = arith.constant 13 : i32
    %121 = vector.broadcast %c13_i32 : i32 to vector<16x32xi32>
    %122 = arith.cmpi eq, %0, %121 : vector<16x32xi32>
    %123 = vector.broadcast %120 : i32 to vector<16x32xi32>
    %124 = arith.cmpi eq, %1, %123 : vector<16x32xi32>
    %125 = arith.andi %122, %124 : vector<16x32xi1>
    %126 = arith.extui %125 : vector<16x32xi1> to vector<16x32xi32>
    %127 = arith.sitofp %126 : vector<16x32xi32> to vector<16x32xf32>
    %128 = arith.addf %119, %127 : vector<16x32xf32>
    %c7 = arith.constant 7 : index
    %c0_21 = arith.constant 0 : index
    %129 = memref.load %arg0[%c7, %c0_21] : memref<8x2xi32, #tpu.memory_space<smem>>
    %c14_i32 = arith.constant 14 : i32
    %130 = vector.broadcast %c14_i32 : i32 to vector<16x32xi32>
    %131 = arith.cmpi eq, %0, %130 : vector<16x32xi32>
    %132 = vector.broadcast %129 : i32 to vector<16x32xi32>
    %133 = arith.cmpi eq, %1, %132 : vector<16x32xi32>
    %134 = arith.andi %131, %133 : vector<16x32xi1>
    %135 = arith.extui %134 : vector<16x32xi1> to vector<16x32xi32>
    %136 = arith.sitofp %135 : vector<16x32xi32> to vector<16x32xf32>
    %137 = arith.addf %128, %136 : vector<16x32xf32>
    %c7_22 = arith.constant 7 : index
    %c1_23 = arith.constant 1 : index
    %138 = memref.load %arg0[%c7_22, %c1_23] : memref<8x2xi32, #tpu.memory_space<smem>>
    %c15_i32 = arith.constant 15 : i32
    %139 = vector.broadcast %c15_i32 : i32 to vector<16x32xi32>
    %140 = arith.cmpi eq, %0, %139 : vector<16x32xi32>
    %141 = vector.broadcast %138 : i32 to vector<16x32xi32>
    %142 = arith.cmpi eq, %1, %141 : vector<16x32xi32>
    %143 = arith.andi %140, %142 : vector<16x32xi1>
    %144 = arith.extui %143 : vector<16x32xi1> to vector<16x32xi32>
    %145 = arith.sitofp %144 : vector<16x32xi32> to vector<16x32xf32>
    %146 = arith.addf %137, %145 : vector<16x32xf32>
    %c0_24 = arith.constant 0 : index
    %c0_25 = arith.constant 0 : index
    %147 = vector.load %arg2[%c0_24, %c0_25] : memref<32x192xf32, #tpu.memory_space<vmem>>, vector<32x192xf32>
    %cst_26 = arith.constant dense<0.000000e+00> : vector<16x192xf32>
    %148 = tpu.matmul %146, %147, %cst_26 {dimension_numbers = #tpu.dot_dimension_numbers<[1], [0], [0], [1], [0, 0, 1, 1], [], []>} : vector<16x32xf32>, vector<32x192xf32>, vector<16x192xf32> -> vector<16x192xf32>
    %c0_27 = arith.constant 0 : index
    %c0_28 = arith.constant 0 : index
    %149 = vector.load %arg3[%c0_27, %c0_28] : memref<1x192xf32, #tpu.memory_space<vmem>>, vector<1x192xf32>
    %150 = vector.broadcast %149 : vector<1x192xf32> to vector<16x192xf32>
    %151 = arith.addf %148, %150 : vector<16x192xf32>
    %152 = tpu.iota {dimensions = array<i32: 1>} : vector<2x8xi32>
    %c0_29 = arith.constant 0 : index
    %c0_30 = arith.constant 0 : index
    %153 = vector.load %arg1[%c0_29, %c0_30] : memref<2x1xi32, #tpu.memory_space<vmem>>, vector<2x1xi32>
    %154 = vector.broadcast %153 : vector<2x1xi32> to vector<2x8xi32>
    %155 = arith.cmpi slt, %152, %154 : vector<2x8xi32>
    %156 = arith.extui %155 : vector<2x8xi1> to vector<2x8xi32>
    %157 = arith.sitofp %156 : vector<2x8xi32> to vector<2x8xf32>
    %c0_31 = arith.constant 0 : index
    %c0_32 = arith.constant 0 : index
    %158 = vector.load %arg4[%c0_31, %c0_32] : memref<32x96xf32, #tpu.memory_space<vmem>>, vector<32x96xf32>
    %c0_33 = arith.constant 0 : index
    %c0_34 = arith.constant 0 : index
    %159 = vector.load %arg6[%c0_33, %c0_34] : memref<32x96xf32, #tpu.memory_space<vmem>>, vector<32x96xf32>
    %c0_35 = arith.constant 0 : index
    %c0_36 = arith.constant 0 : index
    %160 = vector.load %arg5[%c0_35, %c0_36] : memref<1x96xf32, #tpu.memory_space<vmem>>, vector<1x96xf32>
    %161 = vector.shape_cast %160 : vector<1x96xf32> to vector<1x96xf32>
    %162 = vector.broadcast %161 : vector<1x96xf32> to vector<2x96xf32>
    %c0_37 = arith.constant 0 : index
    %c0_38 = arith.constant 0 : index
    %163 = vector.load %arg7[%c0_37, %c0_38] : memref<1x96xf32, #tpu.memory_space<vmem>>, vector<1x96xf32>
    %164 = vector.shape_cast %163 : vector<1x96xf32> to vector<1x96xf32>
    %165 = vector.broadcast %164 : vector<1x96xf32> to vector<2x96xf32>
    %cst_39 = arith.constant 0.000000e+00 : f32
    %166 = vector.broadcast %cst_39 : f32 to vector<2x32xf32>
    %cst_40 = arith.constant 0.000000e+00 : f32
    %167 = vector.broadcast %cst_40 : f32 to vector<2x32xf32>
    %168 = vector.extract_strided_slice %157 {offsets = [0, 0], sizes = [2, 1], strides = [1, 1]} : vector<2x8xf32> to vector<2x1xf32>
    %169 = vector.extract_strided_slice %157 {offsets = [0, 7], sizes = [2, 1], strides = [1, 1]} : vector<2x8xf32> to vector<2x1xf32>
    %170 = vector.extract_strided_slice %151 {offsets = [0, 0], sizes = [2, 96], strides = [1, 1]} : vector<16x192xf32> to vector<2x96xf32>
    %cst_41 = arith.constant dense<0.000000e+00> : vector<2x96xf32>
    %171 = tpu.matmul %166, %158, %cst_41 {dimension_numbers = #tpu.dot_dimension_numbers<[1], [0], [0], [1], [0, 0, 1, 1], [], []>} : vector<2x32xf32>, vector<32x96xf32>, vector<2x96xf32> -> vector<2x96xf32>
    %172 = arith.addf %171, %162 : vector<2x96xf32>
    %173 = vector.extract_strided_slice %170 {offsets = [0, 0], sizes = [2, 32], strides = [1, 1]} : vector<2x96xf32> to vector<2x32xf32>
    %174 = vector.extract_strided_slice %172 {offsets = [0, 0], sizes = [2, 32], strides = [1, 1]} : vector<2x96xf32> to vector<2x32xf32>
    %175 = arith.addf %173, %174 : vector<2x32xf32>
    %176 = arith.negf %175 : vector<2x32xf32>
    %177 = math.exp %176 : vector<2x32xf32>
    %cst_42 = arith.constant 1.000000e+00 : f32
    %178 = vector.broadcast %cst_42 : f32 to vector<2x32xf32>
    %179 = arith.addf %178, %177 : vector<2x32xf32>
    %180 = arith.divf %178, %179 : vector<2x32xf32>
    %181 = vector.extract_strided_slice %170 {offsets = [0, 32], sizes = [2, 32], strides = [1, 1]} : vector<2x96xf32> to vector<2x32xf32>
    %182 = vector.extract_strided_slice %172 {offsets = [0, 32], sizes = [2, 32], strides = [1, 1]} : vector<2x96xf32> to vector<2x32xf32>
    %183 = arith.addf %181, %182 : vector<2x32xf32>
    %184 = arith.negf %183 : vector<2x32xf32>
    %185 = math.exp %184 : vector<2x32xf32>
    %cst_43 = arith.constant 1.000000e+00 : f32
    %186 = vector.broadcast %cst_43 : f32 to vector<2x32xf32>
    %187 = arith.addf %186, %185 : vector<2x32xf32>
    %188 = arith.divf %186, %187 : vector<2x32xf32>
    %189 = vector.extract_strided_slice %170 {offsets = [0, 64], sizes = [2, 32], strides = [1, 1]} : vector<2x96xf32> to vector<2x32xf32>
    %190 = vector.extract_strided_slice %172 {offsets = [0, 64], sizes = [2, 32], strides = [1, 1]} : vector<2x96xf32> to vector<2x32xf32>
    %191 = arith.mulf %180, %190 : vector<2x32xf32>
    %192 = arith.addf %189, %191 : vector<2x32xf32>
    %193 = math.tanh %192 : vector<2x32xf32>
    %cst_44 = arith.constant 1.000000e+00 : f32
    %194 = vector.broadcast %cst_44 : f32 to vector<2x32xf32>
    %195 = arith.subf %194, %188 : vector<2x32xf32>
    %196 = arith.mulf %195, %193 : vector<2x32xf32>
    %197 = arith.mulf %188, %166 : vector<2x32xf32>
    %198 = arith.addf %196, %197 : vector<2x32xf32>
    %199 = vector.broadcast %168 : vector<2x1xf32> to vector<2x32xf32>
    %200 = arith.mulf %199, %198 : vector<2x32xf32>
    %cst_45 = arith.constant 1.000000e+00 : f32
    %201 = vector.broadcast %cst_45 : f32 to vector<2x1xf32>
    %202 = arith.subf %201, %168 : vector<2x1xf32>
    %203 = vector.broadcast %202 : vector<2x1xf32> to vector<2x32xf32>
    %204 = arith.mulf %203, %166 : vector<2x32xf32>
    %205 = arith.addf %200, %204 : vector<2x32xf32>
    %206 = vector.broadcast %168 : vector<2x1xf32> to vector<2x32xf32>
    %207 = arith.mulf %206, %205 : vector<2x32xf32>
    %c0_46 = arith.constant 0 : index
    %c0_47 = arith.constant 0 : index
    %c0_48 = arith.constant 0 : index
    %208 = vector.load %arg11[%c0_46, %c0_47, %c0_48] : memref<2x8x64xf32, #tpu.memory_space<vmem>>, vector<2x1x32xf32>
    %209 = vector.shape_cast %208 : vector<2x1x32xf32> to vector<2x32xf32>
    %210 = vector.shape_cast %207 : vector<2x32xf32> to vector<2x1x32xf32>
    tpu.vector_store %arg11[%c0_46, %c0_47, %c0_48], %210 {strides = array<i32>} : memref<2x8x64xf32, #tpu.memory_space<vmem>>, vector<2x1x32xf32>,
    %211 = vector.extract_strided_slice %151 {offsets = [14, 96], sizes = [2, 96], strides = [1, 1]} : vector<16x192xf32> to vector<2x96xf32>
    %cst_49 = arith.constant dense<0.000000e+00> : vector<2x96xf32>
    %212 = tpu.matmul %167, %159, %cst_49 {dimension_numbers = #tpu.dot_dimension_numbers<[1], [0], [0], [1], [0, 0, 1, 1], [], []>} : vector<2x32xf32>, vector<32x96xf32>, vector<2x96xf32> -> vector<2x96xf32>
    %213 = arith.addf %212, %165 : vector<2x96xf32>
    %214 = vector.extract_strided_slice %211 {offsets = [0, 0], sizes = [2, 32], strides = [1, 1]} : vector<2x96xf32> to vector<2x32xf32>
    %215 = vector.extract_strided_slice %213 {offsets = [0, 0], sizes = [2, 32], strides = [1, 1]} : vector<2x96xf32> to vector<2x32xf32>
    %216 = arith.addf %214, %215 : vector<2x32xf32>
    %217 = arith.negf %216 : vector<2x32xf32>
    %218 = math.exp %217 : vector<2x32xf32>
    %cst_50 = arith.constant 1.000000e+00 : f32
    %219 = vector.broadcast %cst_50 : f32 to vector<2x32xf32>
    %220 = arith.addf %219, %218 : vector<2x32xf32>
    %221 = arith.divf %219, %220 : vector<2x32xf32>
    %222 = vector.extract_strided_slice %211 {offsets = [0, 32], sizes = [2, 32], strides = [1, 1]} : vector<2x96xf32> to vector<2x32xf32>
    %223 = vector.extract_strided_slice %213 {offsets = [0, 32], sizes = [2, 32], strides = [1, 1]} : vector<2x96xf32> to vector<2x32xf32>
    %224 = arith.addf %222, %223 : vector<2x32xf32>
    %225 = arith.negf %224 : vector<2x32xf32>
    %226 = math.exp %225 : vector<2x32xf32>
    %cst_51 = arith.constant 1.000000e+00 : f32
    %227 = vector.broadcast %cst_51 : f32 to vector<2x32xf32>
    %228 = arith.addf %227, %226 : vector<2x32xf32>
    %229 = arith.divf %227, %228 : vector<2x32xf32>
    %230 = vector.extract_strided_slice %211 {offsets = [0, 64], sizes = [2, 32], strides = [1, 1]} : vector<2x96xf32> to vector<2x32xf32>
    %231 = vector.extract_strided_slice %213 {offsets = [0, 64], sizes = [2, 32], strides = [1, 1]} : vector<2x96xf32> to vector<2x32xf32>
    %232 = arith.mulf %221, %231 : vector<2x32xf32>
    %233 = arith.addf %230, %232 : vector<2x32xf32>
    %234 = math.tanh %233 : vector<2x32xf32>
    %cst_52 = arith.constant 1.000000e+00 : f32
    %235 = vector.broadcast %cst_52 : f32 to vector<2x32xf32>
    %236 = arith.subf %235, %229 : vector<2x32xf32>
    %237 = arith.mulf %236, %234 : vector<2x32xf32>
    %238 = arith.mulf %229, %167 : vector<2x32xf32>
    %239 = arith.addf %237, %238 : vector<2x32xf32>
    %240 = vector.broadcast %169 : vector<2x1xf32> to vector<2x32xf32>
    %241 = arith.mulf %240, %239 : vector<2x32xf32>
    %cst_53 = arith.constant 1.000000e+00 : f32
    %242 = vector.broadcast %cst_53 : f32 to vector<2x1xf32>
    %243 = arith.subf %242, %169 : vector<2x1xf32>
    %244 = vector.broadcast %243 : vector<2x1xf32> to vector<2x32xf32>
    %245 = arith.mulf %244, %167 : vector<2x32xf32>
    %246 = arith.addf %241, %245 : vector<2x32xf32>
    %247 = vector.broadcast %169 : vector<2x1xf32> to vector<2x32xf32>
    %248 = arith.mulf %247, %246 : vector<2x32xf32>
    %c0_54 = arith.constant 0 : index
    %c7_55 = arith.constant 7 : index
    %c32 = arith.constant 32 : index
    %249 = vector.load %arg11[%c0_54, %c7_55, %c32] : memref<2x8x64xf32, #tpu.memory_space<vmem>>, vector<2x1x32xf32>
    %250 = vector.shape_cast %249 : vector<2x1x32xf32> to vector<2x32xf32>
    %251 = vector.shape_cast %248 : vector<2x32xf32> to vector<2x1x32xf32>
    tpu.vector_store %arg11[%c0_54, %c7_55, %c32], %251 {strides = array<i32>} : memref<2x8x64xf32, #tpu.memory_space<vmem>>, vector<2x1x32xf32>,
    %252 = vector.extract_strided_slice %157 {offsets = [0, 1], sizes = [2, 1], strides = [1, 1]} : vector<2x8xf32> to vector<2x1xf32>
    %253 = vector.extract_strided_slice %157 {offsets = [0, 6], sizes = [2, 1], strides = [1, 1]} : vector<2x8xf32> to vector<2x1xf32>
    %254 = vector.extract_strided_slice %151 {offsets = [2, 0], sizes = [2, 96], strides = [1, 1]} : vector<16x192xf32> to vector<2x96xf32>
    %cst_56 = arith.constant dense<0.000000e+00> : vector<2x96xf32>
    %255 = tpu.matmul %205, %158, %cst_56 {dimension_numbers = #tpu.dot_dimension_numbers<[1], [0], [0], [1], [0, 0, 1, 1], [], []>} : vector<2x32xf32>, vector<32x96xf32>, vector<2x96xf32> -> vector<2x96xf32>
    %256 = arith.addf %255, %162 : vector<2x96xf32>
    %257 = vector.extract_strided_slice %254 {offsets = [0, 0], sizes = [2, 32], strides = [1, 1]} : vector<2x96xf32> to vector<2x32xf32>
    %258 = vector.extract_strided_slice %256 {offsets = [0, 0], sizes = [2, 32], strides = [1, 1]} : vector<2x96xf32> to vector<2x32xf32>
    %259 = arith.addf %257, %258 : vector<2x32xf32>
    %260 = arith.negf %259 : vector<2x32xf32>
    %261 = math.exp %260 : vector<2x32xf32>
    %cst_57 = arith.constant 1.000000e+00 : f32
    %262 = vector.broadcast %cst_57 : f32 to vector<2x32xf32>
    %263 = arith.addf %262, %261 : vector<2x32xf32>
    %264 = arith.divf %262, %263 : vector<2x32xf32>
    %265 = vector.extract_strided_slice %254 {offsets = [0, 32], sizes = [2, 32], strides = [1, 1]} : vector<2x96xf32> to vector<2x32xf32>
    %266 = vector.extract_strided_slice %256 {offsets = [0, 32], sizes = [2, 32], strides = [1, 1]} : vector<2x96xf32> to vector<2x32xf32>
    %267 = arith.addf %265, %266 : vector<2x32xf32>
    %268 = arith.negf %267 : vector<2x32xf32>
    %269 = math.exp %268 : vector<2x32xf32>
    %cst_58 = arith.constant 1.000000e+00 : f32
    %270 = vector.broadcast %cst_58 : f32 to vector<2x32xf32>
    %271 = arith.addf %270, %269 : vector<2x32xf32>
    %272 = arith.divf %270, %271 : vector<2x32xf32>
    %273 = vector.extract_strided_slice %254 {offsets = [0, 64], sizes = [2, 32], strides = [1, 1]} : vector<2x96xf32> to vector<2x32xf32>
    %274 = vector.extract_strided_slice %256 {offsets = [0, 64], sizes = [2, 32], strides = [1, 1]} : vector<2x96xf32> to vector<2x32xf32>
    %275 = arith.mulf %264, %274 : vector<2x32xf32>
    %276 = arith.addf %273, %275 : vector<2x32xf32>
    %277 = math.tanh %276 : vector<2x32xf32>
    %cst_59 = arith.constant 1.000000e+00 : f32
    %278 = vector.broadcast %cst_59 : f32 to vector<2x32xf32>
    %279 = arith.subf %278, %272 : vector<2x32xf32>
    %280 = arith.mulf %279, %277 : vector<2x32xf32>
    %281 = arith.mulf %272, %205 : vector<2x32xf32>
    %282 = arith.addf %280, %281 : vector<2x32xf32>
    %283 = vector.broadcast %252 : vector<2x1xf32> to vector<2x32xf32>
    %284 = arith.mulf %283, %282 : vector<2x32xf32>
    %cst_60 = arith.constant 1.000000e+00 : f32
    %285 = vector.broadcast %cst_60 : f32 to vector<2x1xf32>
    %286 = arith.subf %285, %252 : vector<2x1xf32>
    %287 = vector.broadcast %286 : vector<2x1xf32> to vector<2x32xf32>
    %288 = arith.mulf %287, %205 : vector<2x32xf32>
    %289 = arith.addf %284, %288 : vector<2x32xf32>
    %290 = vector.broadcast %252 : vector<2x1xf32> to vector<2x32xf32>
    %291 = arith.mulf %290, %289 : vector<2x32xf32>
    %c0_61 = arith.constant 0 : index
    %c1_62 = arith.constant 1 : index
    %c0_63 = arith.constant 0 : index
    %292 = vector.load %arg11[%c0_61, %c1_62, %c0_63] : memref<2x8x64xf32, #tpu.memory_space<vmem>>, vector<2x1x32xf32>
    %293 = vector.shape_cast %292 : vector<2x1x32xf32> to vector<2x32xf32>
    %294 = vector.shape_cast %291 : vector<2x32xf32> to vector<2x1x32xf32>
    tpu.vector_store %arg11[%c0_61, %c1_62, %c0_63], %294 {strides = array<i32>} : memref<2x8x64xf32, #tpu.memory_space<vmem>>, vector<2x1x32xf32>,
    %295 = vector.extract_strided_slice %151 {offsets = [12, 96], sizes = [2, 96], strides = [1, 1]} : vector<16x192xf32> to vector<2x96xf32>
    %cst_64 = arith.constant dense<0.000000e+00> : vector<2x96xf32>
    %296 = tpu.matmul %246, %159, %cst_64 {dimension_numbers = #tpu.dot_dimension_numbers<[1], [0], [0], [1], [0, 0, 1, 1], [], []>} : vector<2x32xf32>, vector<32x96xf32>, vector<2x96xf32> -> vector<2x96xf32>
    %297 = arith.addf %296, %165 : vector<2x96xf32>
    %298 = vector.extract_strided_slice %295 {offsets = [0, 0], sizes = [2, 32], strides = [1, 1]} : vector<2x96xf32> to vector<2x32xf32>
    %299 = vector.extract_strided_slice %297 {offsets = [0, 0], sizes = [2, 32], strides = [1, 1]} : vector<2x96xf32> to vector<2x32xf32>
    %300 = arith.addf %298, %299 : vector<2x32xf32>
    %301 = arith.negf %300 : vector<2x32xf32>
    %302 = math.exp %301 : vector<2x32xf32>
    %cst_65 = arith.constant 1.000000e+00 : f32
    %303 = vector.broadcast %cst_65 : f32 to vector<2x32xf32>
    %304 = arith.addf %303, %302 : vector<2x32xf32>
    %305 = arith.divf %303, %304 : vector<2x32xf32>
    %306 = vector.extract_strided_slice %295 {offsets = [0, 32], sizes = [2, 32], strides = [1, 1]} : vector<2x96xf32> to vector<2x32xf32>
    %307 = vector.extract_strided_slice %297 {offsets = [0, 32], sizes = [2, 32], strides = [1, 1]} : vector<2x96xf32> to vector<2x32xf32>
    %308 = arith.addf %306, %307 : vector<2x32xf32>
    %309 = arith.negf %308 : vector<2x32xf32>
    %310 = math.exp %309 : vector<2x32xf32>
    %cst_66 = arith.constant 1.000000e+00 : f32
    %311 = vector.broadcast %cst_66 : f32 to vector<2x32xf32>
    %312 = arith.addf %311, %310 : vector<2x32xf32>
    %313 = arith.divf %311, %312 : vector<2x32xf32>
    %314 = vector.extract_strided_slice %295 {offsets = [0, 64], sizes = [2, 32], strides = [1, 1]} : vector<2x96xf32> to vector<2x32xf32>
    %315 = vector.extract_strided_slice %297 {offsets = [0, 64], sizes = [2, 32], strides = [1, 1]} : vector<2x96xf32> to vector<2x32xf32>
    %316 = arith.mulf %305, %315 : vector<2x32xf32>
    %317 = arith.addf %314, %316 : vector<2x32xf32>
    %318 = math.tanh %317 : vector<2x32xf32>
    %cst_67 = arith.constant 1.000000e+00 : f32
    %319 = vector.broadcast %cst_67 : f32 to vector<2x32xf32>
    %320 = arith.subf %319, %313 : vector<2x32xf32>
    %321 = arith.mulf %320, %318 : vector<2x32xf32>
    %322 = arith.mulf %313, %246 : vector<2x32xf32>
    %323 = arith.addf %321, %322 : vector<2x32xf32>
    %324 = vector.broadcast %253 : vector<2x1xf32> to vector<2x32xf32>
    %325 = arith.mulf %324, %323 : vector<2x32xf32>
    %cst_68 = arith.constant 1.000000e+00 : f32
    %326 = vector.broadcast %cst_68 : f32 to vector<2x1xf32>
    %327 = arith.subf %326, %253 : vector<2x1xf32>
    %328 = vector.broadcast %327 : vector<2x1xf32> to vector<2x32xf32>
    %329 = arith.mulf %328, %246 : vector<2x32xf32>
    %330 = arith.addf %325, %329 : vector<2x32xf32>
    %331 = vector.broadcast %253 : vector<2x1xf32> to vector<2x32xf32>
    %332 = arith.mulf %331, %330 : vector<2x32xf32>
    %c0_69 = arith.constant 0 : index
    %c6_70 = arith.constant 6 : index
    %c32_71 = arith.constant 32 : index
    %333 = vector.load %arg11[%c0_69, %c6_70, %c32_71] : memref<2x8x64xf32, #tpu.memory_space<vmem>>, vector<2x1x32xf32>
    %334 = vector.shape_cast %333 : vector<2x1x32xf32> to vector<2x32xf32>
    %335 = vector.shape_cast %332 : vector<2x32xf32> to vector<2x1x32xf32>
    tpu.vector_store %arg11[%c0_69, %c6_70, %c32_71], %335 {strides = array<i32>} : memref<2x8x64xf32, #tpu.memory_space<vmem>>, vector<2x1x32xf32>,
    %336 = vector.extract_strided_slice %157 {offsets = [0, 2], sizes = [2, 1], strides = [1, 1]} : vector<2x8xf32> to vector<2x1xf32>
    %337 = vector.extract_strided_slice %157 {offsets = [0, 5], sizes = [2, 1], strides = [1, 1]} : vector<2x8xf32> to vector<2x1xf32>
    %338 = vector.extract_strided_slice %151 {offsets = [4, 0], sizes = [2, 96], strides = [1, 1]} : vector<16x192xf32> to vector<2x96xf32>
    %cst_72 = arith.constant dense<0.000000e+00> : vector<2x96xf32>
    %339 = tpu.matmul %289, %158, %cst_72 {dimension_numbers = #tpu.dot_dimension_numbers<[1], [0], [0], [1], [0, 0, 1, 1], [], []>} : vector<2x32xf32>, vector<32x96xf32>, vector<2x96xf32> -> vector<2x96xf32>
    %340 = arith.addf %339, %162 : vector<2x96xf32>
    %341 = vector.extract_strided_slice %338 {offsets = [0, 0], sizes = [2, 32], strides = [1, 1]} : vector<2x96xf32> to vector<2x32xf32>
    %342 = vector.extract_strided_slice %340 {offsets = [0, 0], sizes = [2, 32], strides = [1, 1]} : vector<2x96xf32> to vector<2x32xf32>
    %343 = arith.addf %341, %342 : vector<2x32xf32>
    %344 = arith.negf %343 : vector<2x32xf32>
    %345 = math.exp %344 : vector<2x32xf32>
    %cst_73 = arith.constant 1.000000e+00 : f32
    %346 = vector.broadcast %cst_73 : f32 to vector<2x32xf32>
    %347 = arith.addf %346, %345 : vector<2x32xf32>
    %348 = arith.divf %346, %347 : vector<2x32xf32>
    %349 = vector.extract_strided_slice %338 {offsets = [0, 32], sizes = [2, 32], strides = [1, 1]} : vector<2x96xf32> to vector<2x32xf32>
    %350 = vector.extract_strided_slice %340 {offsets = [0, 32], sizes = [2, 32], strides = [1, 1]} : vector<2x96xf32> to vector<2x32xf32>
    %351 = arith.addf %349, %350 : vector<2x32xf32>
    %352 = arith.negf %351 : vector<2x32xf32>
    %353 = math.exp %352 : vector<2x32xf32>
    %cst_74 = arith.constant 1.000000e+00 : f32
    %354 = vector.broadcast %cst_74 : f32 to vector<2x32xf32>
    %355 = arith.addf %354, %353 : vector<2x32xf32>
    %356 = arith.divf %354, %355 : vector<2x32xf32>
    %357 = vector.extract_strided_slice %338 {offsets = [0, 64], sizes = [2, 32], strides = [1, 1]} : vector<2x96xf32> to vector<2x32xf32>
    %358 = vector.extract_strided_slice %340 {offsets = [0, 64], sizes = [2, 32], strides = [1, 1]} : vector<2x96xf32> to vector<2x32xf32>
    %359 = arith.mulf %348, %358 : vector<2x32xf32>
    %360 = arith.addf %357, %359 : vector<2x32xf32>
    %361 = math.tanh %360 : vector<2x32xf32>
    %cst_75 = arith.constant 1.000000e+00 : f32
    %362 = vector.broadcast %cst_75 : f32 to vector<2x32xf32>
    %363 = arith.subf %362, %356 : vector<2x32xf32>
    %364 = arith.mulf %363, %361 : vector<2x32xf32>
    %365 = arith.mulf %356, %289 : vector<2x32xf32>
    %366 = arith.addf %364, %365 : vector<2x32xf32>
    %367 = vector.broadcast %336 : vector<2x1xf32> to vector<2x32xf32>
    %368 = arith.mulf %367, %366 : vector<2x32xf32>
    %cst_76 = arith.constant 1.000000e+00 : f32
    %369 = vector.broadcast %cst_76 : f32 to vector<2x1xf32>
    %370 = arith.subf %369, %336 : vector<2x1xf32>
    %371 = vector.broadcast %370 : vector<2x1xf32> to vector<2x32xf32>
    %372 = arith.mulf %371, %289 : vector<2x32xf32>
    %373 = arith.addf %368, %372 : vector<2x32xf32>
    %374 = vector.broadcast %336 : vector<2x1xf32> to vector<2x32xf32>
    %375 = arith.mulf %374, %373 : vector<2x32xf32>
    %c0_77 = arith.constant 0 : index
    %c2_78 = arith.constant 2 : index
    %c0_79 = arith.constant 0 : index
    %376 = vector.load %arg11[%c0_77, %c2_78, %c0_79] : memref<2x8x64xf32, #tpu.memory_space<vmem>>, vector<2x1x32xf32>
    %377 = vector.shape_cast %376 : vector<2x1x32xf32> to vector<2x32xf32>
    %378 = vector.shape_cast %375 : vector<2x32xf32> to vector<2x1x32xf32>
    tpu.vector_store %arg11[%c0_77, %c2_78, %c0_79], %378 {strides = array<i32>} : memref<2x8x64xf32, #tpu.memory_space<vmem>>, vector<2x1x32xf32>,
    %379 = vector.extract_strided_slice %151 {offsets = [10, 96], sizes = [2, 96], strides = [1, 1]} : vector<16x192xf32> to vector<2x96xf32>
    %cst_80 = arith.constant dense<0.000000e+00> : vector<2x96xf32>
    %380 = tpu.matmul %330, %159, %cst_80 {dimension_numbers = #tpu.dot_dimension_numbers<[1], [0], [0], [1], [0, 0, 1, 1], [], []>} : vector<2x32xf32>, vector<32x96xf32>, vector<2x96xf32> -> vector<2x96xf32>
    %381 = arith.addf %380, %165 : vector<2x96xf32>
    %382 = vector.extract_strided_slice %379 {offsets = [0, 0], sizes = [2, 32], strides = [1, 1]} : vector<2x96xf32> to vector<2x32xf32>
    %383 = vector.extract_strided_slice %381 {offsets = [0, 0], sizes = [2, 32], strides = [1, 1]} : vector<2x96xf32> to vector<2x32xf32>
    %384 = arith.addf %382, %383 : vector<2x32xf32>
    %385 = arith.negf %384 : vector<2x32xf32>
    %386 = math.exp %385 : vector<2x32xf32>
    %cst_81 = arith.constant 1.000000e+00 : f32
    %387 = vector.broadcast %cst_81 : f32 to vector<2x32xf32>
    %388 = arith.addf %387, %386 : vector<2x32xf32>
    %389 = arith.divf %387, %388 : vector<2x32xf32>
    %390 = vector.extract_strided_slice %379 {offsets = [0, 32], sizes = [2, 32], strides = [1, 1]} : vector<2x96xf32> to vector<2x32xf32>
    %391 = vector.extract_strided_slice %381 {offsets = [0, 32], sizes = [2, 32], strides = [1, 1]} : vector<2x96xf32> to vector<2x32xf32>
    %392 = arith.addf %390, %391 : vector<2x32xf32>
    %393 = arith.negf %392 : vector<2x32xf32>
    %394 = math.exp %393 : vector<2x32xf32>
    %cst_82 = arith.constant 1.000000e+00 : f32
    %395 = vector.broadcast %cst_82 : f32 to vector<2x32xf32>
    %396 = arith.addf %395, %394 : vector<2x32xf32>
    %397 = arith.divf %395, %396 : vector<2x32xf32>
    %398 = vector.extract_strided_slice %379 {offsets = [0, 64], sizes = [2, 32], strides = [1, 1]} : vector<2x96xf32> to vector<2x32xf32>
    %399 = vector.extract_strided_slice %381 {offsets = [0, 64], sizes = [2, 32], strides = [1, 1]} : vector<2x96xf32> to vector<2x32xf32>
    %400 = arith.mulf %389, %399 : vector<2x32xf32>
    %401 = arith.addf %398, %400 : vector<2x32xf32>
    %402 = math.tanh %401 : vector<2x32xf32>
    %cst_83 = arith.constant 1.000000e+00 : f32
    %403 = vector.broadcast %cst_83 : f32 to vector<2x32xf32>
    %404 = arith.subf %403, %397 : vector<2x32xf32>
    %405 = arith.mulf %404, %402 : vector<2x32xf32>
    %406 = arith.mulf %397, %330 : vector<2x32xf32>
    %407 = arith.addf %405, %406 : vector<2x32xf32>
    %408 = vector.broadcast %337 : vector<2x1xf32> to vector<2x32xf32>
    %409 = arith.mulf %408, %407 : vector<2x32xf32>
    %cst_84 = arith.constant 1.000000e+00 : f32
    %410 = vector.broadcast %cst_84 : f32 to vector<2x1xf32>
    %411 = arith.subf %410, %337 : vector<2x1xf32>
    %412 = vector.broadcast %411 : vector<2x1xf32> to vector<2x32xf32>
    %413 = arith.mulf %412, %330 : vector<2x32xf32>
    %414 = arith.addf %409, %413 : vector<2x32xf32>
    %415 = vector.broadcast %337 : vector<2x1xf32> to vector<2x32xf32>
    %416 = arith.mulf %415, %414 : vector<2x32xf32>
    %c0_85 = arith.constant 0 : index
    %c5_86 = arith.constant 5 : index
    %c32_87 = arith.constant 32 : index
    %417 = vector.load %arg11[%c0_85, %c5_86, %c32_87] : memref<2x8x64xf32, #tpu.memory_space<vmem>>, vector<2x1x32xf32>
    %418 = vector.shape_cast %417 : vector<2x1x32xf32> to vector<2x32xf32>
    %419 = vector.shape_cast %416 : vector<2x32xf32> to vector<2x1x32xf32>
    tpu.vector_store %arg11[%c0_85, %c5_86, %c32_87], %419 {strides = array<i32>} : memref<2x8x64xf32, #tpu.memory_space<vmem>>, vector<2x1x32xf32>,
    %420 = vector.extract_strided_slice %157 {offsets = [0, 3], sizes = [2, 1], strides = [1, 1]} : vector<2x8xf32> to vector<2x1xf32>
    %421 = vector.extract_strided_slice %157 {offsets = [0, 4], sizes = [2, 1], strides = [1, 1]} : vector<2x8xf32> to vector<2x1xf32>
    %422 = vector.extract_strided_slice %151 {offsets = [6, 0], sizes = [2, 96], strides = [1, 1]} : vector<16x192xf32> to vector<2x96xf32>
    %cst_88 = arith.constant dense<0.000000e+00> : vector<2x96xf32>
    %423 = tpu.matmul %373, %158, %cst_88 {dimension_numbers = #tpu.dot_dimension_numbers<[1], [0], [0], [1], [0, 0, 1, 1], [], []>} : vector<2x32xf32>, vector<32x96xf32>, vector<2x96xf32> -> vector<2x96xf32>
    %424 = arith.addf %423, %162 : vector<2x96xf32>
    %425 = vector.extract_strided_slice %422 {offsets = [0, 0], sizes = [2, 32], strides = [1, 1]} : vector<2x96xf32> to vector<2x32xf32>
    %426 = vector.extract_strided_slice %424 {offsets = [0, 0], sizes = [2, 32], strides = [1, 1]} : vector<2x96xf32> to vector<2x32xf32>
    %427 = arith.addf %425, %426 : vector<2x32xf32>
    %428 = arith.negf %427 : vector<2x32xf32>
    %429 = math.exp %428 : vector<2x32xf32>
    %cst_89 = arith.constant 1.000000e+00 : f32
    %430 = vector.broadcast %cst_89 : f32 to vector<2x32xf32>
    %431 = arith.addf %430, %429 : vector<2x32xf32>
    %432 = arith.divf %430, %431 : vector<2x32xf32>
    %433 = vector.extract_strided_slice %422 {offsets = [0, 32], sizes = [2, 32], strides = [1, 1]} : vector<2x96xf32> to vector<2x32xf32>
    %434 = vector.extract_strided_slice %424 {offsets = [0, 32], sizes = [2, 32], strides = [1, 1]} : vector<2x96xf32> to vector<2x32xf32>
    %435 = arith.addf %433, %434 : vector<2x32xf32>
    %436 = arith.negf %435 : vector<2x32xf32>
    %437 = math.exp %436 : vector<2x32xf32>
    %cst_90 = arith.constant 1.000000e+00 : f32
    %438 = vector.broadcast %cst_90 : f32 to vector<2x32xf32>
    %439 = arith.addf %438, %437 : vector<2x32xf32>
    %440 = arith.divf %438, %439 : vector<2x32xf32>
    %441 = vector.extract_strided_slice %422 {offsets = [0, 64], sizes = [2, 32], strides = [1, 1]} : vector<2x96xf32> to vector<2x32xf32>
    %442 = vector.extract_strided_slice %424 {offsets = [0, 64], sizes = [2, 32], strides = [1, 1]} : vector<2x96xf32> to vector<2x32xf32>
    %443 = arith.mulf %432, %442 : vector<2x32xf32>
    %444 = arith.addf %441, %443 : vector<2x32xf32>
    %445 = math.tanh %444 : vector<2x32xf32>
    %cst_91 = arith.constant 1.000000e+00 : f32
    %446 = vector.broadcast %cst_91 : f32 to vector<2x32xf32>
    %447 = arith.subf %446, %440 : vector<2x32xf32>
    %448 = arith.mulf %447, %445 : vector<2x32xf32>
    %449 = arith.mulf %440, %373 : vector<2x32xf32>
    %450 = arith.addf %448, %449 : vector<2x32xf32>
    %451 = vector.broadcast %420 : vector<2x1xf32> to vector<2x32xf32>
    %452 = arith.mulf %451, %450 : vector<2x32xf32>
    %cst_92 = arith.constant 1.000000e+00 : f32
    %453 = vector.broadcast %cst_92 : f32 to vector<2x1xf32>
    %454 = arith.subf %453, %420 : vector<2x1xf32>
    %455 = vector.broadcast %454 : vector<2x1xf32> to vector<2x32xf32>
    %456 = arith.mulf %455, %373 : vector<2x32xf32>
    %457 = arith.addf %452, %456 : vector<2x32xf32>
    %458 = vector.broadcast %420 : vector<2x1xf32> to vector<2x32xf32>
    %459 = arith.mulf %458, %457 : vector<2x32xf32>
    %c0_93 = arith.constant 0 : index
    %c3_94 = arith.constant 3 : index
    %c0_95 = arith.constant 0 : index
    %460 = vector.load %arg11[%c0_93, %c3_94, %c0_95] : memref<2x8x64xf32, #tpu.memory_space<vmem>>, vector<2x1x32xf32>
    %461 = vector.shape_cast %460 : vector<2x1x32xf32> to vector<2x32xf32>
    %462 = vector.shape_cast %459 : vector<2x32xf32> to vector<2x1x32xf32>
    tpu.vector_store %arg11[%c0_93, %c3_94, %c0_95], %462 {strides = array<i32>} : memref<2x8x64xf32, #tpu.memory_space<vmem>>, vector<2x1x32xf32>,
    %463 = vector.extract_strided_slice %151 {offsets = [8, 96], sizes = [2, 96], strides = [1, 1]} : vector<16x192xf32> to vector<2x96xf32>
    %cst_96 = arith.constant dense<0.000000e+00> : vector<2x96xf32>
    %464 = tpu.matmul %414, %159, %cst_96 {dimension_numbers = #tpu.dot_dimension_numbers<[1], [0], [0], [1], [0, 0, 1, 1], [], []>} : vector<2x32xf32>, vector<32x96xf32>, vector<2x96xf32> -> vector<2x96xf32>
    %465 = arith.addf %464, %165 : vector<2x96xf32>
    %466 = vector.extract_strided_slice %463 {offsets = [0, 0], sizes = [2, 32], strides = [1, 1]} : vector<2x96xf32> to vector<2x32xf32>
    %467 = vector.extract_strided_slice %465 {offsets = [0, 0], sizes = [2, 32], strides = [1, 1]} : vector<2x96xf32> to vector<2x32xf32>
    %468 = arith.addf %466, %467 : vector<2x32xf32>
    %469 = arith.negf %468 : vector<2x32xf32>
    %470 = math.exp %469 : vector<2x32xf32>
    %cst_97 = arith.constant 1.000000e+00 : f32
    %471 = vector.broadcast %cst_97 : f32 to vector<2x32xf32>
    %472 = arith.addf %471, %470 : vector<2x32xf32>
    %473 = arith.divf %471, %472 : vector<2x32xf32>
    %474 = vector.extract_strided_slice %463 {offsets = [0, 32], sizes = [2, 32], strides = [1, 1]} : vector<2x96xf32> to vector<2x32xf32>
    %475 = vector.extract_strided_slice %465 {offsets = [0, 32], sizes = [2, 32], strides = [1, 1]} : vector<2x96xf32> to vector<2x32xf32>
    %476 = arith.addf %474, %475 : vector<2x32xf32>
    %477 = arith.negf %476 : vector<2x32xf32>
    %478 = math.exp %477 : vector<2x32xf32>
    %cst_98 = arith.constant 1.000000e+00 : f32
    %479 = vector.broadcast %cst_98 : f32 to vector<2x32xf32>
    %480 = arith.addf %479, %478 : vector<2x32xf32>
    %481 = arith.divf %479, %480 : vector<2x32xf32>
    %482 = vector.extract_strided_slice %463 {offsets = [0, 64], sizes = [2, 32], strides = [1, 1]} : vector<2x96xf32> to vector<2x32xf32>
    %483 = vector.extract_strided_slice %465 {offsets = [0, 64], sizes = [2, 32], strides = [1, 1]} : vector<2x96xf32> to vector<2x32xf32>
    %484 = arith.mulf %473, %483 : vector<2x32xf32>
    %485 = arith.addf %482, %484 : vector<2x32xf32>
    %486 = math.tanh %485 : vector<2x32xf32>
    %cst_99 = arith.constant 1.000000e+00 : f32
    %487 = vector.broadcast %cst_99 : f32 to vector<2x32xf32>
    %488 = arith.subf %487, %481 : vector<2x32xf32>
    %489 = arith.mulf %488, %486 : vector<2x32xf32>
    %490 = arith.mulf %481, %414 : vector<2x32xf32>
    %491 = arith.addf %489, %490 : vector<2x32xf32>
    %492 = vector.broadcast %421 : vector<2x1xf32> to vector<2x32xf32>
    %493 = arith.mulf %492, %491 : vector<2x32xf32>
    %cst_100 = arith.constant 1.000000e+00 : f32
    %494 = vector.broadcast %cst_100 : f32 to vector<2x1xf32>
    %495 = arith.subf %494, %421 : vector<2x1xf32>
    %496 = vector.broadcast %495 : vector<2x1xf32> to vector<2x32xf32>
    %497 = arith.mulf %496, %414 : vector<2x32xf32>
    %498 = arith.addf %493, %497 : vector<2x32xf32>
    %499 = vector.broadcast %421 : vector<2x1xf32> to vector<2x32xf32>
    %500 = arith.mulf %499, %498 : vector<2x32xf32>
    %c0_101 = arith.constant 0 : index
    %c4_102 = arith.constant 4 : index
    %c32_103 = arith.constant 32 : index
    %501 = vector.load %arg11[%c0_101, %c4_102, %c32_103] : memref<2x8x64xf32, #tpu.memory_space<vmem>>, vector<2x1x32xf32>
    %502 = vector.shape_cast %501 : vector<2x1x32xf32> to vector<2x32xf32>
    %503 = vector.shape_cast %500 : vector<2x32xf32> to vector<2x1x32xf32>
    tpu.vector_store %arg11[%c0_101, %c4_102, %c32_103], %503 {strides = array<i32>} : memref<2x8x64xf32, #tpu.memory_space<vmem>>, vector<2x1x32xf32>,
    %504 = vector.extract_strided_slice %157 {offsets = [0, 4], sizes = [2, 1], strides = [1, 1]} : vector<2x8xf32> to vector<2x1xf32>
    %505 = vector.extract_strided_slice %157 {offsets = [0, 3], sizes = [2, 1], strides = [1, 1]} : vector<2x8xf32> to vector<2x1xf32>
    %506 = vector.extract_strided_slice %151 {offsets = [8, 0], sizes = [2, 96], strides = [1, 1]} : vector<16x192xf32> to vector<2x96xf32>
    %cst_104 = arith.constant dense<0.000000e+00> : vector<2x96xf32>
    %507 = tpu.matmul %457, %158, %cst_104 {dimension_numbers = #tpu.dot_dimension_numbers<[1], [0], [0], [1], [0, 0, 1, 1], [], []>} : vector<2x32xf32>, vector<32x96xf32>, vector<2x96xf32> -> vector<2x96xf32>
    %508 = arith.addf %507, %162 : vector<2x96xf32>
    %509 = vector.extract_strided_slice %506 {offsets = [0, 0], sizes = [2, 32], strides = [1, 1]} : vector<2x96xf32> to vector<2x32xf32>
    %510 = vector.extract_strided_slice %508 {offsets = [0, 0], sizes = [2, 32], strides = [1, 1]} : vector<2x96xf32> to vector<2x32xf32>
    %511 = arith.addf %509, %510 : vector<2x32xf32>
    %512 = arith.negf %511 : vector<2x32xf32>
    %513 = math.exp %512 : vector<2x32xf32>
    %cst_105 = arith.constant 1.000000e+00 : f32
    %514 = vector.broadcast %cst_105 : f32 to vector<2x32xf32>
    %515 = arith.addf %514, %513 : vector<2x32xf32>
    %516 = arith.divf %514, %515 : vector<2x32xf32>
    %517 = vector.extract_strided_slice %506 {offsets = [0, 32], sizes = [2, 32], strides = [1, 1]} : vector<2x96xf32> to vector<2x32xf32>
    %518 = vector.extract_strided_slice %508 {offsets = [0, 32], sizes = [2, 32], strides = [1, 1]} : vector<2x96xf32> to vector<2x32xf32>
    %519 = arith.addf %517, %518 : vector<2x32xf32>
    %520 = arith.negf %519 : vector<2x32xf32>
    %521 = math.exp %520 : vector<2x32xf32>
    %cst_106 = arith.constant 1.000000e+00 : f32
    %522 = vector.broadcast %cst_106 : f32 to vector<2x32xf32>
    %523 = arith.addf %522, %521 : vector<2x32xf32>
    %524 = arith.divf %522, %523 : vector<2x32xf32>
    %525 = vector.extract_strided_slice %506 {offsets = [0, 64], sizes = [2, 32], strides = [1, 1]} : vector<2x96xf32> to vector<2x32xf32>
    %526 = vector.extract_strided_slice %508 {offsets = [0, 64], sizes = [2, 32], strides = [1, 1]} : vector<2x96xf32> to vector<2x32xf32>
    %527 = arith.mulf %516, %526 : vector<2x32xf32>
    %528 = arith.addf %525, %527 : vector<2x32xf32>
    %529 = math.tanh %528 : vector<2x32xf32>
    %cst_107 = arith.constant 1.000000e+00 : f32
    %530 = vector.broadcast %cst_107 : f32 to vector<2x32xf32>
    %531 = arith.subf %530, %524 : vector<2x32xf32>
    %532 = arith.mulf %531, %529 : vector<2x32xf32>
    %533 = arith.mulf %524, %457 : vector<2x32xf32>
    %534 = arith.addf %532, %533 : vector<2x32xf32>
    %535 = vector.broadcast %504 : vector<2x1xf32> to vector<2x32xf32>
    %536 = arith.mulf %535, %534 : vector<2x32xf32>
    %cst_108 = arith.constant 1.000000e+00 : f32
    %537 = vector.broadcast %cst_108 : f32 to vector<2x1xf32>
    %538 = arith.subf %537, %504 : vector<2x1xf32>
    %539 = vector.broadcast %538 : vector<2x1xf32> to vector<2x32xf32>
    %540 = arith.mulf %539, %457 : vector<2x32xf32>
    %541 = arith.addf %536, %540 : vector<2x32xf32>
    %542 = vector.broadcast %504 : vector<2x1xf32> to vector<2x32xf32>
    %543 = arith.mulf %542, %541 : vector<2x32xf32>
    %c0_109 = arith.constant 0 : index
    %c4_110 = arith.constant 4 : index
    %c0_111 = arith.constant 0 : index
    %544 = vector.load %arg11[%c0_109, %c4_110, %c0_111] : memref<2x8x64xf32, #tpu.memory_space<vmem>>, vector<2x1x32xf32>
    %545 = vector.shape_cast %544 : vector<2x1x32xf32> to vector<2x32xf32>
    %546 = vector.shape_cast %543 : vector<2x32xf32> to vector<2x1x32xf32>
    tpu.vector_store %arg11[%c0_109, %c4_110, %c0_111], %546 {strides = array<i32>} : memref<2x8x64xf32, #tpu.memory_space<vmem>>, vector<2x1x32xf32>,
    %547 = vector.extract_strided_slice %151 {offsets = [6, 96], sizes = [2, 96], strides = [1, 1]} : vector<16x192xf32> to vector<2x96xf32>
    %cst_112 = arith.constant dense<0.000000e+00> : vector<2x96xf32>
    %548 = tpu.matmul %498, %159, %cst_112 {dimension_numbers = #tpu.dot_dimension_numbers<[1], [0], [0], [1], [0, 0, 1, 1], [], []>} : vector<2x32xf32>, vector<32x96xf32>, vector<2x96xf32> -> vector<2x96xf32>
    %549 = arith.addf %548, %165 : vector<2x96xf32>
    %550 = vector.extract_strided_slice %547 {offsets = [0, 0], sizes = [2, 32], strides = [1, 1]} : vector<2x96xf32> to vector<2x32xf32>
    %551 = vector.extract_strided_slice %549 {offsets = [0, 0], sizes = [2, 32], strides = [1, 1]} : vector<2x96xf32> to vector<2x32xf32>
    %552 = arith.addf %550, %551 : vector<2x32xf32>
    %553 = arith.negf %552 : vector<2x32xf32>
    %554 = math.exp %553 : vector<2x32xf32>
    %cst_113 = arith.constant 1.000000e+00 : f32
    %555 = vector.broadcast %cst_113 : f32 to vector<2x32xf32>
    %556 = arith.addf %555, %554 : vector<2x32xf32>
    %557 = arith.divf %555, %556 : vector<2x32xf32>
    %558 = vector.extract_strided_slice %547 {offsets = [0, 32], sizes = [2, 32], strides = [1, 1]} : vector<2x96xf32> to vector<2x32xf32>
    %559 = vector.extract_strided_slice %549 {offsets = [0, 32], sizes = [2, 32], strides = [1, 1]} : vector<2x96xf32> to vector<2x32xf32>
    %560 = arith.addf %558, %559 : vector<2x32xf32>
    %561 = arith.negf %560 : vector<2x32xf32>
    %562 = math.exp %561 : vector<2x32xf32>
    %cst_114 = arith.constant 1.000000e+00 : f32
    %563 = vector.broadcast %cst_114 : f32 to vector<2x32xf32>
    %564 = arith.addf %563, %562 : vector<2x32xf32>
    %565 = arith.divf %563, %564 : vector<2x32xf32>
    %566 = vector.extract_strided_slice %547 {offsets = [0, 64], sizes = [2, 32], strides = [1, 1]} : vector<2x96xf32> to vector<2x32xf32>
    %567 = vector.extract_strided_slice %549 {offsets = [0, 64], sizes = [2, 32], strides = [1, 1]} : vector<2x96xf32> to vector<2x32xf32>
    %568 = arith.mulf %557, %567 : vector<2x32xf32>
    %569 = arith.addf %566, %568 : vector<2x32xf32>
    %570 = math.tanh %569 : vector<2x32xf32>
    %cst_115 = arith.constant 1.000000e+00 : f32
    %571 = vector.broadcast %cst_115 : f32 to vector<2x32xf32>
    %572 = arith.subf %571, %565 : vector<2x32xf32>
    %573 = arith.mulf %572, %570 : vector<2x32xf32>
    %574 = arith.mulf %565, %498 : vector<2x32xf32>
    %575 = arith.addf %573, %574 : vector<2x32xf32>
    %576 = vector.broadcast %505 : vector<2x1xf32> to vector<2x32xf32>
    %577 = arith.mulf %576, %575 : vector<2x32xf32>
    %cst_116 = arith.constant 1.000000e+00 : f32
    %578 = vector.broadcast %cst_116 : f32 to vector<2x1xf32>
    %579 = arith.subf %578, %505 : vector<2x1xf32>
    %580 = vector.broadcast %579 : vector<2x1xf32> to vector<2x32xf32>
    %581 = arith.mulf %580, %498 : vector<2x32xf32>
    %582 = arith.addf %577, %581 : vector<2x32xf32>
    %583 = vector.broadcast %505 : vector<2x1xf32> to vector<2x32xf32>
    %584 = arith.mulf %583, %582 : vector<2x32xf32>
    %c0_117 = arith.constant 0 : index
    %c3_118 = arith.constant 3 : index
    %c32_119 = arith.constant 32 : index
    %585 = vector.load %arg11[%c0_117, %c3_118, %c32_119] : memref<2x8x64xf32, #tpu.memory_space<vmem>>, vector<2x1x32xf32>
    %586 = vector.shape_cast %585 : vector<2x1x32xf32> to vector<2x32xf32>
    %587 = vector.shape_cast %584 : vector<2x32xf32> to vector<2x1x32xf32>
    tpu.vector_store %arg11[%c0_117, %c3_118, %c32_119], %587 {strides = array<i32>} : memref<2x8x64xf32, #tpu.memory_space<vmem>>, vector<2x1x32xf32>,
    %588 = vector.extract_strided_slice %157 {offsets = [0, 5], sizes = [2, 1], strides = [1, 1]} : vector<2x8xf32> to vector<2x1xf32>
    %589 = vector.extract_strided_slice %157 {offsets = [0, 2], sizes = [2, 1], strides = [1, 1]} : vector<2x8xf32> to vector<2x1xf32>
    %590 = vector.extract_strided_slice %151 {offsets = [10, 0], sizes = [2, 96], strides = [1, 1]} : vector<16x192xf32> to vector<2x96xf32>
    %cst_120 = arith.constant dense<0.000000e+00> : vector<2x96xf32>
    %591 = tpu.matmul %541, %158, %cst_120 {dimension_numbers = #tpu.dot_dimension_numbers<[1], [0], [0], [1], [0, 0, 1, 1], [], []>} : vector<2x32xf32>, vector<32x96xf32>, vector<2x96xf32> -> vector<2x96xf32>
    %592 = arith.addf %591, %162 : vector<2x96xf32>
    %593 = vector.extract_strided_slice %590 {offsets = [0, 0], sizes = [2, 32], strides = [1, 1]} : vector<2x96xf32> to vector<2x32xf32>
    %594 = vector.extract_strided_slice %592 {offsets = [0, 0], sizes = [2, 32], strides = [1, 1]} : vector<2x96xf32> to vector<2x32xf32>
    %595 = arith.addf %593, %594 : vector<2x32xf32>
    %596 = arith.negf %595 : vector<2x32xf32>
    %597 = math.exp %596 : vector<2x32xf32>
    %cst_121 = arith.constant 1.000000e+00 : f32
    %598 = vector.broadcast %cst_121 : f32 to vector<2x32xf32>
    %599 = arith.addf %598, %597 : vector<2x32xf32>
    %600 = arith.divf %598, %599 : vector<2x32xf32>
    %601 = vector.extract_strided_slice %590 {offsets = [0, 32], sizes = [2, 32], strides = [1, 1]} : vector<2x96xf32> to vector<2x32xf32>
    %602 = vector.extract_strided_slice %592 {offsets = [0, 32], sizes = [2, 32], strides = [1, 1]} : vector<2x96xf32> to vector<2x32xf32>
    %603 = arith.addf %601, %602 : vector<2x32xf32>
    %604 = arith.negf %603 : vector<2x32xf32>
    %605 = math.exp %604 : vector<2x32xf32>
    %cst_122 = arith.constant 1.000000e+00 : f32
    %606 = vector.broadcast %cst_122 : f32 to vector<2x32xf32>
    %607 = arith.addf %606, %605 : vector<2x32xf32>
    %608 = arith.divf %606, %607 : vector<2x32xf32>
    %609 = vector.extract_strided_slice %590 {offsets = [0, 64], sizes = [2, 32], strides = [1, 1]} : vector<2x96xf32> to vector<2x32xf32>
    %610 = vector.extract_strided_slice %592 {offsets = [0, 64], sizes = [2, 32], strides = [1, 1]} : vector<2x96xf32> to vector<2x32xf32>
    %611 = arith.mulf %600, %610 : vector<2x32xf32>
    %612 = arith.addf %609, %611 : vector<2x32xf32>
    %613 = math.tanh %612 : vector<2x32xf32>
    %cst_123 = arith.constant 1.000000e+00 : f32
    %614 = vector.broadcast %cst_123 : f32 to vector<2x32xf32>
    %615 = arith.subf %614, %608 : vector<2x32xf32>
    %616 = arith.mulf %615, %613 : vector<2x32xf32>
    %617 = arith.mulf %608, %541 : vector<2x32xf32>
    %618 = arith.addf %616, %617 : vector<2x32xf32>
    %619 = vector.broadcast %588 : vector<2x1xf32> to vector<2x32xf32>
    %620 = arith.mulf %619, %618 : vector<2x32xf32>
    %cst_124 = arith.constant 1.000000e+00 : f32
    %621 = vector.broadcast %cst_124 : f32 to vector<2x1xf32>
    %622 = arith.subf %621, %588 : vector<2x1xf32>
    %623 = vector.broadcast %622 : vector<2x1xf32> to vector<2x32xf32>
    %624 = arith.mulf %623, %541 : vector<2x32xf32>
    %625 = arith.addf %620, %624 : vector<2x32xf32>
    %626 = vector.broadcast %588 : vector<2x1xf32> to vector<2x32xf32>
    %627 = arith.mulf %626, %625 : vector<2x32xf32>
    %c0_125 = arith.constant 0 : index
    %c5_126 = arith.constant 5 : index
    %c0_127 = arith.constant 0 : index
    %628 = vector.load %arg11[%c0_125, %c5_126, %c0_127] : memref<2x8x64xf32, #tpu.memory_space<vmem>>, vector<2x1x32xf32>
    %629 = vector.shape_cast %628 : vector<2x1x32xf32> to vector<2x32xf32>
    %630 = vector.shape_cast %627 : vector<2x32xf32> to vector<2x1x32xf32>
    tpu.vector_store %arg11[%c0_125, %c5_126, %c0_127], %630 {strides = array<i32>} : memref<2x8x64xf32, #tpu.memory_space<vmem>>, vector<2x1x32xf32>,
    %631 = vector.extract_strided_slice %151 {offsets = [4, 96], sizes = [2, 96], strides = [1, 1]} : vector<16x192xf32> to vector<2x96xf32>
    %cst_128 = arith.constant dense<0.000000e+00> : vector<2x96xf32>
    %632 = tpu.matmul %582, %159, %cst_128 {dimension_numbers = #tpu.dot_dimension_numbers<[1], [0], [0], [1], [0, 0, 1, 1], [], []>} : vector<2x32xf32>, vector<32x96xf32>, vector<2x96xf32> -> vector<2x96xf32>
    %633 = arith.addf %632, %165 : vector<2x96xf32>
    %634 = vector.extract_strided_slice %631 {offsets = [0, 0], sizes = [2, 32], strides = [1, 1]} : vector<2x96xf32> to vector<2x32xf32>
    %635 = vector.extract_strided_slice %633 {offsets = [0, 0], sizes = [2, 32], strides = [1, 1]} : vector<2x96xf32> to vector<2x32xf32>
    %636 = arith.addf %634, %635 : vector<2x32xf32>
    %637 = arith.negf %636 : vector<2x32xf32>
    %638 = math.exp %637 : vector<2x32xf32>
    %cst_129 = arith.constant 1.000000e+00 : f32
    %639 = vector.broadcast %cst_129 : f32 to vector<2x32xf32>
    %640 = arith.addf %639, %638 : vector<2x32xf32>
    %641 = arith.divf %639, %640 : vector<2x32xf32>
    %642 = vector.extract_strided_slice %631 {offsets = [0, 32], sizes = [2, 32], strides = [1, 1]} : vector<2x96xf32> to vector<2x32xf32>
    %643 = vector.extract_strided_slice %633 {offsets = [0, 32], sizes = [2, 32], strides = [1, 1]} : vector<2x96xf32> to vector<2x32xf32>
    %644 = arith.addf %642, %643 : vector<2x32xf32>
    %645 = arith.negf %644 : vector<2x32xf32>
    %646 = math.exp %645 : vector<2x32xf32>
    %cst_130 = arith.constant 1.000000e+00 : f32
    %647 = vector.broadcast %cst_130 : f32 to vector<2x32xf32>
    %648 = arith.addf %647, %646 : vector<2x32xf32>
    %649 = arith.divf %647, %648 : vector<2x32xf32>
    %650 = vector.extract_strided_slice %631 {offsets = [0, 64], sizes = [2, 32], strides = [1, 1]} : vector<2x96xf32> to vector<2x32xf32>
    %651 = vector.extract_strided_slice %633 {offsets = [0, 64], sizes = [2, 32], strides = [1, 1]} : vector<2x96xf32> to vector<2x32xf32>
    %652 = arith.mulf %641, %651 : vector<2x32xf32>
    %653 = arith.addf %650, %652 : vector<2x32xf32>
    %654 = math.tanh %653 : vector<2x32xf32>
    %cst_131 = arith.constant 1.000000e+00 : f32
    %655 = vector.broadcast %cst_131 : f32 to vector<2x32xf32>
    %656 = arith.subf %655, %649 : vector<2x32xf32>
    %657 = arith.mulf %656, %654 : vector<2x32xf32>
    %658 = arith.mulf %649, %582 : vector<2x32xf32>
    %659 = arith.addf %657, %658 : vector<2x32xf32>
    %660 = vector.broadcast %589 : vector<2x1xf32> to vector<2x32xf32>
    %661 = arith.mulf %660, %659 : vector<2x32xf32>
    %cst_132 = arith.constant 1.000000e+00 : f32
    %662 = vector.broadcast %cst_132 : f32 to vector<2x1xf32>
    %663 = arith.subf %662, %589 : vector<2x1xf32>
    %664 = vector.broadcast %663 : vector<2x1xf32> to vector<2x32xf32>
    %665 = arith.mulf %664, %582 : vector<2x32xf32>
    %666 = arith.addf %661, %665 : vector<2x32xf32>
    %667 = vector.broadcast %589 : vector<2x1xf32> to vector<2x32xf32>
    %668 = arith.mulf %667, %666 : vector<2x32xf32>
    %c0_133 = arith.constant 0 : index
    %c2_134 = arith.constant 2 : index
    %c32_135 = arith.constant 32 : index
    %669 = vector.load %arg11[%c0_133, %c2_134, %c32_135] : memref<2x8x64xf32, #tpu.memory_space<vmem>>, vector<2x1x32xf32>
    %670 = vector.shape_cast %669 : vector<2x1x32xf32> to vector<2x32xf32>
    %671 = vector.shape_cast %668 : vector<2x32xf32> to vector<2x1x32xf32>
    tpu.vector_store %arg11[%c0_133, %c2_134, %c32_135], %671 {strides = array<i32>} : memref<2x8x64xf32, #tpu.memory_space<vmem>>, vector<2x1x32xf32>,
    %672 = vector.extract_strided_slice %157 {offsets = [0, 6], sizes = [2, 1], strides = [1, 1]} : vector<2x8xf32> to vector<2x1xf32>
    %673 = vector.extract_strided_slice %157 {offsets = [0, 1], sizes = [2, 1], strides = [1, 1]} : vector<2x8xf32> to vector<2x1xf32>
    %674 = vector.extract_strided_slice %151 {offsets = [12, 0], sizes = [2, 96], strides = [1, 1]} : vector<16x192xf32> to vector<2x96xf32>
    %cst_136 = arith.constant dense<0.000000e+00> : vector<2x96xf32>
    %675 = tpu.matmul %625, %158, %cst_136 {dimension_numbers = #tpu.dot_dimension_numbers<[1], [0], [0], [1], [0, 0, 1, 1], [], []>} : vector<2x32xf32>, vector<32x96xf32>, vector<2x96xf32> -> vector<2x96xf32>
    %676 = arith.addf %675, %162 : vector<2x96xf32>
    %677 = vector.extract_strided_slice %674 {offsets = [0, 0], sizes = [2, 32], strides = [1, 1]} : vector<2x96xf32> to vector<2x32xf32>
    %678 = vector.extract_strided_slice %676 {offsets = [0, 0], sizes = [2, 32], strides = [1, 1]} : vector<2x96xf32> to vector<2x32xf32>
    %679 = arith.addf %677, %678 : vector<2x32xf32>
    %680 = arith.negf %679 : vector<2x32xf32>
    %681 = math.exp %680 : vector<2x32xf32>
    %cst_137 = arith.constant 1.000000e+00 : f32
    %682 = vector.broadcast %cst_137 : f32 to vector<2x32xf32>
    %683 = arith.addf %682, %681 : vector<2x32xf32>
    %684 = arith.divf %682, %683 : vector<2x32xf32>
    %685 = vector.extract_strided_slice %674 {offsets = [0, 32], sizes = [2, 32], strides = [1, 1]} : vector<2x96xf32> to vector<2x32xf32>
    %686 = vector.extract_strided_slice %676 {offsets = [0, 32], sizes = [2, 32], strides = [1, 1]} : vector<2x96xf32> to vector<2x32xf32>
    %687 = arith.addf %685, %686 : vector<2x32xf32>
    %688 = arith.negf %687 : vector<2x32xf32>
    %689 = math.exp %688 : vector<2x32xf32>
    %cst_138 = arith.constant 1.000000e+00 : f32
    %690 = vector.broadcast %cst_138 : f32 to vector<2x32xf32>
    %691 = arith.addf %690, %689 : vector<2x32xf32>
    %692 = arith.divf %690, %691 : vector<2x32xf32>
    %693 = vector.extract_strided_slice %674 {offsets = [0, 64], sizes = [2, 32], strides = [1, 1]} : vector<2x96xf32> to vector<2x32xf32>
    %694 = vector.extract_strided_slice %676 {offsets = [0, 64], sizes = [2, 32], strides = [1, 1]} : vector<2x96xf32> to vector<2x32xf32>
    %695 = arith.mulf %684, %694 : vector<2x32xf32>
    %696 = arith.addf %693, %695 : vector<2x32xf32>
    %697 = math.tanh %696 : vector<2x32xf32>
    %cst_139 = arith.constant 1.000000e+00 : f32
    %698 = vector.broadcast %cst_139 : f32 to vector<2x32xf32>
    %699 = arith.subf %698, %692 : vector<2x32xf32>
    %700 = arith.mulf %699, %697 : vector<2x32xf32>
    %701 = arith.mulf %692, %625 : vector<2x32xf32>
    %702 = arith.addf %700, %701 : vector<2x32xf32>
    %703 = vector.broadcast %672 : vector<2x1xf32> to vector<2x32xf32>
    %704 = arith.mulf %703, %702 : vector<2x32xf32>
    %cst_140 = arith.constant 1.000000e+00 : f32
    %705 = vector.broadcast %cst_140 : f32 to vector<2x1xf32>
    %706 = arith.subf %705, %672 : vector<2x1xf32>
    %707 = vector.broadcast %706 : vector<2x1xf32> to vector<2x32xf32>
    %708 = arith.mulf %707, %625 : vector<2x32xf32>
    %709 = arith.addf %704, %708 : vector<2x32xf32>
    %710 = vector.broadcast %672 : vector<2x1xf32> to vector<2x32xf32>
    %711 = arith.mulf %710, %709 : vector<2x32xf32>
    %c0_141 = arith.constant 0 : index
    %c6_142 = arith.constant 6 : index
    %c0_143 = arith.constant 0 : index
    %712 = vector.load %arg11[%c0_141, %c6_142, %c0_143] : memref<2x8x64xf32, #tpu.memory_space<vmem>>, vector<2x1x32xf32>
    %713 = vector.shape_cast %712 : vector<2x1x32xf32> to vector<2x32xf32>
    %714 = vector.shape_cast %711 : vector<2x32xf32> to vector<2x1x32xf32>
    tpu.vector_store %arg11[%c0_141, %c6_142, %c0_143], %714 {strides = array<i32>} : memref<2x8x64xf32, #tpu.memory_space<vmem>>, vector<2x1x32xf32>,
    %715 = vector.extract_strided_slice %151 {offsets = [2, 96], sizes = [2, 96], strides = [1, 1]} : vector<16x192xf32> to vector<2x96xf32>
    %cst_144 = arith.constant dense<0.000000e+00> : vector<2x96xf32>
    %716 = tpu.matmul %666, %159, %cst_144 {dimension_numbers = #tpu.dot_dimension_numbers<[1], [0], [0], [1], [0, 0, 1, 1], [], []>} : vector<2x32xf32>, vector<32x96xf32>, vector<2x96xf32> -> vector<2x96xf32>
    %717 = arith.addf %716, %165 : vector<2x96xf32>
    %718 = vector.extract_strided_slice %715 {offsets = [0, 0], sizes = [2, 32], strides = [1, 1]} : vector<2x96xf32> to vector<2x32xf32>
    %719 = vector.extract_strided_slice %717 {offsets = [0, 0], sizes = [2, 32], strides = [1, 1]} : vector<2x96xf32> to vector<2x32xf32>
    %720 = arith.addf %718, %719 : vector<2x32xf32>
    %721 = arith.negf %720 : vector<2x32xf32>
    %722 = math.exp %721 : vector<2x32xf32>
    %cst_145 = arith.constant 1.000000e+00 : f32
    %723 = vector.broadcast %cst_145 : f32 to vector<2x32xf32>
    %724 = arith.addf %723, %722 : vector<2x32xf32>
    %725 = arith.divf %723, %724 : vector<2x32xf32>
    %726 = vector.extract_strided_slice %715 {offsets = [0, 32], sizes = [2, 32], strides = [1, 1]} : vector<2x96xf32> to vector<2x32xf32>
    %727 = vector.extract_strided_slice %717 {offsets = [0, 32], sizes = [2, 32], strides = [1, 1]} : vector<2x96xf32> to vector<2x32xf32>
    %728 = arith.addf %726, %727 : vector<2x32xf32>
    %729 = arith.negf %728 : vector<2x32xf32>
    %730 = math.exp %729 : vector<2x32xf32>
    %cst_146 = arith.constant 1.000000e+00 : f32
    %731 = vector.broadcast %cst_146 : f32 to vector<2x32xf32>
    %732 = arith.addf %731, %730 : vector<2x32xf32>
    %733 = arith.divf %731, %732 : vector<2x32xf32>
    %734 = vector.extract_strided_slice %715 {offsets = [0, 64], sizes = [2, 32], strides = [1, 1]} : vector<2x96xf32> to vector<2x32xf32>
    %735 = vector.extract_strided_slice %717 {offsets = [0, 64], sizes = [2, 32], strides = [1, 1]} : vector<2x96xf32> to vector<2x32xf32>
    %736 = arith.mulf %725, %735 : vector<2x32xf32>
    %737 = arith.addf %734, %736 : vector<2x32xf32>
    %738 = math.tanh %737 : vector<2x32xf32>
    %cst_147 = arith.constant 1.000000e+00 : f32
    %739 = vector.broadcast %cst_147 : f32 to vector<2x32xf32>
    %740 = arith.subf %739, %733 : vector<2x32xf32>
    %741 = arith.mulf %740, %738 : vector<2x32xf32>
    %742 = arith.mulf %733, %666 : vector<2x32xf32>
    %743 = arith.addf %741, %742 : vector<2x32xf32>
    %744 = vector.broadcast %673 : vector<2x1xf32> to vector<2x32xf32>
    %745 = arith.mulf %744, %743 : vector<2x32xf32>
    %cst_148 = arith.constant 1.000000e+00 : f32
    %746 = vector.broadcast %cst_148 : f32 to vector<2x1xf32>
    %747 = arith.subf %746, %673 : vector<2x1xf32>
    %748 = vector.broadcast %747 : vector<2x1xf32> to vector<2x32xf32>
    %749 = arith.mulf %748, %666 : vector<2x32xf32>
    %750 = arith.addf %745, %749 : vector<2x32xf32>
    %751 = vector.broadcast %673 : vector<2x1xf32> to vector<2x32xf32>
    %752 = arith.mulf %751, %750 : vector<2x32xf32>
    %c0_149 = arith.constant 0 : index
    %c1_150 = arith.constant 1 : index
    %c32_151 = arith.constant 32 : index
    %753 = vector.load %arg11[%c0_149, %c1_150, %c32_151] : memref<2x8x64xf32, #tpu.memory_space<vmem>>, vector<2x1x32xf32>
    %754 = vector.shape_cast %753 : vector<2x1x32xf32> to vector<2x32xf32>
    %755 = vector.shape_cast %752 : vector<2x32xf32> to vector<2x1x32xf32>
    tpu.vector_store %arg11[%c0_149, %c1_150, %c32_151], %755 {strides = array<i32>} : memref<2x8x64xf32, #tpu.memory_space<vmem>>, vector<2x1x32xf32>,
    %756 = vector.extract_strided_slice %157 {offsets = [0, 7], sizes = [2, 1], strides = [1, 1]} : vector<2x8xf32> to vector<2x1xf32>
    %757 = vector.extract_strided_slice %157 {offsets = [0, 0], sizes = [2, 1], strides = [1, 1]} : vector<2x8xf32> to vector<2x1xf32>
    %758 = vector.extract_strided_slice %151 {offsets = [14, 0], sizes = [2, 96], strides = [1, 1]} : vector<16x192xf32> to vector<2x96xf32>
    %cst_152 = arith.constant dense<0.000000e+00> : vector<2x96xf32>
    %759 = tpu.matmul %709, %158, %cst_152 {dimension_numbers = #tpu.dot_dimension_numbers<[1], [0], [0], [1], [0, 0, 1, 1], [], []>} : vector<2x32xf32>, vector<32x96xf32>, vector<2x96xf32> -> vector<2x96xf32>
    %760 = arith.addf %759, %162 : vector<2x96xf32>
    %761 = vector.extract_strided_slice %758 {offsets = [0, 0], sizes = [2, 32], strides = [1, 1]} : vector<2x96xf32> to vector<2x32xf32>
    %762 = vector.extract_strided_slice %760 {offsets = [0, 0], sizes = [2, 32], strides = [1, 1]} : vector<2x96xf32> to vector<2x32xf32>
    %763 = arith.addf %761, %762 : vector<2x32xf32>
    %764 = arith.negf %763 : vector<2x32xf32>
    %765 = math.exp %764 : vector<2x32xf32>
    %cst_153 = arith.constant 1.000000e+00 : f32
    %766 = vector.broadcast %cst_153 : f32 to vector<2x32xf32>
    %767 = arith.addf %766, %765 : vector<2x32xf32>
    %768 = arith.divf %766, %767 : vector<2x32xf32>
    %769 = vector.extract_strided_slice %758 {offsets = [0, 32], sizes = [2, 32], strides = [1, 1]} : vector<2x96xf32> to vector<2x32xf32>
    %770 = vector.extract_strided_slice %760 {offsets = [0, 32], sizes = [2, 32], strides = [1, 1]} : vector<2x96xf32> to vector<2x32xf32>
    %771 = arith.addf %769, %770 : vector<2x32xf32>
    %772 = arith.negf %771 : vector<2x32xf32>
    %773 = math.exp %772 : vector<2x32xf32>
    %cst_154 = arith.constant 1.000000e+00 : f32
    %774 = vector.broadcast %cst_154 : f32 to vector<2x32xf32>
    %775 = arith.addf %774, %773 : vector<2x32xf32>
    %776 = arith.divf %774, %775 : vector<2x32xf32>
    %777 = vector.extract_strided_slice %758 {offsets = [0, 64], sizes = [2, 32], strides = [1, 1]} : vector<2x96xf32> to vector<2x32xf32>
    %778 = vector.extract_strided_slice %760 {offsets = [0, 64], sizes = [2, 32], strides = [1, 1]} : vector<2x96xf32> to vector<2x32xf32>
    %779 = arith.mulf %768, %778 : vector<2x32xf32>
    %780 = arith.addf %777, %779 : vector<2x32xf32>
    %781 = math.tanh %780 : vector<2x32xf32>
    %cst_155 = arith.constant 1.000000e+00 : f32
    %782 = vector.broadcast %cst_155 : f32 to vector<2x32xf32>
    %783 = arith.subf %782, %776 : vector<2x32xf32>
    %784 = arith.mulf %783, %781 : vector<2x32xf32>
    %785 = arith.mulf %776, %709 : vector<2x32xf32>
    %786 = arith.addf %784, %785 : vector<2x32xf32>
    %787 = vector.broadcast %756 : vector<2x1xf32> to vector<2x32xf32>
    %788 = arith.mulf %787, %786 : vector<2x32xf32>
    %cst_156 = arith.constant 1.000000e+00 : f32
    %789 = vector.broadcast %cst_156 : f32 to vector<2x1xf32>
    %790 = arith.subf %789, %756 : vector<2x1xf32>
    %791 = vector.broadcast %790 : vector<2x1xf32> to vector<2x32xf32>
    %792 = arith.mulf %791, %709 : vector<2x32xf32>
    %793 = arith.addf %788, %792 : vector<2x32xf32>
    %794 = vector.broadcast %756 : vector<2x1xf32> to vector<2x32xf32>
    %795 = arith.mulf %794, %793 : vector<2x32xf32>
    %c0_157 = arith.constant 0 : index
    %c7_158 = arith.constant 7 : index
    %c0_159 = arith.constant 0 : index
    %796 = vector.load %arg11[%c0_157, %c7_158, %c0_159] : memref<2x8x64xf32, #tpu.memory_space<vmem>>, vector<2x1x32xf32>
    %797 = vector.shape_cast %796 : vector<2x1x32xf32> to vector<2x32xf32>
    %798 = vector.shape_cast %795 : vector<2x32xf32> to vector<2x1x32xf32>
    tpu.vector_store %arg11[%c0_157, %c7_158, %c0_159], %798 {strides = array<i32>} : memref<2x8x64xf32, #tpu.memory_space<vmem>>, vector<2x1x32xf32>,
    %799 = vector.extract_strided_slice %151 {offsets = [0, 96], sizes = [2, 96], strides = [1, 1]} : vector<16x192xf32> to vector<2x96xf32>
    %cst_160 = arith.constant dense<0.000000e+00> : vector<2x96xf32>
    %800 = tpu.matmul %750, %159, %cst_160 {dimension_numbers = #tpu.dot_dimension_numbers<[1], [0], [0], [1], [0, 0, 1, 1], [], []>} : vector<2x32xf32>, vector<32x96xf32>, vector<2x96xf32> -> vector<2x96xf32>
    %801 = arith.addf %800, %165 : vector<2x96xf32>
    %802 = vector.extract_strided_slice %799 {offsets = [0, 0], sizes = [2, 32], strides = [1, 1]} : vector<2x96xf32> to vector<2x32xf32>
    %803 = vector.extract_strided_slice %801 {offsets = [0, 0], sizes = [2, 32], strides = [1, 1]} : vector<2x96xf32> to vector<2x32xf32>
    %804 = arith.addf %802, %803 : vector<2x32xf32>
    %805 = arith.negf %804 : vector<2x32xf32>
    %806 = math.exp %805 : vector<2x32xf32>
    %cst_161 = arith.constant 1.000000e+00 : f32
    %807 = vector.broadcast %cst_161 : f32 to vector<2x32xf32>
    %808 = arith.addf %807, %806 : vector<2x32xf32>
    %809 = arith.divf %807, %808 : vector<2x32xf32>
    %810 = vector.extract_strided_slice %799 {offsets = [0, 32], sizes = [2, 32], strides = [1, 1]} : vector<2x96xf32> to vector<2x32xf32>
    %811 = vector.extract_strided_slice %801 {offsets = [0, 32], sizes = [2, 32], strides = [1, 1]} : vector<2x96xf32> to vector<2x32xf32>
    %812 = arith.addf %810, %811 : vector<2x32xf32>
    %813 = arith.negf %812 : vector<2x32xf32>
    %814 = math.exp %813 : vector<2x32xf32>
    %cst_162 = arith.constant 1.000000e+00 : f32
    %815 = vector.broadcast %cst_162 : f32 to vector<2x32xf32>
    %816 = arith.addf %815, %814 : vector<2x32xf32>
    %817 = arith.divf %815, %816 : vector<2x32xf32>
    %818 = vector.extract_strided_slice %799 {offsets = [0, 64], sizes = [2, 32], strides = [1, 1]} : vector<2x96xf32> to vector<2x32xf32>
    %819 = vector.extract_strided_slice %801 {offsets = [0, 64], sizes = [2, 32], strides = [1, 1]} : vector<2x96xf32> to vector<2x32xf32>
    %820 = arith.mulf %809, %819 : vector<2x32xf32>
    %821 = arith.addf %818, %820 : vector<2x32xf32>
    %822 = math.tanh %821 : vector<2x32xf32>
    %cst_163 = arith.constant 1.000000e+00 : f32
    %823 = vector.broadcast %cst_163 : f32 to vector<2x32xf32>
    %824 = arith.subf %823, %817 : vector<2x32xf32>
    %825 = arith.mulf %824, %822 : vector<2x32xf32>
    %826 = arith.mulf %817, %750 : vector<2x32xf32>
    %827 = arith.addf %825, %826 : vector<2x32xf32>
    %828 = vector.broadcast %757 : vector<2x1xf32> to vector<2x32xf32>
    %829 = arith.mulf %828, %827 : vector<2x32xf32>
    %cst_164 = arith.constant 1.000000e+00 : f32
    %830 = vector.broadcast %cst_164 : f32 to vector<2x1xf32>
    %831 = arith.subf %830, %757 : vector<2x1xf32>
    %832 = vector.broadcast %831 : vector<2x1xf32> to vector<2x32xf32>
    %833 = arith.mulf %832, %750 : vector<2x32xf32>
    %834 = arith.addf %829, %833 : vector<2x32xf32>
    %835 = vector.broadcast %757 : vector<2x1xf32> to vector<2x32xf32>
    %836 = arith.mulf %835, %834 : vector<2x32xf32>
    %c0_165 = arith.constant 0 : index
    %c0_166 = arith.constant 0 : index
    %c32_167 = arith.constant 32 : index
    %837 = vector.load %arg11[%c0_165, %c0_166, %c32_167] : memref<2x8x64xf32, #tpu.memory_space<vmem>>, vector<2x1x32xf32>
    %838 = vector.shape_cast %837 : vector<2x1x32xf32> to vector<2x32xf32>
    %839 = vector.shape_cast %836 : vector<2x32xf32> to vector<2x1x32xf32>
    tpu.vector_store %arg11[%c0_165, %c0_166, %c32_167], %839 {strides = array<i32>} : memref<2x8x64xf32, #tpu.memory_space<vmem>>, vector<2x1x32xf32>,
    %c0_168 = arith.constant 0 : index
    %c0_169 = arith.constant 0 : index
    %840 = vector.load %arg8[%c0_168, %c0_169] : memref<32x32xf32, #tpu.memory_space<vmem>>, vector<32x32xf32>
    %cst_170 = arith.constant dense<0.000000e+00> : vector<2x32xf32>
    %841 = tpu.matmul %793, %840, %cst_170 {dimension_numbers = #tpu.dot_dimension_numbers<[1], [0], [0], [1], [0, 0, 1, 1], [], []>} : vector<2x32xf32>, vector<32x32xf32>, vector<2x32xf32> -> vector<2x32xf32>
    %c0_171 = arith.constant 0 : index
    %c0_172 = arith.constant 0 : index
    %842 = vector.load %arg9[%c0_171, %c0_172] : memref<32x32xf32, #tpu.memory_space<vmem>>, vector<32x32xf32>
    %cst_173 = arith.constant dense<0.000000e+00> : vector<2x32xf32>
    %843 = tpu.matmul %834, %842, %cst_173 {dimension_numbers = #tpu.dot_dimension_numbers<[1], [0], [0], [1], [0, 0, 1, 1], [], []>} : vector<2x32xf32>, vector<32x32xf32>, vector<2x32xf32> -> vector<2x32xf32>
    %844 = arith.addf %841, %843 : vector<2x32xf32>
    %c0_174 = arith.constant 0 : index
    %c0_175 = arith.constant 0 : index
    %845 = vector.load %arg10[%c0_174, %c0_175] : memref<1x32xf32, #tpu.memory_space<vmem>>, vector<1x32xf32>
    %846 = vector.broadcast %845 : vector<1x32xf32> to vector<2x32xf32>
    %847 = arith.addf %844, %846 : vector<2x32xf32>
    %848 = math.tanh %847 : vector<2x32xf32>
    %c0_176 = arith.constant 0 : index
    %c0_177 = arith.constant 0 : index
    %849 = vector.load %arg12[%c0_176, %c0_177] : memref<2x32xf32, #tpu.memory_space<vmem>>, vector<2x32xf32>
    tpu.vector_store %arg12[%c0_176, %c0_177], %848 {strides = array<i32>} : memref<2x32xf32, #tpu.memory_space<vmem>>, vector<2x32xf32>,
    return
  }
}

module attributes {stable_mosaic.version = 11 : i64} {
  func.func @decoder_kernel(%arg0: memref<6x2xi32, #tpu.memory_space<smem>>, %arg1: memref<6xi32, #tpu.memory_space<smem>>, %arg2: memref<2x32xf32, #tpu.memory_space<vmem>>, %arg3: memref<2x8x64xf32, #tpu.memory_space<vmem>>, %arg4: memref<2x1xi32, #tpu.memory_space<vmem>>, %arg5: memref<64x32xf32, #tpu.memory_space<vmem>>, %arg6: memref<32x32xf32, #tpu.memory_space<vmem>>, %arg7: memref<1x1x32xf32, #tpu.memory_space<vmem>>, %arg8: memref<1x1x32xf32, #tpu.memory_space<vmem>>, %arg9: memref<32x96xf32, #tpu.memory_space<vmem>>, %arg10: memref<64x96xf32, #tpu.memory_space<vmem>>, %arg11: memref<32x96xf32, #tpu.memory_space<vmem>>, %arg12: memref<1x96xf32, #tpu.memory_space<vmem>>, %arg13: memref<1x96xf32, #tpu.memory_space<vmem>>, %arg14: memref<32x32xf32, #tpu.memory_space<vmem>>, %arg15: memref<64x32xf32, #tpu.memory_space<vmem>>, %arg16: memref<32x32xf32, #tpu.memory_space<vmem>>, %arg17: memref<1x32xf32, #tpu.memory_space<vmem>>, %arg18: memref<6x2x32xf32, #tpu.memory_space<vmem>>) attributes {dimension_semantics = [], scalar_prefetch = 0 : i64, scratch_operands = 0 : i64, tpu.core_type = #tpu.core_type<tc>} {
    %0 = tpu.iota {dimensions = array<i32: 0>} : vector<2x32xi32>
    %1 = tpu.iota {dimensions = array<i32: 1>} : vector<2x32xi32>
    %2 = arith.sitofp %1 : vector<2x32xi32> to vector<2x32xf32>
    %c0 = arith.constant 0 : index
    %c0_0 = arith.constant 0 : index
    %c0_1 = arith.constant 0 : index
    %3 = vector.load %arg3[%c0, %c0_0, %c0_1] : memref<2x8x64xf32, #tpu.memory_space<vmem>>, vector<2x8x64xf32>
    %c0_2 = arith.constant 0 : index
    %c0_3 = arith.constant 0 : index
    %4 = vector.load %arg6[%c0_2, %c0_3] : memref<32x32xf32, #tpu.memory_space<vmem>>, vector<32x32xf32>
    %c0_4 = arith.constant 0 : index
    %c0_5 = arith.constant 0 : index
    %5 = vector.load %arg9[%c0_4, %c0_5] : memref<32x96xf32, #tpu.memory_space<vmem>>, vector<32x96xf32>
    %c0_6 = arith.constant 0 : index
    %c0_7 = arith.constant 0 : index
    %6 = vector.load %arg10[%c0_6, %c0_7] : memref<64x96xf32, #tpu.memory_space<vmem>>, vector<64x96xf32>
    %c0_8 = arith.constant 0 : index
    %c0_9 = arith.constant 0 : index
    %7 = vector.load %arg11[%c0_8, %c0_9] : memref<32x96xf32, #tpu.memory_space<vmem>>, vector<32x96xf32>
    %c0_10 = arith.constant 0 : index
    %c0_11 = arith.constant 0 : index
    %8 = vector.load %arg14[%c0_10, %c0_11] : memref<32x32xf32, #tpu.memory_space<vmem>>, vector<32x32xf32>
    %c0_12 = arith.constant 0 : index
    %c0_13 = arith.constant 0 : index
    %9 = vector.load %arg15[%c0_12, %c0_13] : memref<64x32xf32, #tpu.memory_space<vmem>>, vector<64x32xf32>
    %c0_14 = arith.constant 0 : index
    %c0_15 = arith.constant 0 : index
    %10 = vector.load %arg16[%c0_14, %c0_15] : memref<32x32xf32, #tpu.memory_space<vmem>>, vector<32x32xf32>
    %c0_16 = arith.constant 0 : index
    %c0_17 = arith.constant 0 : index
    %11 = vector.load %arg12[%c0_16, %c0_17] : memref<1x96xf32, #tpu.memory_space<vmem>>, vector<1x96xf32>
    %12 = vector.shape_cast %11 : vector<1x96xf32> to vector<1x96xf32>
    %13 = vector.broadcast %12 : vector<1x96xf32> to vector<2x96xf32>
    %c0_18 = arith.constant 0 : index
    %c0_19 = arith.constant 0 : index
    %14 = vector.load %arg13[%c0_18, %c0_19] : memref<1x96xf32, #tpu.memory_space<vmem>>, vector<1x96xf32>
    %15 = vector.shape_cast %14 : vector<1x96xf32> to vector<1x96xf32>
    %16 = vector.broadcast %15 : vector<1x96xf32> to vector<2x96xf32>
    %c0_20 = arith.constant 0 : index
    %c0_21 = arith.constant 0 : index
    %17 = vector.load %arg17[%c0_20, %c0_21] : memref<1x32xf32, #tpu.memory_space<vmem>>, vector<1x32xf32>
    %18 = vector.shape_cast %17 : vector<1x32xf32> to vector<1x32xf32>
    %19 = vector.broadcast %18 : vector<1x32xf32> to vector<2x32xf32>
    %c0_22 = arith.constant 0 : index
    %c0_23 = arith.constant 0 : index
    %c0_24 = arith.constant 0 : index
    %20 = vector.load %arg7[%c0_22, %c0_23, %c0_24] : memref<1x1x32xf32, #tpu.memory_space<vmem>>, vector<1x1x32xf32>
    %21 = vector.shape_cast %20 : vector<1x1x32xf32> to vector<1x1x32xf32>
    %22 = vector.broadcast %21 : vector<1x1x32xf32> to vector<2x8x32xf32>
    %c0_25 = arith.constant 0 : index
    %c0_26 = arith.constant 0 : index
    %c0_27 = arith.constant 0 : index
    %23 = vector.load %arg8[%c0_25, %c0_26, %c0_27] : memref<1x1x32xf32, #tpu.memory_space<vmem>>, vector<1x1x32xf32>
    %24 = vector.shape_cast %23 : vector<1x1x32xf32> to vector<1x1x32xf32>
    %25 = vector.broadcast %24 : vector<1x1x32xf32> to vector<2x8x32xf32>
    %26 = tpu.iota {dimensions = array<i32: 1>} : vector<2x8xi32>
    %c0_28 = arith.constant 0 : index
    %c0_29 = arith.constant 0 : index
    %27 = vector.load %arg4[%c0_28, %c0_29] : memref<2x1xi32, #tpu.memory_space<vmem>>, vector<2x1xi32>
    %28 = vector.broadcast %27 : vector<2x1xi32> to vector<2x8xi32>
    %29 = arith.cmpi slt, %26, %28 : vector<2x8xi32>
    %cst = arith.constant -1.000000e+10 : f32
    %30 = vector.broadcast %cst : f32 to vector<2x8xf32>
    %31 = vector.shape_cast %3 : vector<2x8x64xf32> to vector<16x64xf32>
    %c0_30 = arith.constant 0 : index
    %c0_31 = arith.constant 0 : index
    %32 = vector.load %arg5[%c0_30, %c0_31] : memref<64x32xf32, #tpu.memory_space<vmem>>, vector<64x32xf32>
    %cst_32 = arith.constant dense<0.000000e+00> : vector<16x32xf32>
    %33 = tpu.matmul %31, %32, %cst_32 {dimension_numbers = #tpu.dot_dimension_numbers<[1], [0], [0], [1], [0, 0, 1, 1], [], []>} : vector<16x64xf32>, vector<64x32xf32>, vector<16x32xf32> -> vector<16x32xf32>
    %34 = vector.shape_cast %33 : vector<16x32xf32> to vector<2x8x32xf32>
    %c0_33 = arith.constant 0 : index
    %c0_34 = arith.constant 0 : index
    %35 = vector.load %arg2[%c0_33, %c0_34] : memref<2x32xf32, #tpu.memory_space<vmem>>, vector<2x32xf32>
    %cst_35 = arith.constant 0.000000e+00 : f32
    %36 = vector.broadcast %cst_35 : f32 to vector<2x32xf32>
    %c0_36 = arith.constant 0 : index
    %c0_37 = arith.constant 0 : index
    %37 = memref.load %arg0[%c0_36, %c0_37] : memref<6x2xi32, #tpu.memory_space<smem>>
    %c0_i32 = arith.constant 0 : i32
    %38 = vector.broadcast %c0_i32 : i32 to vector<2x32xi32>
    %39 = arith.cmpi eq, %0, %38 : vector<2x32xi32>
    %40 = vector.broadcast %37 : i32 to vector<2x32xi32>
    %41 = arith.cmpi eq, %1, %40 : vector<2x32xi32>
    %42 = arith.andi %39, %41 : vector<2x32xi1>
    %43 = arith.extui %42 : vector<2x32xi1> to vector<2x32xi32>
    %44 = arith.sitofp %43 : vector<2x32xi32> to vector<2x32xf32>
    %45 = arith.addf %36, %44 : vector<2x32xf32>
    %c0_38 = arith.constant 0 : index
    %c1 = arith.constant 1 : index
    %46 = memref.load %arg0[%c0_38, %c1] : memref<6x2xi32, #tpu.memory_space<smem>>
    %c1_i32 = arith.constant 1 : i32
    %47 = vector.broadcast %c1_i32 : i32 to vector<2x32xi32>
    %48 = arith.cmpi eq, %0, %47 : vector<2x32xi32>
    %49 = vector.broadcast %46 : i32 to vector<2x32xi32>
    %50 = arith.cmpi eq, %1, %49 : vector<2x32xi32>
    %51 = arith.andi %48, %50 : vector<2x32xi1>
    %52 = arith.extui %51 : vector<2x32xi1> to vector<2x32xi32>
    %53 = arith.sitofp %52 : vector<2x32xi32> to vector<2x32xf32>
    %54 = arith.addf %45, %53 : vector<2x32xf32>
    %cst_39 = arith.constant 0.000000e+00 : f32
    %55 = vector.broadcast %cst_39 : f32 to vector<2x32xf32>
    %c0_40 = arith.constant 0 : index
    %c0_41 = arith.constant 0 : index
    %c0_42 = arith.constant 0 : index
    %56 = vector.load %arg18[%c0_40, %c0_41, %c0_42] : memref<6x2x32xf32, #tpu.memory_space<vmem>>, vector<1x2x32xf32>
    %57 = vector.shape_cast %56 : vector<1x2x32xf32> to vector<2x32xf32>
    %58 = vector.shape_cast %55 : vector<2x32xf32> to vector<1x2x32xf32>
    tpu.vector_store %arg18[%c0_40, %c0_41, %c0_42], %58 {strides = array<i32>} : memref<6x2x32xf32, #tpu.memory_space<vmem>>, vector<1x2x32xf32>,
    %cst_43 = arith.constant dense<0.000000e+00> : vector<2x32xf32>
    %59 = tpu.matmul %35, %4, %cst_43 {dimension_numbers = #tpu.dot_dimension_numbers<[1], [0], [0], [1], [0, 0, 1, 1], [], []>} : vector<2x32xf32>, vector<32x32xf32>, vector<2x32xf32> -> vector<2x32xf32>
    %60 = vector.shape_cast %59 : vector<2x32xf32> to vector<2x1x32xf32>
    %61 = vector.broadcast %60 : vector<2x1x32xf32> to vector<2x8x32xf32>
    %62 = arith.addf %61, %34 : vector<2x8x32xf32>
    %63 = arith.addf %62, %22 : vector<2x8x32xf32>
    %64 = math.tanh %63 : vector<2x8x32xf32>
    %65 = arith.mulf %64, %25 : vector<2x8x32xf32>
    %cst_44 = arith.constant dense<0.000000e+00> : vector<2x8xf32>
    %66 = vector.multi_reduction <add>, %65, %cst_44 [2] : vector<2x8x32xf32> to vector<2x8xf32>
    %67 = arith.select %29, %66, %30 : vector<2x8xi1>, vector<2x8xf32>
    %cst_45 = arith.constant dense<0xFF800000> : vector<2xf32>
    %68 = vector.multi_reduction <maximumf>, %67, %cst_45 [1] : vector<2x8xf32> to vector<2xf32>
    %69 = vector.shape_cast %68 : vector<2xf32> to vector<2x1xf32>
    %70 = vector.broadcast %69 : vector<2x1xf32> to vector<2x8xf32>
    %71 = arith.subf %67, %70 : vector<2x8xf32>
    %72 = math.exp %71 : vector<2x8xf32>
    %cst_46 = arith.constant dense<0.000000e+00> : vector<2xf32>
    %73 = vector.multi_reduction <add>, %72, %cst_46 [1] : vector<2x8xf32> to vector<2xf32>
    %74 = vector.shape_cast %73 : vector<2xf32> to vector<2x1xf32>
    %75 = tpu.reciprocal %74 : vector<2x1xf32> -> vector<2x1xf32>
    %76 = vector.broadcast %75 : vector<2x1xf32> to vector<2x8xf32>
    %77 = arith.mulf %72, %76 : vector<2x8xf32>
    %78 = vector.shape_cast %77 : vector<2x8xf32> to vector<2x8x1xf32>
    %79 = vector.broadcast %78 : vector<2x8x1xf32> to vector<2x8x64xf32>
    %80 = arith.mulf %79, %3 : vector<2x8x64xf32>
    %cst_47 = arith.constant dense<0.000000e+00> : vector<2x64xf32>
    %81 = vector.multi_reduction <add>, %80, %cst_47 [1] : vector<2x8x64xf32> to vector<2x64xf32>
    %cst_48 = arith.constant dense<0.000000e+00> : vector<2x96xf32>
    %82 = tpu.matmul %54, %5, %cst_48 {dimension_numbers = #tpu.dot_dimension_numbers<[1], [0], [0], [1], [0, 0, 1, 1], [], []>} : vector<2x32xf32>, vector<32x96xf32>, vector<2x96xf32> -> vector<2x96xf32>
    %cst_49 = arith.constant dense<0.000000e+00> : vector<2x96xf32>
    %83 = tpu.matmul %81, %6, %cst_49 {dimension_numbers = #tpu.dot_dimension_numbers<[1], [0], [0], [1], [0, 0, 1, 1], [], []>} : vector<2x64xf32>, vector<64x96xf32>, vector<2x96xf32> -> vector<2x96xf32>
    %84 = arith.addf %82, %83 : vector<2x96xf32>
    %85 = arith.addf %84, %13 : vector<2x96xf32>
    %cst_50 = arith.constant dense<0.000000e+00> : vector<2x96xf32>
    %86 = tpu.matmul %35, %7, %cst_50 {dimension_numbers = #tpu.dot_dimension_numbers<[1], [0], [0], [1], [0, 0, 1, 1], [], []>} : vector<2x32xf32>, vector<32x96xf32>, vector<2x96xf32> -> vector<2x96xf32>
    %87 = arith.addf %86, %16 : vector<2x96xf32>
    %88 = vector.extract_strided_slice %85 {offsets = [0, 0], sizes = [2, 32], strides = [1, 1]} : vector<2x96xf32> to vector<2x32xf32>
    %89 = vector.extract_strided_slice %87 {offsets = [0, 0], sizes = [2, 32], strides = [1, 1]} : vector<2x96xf32> to vector<2x32xf32>
    %90 = arith.addf %88, %89 : vector<2x32xf32>
    %91 = arith.negf %90 : vector<2x32xf32>
    %92 = math.exp %91 : vector<2x32xf32>
    %cst_51 = arith.constant 1.000000e+00 : f32
    %93 = vector.broadcast %cst_51 : f32 to vector<2x32xf32>
    %94 = arith.addf %93, %92 : vector<2x32xf32>
    %95 = arith.divf %93, %94 : vector<2x32xf32>
    %96 = vector.extract_strided_slice %85 {offsets = [0, 32], sizes = [2, 32], strides = [1, 1]} : vector<2x96xf32> to vector<2x32xf32>
    %97 = vector.extract_strided_slice %87 {offsets = [0, 32], sizes = [2, 32], strides = [1, 1]} : vector<2x96xf32> to vector<2x32xf32>
    %98 = arith.addf %96, %97 : vector<2x32xf32>
    %99 = arith.negf %98 : vector<2x32xf32>
    %100 = math.exp %99 : vector<2x32xf32>
    %cst_52 = arith.constant 1.000000e+00 : f32
    %101 = vector.broadcast %cst_52 : f32 to vector<2x32xf32>
    %102 = arith.addf %101, %100 : vector<2x32xf32>
    %103 = arith.divf %101, %102 : vector<2x32xf32>
    %104 = vector.extract_strided_slice %85 {offsets = [0, 64], sizes = [2, 32], strides = [1, 1]} : vector<2x96xf32> to vector<2x32xf32>
    %105 = vector.extract_strided_slice %87 {offsets = [0, 64], sizes = [2, 32], strides = [1, 1]} : vector<2x96xf32> to vector<2x32xf32>
    %106 = arith.mulf %95, %105 : vector<2x32xf32>
    %107 = arith.addf %104, %106 : vector<2x32xf32>
    %108 = math.tanh %107 : vector<2x32xf32>
    %cst_53 = arith.constant 1.000000e+00 : f32
    %109 = vector.broadcast %cst_53 : f32 to vector<2x32xf32>
    %110 = arith.subf %109, %103 : vector<2x32xf32>
    %111 = arith.mulf %110, %108 : vector<2x32xf32>
    %112 = arith.mulf %103, %35 : vector<2x32xf32>
    %113 = arith.addf %111, %112 : vector<2x32xf32>
    %cst_54 = arith.constant dense<0.000000e+00> : vector<2x32xf32>
    %114 = tpu.matmul %113, %8, %cst_54 {dimension_numbers = #tpu.dot_dimension_numbers<[1], [0], [0], [1], [0, 0, 1, 1], [], []>} : vector<2x32xf32>, vector<32x32xf32>, vector<2x32xf32> -> vector<2x32xf32>
    %cst_55 = arith.constant dense<0.000000e+00> : vector<2x32xf32>
    %115 = tpu.matmul %81, %9, %cst_55 {dimension_numbers = #tpu.dot_dimension_numbers<[1], [0], [0], [1], [0, 0, 1, 1], [], []>} : vector<2x64xf32>, vector<64x32xf32>, vector<2x32xf32> -> vector<2x32xf32>
    %116 = arith.addf %114, %115 : vector<2x32xf32>
    %cst_56 = arith.constant dense<0.000000e+00> : vector<2x32xf32>
    %117 = tpu.matmul %54, %10, %cst_56 {dimension_numbers = #tpu.dot_dimension_numbers<[1], [0], [0], [1], [0, 0, 1, 1], [], []>} : vector<2x32xf32>, vector<32x32xf32>, vector<2x32xf32> -> vector<2x32xf32>
    %118 = arith.addf %116, %117 : vector<2x32xf32>
    %119 = arith.addf %118, %19 : vector<2x32xf32>
    %c1_57 = arith.constant 1 : index
    %c0_58 = arith.constant 0 : index
    %c0_59 = arith.constant 0 : index
    %120 = vector.load %arg18[%c1_57, %c0_58, %c0_59] : memref<6x2x32xf32, #tpu.memory_space<vmem>>, vector<1x2x32xf32>
    %121 = vector.shape_cast %120 : vector<1x2x32xf32> to vector<2x32xf32>
    %122 = vector.shape_cast %119 : vector<2x32xf32> to vector<1x2x32xf32>
    tpu.vector_store %arg18[%c1_57, %c0_58, %c0_59], %122 {strides = array<i32>} : memref<6x2x32xf32, #tpu.memory_space<vmem>>, vector<1x2x32xf32>,
    %cst_60 = arith.constant dense<0xFF800000> : vector<2xf32>
    %123 = vector.multi_reduction <maximumf>, %119, %cst_60 [1] : vector<2x32xf32> to vector<2xf32>
    %124 = vector.shape_cast %123 : vector<2xf32> to vector<2x1xf32>
    %125 = vector.broadcast %124 : vector<2x1xf32> to vector<2x32xf32>
    %126 = arith.cmpf oge, %119, %125 : vector<2x32xf32>
    %cst_61 = arith.constant 3.200000e+01 : f32
    %127 = vector.broadcast %cst_61 : f32 to vector<2x32xf32>
    %128 = arith.select %126, %2, %127 : vector<2x32xi1>, vector<2x32xf32>
    %cst_62 = arith.constant dense<0x7F800000> : vector<2xf32>
    %129 = vector.multi_reduction <minimumf>, %128, %cst_62 [1] : vector<2x32xf32> to vector<2xf32>
    %130 = vector.shape_cast %129 : vector<2xf32> to vector<2x1xf32>
    %131 = vector.broadcast %130 : vector<2x1xf32> to vector<2x32xf32>
    %132 = arith.cmpf oeq, %2, %131 : vector<2x32xf32>
    %133 = arith.extui %132 : vector<2x32xi1> to vector<2x32xi32>
    %134 = arith.sitofp %133 : vector<2x32xi32> to vector<2x32xf32>
    %cst_63 = arith.constant 0.000000e+00 : f32
    %135 = vector.broadcast %cst_63 : f32 to vector<2x32xf32>
    %c1_64 = arith.constant 1 : index
    %c0_65 = arith.constant 0 : index
    %136 = memref.load %arg0[%c1_64, %c0_65] : memref<6x2xi32, #tpu.memory_space<smem>>
    %c0_i32_66 = arith.constant 0 : i32
    %137 = vector.broadcast %c0_i32_66 : i32 to vector<2x32xi32>
    %138 = arith.cmpi eq, %0, %137 : vector<2x32xi32>
    %139 = vector.broadcast %136 : i32 to vector<2x32xi32>
    %140 = arith.cmpi eq, %1, %139 : vector<2x32xi32>
    %141 = arith.andi %138, %140 : vector<2x32xi1>
    %142 = arith.extui %141 : vector<2x32xi1> to vector<2x32xi32>
    %143 = arith.sitofp %142 : vector<2x32xi32> to vector<2x32xf32>
    %144 = arith.addf %135, %143 : vector<2x32xf32>
    %c1_67 = arith.constant 1 : index
    %c1_68 = arith.constant 1 : index
    %145 = memref.load %arg0[%c1_67, %c1_68] : memref<6x2xi32, #tpu.memory_space<smem>>
    %c1_i32_69 = arith.constant 1 : i32
    %146 = vector.broadcast %c1_i32_69 : i32 to vector<2x32xi32>
    %147 = arith.cmpi eq, %0, %146 : vector<2x32xi32>
    %148 = vector.broadcast %145 : i32 to vector<2x32xi32>
    %149 = arith.cmpi eq, %1, %148 : vector<2x32xi32>
    %150 = arith.andi %147, %149 : vector<2x32xi1>
    %151 = arith.extui %150 : vector<2x32xi1> to vector<2x32xi32>
    %152 = arith.sitofp %151 : vector<2x32xi32> to vector<2x32xf32>
    %153 = arith.addf %144, %152 : vector<2x32xf32>
    %c1_70 = arith.constant 1 : index
    %154 = memref.load %arg1[%c1_70] : memref<6xi32, #tpu.memory_space<smem>>
    %c0_i32_71 = arith.constant 0 : i32
    %155 = arith.cmpi sgt, %154, %c0_i32_71 : i32
    %156 = arith.extui %155 : i1 to i32
    %157 = arith.sitofp %156 : i32 to f32
    %158 = vector.broadcast %157 : f32 to vector<2x32xf32>
    %159 = arith.mulf %158, %153 : vector<2x32xf32>
    %cst_72 = arith.constant 1.000000e+00 : f32
    %160 = arith.subf %cst_72, %157 : f32
    %161 = vector.broadcast %160 : f32 to vector<2x32xf32>
    %162 = arith.mulf %161, %134 : vector<2x32xf32>
    %163 = arith.addf %159, %162 : vector<2x32xf32>
    %cst_73 = arith.constant dense<0.000000e+00> : vector<2x32xf32>
    %164 = tpu.matmul %113, %4, %cst_73 {dimension_numbers = #tpu.dot_dimension_numbers<[1], [0], [0], [1], [0, 0, 1, 1], [], []>} : vector<2x32xf32>, vector<32x32xf32>, vector<2x32xf32> -> vector<2x32xf32>
    %165 = vector.shape_cast %164 : vector<2x32xf32> to vector<2x1x32xf32>
    %166 = vector.broadcast %165 : vector<2x1x32xf32> to vector<2x8x32xf32>
    %167 = arith.addf %166, %34 : vector<2x8x32xf32>
    %168 = arith.addf %167, %22 : vector<2x8x32xf32>
    %169 = math.tanh %168 : vector<2x8x32xf32>
    %170 = arith.mulf %169, %25 : vector<2x8x32xf32>
    %cst_74 = arith.constant dense<0.000000e+00> : vector<2x8xf32>
    %171 = vector.multi_reduction <add>, %170, %cst_74 [2] : vector<2x8x32xf32> to vector<2x8xf32>
    %172 = arith.select %29, %171, %30 : vector<2x8xi1>, vector<2x8xf32>
    %cst_75 = arith.constant dense<0xFF800000> : vector<2xf32>
    %173 = vector.multi_reduction <maximumf>, %172, %cst_75 [1] : vector<2x8xf32> to vector<2xf32>
    %174 = vector.shape_cast %173 : vector<2xf32> to vector<2x1xf32>
    %175 = vector.broadcast %174 : vector<2x1xf32> to vector<2x8xf32>
    %176 = arith.subf %172, %175 : vector<2x8xf32>
    %177 = math.exp %176 : vector<2x8xf32>
    %cst_76 = arith.constant dense<0.000000e+00> : vector<2xf32>
    %178 = vector.multi_reduction <add>, %177, %cst_76 [1] : vector<2x8xf32> to vector<2xf32>
    %179 = vector.shape_cast %178 : vector<2xf32> to vector<2x1xf32>
    %180 = tpu.reciprocal %179 : vector<2x1xf32> -> vector<2x1xf32>
    %181 = vector.broadcast %180 : vector<2x1xf32> to vector<2x8xf32>
    %182 = arith.mulf %177, %181 : vector<2x8xf32>
    %183 = vector.shape_cast %182 : vector<2x8xf32> to vector<2x8x1xf32>
    %184 = vector.broadcast %183 : vector<2x8x1xf32> to vector<2x8x64xf32>
    %185 = arith.mulf %184, %3 : vector<2x8x64xf32>
    %cst_77 = arith.constant dense<0.000000e+00> : vector<2x64xf32>
    %186 = vector.multi_reduction <add>, %185, %cst_77 [1] : vector<2x8x64xf32> to vector<2x64xf32>
    %cst_78 = arith.constant dense<0.000000e+00> : vector<2x96xf32>
    %187 = tpu.matmul %163, %5, %cst_78 {dimension_numbers = #tpu.dot_dimension_numbers<[1], [0], [0], [1], [0, 0, 1, 1], [], []>} : vector<2x32xf32>, vector<32x96xf32>, vector<2x96xf32> -> vector<2x96xf32>
    %cst_79 = arith.constant dense<0.000000e+00> : vector<2x96xf32>
    %188 = tpu.matmul %186, %6, %cst_79 {dimension_numbers = #tpu.dot_dimension_numbers<[1], [0], [0], [1], [0, 0, 1, 1], [], []>} : vector<2x64xf32>, vector<64x96xf32>, vector<2x96xf32> -> vector<2x96xf32>
    %189 = arith.addf %187, %188 : vector<2x96xf32>
    %190 = arith.addf %189, %13 : vector<2x96xf32>
    %cst_80 = arith.constant dense<0.000000e+00> : vector<2x96xf32>
    %191 = tpu.matmul %113, %7, %cst_80 {dimension_numbers = #tpu.dot_dimension_numbers<[1], [0], [0], [1], [0, 0, 1, 1], [], []>} : vector<2x32xf32>, vector<32x96xf32>, vector<2x96xf32> -> vector<2x96xf32>
    %192 = arith.addf %191, %16 : vector<2x96xf32>
    %193 = vector.extract_strided_slice %190 {offsets = [0, 0], sizes = [2, 32], strides = [1, 1]} : vector<2x96xf32> to vector<2x32xf32>
    %194 = vector.extract_strided_slice %192 {offsets = [0, 0], sizes = [2, 32], strides = [1, 1]} : vector<2x96xf32> to vector<2x32xf32>
    %195 = arith.addf %193, %194 : vector<2x32xf32>
    %196 = arith.negf %195 : vector<2x32xf32>
    %197 = math.exp %196 : vector<2x32xf32>
    %cst_81 = arith.constant 1.000000e+00 : f32
    %198 = vector.broadcast %cst_81 : f32 to vector<2x32xf32>
    %199 = arith.addf %198, %197 : vector<2x32xf32>
    %200 = arith.divf %198, %199 : vector<2x32xf32>
    %201 = vector.extract_strided_slice %190 {offsets = [0, 32], sizes = [2, 32], strides = [1, 1]} : vector<2x96xf32> to vector<2x32xf32>
    %202 = vector.extract_strided_slice %192 {offsets = [0, 32], sizes = [2, 32], strides = [1, 1]} : vector<2x96xf32> to vector<2x32xf32>
    %203 = arith.addf %201, %202 : vector<2x32xf32>
    %204 = arith.negf %203 : vector<2x32xf32>
    %205 = math.exp %204 : vector<2x32xf32>
    %cst_82 = arith.constant 1.000000e+00 : f32
    %206 = vector.broadcast %cst_82 : f32 to vector<2x32xf32>
    %207 = arith.addf %206, %205 : vector<2x32xf32>
    %208 = arith.divf %206, %207 : vector<2x32xf32>
    %209 = vector.extract_strided_slice %190 {offsets = [0, 64], sizes = [2, 32], strides = [1, 1]} : vector<2x96xf32> to vector<2x32xf32>
    %210 = vector.extract_strided_slice %192 {offsets = [0, 64], sizes = [2, 32], strides = [1, 1]} : vector<2x96xf32> to vector<2x32xf32>
    %211 = arith.mulf %200, %210 : vector<2x32xf32>
    %212 = arith.addf %209, %211 : vector<2x32xf32>
    %213 = math.tanh %212 : vector<2x32xf32>
    %cst_83 = arith.constant 1.000000e+00 : f32
    %214 = vector.broadcast %cst_83 : f32 to vector<2x32xf32>
    %215 = arith.subf %214, %208 : vector<2x32xf32>
    %216 = arith.mulf %215, %213 : vector<2x32xf32>
    %217 = arith.mulf %208, %113 : vector<2x32xf32>
    %218 = arith.addf %216, %217 : vector<2x32xf32>
    %cst_84 = arith.constant dense<0.000000e+00> : vector<2x32xf32>
    %219 = tpu.matmul %218, %8, %cst_84 {dimension_numbers = #tpu.dot_dimension_numbers<[1], [0], [0], [1], [0, 0, 1, 1], [], []>} : vector<2x32xf32>, vector<32x32xf32>, vector<2x32xf32> -> vector<2x32xf32>
    %cst_85 = arith.constant dense<0.000000e+00> : vector<2x32xf32>
    %220 = tpu.matmul %186, %9, %cst_85 {dimension_numbers = #tpu.dot_dimension_numbers<[1], [0], [0], [1], [0, 0, 1, 1], [], []>} : vector<2x64xf32>, vector<64x32xf32>, vector<2x32xf32> -> vector<2x32xf32>
    %221 = arith.addf %219, %220 : vector<2x32xf32>
    %cst_86 = arith.constant dense<0.000000e+00> : vector<2x32xf32>
    %222 = tpu.matmul %163, %10, %cst_86 {dimension_numbers = #tpu.dot_dimension_numbers<[1], [0], [0], [1], [0, 0, 1, 1], [], []>} : vector<2x32xf32>, vector<32x32xf32>, vector<2x32xf32> -> vector<2x32xf32>
    %223 = arith.addf %221, %222 : vector<2x32xf32>
    %224 = arith.addf %223, %19 : vector<2x32xf32>
    %c2 = arith.constant 2 : index
    %c0_87 = arith.constant 0 : index
    %c0_88 = arith.constant 0 : index
    %225 = vector.load %arg18[%c2, %c0_87, %c0_88] : memref<6x2x32xf32, #tpu.memory_space<vmem>>, vector<1x2x32xf32>
    %226 = vector.shape_cast %225 : vector<1x2x32xf32> to vector<2x32xf32>
    %227 = vector.shape_cast %224 : vector<2x32xf32> to vector<1x2x32xf32>
    tpu.vector_store %arg18[%c2, %c0_87, %c0_88], %227 {strides = array<i32>} : memref<6x2x32xf32, #tpu.memory_space<vmem>>, vector<1x2x32xf32>,
    %cst_89 = arith.constant dense<0xFF800000> : vector<2xf32>
    %228 = vector.multi_reduction <maximumf>, %224, %cst_89 [1] : vector<2x32xf32> to vector<2xf32>
    %229 = vector.shape_cast %228 : vector<2xf32> to vector<2x1xf32>
    %230 = vector.broadcast %229 : vector<2x1xf32> to vector<2x32xf32>
    %231 = arith.cmpf oge, %224, %230 : vector<2x32xf32>
    %cst_90 = arith.constant 3.200000e+01 : f32
    %232 = vector.broadcast %cst_90 : f32 to vector<2x32xf32>
    %233 = arith.select %231, %2, %232 : vector<2x32xi1>, vector<2x32xf32>
    %cst_91 = arith.constant dense<0x7F800000> : vector<2xf32>
    %234 = vector.multi_reduction <minimumf>, %233, %cst_91 [1] : vector<2x32xf32> to vector<2xf32>
    %235 = vector.shape_cast %234 : vector<2xf32> to vector<2x1xf32>
    %236 = vector.broadcast %235 : vector<2x1xf32> to vector<2x32xf32>
    %237 = arith.cmpf oeq, %2, %236 : vector<2x32xf32>
    %238 = arith.extui %237 : vector<2x32xi1> to vector<2x32xi32>
    %239 = arith.sitofp %238 : vector<2x32xi32> to vector<2x32xf32>
    %cst_92 = arith.constant 0.000000e+00 : f32
    %240 = vector.broadcast %cst_92 : f32 to vector<2x32xf32>
    %c2_93 = arith.constant 2 : index
    %c0_94 = arith.constant 0 : index
    %241 = memref.load %arg0[%c2_93, %c0_94] : memref<6x2xi32, #tpu.memory_space<smem>>
    %c0_i32_95 = arith.constant 0 : i32
    %242 = vector.broadcast %c0_i32_95 : i32 to vector<2x32xi32>
    %243 = arith.cmpi eq, %0, %242 : vector<2x32xi32>
    %244 = vector.broadcast %241 : i32 to vector<2x32xi32>
    %245 = arith.cmpi eq, %1, %244 : vector<2x32xi32>
    %246 = arith.andi %243, %245 : vector<2x32xi1>
    %247 = arith.extui %246 : vector<2x32xi1> to vector<2x32xi32>
    %248 = arith.sitofp %247 : vector<2x32xi32> to vector<2x32xf32>
    %249 = arith.addf %240, %248 : vector<2x32xf32>
    %c2_96 = arith.constant 2 : index
    %c1_97 = arith.constant 1 : index
    %250 = memref.load %arg0[%c2_96, %c1_97] : memref<6x2xi32, #tpu.memory_space<smem>>
    %c1_i32_98 = arith.constant 1 : i32
    %251 = vector.broadcast %c1_i32_98 : i32 to vector<2x32xi32>
    %252 = arith.cmpi eq, %0, %251 : vector<2x32xi32>
    %253 = vector.broadcast %250 : i32 to vector<2x32xi32>
    %254 = arith.cmpi eq, %1, %253 : vector<2x32xi32>
    %255 = arith.andi %252, %254 : vector<2x32xi1>
    %256 = arith.extui %255 : vector<2x32xi1> to vector<2x32xi32>
    %257 = arith.sitofp %256 : vector<2x32xi32> to vector<2x32xf32>
    %258 = arith.addf %249, %257 : vector<2x32xf32>
    %c2_99 = arith.constant 2 : index
    %259 = memref.load %arg1[%c2_99] : memref<6xi32, #tpu.memory_space<smem>>
    %c0_i32_100 = arith.constant 0 : i32
    %260 = arith.cmpi sgt, %259, %c0_i32_100 : i32
    %261 = arith.extui %260 : i1 to i32
    %262 = arith.sitofp %261 : i32 to f32
    %263 = vector.broadcast %262 : f32 to vector<2x32xf32>
    %264 = arith.mulf %263, %258 : vector<2x32xf32>
    %cst_101 = arith.constant 1.000000e+00 : f32
    %265 = arith.subf %cst_101, %262 : f32
    %266 = vector.broadcast %265 : f32 to vector<2x32xf32>
    %267 = arith.mulf %266, %239 : vector<2x32xf32>
    %268 = arith.addf %264, %267 : vector<2x32xf32>
    %cst_102 = arith.constant dense<0.000000e+00> : vector<2x32xf32>
    %269 = tpu.matmul %218, %4, %cst_102 {dimension_numbers = #tpu.dot_dimension_numbers<[1], [0], [0], [1], [0, 0, 1, 1], [], []>} : vector<2x32xf32>, vector<32x32xf32>, vector<2x32xf32> -> vector<2x32xf32>
    %270 = vector.shape_cast %269 : vector<2x32xf32> to vector<2x1x32xf32>
    %271 = vector.broadcast %270 : vector<2x1x32xf32> to vector<2x8x32xf32>
    %272 = arith.addf %271, %34 : vector<2x8x32xf32>
    %273 = arith.addf %272, %22 : vector<2x8x32xf32>
    %274 = math.tanh %273 : vector<2x8x32xf32>
    %275 = arith.mulf %274, %25 : vector<2x8x32xf32>
    %cst_103 = arith.constant dense<0.000000e+00> : vector<2x8xf32>
    %276 = vector.multi_reduction <add>, %275, %cst_103 [2] : vector<2x8x32xf32> to vector<2x8xf32>
    %277 = arith.select %29, %276, %30 : vector<2x8xi1>, vector<2x8xf32>
    %cst_104 = arith.constant dense<0xFF800000> : vector<2xf32>
    %278 = vector.multi_reduction <maximumf>, %277, %cst_104 [1] : vector<2x8xf32> to vector<2xf32>
    %279 = vector.shape_cast %278 : vector<2xf32> to vector<2x1xf32>
    %280 = vector.broadcast %279 : vector<2x1xf32> to vector<2x8xf32>
    %281 = arith.subf %277, %280 : vector<2x8xf32>
    %282 = math.exp %281 : vector<2x8xf32>
    %cst_105 = arith.constant dense<0.000000e+00> : vector<2xf32>
    %283 = vector.multi_reduction <add>, %282, %cst_105 [1] : vector<2x8xf32> to vector<2xf32>
    %284 = vector.shape_cast %283 : vector<2xf32> to vector<2x1xf32>
    %285 = tpu.reciprocal %284 : vector<2x1xf32> -> vector<2x1xf32>
    %286 = vector.broadcast %285 : vector<2x1xf32> to vector<2x8xf32>
    %287 = arith.mulf %282, %286 : vector<2x8xf32>
    %288 = vector.shape_cast %287 : vector<2x8xf32> to vector<2x8x1xf32>
    %289 = vector.broadcast %288 : vector<2x8x1xf32> to vector<2x8x64xf32>
    %290 = arith.mulf %289, %3 : vector<2x8x64xf32>
    %cst_106 = arith.constant dense<0.000000e+00> : vector<2x64xf32>
    %291 = vector.multi_reduction <add>, %290, %cst_106 [1] : vector<2x8x64xf32> to vector<2x64xf32>
    %cst_107 = arith.constant dense<0.000000e+00> : vector<2x96xf32>
    %292 = tpu.matmul %268, %5, %cst_107 {dimension_numbers = #tpu.dot_dimension_numbers<[1], [0], [0], [1], [0, 0, 1, 1], [], []>} : vector<2x32xf32>, vector<32x96xf32>, vector<2x96xf32> -> vector<2x96xf32>
    %cst_108 = arith.constant dense<0.000000e+00> : vector<2x96xf32>
    %293 = tpu.matmul %291, %6, %cst_108 {dimension_numbers = #tpu.dot_dimension_numbers<[1], [0], [0], [1], [0, 0, 1, 1], [], []>} : vector<2x64xf32>, vector<64x96xf32>, vector<2x96xf32> -> vector<2x96xf32>
    %294 = arith.addf %292, %293 : vector<2x96xf32>
    %295 = arith.addf %294, %13 : vector<2x96xf32>
    %cst_109 = arith.constant dense<0.000000e+00> : vector<2x96xf32>
    %296 = tpu.matmul %218, %7, %cst_109 {dimension_numbers = #tpu.dot_dimension_numbers<[1], [0], [0], [1], [0, 0, 1, 1], [], []>} : vector<2x32xf32>, vector<32x96xf32>, vector<2x96xf32> -> vector<2x96xf32>
    %297 = arith.addf %296, %16 : vector<2x96xf32>
    %298 = vector.extract_strided_slice %295 {offsets = [0, 0], sizes = [2, 32], strides = [1, 1]} : vector<2x96xf32> to vector<2x32xf32>
    %299 = vector.extract_strided_slice %297 {offsets = [0, 0], sizes = [2, 32], strides = [1, 1]} : vector<2x96xf32> to vector<2x32xf32>
    %300 = arith.addf %298, %299 : vector<2x32xf32>
    %301 = arith.negf %300 : vector<2x32xf32>
    %302 = math.exp %301 : vector<2x32xf32>
    %cst_110 = arith.constant 1.000000e+00 : f32
    %303 = vector.broadcast %cst_110 : f32 to vector<2x32xf32>
    %304 = arith.addf %303, %302 : vector<2x32xf32>
    %305 = arith.divf %303, %304 : vector<2x32xf32>
    %306 = vector.extract_strided_slice %295 {offsets = [0, 32], sizes = [2, 32], strides = [1, 1]} : vector<2x96xf32> to vector<2x32xf32>
    %307 = vector.extract_strided_slice %297 {offsets = [0, 32], sizes = [2, 32], strides = [1, 1]} : vector<2x96xf32> to vector<2x32xf32>
    %308 = arith.addf %306, %307 : vector<2x32xf32>
    %309 = arith.negf %308 : vector<2x32xf32>
    %310 = math.exp %309 : vector<2x32xf32>
    %cst_111 = arith.constant 1.000000e+00 : f32
    %311 = vector.broadcast %cst_111 : f32 to vector<2x32xf32>
    %312 = arith.addf %311, %310 : vector<2x32xf32>
    %313 = arith.divf %311, %312 : vector<2x32xf32>
    %314 = vector.extract_strided_slice %295 {offsets = [0, 64], sizes = [2, 32], strides = [1, 1]} : vector<2x96xf32> to vector<2x32xf32>
    %315 = vector.extract_strided_slice %297 {offsets = [0, 64], sizes = [2, 32], strides = [1, 1]} : vector<2x96xf32> to vector<2x32xf32>
    %316 = arith.mulf %305, %315 : vector<2x32xf32>
    %317 = arith.addf %314, %316 : vector<2x32xf32>
    %318 = math.tanh %317 : vector<2x32xf32>
    %cst_112 = arith.constant 1.000000e+00 : f32
    %319 = vector.broadcast %cst_112 : f32 to vector<2x32xf32>
    %320 = arith.subf %319, %313 : vector<2x32xf32>
    %321 = arith.mulf %320, %318 : vector<2x32xf32>
    %322 = arith.mulf %313, %218 : vector<2x32xf32>
    %323 = arith.addf %321, %322 : vector<2x32xf32>
    %cst_113 = arith.constant dense<0.000000e+00> : vector<2x32xf32>
    %324 = tpu.matmul %323, %8, %cst_113 {dimension_numbers = #tpu.dot_dimension_numbers<[1], [0], [0], [1], [0, 0, 1, 1], [], []>} : vector<2x32xf32>, vector<32x32xf32>, vector<2x32xf32> -> vector<2x32xf32>
    %cst_114 = arith.constant dense<0.000000e+00> : vector<2x32xf32>
    %325 = tpu.matmul %291, %9, %cst_114 {dimension_numbers = #tpu.dot_dimension_numbers<[1], [0], [0], [1], [0, 0, 1, 1], [], []>} : vector<2x64xf32>, vector<64x32xf32>, vector<2x32xf32> -> vector<2x32xf32>
    %326 = arith.addf %324, %325 : vector<2x32xf32>
    %cst_115 = arith.constant dense<0.000000e+00> : vector<2x32xf32>
    %327 = tpu.matmul %268, %10, %cst_115 {dimension_numbers = #tpu.dot_dimension_numbers<[1], [0], [0], [1], [0, 0, 1, 1], [], []>} : vector<2x32xf32>, vector<32x32xf32>, vector<2x32xf32> -> vector<2x32xf32>
    %328 = arith.addf %326, %327 : vector<2x32xf32>
    %329 = arith.addf %328, %19 : vector<2x32xf32>
    %c3 = arith.constant 3 : index
    %c0_116 = arith.constant 0 : index
    %c0_117 = arith.constant 0 : index
    %330 = vector.load %arg18[%c3, %c0_116, %c0_117] : memref<6x2x32xf32, #tpu.memory_space<vmem>>, vector<1x2x32xf32>
    %331 = vector.shape_cast %330 : vector<1x2x32xf32> to vector<2x32xf32>
    %332 = vector.shape_cast %329 : vector<2x32xf32> to vector<1x2x32xf32>
    tpu.vector_store %arg18[%c3, %c0_116, %c0_117], %332 {strides = array<i32>} : memref<6x2x32xf32, #tpu.memory_space<vmem>>, vector<1x2x32xf32>,
    %cst_118 = arith.constant dense<0xFF800000> : vector<2xf32>
    %333 = vector.multi_reduction <maximumf>, %329, %cst_118 [1] : vector<2x32xf32> to vector<2xf32>
    %334 = vector.shape_cast %333 : vector<2xf32> to vector<2x1xf32>
    %335 = vector.broadcast %334 : vector<2x1xf32> to vector<2x32xf32>
    %336 = arith.cmpf oge, %329, %335 : vector<2x32xf32>
    %cst_119 = arith.constant 3.200000e+01 : f32
    %337 = vector.broadcast %cst_119 : f32 to vector<2x32xf32>
    %338 = arith.select %336, %2, %337 : vector<2x32xi1>, vector<2x32xf32>
    %cst_120 = arith.constant dense<0x7F800000> : vector<2xf32>
    %339 = vector.multi_reduction <minimumf>, %338, %cst_120 [1] : vector<2x32xf32> to vector<2xf32>
    %340 = vector.shape_cast %339 : vector<2xf32> to vector<2x1xf32>
    %341 = vector.broadcast %340 : vector<2x1xf32> to vector<2x32xf32>
    %342 = arith.cmpf oeq, %2, %341 : vector<2x32xf32>
    %343 = arith.extui %342 : vector<2x32xi1> to vector<2x32xi32>
    %344 = arith.sitofp %343 : vector<2x32xi32> to vector<2x32xf32>
    %cst_121 = arith.constant 0.000000e+00 : f32
    %345 = vector.broadcast %cst_121 : f32 to vector<2x32xf32>
    %c3_122 = arith.constant 3 : index
    %c0_123 = arith.constant 0 : index
    %346 = memref.load %arg0[%c3_122, %c0_123] : memref<6x2xi32, #tpu.memory_space<smem>>
    %c0_i32_124 = arith.constant 0 : i32
    %347 = vector.broadcast %c0_i32_124 : i32 to vector<2x32xi32>
    %348 = arith.cmpi eq, %0, %347 : vector<2x32xi32>
    %349 = vector.broadcast %346 : i32 to vector<2x32xi32>
    %350 = arith.cmpi eq, %1, %349 : vector<2x32xi32>
    %351 = arith.andi %348, %350 : vector<2x32xi1>
    %352 = arith.extui %351 : vector<2x32xi1> to vector<2x32xi32>
    %353 = arith.sitofp %352 : vector<2x32xi32> to vector<2x32xf32>
    %354 = arith.addf %345, %353 : vector<2x32xf32>
    %c3_125 = arith.constant 3 : index
    %c1_126 = arith.constant 1 : index
    %355 = memref.load %arg0[%c3_125, %c1_126] : memref<6x2xi32, #tpu.memory_space<smem>>
    %c1_i32_127 = arith.constant 1 : i32
    %356 = vector.broadcast %c1_i32_127 : i32 to vector<2x32xi32>
    %357 = arith.cmpi eq, %0, %356 : vector<2x32xi32>
    %358 = vector.broadcast %355 : i32 to vector<2x32xi32>
    %359 = arith.cmpi eq, %1, %358 : vector<2x32xi32>
    %360 = arith.andi %357, %359 : vector<2x32xi1>
    %361 = arith.extui %360 : vector<2x32xi1> to vector<2x32xi32>
    %362 = arith.sitofp %361 : vector<2x32xi32> to vector<2x32xf32>
    %363 = arith.addf %354, %362 : vector<2x32xf32>
    %c3_128 = arith.constant 3 : index
    %364 = memref.load %arg1[%c3_128] : memref<6xi32, #tpu.memory_space<smem>>
    %c0_i32_129 = arith.constant 0 : i32
    %365 = arith.cmpi sgt, %364, %c0_i32_129 : i32
    %366 = arith.extui %365 : i1 to i32
    %367 = arith.sitofp %366 : i32 to f32
    %368 = vector.broadcast %367 : f32 to vector<2x32xf32>
    %369 = arith.mulf %368, %363 : vector<2x32xf32>
    %cst_130 = arith.constant 1.000000e+00 : f32
    %370 = arith.subf %cst_130, %367 : f32
    %371 = vector.broadcast %370 : f32 to vector<2x32xf32>
    %372 = arith.mulf %371, %344 : vector<2x32xf32>
    %373 = arith.addf %369, %372 : vector<2x32xf32>
    %cst_131 = arith.constant dense<0.000000e+00> : vector<2x32xf32>
    %374 = tpu.matmul %323, %4, %cst_131 {dimension_numbers = #tpu.dot_dimension_numbers<[1], [0], [0], [1], [0, 0, 1, 1], [], []>} : vector<2x32xf32>, vector<32x32xf32>, vector<2x32xf32> -> vector<2x32xf32>
    %375 = vector.shape_cast %374 : vector<2x32xf32> to vector<2x1x32xf32>
    %376 = vector.broadcast %375 : vector<2x1x32xf32> to vector<2x8x32xf32>
    %377 = arith.addf %376, %34 : vector<2x8x32xf32>
    %378 = arith.addf %377, %22 : vector<2x8x32xf32>
    %379 = math.tanh %378 : vector<2x8x32xf32>
    %380 = arith.mulf %379, %25 : vector<2x8x32xf32>
    %cst_132 = arith.constant dense<0.000000e+00> : vector<2x8xf32>
    %381 = vector.multi_reduction <add>, %380, %cst_132 [2] : vector<2x8x32xf32> to vector<2x8xf32>
    %382 = arith.select %29, %381, %30 : vector<2x8xi1>, vector<2x8xf32>
    %cst_133 = arith.constant dense<0xFF800000> : vector<2xf32>
    %383 = vector.multi_reduction <maximumf>, %382, %cst_133 [1] : vector<2x8xf32> to vector<2xf32>
    %384 = vector.shape_cast %383 : vector<2xf32> to vector<2x1xf32>
    %385 = vector.broadcast %384 : vector<2x1xf32> to vector<2x8xf32>
    %386 = arith.subf %382, %385 : vector<2x8xf32>
    %387 = math.exp %386 : vector<2x8xf32>
    %cst_134 = arith.constant dense<0.000000e+00> : vector<2xf32>
    %388 = vector.multi_reduction <add>, %387, %cst_134 [1] : vector<2x8xf32> to vector<2xf32>
    %389 = vector.shape_cast %388 : vector<2xf32> to vector<2x1xf32>
    %390 = tpu.reciprocal %389 : vector<2x1xf32> -> vector<2x1xf32>
    %391 = vector.broadcast %390 : vector<2x1xf32> to vector<2x8xf32>
    %392 = arith.mulf %387, %391 : vector<2x8xf32>
    %393 = vector.shape_cast %392 : vector<2x8xf32> to vector<2x8x1xf32>
    %394 = vector.broadcast %393 : vector<2x8x1xf32> to vector<2x8x64xf32>
    %395 = arith.mulf %394, %3 : vector<2x8x64xf32>
    %cst_135 = arith.constant dense<0.000000e+00> : vector<2x64xf32>
    %396 = vector.multi_reduction <add>, %395, %cst_135 [1] : vector<2x8x64xf32> to vector<2x64xf32>
    %cst_136 = arith.constant dense<0.000000e+00> : vector<2x96xf32>
    %397 = tpu.matmul %373, %5, %cst_136 {dimension_numbers = #tpu.dot_dimension_numbers<[1], [0], [0], [1], [0, 0, 1, 1], [], []>} : vector<2x32xf32>, vector<32x96xf32>, vector<2x96xf32> -> vector<2x96xf32>
    %cst_137 = arith.constant dense<0.000000e+00> : vector<2x96xf32>
    %398 = tpu.matmul %396, %6, %cst_137 {dimension_numbers = #tpu.dot_dimension_numbers<[1], [0], [0], [1], [0, 0, 1, 1], [], []>} : vector<2x64xf32>, vector<64x96xf32>, vector<2x96xf32> -> vector<2x96xf32>
    %399 = arith.addf %397, %398 : vector<2x96xf32>
    %400 = arith.addf %399, %13 : vector<2x96xf32>
    %cst_138 = arith.constant dense<0.000000e+00> : vector<2x96xf32>
    %401 = tpu.matmul %323, %7, %cst_138 {dimension_numbers = #tpu.dot_dimension_numbers<[1], [0], [0], [1], [0, 0, 1, 1], [], []>} : vector<2x32xf32>, vector<32x96xf32>, vector<2x96xf32> -> vector<2x96xf32>
    %402 = arith.addf %401, %16 : vector<2x96xf32>
    %403 = vector.extract_strided_slice %400 {offsets = [0, 0], sizes = [2, 32], strides = [1, 1]} : vector<2x96xf32> to vector<2x32xf32>
    %404 = vector.extract_strided_slice %402 {offsets = [0, 0], sizes = [2, 32], strides = [1, 1]} : vector<2x96xf32> to vector<2x32xf32>
    %405 = arith.addf %403, %404 : vector<2x32xf32>
    %406 = arith.negf %405 : vector<2x32xf32>
    %407 = math.exp %406 : vector<2x32xf32>
    %cst_139 = arith.constant 1.000000e+00 : f32
    %408 = vector.broadcast %cst_139 : f32 to vector<2x32xf32>
    %409 = arith.addf %408, %407 : vector<2x32xf32>
    %410 = arith.divf %408, %409 : vector<2x32xf32>
    %411 = vector.extract_strided_slice %400 {offsets = [0, 32], sizes = [2, 32], strides = [1, 1]} : vector<2x96xf32> to vector<2x32xf32>
    %412 = vector.extract_strided_slice %402 {offsets = [0, 32], sizes = [2, 32], strides = [1, 1]} : vector<2x96xf32> to vector<2x32xf32>
    %413 = arith.addf %411, %412 : vector<2x32xf32>
    %414 = arith.negf %413 : vector<2x32xf32>
    %415 = math.exp %414 : vector<2x32xf32>
    %cst_140 = arith.constant 1.000000e+00 : f32
    %416 = vector.broadcast %cst_140 : f32 to vector<2x32xf32>
    %417 = arith.addf %416, %415 : vector<2x32xf32>
    %418 = arith.divf %416, %417 : vector<2x32xf32>
    %419 = vector.extract_strided_slice %400 {offsets = [0, 64], sizes = [2, 32], strides = [1, 1]} : vector<2x96xf32> to vector<2x32xf32>
    %420 = vector.extract_strided_slice %402 {offsets = [0, 64], sizes = [2, 32], strides = [1, 1]} : vector<2x96xf32> to vector<2x32xf32>
    %421 = arith.mulf %410, %420 : vector<2x32xf32>
    %422 = arith.addf %419, %421 : vector<2x32xf32>
    %423 = math.tanh %422 : vector<2x32xf32>
    %cst_141 = arith.constant 1.000000e+00 : f32
    %424 = vector.broadcast %cst_141 : f32 to vector<2x32xf32>
    %425 = arith.subf %424, %418 : vector<2x32xf32>
    %426 = arith.mulf %425, %423 : vector<2x32xf32>
    %427 = arith.mulf %418, %323 : vector<2x32xf32>
    %428 = arith.addf %426, %427 : vector<2x32xf32>
    %cst_142 = arith.constant dense<0.000000e+00> : vector<2x32xf32>
    %429 = tpu.matmul %428, %8, %cst_142 {dimension_numbers = #tpu.dot_dimension_numbers<[1], [0], [0], [1], [0, 0, 1, 1], [], []>} : vector<2x32xf32>, vector<32x32xf32>, vector<2x32xf32> -> vector<2x32xf32>
    %cst_143 = arith.constant dense<0.000000e+00> : vector<2x32xf32>
    %430 = tpu.matmul %396, %9, %cst_143 {dimension_numbers = #tpu.dot_dimension_numbers<[1], [0], [0], [1], [0, 0, 1, 1], [], []>} : vector<2x64xf32>, vector<64x32xf32>, vector<2x32xf32> -> vector<2x32xf32>
    %431 = arith.addf %429, %430 : vector<2x32xf32>
    %cst_144 = arith.constant dense<0.000000e+00> : vector<2x32xf32>
    %432 = tpu.matmul %373, %10, %cst_144 {dimension_numbers = #tpu.dot_dimension_numbers<[1], [0], [0], [1], [0, 0, 1, 1], [], []>} : vector<2x32xf32>, vector<32x32xf32>, vector<2x32xf32> -> vector<2x32xf32>
    %433 = arith.addf %431, %432 : vector<2x32xf32>
    %434 = arith.addf %433, %19 : vector<2x32xf32>
    %c4 = arith.constant 4 : index
    %c0_145 = arith.constant 0 : index
    %c0_146 = arith.constant 0 : index
    %435 = vector.load %arg18[%c4, %c0_145, %c0_146] : memref<6x2x32xf32, #tpu.memory_space<vmem>>, vector<1x2x32xf32>
    %436 = vector.shape_cast %435 : vector<1x2x32xf32> to vector<2x32xf32>
    %437 = vector.shape_cast %434 : vector<2x32xf32> to vector<1x2x32xf32>
    tpu.vector_store %arg18[%c4, %c0_145, %c0_146], %437 {strides = array<i32>} : memref<6x2x32xf32, #tpu.memory_space<vmem>>, vector<1x2x32xf32>,
    %cst_147 = arith.constant dense<0xFF800000> : vector<2xf32>
    %438 = vector.multi_reduction <maximumf>, %434, %cst_147 [1] : vector<2x32xf32> to vector<2xf32>
    %439 = vector.shape_cast %438 : vector<2xf32> to vector<2x1xf32>
    %440 = vector.broadcast %439 : vector<2x1xf32> to vector<2x32xf32>
    %441 = arith.cmpf oge, %434, %440 : vector<2x32xf32>
    %cst_148 = arith.constant 3.200000e+01 : f32
    %442 = vector.broadcast %cst_148 : f32 to vector<2x32xf32>
    %443 = arith.select %441, %2, %442 : vector<2x32xi1>, vector<2x32xf32>
    %cst_149 = arith.constant dense<0x7F800000> : vector<2xf32>
    %444 = vector.multi_reduction <minimumf>, %443, %cst_149 [1] : vector<2x32xf32> to vector<2xf32>
    %445 = vector.shape_cast %444 : vector<2xf32> to vector<2x1xf32>
    %446 = vector.broadcast %445 : vector<2x1xf32> to vector<2x32xf32>
    %447 = arith.cmpf oeq, %2, %446 : vector<2x32xf32>
    %448 = arith.extui %447 : vector<2x32xi1> to vector<2x32xi32>
    %449 = arith.sitofp %448 : vector<2x32xi32> to vector<2x32xf32>
    %cst_150 = arith.constant 0.000000e+00 : f32
    %450 = vector.broadcast %cst_150 : f32 to vector<2x32xf32>
    %c4_151 = arith.constant 4 : index
    %c0_152 = arith.constant 0 : index
    %451 = memref.load %arg0[%c4_151, %c0_152] : memref<6x2xi32, #tpu.memory_space<smem>>
    %c0_i32_153 = arith.constant 0 : i32
    %452 = vector.broadcast %c0_i32_153 : i32 to vector<2x32xi32>
    %453 = arith.cmpi eq, %0, %452 : vector<2x32xi32>
    %454 = vector.broadcast %451 : i32 to vector<2x32xi32>
    %455 = arith.cmpi eq, %1, %454 : vector<2x32xi32>
    %456 = arith.andi %453, %455 : vector<2x32xi1>
    %457 = arith.extui %456 : vector<2x32xi1> to vector<2x32xi32>
    %458 = arith.sitofp %457 : vector<2x32xi32> to vector<2x32xf32>
    %459 = arith.addf %450, %458 : vector<2x32xf32>
    %c4_154 = arith.constant 4 : index
    %c1_155 = arith.constant 1 : index
    %460 = memref.load %arg0[%c4_154, %c1_155] : memref<6x2xi32, #tpu.memory_space<smem>>
    %c1_i32_156 = arith.constant 1 : i32
    %461 = vector.broadcast %c1_i32_156 : i32 to vector<2x32xi32>
    %462 = arith.cmpi eq, %0, %461 : vector<2x32xi32>
    %463 = vector.broadcast %460 : i32 to vector<2x32xi32>
    %464 = arith.cmpi eq, %1, %463 : vector<2x32xi32>
    %465 = arith.andi %462, %464 : vector<2x32xi1>
    %466 = arith.extui %465 : vector<2x32xi1> to vector<2x32xi32>
    %467 = arith.sitofp %466 : vector<2x32xi32> to vector<2x32xf32>
    %468 = arith.addf %459, %467 : vector<2x32xf32>
    %c4_157 = arith.constant 4 : index
    %469 = memref.load %arg1[%c4_157] : memref<6xi32, #tpu.memory_space<smem>>
    %c0_i32_158 = arith.constant 0 : i32
    %470 = arith.cmpi sgt, %469, %c0_i32_158 : i32
    %471 = arith.extui %470 : i1 to i32
    %472 = arith.sitofp %471 : i32 to f32
    %473 = vector.broadcast %472 : f32 to vector<2x32xf32>
    %474 = arith.mulf %473, %468 : vector<2x32xf32>
    %cst_159 = arith.constant 1.000000e+00 : f32
    %475 = arith.subf %cst_159, %472 : f32
    %476 = vector.broadcast %475 : f32 to vector<2x32xf32>
    %477 = arith.mulf %476, %449 : vector<2x32xf32>
    %478 = arith.addf %474, %477 : vector<2x32xf32>
    %cst_160 = arith.constant dense<0.000000e+00> : vector<2x32xf32>
    %479 = tpu.matmul %428, %4, %cst_160 {dimension_numbers = #tpu.dot_dimension_numbers<[1], [0], [0], [1], [0, 0, 1, 1], [], []>} : vector<2x32xf32>, vector<32x32xf32>, vector<2x32xf32> -> vector<2x32xf32>
    %480 = vector.shape_cast %479 : vector<2x32xf32> to vector<2x1x32xf32>
    %481 = vector.broadcast %480 : vector<2x1x32xf32> to vector<2x8x32xf32>
    %482 = arith.addf %481, %34 : vector<2x8x32xf32>
    %483 = arith.addf %482, %22 : vector<2x8x32xf32>
    %484 = math.tanh %483 : vector<2x8x32xf32>
    %485 = arith.mulf %484, %25 : vector<2x8x32xf32>
    %cst_161 = arith.constant dense<0.000000e+00> : vector<2x8xf32>
    %486 = vector.multi_reduction <add>, %485, %cst_161 [2] : vector<2x8x32xf32> to vector<2x8xf32>
    %487 = arith.select %29, %486, %30 : vector<2x8xi1>, vector<2x8xf32>
    %cst_162 = arith.constant dense<0xFF800000> : vector<2xf32>
    %488 = vector.multi_reduction <maximumf>, %487, %cst_162 [1] : vector<2x8xf32> to vector<2xf32>
    %489 = vector.shape_cast %488 : vector<2xf32> to vector<2x1xf32>
    %490 = vector.broadcast %489 : vector<2x1xf32> to vector<2x8xf32>
    %491 = arith.subf %487, %490 : vector<2x8xf32>
    %492 = math.exp %491 : vector<2x8xf32>
    %cst_163 = arith.constant dense<0.000000e+00> : vector<2xf32>
    %493 = vector.multi_reduction <add>, %492, %cst_163 [1] : vector<2x8xf32> to vector<2xf32>
    %494 = vector.shape_cast %493 : vector<2xf32> to vector<2x1xf32>
    %495 = tpu.reciprocal %494 : vector<2x1xf32> -> vector<2x1xf32>
    %496 = vector.broadcast %495 : vector<2x1xf32> to vector<2x8xf32>
    %497 = arith.mulf %492, %496 : vector<2x8xf32>
    %498 = vector.shape_cast %497 : vector<2x8xf32> to vector<2x8x1xf32>
    %499 = vector.broadcast %498 : vector<2x8x1xf32> to vector<2x8x64xf32>
    %500 = arith.mulf %499, %3 : vector<2x8x64xf32>
    %cst_164 = arith.constant dense<0.000000e+00> : vector<2x64xf32>
    %501 = vector.multi_reduction <add>, %500, %cst_164 [1] : vector<2x8x64xf32> to vector<2x64xf32>
    %cst_165 = arith.constant dense<0.000000e+00> : vector<2x96xf32>
    %502 = tpu.matmul %478, %5, %cst_165 {dimension_numbers = #tpu.dot_dimension_numbers<[1], [0], [0], [1], [0, 0, 1, 1], [], []>} : vector<2x32xf32>, vector<32x96xf32>, vector<2x96xf32> -> vector<2x96xf32>
    %cst_166 = arith.constant dense<0.000000e+00> : vector<2x96xf32>
    %503 = tpu.matmul %501, %6, %cst_166 {dimension_numbers = #tpu.dot_dimension_numbers<[1], [0], [0], [1], [0, 0, 1, 1], [], []>} : vector<2x64xf32>, vector<64x96xf32>, vector<2x96xf32> -> vector<2x96xf32>
    %504 = arith.addf %502, %503 : vector<2x96xf32>
    %505 = arith.addf %504, %13 : vector<2x96xf32>
    %cst_167 = arith.constant dense<0.000000e+00> : vector<2x96xf32>
    %506 = tpu.matmul %428, %7, %cst_167 {dimension_numbers = #tpu.dot_dimension_numbers<[1], [0], [0], [1], [0, 0, 1, 1], [], []>} : vector<2x32xf32>, vector<32x96xf32>, vector<2x96xf32> -> vector<2x96xf32>
    %507 = arith.addf %506, %16 : vector<2x96xf32>
    %508 = vector.extract_strided_slice %505 {offsets = [0, 0], sizes = [2, 32], strides = [1, 1]} : vector<2x96xf32> to vector<2x32xf32>
    %509 = vector.extract_strided_slice %507 {offsets = [0, 0], sizes = [2, 32], strides = [1, 1]} : vector<2x96xf32> to vector<2x32xf32>
    %510 = arith.addf %508, %509 : vector<2x32xf32>
    %511 = arith.negf %510 : vector<2x32xf32>
    %512 = math.exp %511 : vector<2x32xf32>
    %cst_168 = arith.constant 1.000000e+00 : f32
    %513 = vector.broadcast %cst_168 : f32 to vector<2x32xf32>
    %514 = arith.addf %513, %512 : vector<2x32xf32>
    %515 = arith.divf %513, %514 : vector<2x32xf32>
    %516 = vector.extract_strided_slice %505 {offsets = [0, 32], sizes = [2, 32], strides = [1, 1]} : vector<2x96xf32> to vector<2x32xf32>
    %517 = vector.extract_strided_slice %507 {offsets = [0, 32], sizes = [2, 32], strides = [1, 1]} : vector<2x96xf32> to vector<2x32xf32>
    %518 = arith.addf %516, %517 : vector<2x32xf32>
    %519 = arith.negf %518 : vector<2x32xf32>
    %520 = math.exp %519 : vector<2x32xf32>
    %cst_169 = arith.constant 1.000000e+00 : f32
    %521 = vector.broadcast %cst_169 : f32 to vector<2x32xf32>
    %522 = arith.addf %521, %520 : vector<2x32xf32>
    %523 = arith.divf %521, %522 : vector<2x32xf32>
    %524 = vector.extract_strided_slice %505 {offsets = [0, 64], sizes = [2, 32], strides = [1, 1]} : vector<2x96xf32> to vector<2x32xf32>
    %525 = vector.extract_strided_slice %507 {offsets = [0, 64], sizes = [2, 32], strides = [1, 1]} : vector<2x96xf32> to vector<2x32xf32>
    %526 = arith.mulf %515, %525 : vector<2x32xf32>
    %527 = arith.addf %524, %526 : vector<2x32xf32>
    %528 = math.tanh %527 : vector<2x32xf32>
    %cst_170 = arith.constant 1.000000e+00 : f32
    %529 = vector.broadcast %cst_170 : f32 to vector<2x32xf32>
    %530 = arith.subf %529, %523 : vector<2x32xf32>
    %531 = arith.mulf %530, %528 : vector<2x32xf32>
    %532 = arith.mulf %523, %428 : vector<2x32xf32>
    %533 = arith.addf %531, %532 : vector<2x32xf32>
    %cst_171 = arith.constant dense<0.000000e+00> : vector<2x32xf32>
    %534 = tpu.matmul %533, %8, %cst_171 {dimension_numbers = #tpu.dot_dimension_numbers<[1], [0], [0], [1], [0, 0, 1, 1], [], []>} : vector<2x32xf32>, vector<32x32xf32>, vector<2x32xf32> -> vector<2x32xf32>
    %cst_172 = arith.constant dense<0.000000e+00> : vector<2x32xf32>
    %535 = tpu.matmul %501, %9, %cst_172 {dimension_numbers = #tpu.dot_dimension_numbers<[1], [0], [0], [1], [0, 0, 1, 1], [], []>} : vector<2x64xf32>, vector<64x32xf32>, vector<2x32xf32> -> vector<2x32xf32>
    %536 = arith.addf %534, %535 : vector<2x32xf32>
    %cst_173 = arith.constant dense<0.000000e+00> : vector<2x32xf32>
    %537 = tpu.matmul %478, %10, %cst_173 {dimension_numbers = #tpu.dot_dimension_numbers<[1], [0], [0], [1], [0, 0, 1, 1], [], []>} : vector<2x32xf32>, vector<32x32xf32>, vector<2x32xf32> -> vector<2x32xf32>
    %538 = arith.addf %536, %537 : vector<2x32xf32>
    %539 = arith.addf %538, %19 : vector<2x32xf32>
    %c5 = arith.constant 5 : index
    %c0_174 = arith.constant 0 : index
    %c0_175 = arith.constant 0 : index
    %540 = vector.load %arg18[%c5, %c0_174, %c0_175] : memref<6x2x32xf32, #tpu.memory_space<vmem>>, vector<1x2x32xf32>
    %541 = vector.shape_cast %540 : vector<1x2x32xf32> to vector<2x32xf32>
    %542 = vector.shape_cast %539 : vector<2x32xf32> to vector<1x2x32xf32>
    tpu.vector_store %arg18[%c5, %c0_174, %c0_175], %542 {strides = array<i32>} : memref<6x2x32xf32, #tpu.memory_space<vmem>>, vector<1x2x32xf32>,
    return
  }
}

</mosaic_0001>

<llo_original>
// kernel: seq2seq_forward.3
$region0: #{seq2seq_forward.3}
  #allocation0 [shape = 'u32[]', space=smem, size = 0x4, offset = 0x4, fixed_abs, tag = 'smem constant byte address 0x4 - core index']
  #allocation1 [shape = 'u32[144,128]{1,0:T(1,128)}', space=vmem, size = 0x12000, scoped, tag = 'internal scratch']
  %s0 = inlined_call_operand.vmem [shape: s32[6,2], index: 0, kind: input, shape index: {}]
  %s1 = inlined_call_operand.vmem [shape: s32[6], index: 1, kind: input, shape index: {}]
  %s2 = inlined_call_operand.vmem [shape: f32[2,32], index: 2, kind: input, shape index: {}]
  %s3 = inlined_call_operand.vmem [shape: f32[2,8,64], index: 3, kind: input, shape index: {}]
  %s4 = inlined_call_operand.vmem [shape: s32[2,1], index: 4, kind: input, shape index: {}]
  %s5 = inlined_call_operand.vmem [shape: f32[64,32], index: 5, kind: input, shape index: {}]
  %s6 = inlined_call_operand.vmem [shape: f32[32,32], index: 6, kind: input, shape index: {}]
  %s7 = inlined_call_operand.vmem [shape: f32[1,1,32], index: 7, kind: input, shape index: {}]
  %s8 = inlined_call_operand.vmem [shape: f32[1,1,32], index: 8, kind: input, shape index: {}]
  %s9 = inlined_call_operand.vmem [shape: f32[32,96], index: 9, kind: input, shape index: {}]
  %s10 = inlined_call_operand.vmem [shape: f32[64,96], index: 10, kind: input, shape index: {}]
  %s11 = inlined_call_operand.vmem [shape: f32[32,96], index: 11, kind: input, shape index: {}]
  %s12 = inlined_call_operand.vmem [shape: f32[1,96], index: 12, kind: input, shape index: {}]
  %s13 = inlined_call_operand.vmem [shape: f32[1,96], index: 13, kind: input, shape index: {}]
  %s14 = inlined_call_operand.vmem [shape: f32[32,32], index: 14, kind: input, shape index: {}]
  %s15 = inlined_call_operand.vmem [shape: f32[64,32], index: 15, kind: input, shape index: {}]
  %s16 = inlined_call_operand.vmem [shape: f32[32,32], index: 16, kind: input, shape index: {}]
  %s17 = inlined_call_operand.vmem [shape: f32[1,32], index: 17, kind: input, shape index: {}]
  %s18 = inlined_call_operand.hbm [shape: f32[6,2,32], index: 18, kind: output, shape index: {}]
  %s19 = sld [smem:[#allocation0]]
  $region90: #{seq2seq_forward.3} parent=0
    _
  %s21 = ssub.s32 1, %s19
  %s22 = scalar_select 0, %s21, %s19
  $region1: #{seq2seq_forward.3} parent=0
    #allocation2 [shape = 'u8[4096]{0}', space=smem, size = 0x1000, scoped, tag = 'input window, operand 0, single buffered']
    #allocation3 [shape = 's32[1]{0}', space=sflag, size = 0x4, scoped, tag = 'scoped memory for seq2seq_forward.3']
    #allocation4 [shape = 's32[1]{0}', space=sflag, size = 0x4, scoped, tag = 'scoped memory for seq2seq_forward.3']
    #allocation5 [shape = 'u8[512]{0}', space=smem, size = 0x200, scoped, tag = 'input window, operand 1, single buffered']
    #allocation6 [shape = 's32[1]{0}', space=sflag, size = 0x4, scoped, tag = 'scoped memory for seq2seq_forward.3']
    #allocation7 [shape = 'u8[6144]{0}', space=vmem, size = 0x1800, scoped, tag = 'output window, operand 0, single buffered']
    %23 = vsyncpa [#allocation4], 0
    %24 = vsyncpa [#allocation6], 0
    %25 = vsyncpa [#allocation3], 0
    // Predicated region
    $region2: #{seq2seq_forward.3} parent=1 // pred_check
      _
    $region3: #{seq2seq_forward.3} parent=1 // pred_check_branch
      %27 = sbr.rel (0) target = $region5
    $region4: #{seq2seq_forward.3} parent=1 // pred_region
      %s29 = ssub.s32 128, 128
      %30 = vsyncadd [#allocation4], %s29
      %s32 = sshll.u32 %s0, 4
      %s33 = int_to_ptr.vmem [resolvable:$true] %s32
      %35 = dma.vmem_to_smem %s33, 128, [#allocation2], [#allocation4]
    $region5: #{seq2seq_forward.3} parent=1 // pred_fallthru
      _
    // Predicated region
    $region6: #{seq2seq_forward.3} parent=1 // pred_check
      _
    $region7: #{seq2seq_forward.3} parent=1 // pred_check_branch
      %37 = sbr.rel (0) target = $region9
    $region8: #{seq2seq_forward.3} parent=1 // pred_region
      %s39 = ssub.s32 16, 16
      %40 = vsyncadd [#allocation6], %s39
      %s42 = sshll.u32 %s1, 4
      %s43 = int_to_ptr.vmem [resolvable:$true] %s42
      %45 = dma.vmem_to_smem %s43, 16, [#allocation5], [#allocation6]
    $region9: #{seq2seq_forward.3} parent=1 // pred_fallthru
      _
    // Predicated region
    $region10: #{seq2seq_forward.3} parent=1 // pred_check
      _
    $region11: #{seq2seq_forward.3} parent=1 // pred_check_branch
      %47 = sbr.rel (0) target = $region13
    $region12: #{seq2seq_forward.3} parent=1 // pred_region
      _
    $region13: #{seq2seq_forward.3} parent=1 // pred_fallthru
      _
    // Predicated region
    $region14: #{seq2seq_forward.3} parent=1 // pred_check
      _
    $region15: #{seq2seq_forward.3} parent=1 // pred_check_branch
      %49 = sbr.rel (0) target = $region17
    $region16: #{seq2seq_forward.3} parent=1 // pred_region
      _
    $region17: #{seq2seq_forward.3} parent=1 // pred_fallthru
      _
    // Predicated region
    $region18: #{seq2seq_forward.3} parent=1 // pred_check
      _
    $region19: #{seq2seq_forward.3} parent=1 // pred_check_branch
      %51 = sbr.rel (0) target = $region21
    $region20: #{seq2seq_forward.3} parent=1 // pred_region
      _
    $region21: #{seq2seq_forward.3} parent=1 // pred_fallthru
      _
    // Predicated region
    $region22: #{seq2seq_forward.3} parent=1 // pred_check
      _
    $region23: #{seq2seq_forward.3} parent=1 // pred_check_branch
      %53 = sbr.rel (0) target = $region25
    $region24: #{seq2seq_forward.3} parent=1 // pred_region
      _
    $region25: #{seq2seq_forward.3} parent=1 // pred_fallthru
      _
    // Predicated region
    $region26: #{seq2seq_forward.3} parent=1 // pred_check
      _
    $region27: #{seq2seq_forward.3} parent=1 // pred_check_branch
      %55 = sbr.rel (0) target = $region29
    $region28: #{seq2seq_forward.3} parent=1 // pred_region
      _
    $region29: #{seq2seq_forward.3} parent=1 // pred_fallthru
      _
    // Predicated region
    $region30: #{seq2seq_forward.3} parent=1 // pred_check
      _
    $region31: #{seq2seq_forward.3} parent=1 // pred_check_branch
      %57 = sbr.rel (0) target = $region33
    $region32: #{seq2seq_forward.3} parent=1 // pred_region
      _
    $region33: #{seq2seq_forward.3} parent=1 // pred_fallthru
      _
    // Predicated region
    $region34: #{seq2seq_forward.3} parent=1 // pred_check
      _
    $region35: #{seq2seq_forward.3} parent=1 // pred_check_branch
      %59 = sbr.rel (0) target = $region37
    $region36: #{seq2seq_forward.3} parent=1 // pred_region
      _
    $region37: #{seq2seq_forward.3} parent=1 // pred_fallthru
      _
    // Predicated region
    $region38: #{seq2seq_forward.3} parent=1 // pred_check
      _
    $region39: #{seq2seq_forward.3} parent=1 // pred_check_branch
      %61 = sbr.rel (0) target = $region41
    $region40: #{seq2seq_forward.3} parent=1 // pred_region
      _
    $region41: #{seq2seq_forward.3} parent=1 // pred_fallthru
      _
    // Predicated region
    $region42: #{seq2seq_forward.3} parent=1 // pred_check
      _
    $region43: #{seq2seq_forward.3} parent=1 // pred_check_branch
      %63 = sbr.rel (0) target = $region45
    $region44: #{seq2seq_forward.3} parent=1 // pred_region
      _
    $region45: #{seq2seq_forward.3} parent=1 // pred_fallthru
      _
    // Predicated region
    $region46: #{seq2seq_forward.3} parent=1 // pred_check
      _
    $region47: #{seq2seq_forward.3} parent=1 // pred_check_branch
      %65 = sbr.rel (0) target = $region49
    $region48: #{seq2seq_forward.3} parent=1 // pred_region
      _
    $region49: #{seq2seq_forward.3} parent=1 // pred_fallthru
      _
    // Predicated region
    $region50: #{seq2seq_forward.3} parent=1 // pred_check
      _
    $region51: #{seq2seq_forward.3} parent=1 // pred_check_branch
      %67 = sbr.rel (0) target = $region53
    $region52: #{seq2seq_forward.3} parent=1 // pred_region
      _
    $region53: #{seq2seq_forward.3} parent=1 // pred_fallthru
      _
    // Predicated region
    $region54: #{seq2seq_forward.3} parent=1 // pred_check
      _
    $region55: #{seq2seq_forward.3} parent=1 // pred_check_branch
      %69 = sbr.rel (0) target = $region57
    $region56: #{seq2seq_forward.3} parent=1 // pred_region
      _
    $region57: #{seq2seq_forward.3} parent=1 // pred_fallthru
      _
    // Predicated region
    $region58: #{seq2seq_forward.3} parent=1 // pred_check
      _
    $region59: #{seq2seq_forward.3} parent=1 // pred_check_branch
      %71 = sbr.rel (0) target = $region61
    $region60: #{seq2seq_forward.3} parent=1 // pred_region
      _
    $region61: #{seq2seq_forward.3} parent=1 // pred_fallthru
      _
    // Predicated region
    $region62: #{seq2seq_forward.3} parent=1 // pred_check
      _
    $region63: #{seq2seq_forward.3} parent=1 // pred_check_branch
      %73 = sbr.rel (0) target = $region65
    $region64: #{seq2seq_forward.3} parent=1 // pred_region
      _
    $region65: #{seq2seq_forward.3} parent=1 // pred_fallthru
      _
    // Predicated region
    $region66: #{seq2seq_forward.3} parent=1 // pred_check
      _
    $region67: #{seq2seq_forward.3} parent=1 // pred_check_branch
      %75 = sbr.rel (0) target = $region69
    $region68: #{seq2seq_forward.3} parent=1 // pred_region
      _
    $region69: #{seq2seq_forward.3} parent=1 // pred_fallthru
      _
    // Predicated region
    $region70: #{seq2seq_forward.3} parent=1 // pred_check
      _
    $region71: #{seq2seq_forward.3} parent=1 // pred_check_branch
      %77 = sbr.rel (0) target = $region73
    $region72: #{seq2seq_forward.3} parent=1 // pred_region
      _
    $region73: #{seq2seq_forward.3} parent=1 // pred_fallthru
      _
    // Predicated region
    $region74: #{seq2seq_forward.3} parent=1 // pred_check
      _
    $region75: #{seq2seq_forward.3} parent=1 // pred_check_branch
      %79 = sbr.rel (0) target = $region77
    $region76: #{seq2seq_forward.3} parent=1 // pred_region
      %80 = dma.done [#allocation4], 128
    $region77: #{seq2seq_forward.3} parent=1 // pred_fallthru
      _
    // Predicated region
    $region78: #{seq2seq_forward.3} parent=1 // pred_check
      _
    $region79: #{seq2seq_forward.3} parent=1 // pred_check_branch
      %82 = sbr.rel (0) target = $region81
    $region80: #{seq2seq_forward.3} parent=1 // pred_region
      %83 = dma.done [#allocation6], 16
    $region81: #{seq2seq_forward.3} parent=1 // pred_fallthru
      _
    %84 = sfence
    %v85 = vlaneseq
    %v86 = vshrl.u32 %v85, 7
    %v87 = vlaneseq
    %v88 = vand.u32 %v87, 127
    %v89 = vcvt.s32.f32 %v88
    %v90 = vld [vmem:[%s3] sm:$0xff]
    %v91 = vld [vmem:[%s3 + $0x8] sm:$0xff]
    %v92 = vld [vmem:[%s6] sm:$0xff]
    %v93 = vld [vmem:[%s6 + $0x8] sm:$0xff]
    %v94 = vld [vmem:[%s6 + $0x10] sm:$0xff]
    %v95 = vld [vmem:[%s6 + $0x18] sm:$0xff]
    %v96 = vld [vmem:[%s9] sm:$0xff]
    %v97 = vld [vmem:[%s9 + $0x8] sm:$0xff]
    %v98 = vld [vmem:[%s9 + $0x10] sm:$0xff]
    %v99 = vld [vmem:[%s9 + $0x18] sm:$0xff]
    %v100 = vld [vmem:[%s10] sm:$0xff]
    %v101 = vld [vmem:[%s10 + $0x8] sm:$0xff]
    %v102 = vld [vmem:[%s10 + $0x10] sm:$0xff]
    %v103 = vld [vmem:[%s10 + $0x18] sm:$0xff]
    %v104 = vld [vmem:[%s10 + $0x20] sm:$0xff]
    %v105 = vld [vmem:[%s10 + $0x28] sm:$0xff]
    %v106 = vld [vmem:[%s10 + $0x30] sm:$0xff]
    %v107 = vld [vmem:[%s10 + $0x38] sm:$0xff]
    %v108 = vld [vmem:[%s11] sm:$0xff]
    %v109 = vld [vmem:[%s11 + $0x8] sm:$0xff]
    %v110 = vld [vmem:[%s11 + $0x10] sm:$0xff]
    %v111 = vld [vmem:[%s11 + $0x18] sm:$0xff]
    %v112 = vld [vmem:[%s14] sm:$0xff]
    %v113 = vld [vmem:[%s14 + $0x8] sm:$0xff]
    %v114 = vld [vmem:[%s14 + $0x10] sm:$0xff]
    %v115 = vld [vmem:[%s14 + $0x18] sm:$0xff]
    %v116 = vld [vmem:[%s15] sm:$0xff]
    %v117 = vld [vmem:[%s15 + $0x8] sm:$0xff]
    %v118 = vld [vmem:[%s15 + $0x10] sm:$0xff]
    %v119 = vld [vmem:[%s15 + $0x18] sm:$0xff]
    %v120 = vld [vmem:[%s15 + $0x20] sm:$0xff]
    %v121 = vld [vmem:[%s15 + $0x28] sm:$0xff]
    %v122 = vld [vmem:[%s15 + $0x30] sm:$0xff]
    %v123 = vld [vmem:[%s15 + $0x38] sm:$0xff]
    %v124 = vld [vmem:[%s16] sm:$0xff]
    %v125 = vld [vmem:[%s16 + $0x8] sm:$0xff]
    %v126 = vld [vmem:[%s16 + $0x10] sm:$0xff]
    %v127 = vld [vmem:[%s16 + $0x18] sm:$0xff]
    %v128 = vld [vmem:[%s12] sm:$0x1]
    %v130 = vlaneseq
    %v131 = vshrl.u32 %v130, 7
    %v132 = vsub.s32 0, %v131
    %v133 = vrot.slane %v128, %v132
    %v135 = vld [vmem:[%s13] sm:$0x1]
    %v137 = vlaneseq
    %v138 = vshrl.u32 %v137, 7
    %v139 = vsub.s32 0, %v138
    %v140 = vrot.slane %v135, %v139
    %v142 = vld [vmem:[%s17] sm:$0x1]
    %v144 = vlaneseq
    %v145 = vshrl.u32 %v144, 7
    %v146 = vsub.s32 0, %v145
    %v147 = vrot.slane %v142, %v146
    %v149 = vld [vmem:[%s7] sm:$0x1]
    %v151 = vlaneseq
    %v152 = vshrl.u32 %v151, 7
    %v153 = vsub.s32 0, %v152
    %v154 = vrot.slane %v149, %v153
    %v156 = vld [vmem:[%s8] sm:$0x1]
    %v158 = vlaneseq
    %v159 = vshrl.u32 %v158, 7
    %v160 = vsub.s32 0, %v159
    %v161 = vrot.slane %v156, %v160
    %v163 = vld [vmem:[%s4] sm:$0x3]
    %164 = vset.pattern.permute.xlu0 0
    %165 = vperm.xlu0 %164, %v163
    %v166 = vpop.permute.xlu0 %165
    %vm167 = vcmp.lt.s32.totalorder %v88, %v166
    %v168 = vld [vmem:[%s5] sm:$0xff]
    %v169 = vld [vmem:[%s5 + $0x8] sm:$0xff]
    %v170 = vld [vmem:[%s5 + $0x10] sm:$0xff]
    %v171 = vld [vmem:[%s5 + $0x18] sm:$0xff]
    %v172 = vld [vmem:[%s5 + $0x20] sm:$0xff]
    %v173 = vld [vmem:[%s5 + $0x28] sm:$0xff]
    %v174 = vld [vmem:[%s5 + $0x30] sm:$0xff]
    %v175 = vld [vmem:[%s5 + $0x38] sm:$0xff]
    %vm176 = vcmask 523264
    %v178 = vsel %vm176, %v90, 0
    %v181 = vsel %vm176, %v91, 0
    %183 = vmatprep.subr.mxu0 0.0
    %184 = vmatpush1.msra.mxu0 %v168
    %185 = vmatprep.subr.mxu0 0.0
    %186 = vmatpush1.msra.mxu0 %v169
    %187 = vmatprep.subr.mxu0 0.0
    %188 = vmatpush1.msra.mxu0 %v170
    %189 = vmatprep.subr.mxu0 0.0
    %190 = vmatpush1.msra.mxu0 %v171
    %191 = vmatprep.subr.mxu0 0.0
    %192 = vmatpush1.msra.mxu0 %v172
    %193 = vmatprep.subr.mxu0 0.0
    %194 = vmatpush1.msra.mxu0 %v173
    %195 = vmatprep.subr.mxu0 0.0
    %196 = vmatpush1.msra.mxu0 %v174
    %197 = vmatprep.subr.mxu0 0.0
    %198 = vmatpush1.msra.mxu0 %v175
    %199 = vmatprep.subr.mxu0 0.0
    %200 = vmatpush1.msra.mxu0 0.0
    %201 = vmatprep.subr.mxu0 0.0
    %202 = vmatpush1.msra.mxu0 0.0
    %203 = vmatprep.subr.mxu0 0.0
    %204 = vmatpush1.msra.mxu0 0.0
    %205 = vmatprep.subr.mxu0 0.0
    %206 = vmatpush1.msra.mxu0 0.0
    %207 = vmatprep.subr.mxu0 0.0
    %208 = vmatpush1.msra.mxu0 0.0
    %209 = vmatprep.subr.mxu0 0.0
    %210 = vmatpush1.msra.mxu0 0.0
    %211 = vmatprep.subr.mxu0 0.0
    %212 = vmatpush1.msra.mxu0 0.0
    %213 = vmatprep.subr.mxu0 0.0
    %214 = vmatpush1.msra.mxu0 0.0
    %215 = vmatprep.subr.mxu0 0.0
    %216 = vmatpush1.msra.mxu0 0.0
    %217 = vmatprep.subr.mxu0 0.0
    %218 = vmatpush1.msra.mxu0 0.0
    %219 = vmatprep.subr.mxu0 0.0
    %220 = vmatpush1.msra.mxu0 0.0
    %221 = vmatprep.subr.mxu0 0.0
    %222 = vmatpush1.msra.mxu0 0.0
    %223 = vmatprep.subr.mxu0 0.0
    %224 = vmatpush1.msra.mxu0 0.0
    %225 = vmatprep.subr.mxu0 0.0
    %226 = vmatpush1.msra.mxu0 0.0
    %227 = vmatprep.subr.mxu0 0.0
    %228 = vmatpush1.msra.mxu0 0.0
    %229 = vmatprep.subr.mxu0 0.0
    %230 = vmatpush1.msra.mxu0 0.0
    %231 = vmatprep.subr.mxu0 0.0
    %232 = vmatpush1.msra.mxu0 0.0
    %233 = vmatprep.subr.mxu0 0.0
    %234 = vmatpush1.msra.mxu0 0.0
    %235 = vmatprep.subr.mxu0 0.0
    %236 = vmatpush1.msra.mxu0 0.0
    %237 = vmatprep.subr.mxu0 0.0
    %238 = vmatpush1.msra.mxu0 0.0
    %239 = vmatprep.subr.mxu0 0.0
    %240 = vmatpush1.msra.mxu0 0.0
    %241 = vmatprep.subr.mxu0 0.0
    %242 = vmatpush1.msra.mxu0 0.0
    %243 = vmatprep.subr.mxu0 0.0
    %244 = vmatpush1.msra.mxu0 0.0
    %245 = vmatprep.subr.mxu0 0.0
    %246 = vmatpush1.msra.mxu0 0.0
    %247 = vmatprep.mubr.f32.mxu0 0.0
    %248 = vmatmul.mubr.f32.gmra.mrb[0].mxu0 %v178
    %v249 = vpop.f32.mrb[0].mxu0
    %v250 = vadd.f32 0.0, %v249
    %v251 = vpop.f32.mrb[0].mxu0
    %252 = vmatprep.mubr.f32.mxu0 0.0
    %253 = vmatmul.mubr.f32.gmra.mrb[0].mxu0 %v181
    %v254 = vpop.f32.mrb[0].mxu0
    %v255 = vadd.f32 0.0, %v254
    %v256 = vpop.f32.mrb[0].mxu0
    %257 = vdwg.mxu0
    %v258 = vld [vmem:[%s2] sm:$0x3]
    %s259 = sld [smem:[#allocation2]]
    %vm260 = vcmp.eq.s32.totalorder %v86, 0
    %v261 = vstv %s259
    %vm262 = vcmp.eq.s32.totalorder %v88, %v261
    %vm263 = vmand %vm260, %vm262
    %v264 = vsel %vm263, 1, 0
    %v265 = vcvt.s32.f32 %v264
    %v266 = vadd.f32 %v265, 0.0
    %s267 = sld [smem:[#allocation2 + $0x1]]
    %vm268 = vcmp.eq.s32.totalorder %v86, 1
    %v269 = vstv %s267
    %vm270 = vcmp.eq.s32.totalorder %v88, %v269
    %vm271 = vmand %vm268, %vm270
    %v272 = vsel %vm271, 1, 0
    %v273 = vcvt.s32.f32 %v272
    %v274 = vadd.f32 %v266, %v273
    %vm275 = vcmask 254976
    %276 = vst.msk [vmem:[#allocation7] sm:$0x3] %vm275, 0.0
    %vm277 = vcmask 261120
    %v279 = vsel %vm277, %v258, 0
    %281 = vmatprep.subr.mxu0 0.0
    %282 = vmatpush1.msra.mxu0 %v92
    %283 = vmatprep.subr.mxu0 0.0
    %284 = vmatpush1.msra.mxu0 %v93
    %285 = vmatprep.subr.mxu0 0.0
    %286 = vmatpush1.msra.mxu0 %v94
    %287 = vmatprep.subr.mxu0 0.0
    %288 = vmatpush1.msra.mxu0 %v95
    %289 = vmatprep.subr.mxu0 0.0
    %290 = vmatpush1.msra.mxu0 0.0
    %291 = vmatprep.subr.mxu0 0.0
    %292 = vmatpush1.msra.mxu0 0.0
    %293 = vmatprep.subr.mxu0 0.0
    %294 = vmatpush1.msra.mxu0 0.0
    %295 = vmatprep.subr.mxu0 0.0
    %296 = vmatpush1.msra.mxu0 0.0
    %297 = vmatprep.subr.mxu0 0.0
    %298 = vmatpush1.msra.mxu0 0.0
    %299 = vmatprep.subr.mxu0 0.0
    %300 = vmatpush1.msra.mxu0 0.0
    %301 = vmatprep.subr.mxu0 0.0
    %302 = vmatpush1.msra.mxu0 0.0
    %303 = vmatprep.subr.mxu0 0.0
    %304 = vmatpush1.msra.mxu0 0.0
    %305 = vmatprep.subr.mxu0 0.0
    %306 = vmatpush1.msra.mxu0 0.0
    %307 = vmatprep.subr.mxu0 0.0
    %308 = vmatpush1.msra.mxu0 0.0
    %309 = vmatprep.subr.mxu0 0.0
    %310 = vmatpush1.msra.mxu0 0.0
    %311 = vmatprep.subr.mxu0 0.0
    %312 = vmatpush1.msra.mxu0 0.0
    %313 = vmatprep.subr.mxu0 0.0
    %314 = vmatpush1.msra.mxu0 0.0
    %315 = vmatprep.subr.mxu0 0.0
    %316 = vmatpush1.msra.mxu0 0.0
    %317 = vmatprep.subr.mxu0 0.0
    %318 = vmatpush1.msra.mxu0 0.0
    %319 = vmatprep.subr.mxu0 0.0
    %320 = vmatpush1.msra.mxu0 0.0
    %321 = vmatprep.subr.mxu0 0.0
    %322 = vmatpush1.msra.mxu0 0.0
    %323 = vmatprep.subr.mxu0 0.0
    %324 = vmatpush1.msra.mxu0 0.0
    %325 = vmatprep.subr.mxu0 0.0
    %326 = vmatpush1.msra.mxu0 0.0
    %327 = vmatprep.subr.mxu0 0.0
    %328 = vmatpush1.msra.mxu0 0.0
    %329 = vmatprep.subr.mxu0 0.0
    %330 = vmatpush1.msra.mxu0 0.0
    %331 = vmatprep.subr.mxu0 0.0
    %332 = vmatpush1.msra.mxu0 0.0
    %333 = vmatprep.subr.mxu0 0.0
    %334 = vmatpush1.msra.mxu0 0.0
    %335 = vmatprep.subr.mxu0 0.0
    %336 = vmatpush1.msra.mxu0 0.0
    %337 = vmatprep.subr.mxu0 0.0
    %338 = vmatpush1.msra.mxu0 0.0
    %339 = vmatprep.subr.mxu0 0.0
    %340 = vmatpush1.msra.mxu0 0.0
    %341 = vmatprep.subr.mxu0 0.0
    %342 = vmatpush1.msra.mxu0 0.0
    %343 = vmatprep.subr.mxu0 0.0
    %344 = vmatpush1.msra.mxu0 0.0
    %345 = vmatprep.mubr.f32.mxu0 0.0
    %346 = vmatmul.mubr.f32.gmra.mrb[0].mxu0 %v279
    %v347 = vpop.f32.mrb[0].mxu0
    %v348 = vadd.f32 0.0, %v347
    %v349 = vpop.f32.mrb[0].mxu0
    %350 = vdwg.mxu0
    %v353 = vunpack.c.l.s4 1966171168
    %v354 = vunpack.c.0.s8 %v353
    %v355 = vlaneseq
    %v356 = vshrl.u32 %v355, 7
    %v357 = vsub.s32 %v354, %v356
    %v358 = vrot.slane %v348, %v357
    %v359 = vcombine.high %v358, %v358
    %v361 = vunpack.c.l.s4 1966171168
    %v362 = vunpack.c.0.s8 %v361
    %v363 = vlaneseq
    %v364 = vshrl.u32 %v363, 7
    %v365 = vsub.s32 %v362, %v364
    %v366 = vrot.slane %v358, %v365
    %v368 = vunpack.c.l.s4 1966171168
    %v369 = vunpack.c.0.s8 %v368
    %v370 = vlaneseq
    %v371 = vshrl.u32 %v370, 7
    %v372 = vsub.s32 %v369, %v371
    %v373 = vrot.slane %v359, %v372
    %v374 = vlaneseq
    %v375 = vshrl.u32 %v374, 7
    %v376 = vsub.s32 0, %v375
    %v377 = vrot.slane %v366, %v376
    %v378 = vlaneseq
    %v379 = vshrl.u32 %v378, 7
    %v380 = vsub.s32 0, %v379
    %v381 = vrot.slane %v373, %v380
    %v384 = vadd.f32 %v377, %v250
    %v385 = vadd.f32 %v381, %v255
    %v386 = vadd.f32 %v384, %v154
    %v387 = vadd.f32 %v385, %v154
    %v388 = vtanh.pop %v386
    %v389 = vtanh.pop %v387
    %v390 = vmul.f32 %v388, %v161
    %v391 = vmul.f32 %v389, %v161
    %v392 = vsel %vm277, %v390, 0.0
    %393 = vadd.xlane.f32.xlu0 %v392
    %v394 = vpop.xlane.xlu0 %393
    %v395 = vsel %vm277, %v391, 0.0
    %396 = vadd.xlane.f32.xlu0 %v395
    %v397 = vpop.xlane.xlu0 %396
    %v400 = vlaneseq
    %v401 = vshrl.u32 %v400, 7
    %v402 = vsub.s32 %v88, %v401
    %v403 = vrot.slane %v394, %v402
    %v404 = vlaneseq
    %v405 = vshrl.u32 %v404, 7
    %v406 = vsub.s32 %v88, %v405
    %v407 = vrot.slane %v397, %v406
    %vm408 = vcmask 1041409
    %v409 = vsel %vm408, %v407, %v403
    %v411 = vsel %vm167, %v409, -1e+10
    %vm412 = vcmask 58368
    %v413 = vsel %vm412, %v411, -inf
    %414 = vmax.xlane.f32.xlu0 %v413
    %v415 = vpop.xlane.xlu0 %414
    %v416 = vsub.f32 %v411, %v415
    %v417 = vmul.f32 %v416, 1.442695
    %v418 = vpow.pop %v417
    %v419 = vsel %vm412, %v418, 0.0
    %420 = vadd.xlane.f32.xlu0 %v419
    %v421 = vpop.xlane.xlu0 %420
    %v422 = vrcp.pop %v421
    %v423 = vmul.f32 %v418, %v422
    %v424 = vlaneseq
    %v425 = vshrl.u32 %v424, 7
    %v426 = vsub.s32 0, %v425
    %v427 = vrot.slane %v423, %v426
    %429 = vbcast.lane.b32.xlu0 %v427, 256
    %v430 = vpop.permute.xlu0 %429
    %v431 = vlaneseq
    %v432 = vshrl.u32 %v431, 7
    %v433 = vsub.s32 1, %v432
    %v434 = vrot.slane %v423, %v433
    %436 = vbcast.lane.b32.xlu0 %v434, 256
    %v437 = vpop.permute.xlu0 %436
    %v438 = vmul.f32 %v430, %v90
    %v439 = vmul.f32 %v437, %v91
    %v440 = vsel %vm176, %v438, 0.0
    %v441 = vrot.slane %v440, 4
    %v442 = vadd.f32 %v440, %v441
    %v443 = vrot.slane %v442, 2
    %v444 = vadd.f32 %v442, %v443
    %v445 = vrot.slane %v444, 1
    %v446 = vadd.f32 %v444, %v445
    %v447 = vsel %vm176, %v439, 0.0
    %v448 = vrot.slane %v447, 4
    %v449 = vadd.f32 %v447, %v448
    %v450 = vrot.slane %v449, 2
    %v451 = vadd.f32 %v449, %v450
    %v452 = vrot.slane %v451, 1
    %v453 = vadd.f32 %v451, %v452
    %v456 = vsel %vm408, %v453, %v446
    %v457 = vsel %vm176, %v456, 0
    %459 = vmatprep.subr.mxu0 0.0
    %460 = vmatpush1.msra.mxu0 %v100
    %461 = vmatprep.subr.mxu0 0.0
    %462 = vmatpush1.msra.mxu0 %v101
    %463 = vmatprep.subr.mxu0 0.0
    %464 = vmatpush1.msra.mxu0 %v102
    %465 = vmatprep.subr.mxu0 0.0
    %466 = vmatpush1.msra.mxu0 %v103
    %467 = vmatprep.subr.mxu0 0.0
    %468 = vmatpush1.msra.mxu0 %v104
    %469 = vmatprep.subr.mxu0 0.0
    %470 = vmatpush1.msra.mxu0 %v105
    %471 = vmatprep.subr.mxu0 0.0
    %472 = vmatpush1.msra.mxu0 %v106
    %473 = vmatprep.subr.mxu0 0.0
    %474 = vmatpush1.msra.mxu0 %v107
    %475 = vmatprep.subr.mxu0 0.0
    %476 = vmatpush1.msra.mxu0 0.0
    %477 = vmatprep.subr.mxu0 0.0
    %478 = vmatpush1.msra.mxu0 0.0
    %479 = vmatprep.subr.mxu0 0.0
    %480 = vmatpush1.msra.mxu0 0.0
    %481 = vmatprep.subr.mxu0 0.0
    %482 = vmatpush1.msra.mxu0 0.0
    %483 = vmatprep.subr.mxu0 0.0
    %484 = vmatpush1.msra.mxu0 0.0
    %485 = vmatprep.subr.mxu0 0.0
    %486 = vmatpush1.msra.mxu0 0.0
    %487 = vmatprep.subr.mxu0 0.0
    %488 = vmatpush1.msra.mxu0 0.0
    %489 = vmatprep.subr.mxu0 0.0
    %490 = vmatpush1.msra.mxu0 0.0
    %491 = vmatprep.subr.mxu0 0.0
    %492 = vmatpush1.msra.mxu0 0.0
    %493 = vmatprep.subr.mxu0 0.0
    %494 = vmatpush1.msra.mxu0 0.0
    %495 = vmatprep.subr.mxu0 0.0
    %496 = vmatpush1.msra.mxu0 0.0
    %497 = vmatprep.subr.mxu0 0.0
    %498 = vmatpush1.msra.mxu0 0.0
    %499 = vmatprep.subr.mxu0 0.0
    %500 = vmatpush1.msra.mxu0 0.0
    %501 = vmatprep.subr.mxu0 0.0
    %502 = vmatpush1.msra.mxu0 0.0
    %503 = vmatprep.subr.mxu0 0.0
    %504 = vmatpush1.msra.mxu0 0.0
    %505 = vmatprep.subr.mxu0 0.0
    %506 = vmatpush1.msra.mxu0 0.0
    %507 = vmatprep.subr.mxu0 0.0
    %508 = vmatpush1.msra.mxu0 0.0
    %509 = vmatprep.subr.mxu0 0.0
    %510 = vmatpush1.msra.mxu0 0.0
    %511 = vmatprep.subr.mxu0 0.0
    %512 = vmatpush1.msra.mxu0 0.0
    %513 = vmatprep.subr.mxu0 0.0
    %514 = vmatpush1.msra.mxu0 0.0
    %515 = vmatprep.subr.mxu0 0.0
    %516 = vmatpush1.msra.mxu0 0.0
    %517 = vmatprep.subr.mxu0 0.0
    %518 = vmatpush1.msra.mxu0 0.0
    %519 = vmatprep.subr.mxu0 0.0
    %520 = vmatpush1.msra.mxu0 0.0
    %521 = vmatprep.subr.mxu0 0.0
    %522 = vmatpush1.msra.mxu0 0.0
    %523 = vmatprep.mubr.f32.mxu0 0.0
    %524 = vmatmul.mubr.f32.gmra.mrb[0].mxu0 %v457
    %v525 = vpop.f32.mrb[0].mxu0
    %v526 = vadd.f32 0.0, %v525
    %v527 = vpop.f32.mrb[0].mxu0
    %528 = vdwg.mxu0
    %v530 = vsel %vm277, %v274, 0
    %532 = vmatprep.subr.mxu0 0.0
    %533 = vmatpush1.msra.mxu0 %v96
    %534 = vmatprep.subr.mxu0 0.0
    %535 = vmatpush1.msra.mxu0 %v97
    %536 = vmatprep.subr.mxu0 0.0
    %537 = vmatpush1.msra.mxu0 %v98
    %538 = vmatprep.subr.mxu0 0.0
    %539 = vmatpush1.msra.mxu0 %v99
    %540 = vmatprep.subr.mxu0 0.0
    %541 = vmatpush1.msra.mxu0 0.0
    %542 = vmatprep.subr.mxu0 0.0
    %543 = vmatpush1.msra.mxu0 0.0
    %544 = vmatprep.subr.mxu0 0.0
    %545 = vmatpush1.msra.mxu0 0.0
    %546 = vmatprep.subr.mxu0 0.0
    %547 = vmatpush1.msra.mxu0 0.0
    %548 = vmatprep.subr.mxu0 0.0
    %549 = vmatpush1.msra.mxu0 0.0
    %550 = vmatprep.subr.mxu0 0.0
    %551 = vmatpush1.msra.mxu0 0.0
    %552 = vmatprep.subr.mxu0 0.0
    %553 = vmatpush1.msra.mxu0 0.0
    %554 = vmatprep.subr.mxu0 0.0
    %555 = vmatpush1.msra.mxu0 0.0
    %556 = vmatprep.subr.mxu0 0.0
    %557 = vmatpush1.msra.mxu0 0.0
    %558 = vmatprep.subr.mxu0 0.0
    %559 = vmatpush1.msra.mxu0 0.0
    %560 = vmatprep.subr.mxu0 0.0
    %561 = vmatpush1.msra.mxu0 0.0
    %562 = vmatprep.subr.mxu0 0.0
    %563 = vmatpush1.msra.mxu0 0.0
    %564 = vmatprep.subr.mxu0 0.0
    %565 = vmatpush1.msra.mxu0 0.0
    %566 = vmatprep.subr.mxu0 0.0
    %567 = vmatpush1.msra.mxu0 0.0
    %568 = vmatprep.subr.mxu0 0.0
    %569 = vmatpush1.msra.mxu0 0.0
    %570 = vmatprep.subr.mxu0 0.0
    %571 = vmatpush1.msra.mxu0 0.0
    %572 = vmatprep.subr.mxu0 0.0
    %573 = vmatpush1.msra.mxu0 0.0
    %574 = vmatprep.subr.mxu0 0.0
    %575 = vmatpush1.msra.mxu0 0.0
    %576 = vmatprep.subr.mxu0 0.0
    %577 = vmatpush1.msra.mxu0 0.0
    %578 = vmatprep.subr.mxu0 0.0
    %579 = vmatpush1.msra.mxu0 0.0
    %580 = vmatprep.subr.mxu0 0.0
    %581 = vmatpush1.msra.mxu0 0.0
    %582 = vmatprep.subr.mxu0 0.0
    %583 = vmatpush1.msra.mxu0 0.0
    %584 = vmatprep.subr.mxu0 0.0
    %585 = vmatpush1.msra.mxu0 0.0
    %586 = vmatprep.subr.mxu0 0.0
    %587 = vmatpush1.msra.mxu0 0.0
    %588 = vmatprep.subr.mxu0 0.0
    %589 = vmatpush1.msra.mxu0 0.0
    %590 = vmatprep.subr.mxu0 0.0
    %591 = vmatpush1.msra.mxu0 0.0
    %592 = vmatprep.subr.mxu0 0.0
    %593 = vmatpush1.msra.mxu0 0.0
    %594 = vmatprep.subr.mxu0 0.0
    %595 = vmatpush1.msra.mxu0 0.0
    %596 = vmatprep.mubr.f32.mxu0 0.0
    %597 = vmatmul.mubr.f32.gmra.mrb[0].mxu0 %v530
    %v598 = vpop.f32.mrb[0].mxu0
    %v599 = vadd.f32 %v526, %v598
    %v600 = vpop.f32.mrb[0].mxu0
    %601 = vdwg.mxu0
    %v602 = vadd.f32 %v599, %v133
    %603 = vmatprep.subr.mxu0 0.0
    %604 = vmatpush1.msra.mxu0 %v108
    %605 = vmatprep.subr.mxu0 0.0
    %606 = vmatpush1.msra.mxu0 %v109
    %607 = vmatprep.subr.mxu0 0.0
    %608 = vmatpush1.msra.mxu0 %v110
    %609 = vmatprep.subr.mxu0 0.0
    %610 = vmatpush1.msra.mxu0 %v111
    %611 = vmatprep.subr.mxu0 0.0
    %612 = vmatpush1.msra.mxu0 0.0
    %613 = vmatprep.subr.mxu0 0.0
    %614 = vmatpush1.msra.mxu0 0.0
    %615 = vmatprep.subr.mxu0 0.0
    %616 = vmatpush1.msra.mxu0 0.0
    %617 = vmatprep.subr.mxu0 0.0
    %618 = vmatpush1.msra.mxu0 0.0
    %619 = vmatprep.subr.mxu0 0.0
    %620 = vmatpush1.msra.mxu0 0.0
    %621 = vmatprep.subr.mxu0 0.0
    %622 = vmatpush1.msra.mxu0 0.0
    %623 = vmatprep.subr.mxu0 0.0
    %624 = vmatpush1.msra.mxu0 0.0
    %625 = vmatprep.subr.mxu0 0.0
    %626 = vmatpush1.msra.mxu0 0.0
    %627 = vmatprep.subr.mxu0 0.0
    %628 = vmatpush1.msra.mxu0 0.0
    %629 = vmatprep.subr.mxu0 0.0
    %630 = vmatpush1.msra.mxu0 0.0
    %631 = vmatprep.subr.mxu0 0.0
    %632 = vmatpush1.msra.mxu0 0.0
    %633 = vmatprep.subr.mxu0 0.0
    %634 = vmatpush1.msra.mxu0 0.0
    %635 = vmatprep.subr.mxu0 0.0
    %636 = vmatpush1.msra.mxu0 0.0
    %637 = vmatprep.subr.mxu0 0.0
    %638 = vmatpush1.msra.mxu0 0.0
    %639 = vmatprep.subr.mxu0 0.0
    %640 = vmatpush1.msra.mxu0 0.0
    %641 = vmatprep.subr.mxu0 0.0
    %642 = vmatpush1.msra.mxu0 0.0
    %643 = vmatprep.subr.mxu0 0.0
    %644 = vmatpush1.msra.mxu0 0.0
    %645 = vmatprep.subr.mxu0 0.0
    %646 = vmatpush1.msra.mxu0 0.0
    %647 = vmatprep.subr.mxu0 0.0
    %648 = vmatpush1.msra.mxu0 0.0
    %649 = vmatprep.subr.mxu0 0.0
    %650 = vmatpush1.msra.mxu0 0.0
    %651 = vmatprep.subr.mxu0 0.0
    %652 = vmatpush1.msra.mxu0 0.0
    %653 = vmatprep.subr.mxu0 0.0
    %654 = vmatpush1.msra.mxu0 0.0
    %655 = vmatprep.subr.mxu0 0.0
    %656 = vmatpush1.msra.mxu0 0.0
    %657 = vmatprep.subr.mxu0 0.0
    %658 = vmatpush1.msra.mxu0 0.0
    %659 = vmatprep.subr.mxu0 0.0
    %660 = vmatpush1.msra.mxu0 0.0
    %661 = vmatprep.subr.mxu0 0.0
    %662 = vmatpush1.msra.mxu0 0.0
    %663 = vmatprep.subr.mxu0 0.0
    %664 = vmatpush1.msra.mxu0 0.0
    %665 = vmatprep.subr.mxu0 0.0
    %666 = vmatpush1.msra.mxu0 0.0
    %667 = vmatprep.mubr.f32.mxu0 0.0
    %668 = vmatmul.mubr.f32.gmra.mrb[0].mxu0 %v279
    %v669 = vpop.f32.mrb[0].mxu0
    %v670 = vadd.f32 %v140, %v669
    %v671 = vpop.f32.mrb[0].mxu0
    %672 = vdwg.mxu0
    %v673 = vadd.f32 %v602, %v670
    %v674 = vxor.u32 %v673, 2147483648
    %v675 = vmul.f32 %v674, 1.442695
    %v676 = vpow.pop %v675
    %v677 = vadd.f32 %v676, 1.0
    %v678 = vrcp.pop %v677
    %v679 = vmul.f32 1.0, %v678
    %681 = vrot.lane.b32.xlu0 %v670, 64
    %v682 = vpop.permute.xlu0 %681
    %v684 = vmul.f32 %v679, %v682
    %686 = vrot.lane.b32.xlu0 %v684, 64
    %v687 = vpop.permute.xlu0 %686
    %v689 = vadd.f32 %v602, %v687
    %v690 = vtanh.pop %v689
    %v691 = vsub.f32 1.0, %v679
    %693 = vrot.lane.b32.xlu0 %v690, 96
    %v694 = vpop.permute.xlu0 %693
    %v696 = vmul.f32 %v691, %v694
    %697 = vrot.lane.b32.xlu0 %v258, 32
    %v698 = vpop.permute.xlu0 %697
    %v700 = vmul.f32 %v679, %v698
    %v701 = vadd.f32 %v696, %v700
    %702 = vmatprep.subr.mxu0 0.0
    %703 = vmatpush1.msra.mxu0 %v116
    %704 = vmatprep.subr.mxu0 0.0
    %705 = vmatpush1.msra.mxu0 %v117
    %706 = vmatprep.subr.mxu0 0.0
    %707 = vmatpush1.msra.mxu0 %v118
    %708 = vmatprep.subr.mxu0 0.0
    %709 = vmatpush1.msra.mxu0 %v119
    %710 = vmatprep.subr.mxu0 0.0
    %711 = vmatpush1.msra.mxu0 %v120
    %712 = vmatprep.subr.mxu0 0.0
    %713 = vmatpush1.msra.mxu0 %v121
    %714 = vmatprep.subr.mxu0 0.0
    %715 = vmatpush1.msra.mxu0 %v122
    %716 = vmatprep.subr.mxu0 0.0
    %717 = vmatpush1.msra.mxu0 %v123
    %718 = vmatprep.subr.mxu0 0.0
    %719 = vmatpush1.msra.mxu0 0.0
    %720 = vmatprep.subr.mxu0 0.0
    %721 = vmatpush1.msra.mxu0 0.0
    %722 = vmatprep.subr.mxu0 0.0
    %723 = vmatpush1.msra.mxu0 0.0
    %724 = vmatprep.subr.mxu0 0.0
    %725 = vmatpush1.msra.mxu0 0.0
    %726 = vmatprep.subr.mxu0 0.0
    %727 = vmatpush1.msra.mxu0 0.0
    %728 = vmatprep.subr.mxu0 0.0
    %729 = vmatpush1.msra.mxu0 0.0
    %730 = vmatprep.subr.mxu0 0.0
    %731 = vmatpush1.msra.mxu0 0.0
    %732 = vmatprep.subr.mxu0 0.0
    %733 = vmatpush1.msra.mxu0 0.0
    %734 = vmatprep.subr.mxu0 0.0
    %735 = vmatpush1.msra.mxu0 0.0
    %736 = vmatprep.subr.mxu0 0.0
    %737 = vmatpush1.msra.mxu0 0.0
    %738 = vmatprep.subr.mxu0 0.0
    %739 = vmatpush1.msra.mxu0 0.0
    %740 = vmatprep.subr.mxu0 0.0
    %741 = vmatpush1.msra.mxu0 0.0
    %742 = vmatprep.subr.mxu0 0.0
    %743 = vmatpush1.msra.mxu0 0.0
    %744 = vmatprep.subr.mxu0 0.0
    %745 = vmatpush1.msra.mxu0 0.0
    %746 = vmatprep.subr.mxu0 0.0
    %747 = vmatpush1.msra.mxu0 0.0
    %748 = vmatprep.subr.mxu0 0.0
    %749 = vmatpush1.msra.mxu0 0.0
    %750 = vmatprep.subr.mxu0 0.0
    %751 = vmatpush1.msra.mxu0 0.0
    %752 = vmatprep.subr.mxu0 0.0
    %753 = vmatpush1.msra.mxu0 0.0
    %754 = vmatprep.subr.mxu0 0.0
    %755 = vmatpush1.msra.mxu0 0.0
    %756 = vmatprep.subr.mxu0 0.0
    %757 = vmatpush1.msra.mxu0 0.0
    %758 = vmatprep.subr.mxu0 0.0
    %759 = vmatpush1.msra.mxu0 0.0
    %760 = vmatprep.subr.mxu0 0.0
    %761 = vmatpush1.msra.mxu0 0.0
    %762 = vmatprep.subr.mxu0 0.0
    %763 = vmatpush1.msra.mxu0 0.0
    %764 = vmatprep.subr.mxu0 0.0
    %765 = vmatpush1.msra.mxu0 0.0
    %766 = vmatprep.mubr.f32.mxu0 0.0
    %767 = vmatmul.mubr.f32.gmra.mrb[0].mxu0 %v457
    %v768 = vpop.f32.mrb[0].mxu0
    %v769 = vadd.f32 0.0, %v768
    %v770 = vpop.f32.mrb[0].mxu0
    %771 = vdwg.mxu0
    %773 = vrot.lane.b32.xlu0 %v701, 96
    %v774 = vpop.permute.xlu0 %773
    %v775 = vsel %vm277, %v774, 0
    %777 = vmatprep.subr.mxu0 0.0
    %778 = vmatpush1.msra.mxu0 %v112
    %779 = vmatprep.subr.mxu0 0.0
    %780 = vmatpush1.msra.mxu0 %v113
    %781 = vmatprep.subr.mxu0 0.0
    %782 = vmatpush1.msra.mxu0 %v114
    %783 = vmatprep.subr.mxu0 0.0
    %784 = vmatpush1.msra.mxu0 %v115
    %785 = vmatprep.subr.mxu0 0.0
    %786 = vmatpush1.msra.mxu0 0.0
    %787 = vmatprep.subr.mxu0 0.0
    %788 = vmatpush1.msra.mxu0 0.0
    %789 = vmatprep.subr.mxu0 0.0
    %790 = vmatpush1.msra.mxu0 0.0
    %791 = vmatprep.subr.mxu0 0.0
    %792 = vmatpush1.msra.mxu0 0.0
    %793 = vmatprep.subr.mxu0 0.0
    %794 = vmatpush1.msra.mxu0 0.0
    %795 = vmatprep.subr.mxu0 0.0
    %796 = vmatpush1.msra.mxu0 0.0
    %797 = vmatprep.subr.mxu0 0.0
    %798 = vmatpush1.msra.mxu0 0.0
    %799 = vmatprep.subr.mxu0 0.0
    %800 = vmatpush1.msra.mxu0 0.0
    %801 = vmatprep.subr.mxu0 0.0
    %802 = vmatpush1.msra.mxu0 0.0
    %803 = vmatprep.subr.mxu0 0.0
    %804 = vmatpush1.msra.mxu0 0.0
    %805 = vmatprep.subr.mxu0 0.0
    %806 = vmatpush1.msra.mxu0 0.0
    %807 = vmatprep.subr.mxu0 0.0
    %808 = vmatpush1.msra.mxu0 0.0
    %809 = vmatprep.subr.mxu0 0.0
    %810 = vmatpush1.msra.mxu0 0.0
    %811 = vmatprep.subr.mxu0 0.0
    %812 = vmatpush1.msra.mxu0 0.0
    %813 = vmatprep.subr.mxu0 0.0
    %814 = vmatpush1.msra.mxu0 0.0
    %815 = vmatprep.subr.mxu0 0.0
    %816 = vmatpush1.msra.mxu0 0.0
    %817 = vmatprep.subr.mxu0 0.0
    %818 = vmatpush1.msra.mxu0 0.0
    %819 = vmatprep.subr.mxu0 0.0
    %820 = vmatpush1.msra.mxu0 0.0
    %821 = vmatprep.subr.mxu0 0.0
    %822 = vmatpush1.msra.mxu0 0.0
    %823 = vmatprep.subr.mxu0 0.0
    %824 = vmatpush1.msra.mxu0 0.0
    %825 = vmatprep.subr.mxu0 0.0
    %826 = vmatpush1.msra.mxu0 0.0
    %827 = vmatprep.subr.mxu0 0.0
    %828 = vmatpush1.msra.mxu0 0.0
    %829 = vmatprep.subr.mxu0 0.0
    %830 = vmatpush1.msra.mxu0 0.0
    %831 = vmatprep.subr.mxu0 0.0
    %832 = vmatpush1.msra.mxu0 0.0
    %833 = vmatprep.subr.mxu0 0.0
    %834 = vmatpush1.msra.mxu0 0.0
    %835 = vmatprep.subr.mxu0 0.0
    %836 = vmatpush1.msra.mxu0 0.0
    %837 = vmatprep.subr.mxu0 0.0
    %838 = vmatpush1.msra.mxu0 0.0
    %839 = vmatprep.subr.mxu0 0.0
    %840 = vmatpush1.msra.mxu0 0.0
    %841 = vmatprep.mubr.f32.mxu0 0.0
    %842 = vmatmul.mubr.f32.gmra.mrb[0].mxu0 %v775
    %v843 = vpop.f32.mrb[0].mxu0
    %v844 = vadd.f32 %v769, %v843
    %v845 = vpop.f32.mrb[0].mxu0
    %846 = vdwg.mxu0
    %847 = vmatprep.subr.mxu0 0.0
    %848 = vmatpush1.msra.mxu0 %v124
    %849 = vmatprep.subr.mxu0 0.0
    %850 = vmatpush1.msra.mxu0 %v125
    %851 = vmatprep.subr.mxu0 0.0
    %852 = vmatpush1.msra.mxu0 %v126
    %853 = vmatprep.subr.mxu0 0.0
    %854 = vmatpush1.msra.mxu0 %v127
    %855 = vmatprep.subr.mxu0 0.0
    %856 = vmatpush1.msra.mxu0 0.0
    %857 = vmatprep.subr.mxu0 0.0
    %858 = vmatpush1.msra.mxu0 0.0
    %859 = vmatprep.subr.mxu0 0.0
    %860 = vmatpush1.msra.mxu0 0.0
    %861 = vmatprep.subr.mxu0 0.0
    %862 = vmatpush1.msra.mxu0 0.0
    %863 = vmatprep.subr.mxu0 0.0
    %864 = vmatpush1.msra.mxu0 0.0
    %865 = vmatprep.subr.mxu0 0.0
    %866 = vmatpush1.msra.mxu0 0.0
    %867 = vmatprep.subr.mxu0 0.0
    %868 = vmatpush1.msra.mxu0 0.0
    %869 = vmatprep.subr.mxu0 0.0
    %870 = vmatpush1.msra.mxu0 0.0
    %871 = vmatprep.subr.mxu0 0.0
    %872 = vmatpush1.msra.mxu0 0.0
    %873 = vmatprep.subr.mxu0 0.0
    %874 = vmatpush1.msra.mxu0 0.0
    %875 = vmatprep.subr.mxu0 0.0
    %876 = vmatpush1.msra.mxu0 0.0
    %877 = vmatprep.subr.mxu0 0.0
    %878 = vmatpush1.msra.mxu0 0.0
    %879 = vmatprep.subr.mxu0 0.0
    %880 = vmatpush1.msra.mxu0 0.0
    %881 = vmatprep.subr.mxu0 0.0
    %882 = vmatpush1.msra.mxu0 0.0
    %883 = vmatprep.subr.mxu0 0.0
    %884 = vmatpush1.msra.mxu0 0.0
    %885 = vmatprep.subr.mxu0 0.0
    %886 = vmatpush1.msra.mxu0 0.0
    %887 = vmatprep.subr.mxu0 0.0
    %888 = vmatpush1.msra.mxu0 0.0
    %889 = vmatprep.subr.mxu0 0.0
    %890 = vmatpush1.msra.mxu0 0.0
    %891 = vmatprep.subr.mxu0 0.0
    %892 = vmatpush1.msra.mxu0 0.0
    %893 = vmatprep.subr.mxu0 0.0
    %894 = vmatpush1.msra.mxu0 0.0
    %895 = vmatprep.subr.mxu0 0.0
    %896 = vmatpush1.msra.mxu0 0.0
    %897 = vmatprep.subr.mxu0 0.0
    %898 = vmatpush1.msra.mxu0 0.0
    %899 = vmatprep.subr.mxu0 0.0
    %900 = vmatpush1.msra.mxu0 0.0
    %901 = vmatprep.subr.mxu0 0.0
    %902 = vmatpush1.msra.mxu0 0.0
    %903 = vmatprep.subr.mxu0 0.0
    %904 = vmatpush1.msra.mxu0 0.0
    %905 = vmatprep.subr.mxu0 0.0
    %906 = vmatpush1.msra.mxu0 0.0
    %907 = vmatprep.subr.mxu0 0.0
    %908 = vmatpush1.msra.mxu0 0.0
    %909 = vmatprep.subr.mxu0 0.0
    %910 = vmatpush1.msra.mxu0 0.0
    %911 = vmatprep.mubr.f32.mxu0 0.0
    %912 = vmatmul.mubr.f32.gmra.mrb[0].mxu0 %v530
    %v913 = vpop.f32.mrb[0].mxu0
    %v914 = vadd.f32 0.0, %v913
    %v915 = vpop.f32.mrb[0].mxu0
    %916 = vdwg.mxu0
    %v917 = vadd.f32 %v844, %v914
    %v918 = vadd.f32 %v917, %v147
    %s919 = scalar_lea.vmem [#allocation7], 2
    %920 = vst.msk [vmem:[%s919] sm:$0x3] %vm275, %v918
    %v921 = vsel %vm275, %v918, -inf
    %922 = vmax.xlane.f32.xlu0 %v921
    %v923 = vpop.xlane.xlu0 %922
    %vm924 = vcmp.ge.f32.partialorder %v918, %v923
    %v925 = vsel %vm924, %v89, 32.0
    %v926 = vsel %vm275, %v925, inf
    %927 = vmin.xlane.f32.xlu0 %v926
    %v928 = vpop.xlane.xlu0 %927
    %vm929 = vcmp.eq.f32.partialorder %v89, %v928
    %v930 = vsel %vm929, 1, 0
    %v931 = vcvt.s32.f32 %v930
    %s932 = sld [smem:[#allocation2 + $0x80]]
    %v933 = vstv %s932
    %vm934 = vcmp.eq.s32.totalorder %v88, %v933
    %vm935 = vmand %vm260, %vm934
    %v936 = vsel %vm935, 1, 0
    %v937 = vcvt.s32.f32 %v936
    %v938 = vadd.f32 %v937, 0.0
    %s939 = sld [smem:[#allocation2 + $0x81]]
    %v940 = vstv %s939
    %vm941 = vcmp.eq.s32.totalorder %v88, %v940
    %vm942 = vmand %vm268, %vm941
    %v943 = vsel %vm942, 1, 0
    %v944 = vcvt.s32.f32 %v943
    %v945 = vadd.f32 %v938, %v944
    %s946 = sld [smem:[#allocation5 + $0x1]]
    %p947 = scmp.gt.s32.totalorder %s946, 0
    %s948 = scalar_select %p947, 1, 0
    %s949 = scvt.s32.f32 %s948
    %v950 = vstv %s949
    %v951 = vmul.f32 %v950, %v945
    %s952 = ssub.f32 1.0, %s949
    %v953 = vstv %s952
    %v954 = vmul.f32 %v953, %v931
    %v955 = vadd.f32 %v951, %v954
    %956 = vmatprep.subr.mxu0 0.0
    %957 = vmatpush1.msra.mxu0 %v92
    %958 = vmatprep.subr.mxu0 0.0
    %959 = vmatpush1.msra.mxu0 %v93
    %960 = vmatprep.subr.mxu0 0.0
    %961 = vmatpush1.msra.mxu0 %v94
    %962 = vmatprep.subr.mxu0 0.0
    %963 = vmatpush1.msra.mxu0 %v95
    %964 = vmatprep.subr.mxu0 0.0
    %965 = vmatpush1.msra.mxu0 0.0
    %966 = vmatprep.subr.mxu0 0.0
    %967 = vmatpush1.msra.mxu0 0.0
    %968 = vmatprep.subr.mxu0 0.0
    %969 = vmatpush1.msra.mxu0 0.0
    %970 = vmatprep.subr.mxu0 0.0
    %971 = vmatpush1.msra.mxu0 0.0
    %972 = vmatprep.subr.mxu0 0.0
    %973 = vmatpush1.msra.mxu0 0.0
    %974 = vmatprep.subr.mxu0 0.0
    %975 = vmatpush1.msra.mxu0 0.0
    %976 = vmatprep.subr.mxu0 0.0
    %977 = vmatpush1.msra.mxu0 0.0
    %978 = vmatprep.subr.mxu0 0.0
    %979 = vmatpush1.msra.mxu0 0.0
    %980 = vmatprep.subr.mxu0 0.0
    %981 = vmatpush1.msra.mxu0 0.0
    %982 = vmatprep.subr.mxu0 0.0
    %983 = vmatpush1.msra.mxu0 0.0
    %984 = vmatprep.subr.mxu0 0.0
    %985 = vmatpush1.msra.mxu0 0.0
    %986 = vmatprep.subr.mxu0 0.0
    %987 = vmatpush1.msra.mxu0 0.0
    %988 = vmatprep.subr.mxu0 0.0
    %989 = vmatpush1.msra.mxu0 0.0
    %990 = vmatprep.subr.mxu0 0.0
    %991 = vmatpush1.msra.mxu0 0.0
    %992 = vmatprep.subr.mxu0 0.0
    %993 = vmatpush1.msra.mxu0 0.0
    %994 = vmatprep.subr.mxu0 0.0
    %995 = vmatpush1.msra.mxu0 0.0
    %996 = vmatprep.subr.mxu0 0.0
    %997 = vmatpush1.msra.mxu0 0.0
    %998 = vmatprep.subr.mxu0 0.0
    %999 = vmatpush1.msra.mxu0 0.0
    %1000 = vmatprep.subr.mxu0 0.0
    %1001 = vmatpush1.msra.mxu0 0.0
    %1002 = vmatprep.subr.mxu0 0.0
    %1003 = vmatpush1.msra.mxu0 0.0
    %1004 = vmatprep.subr.mxu0 0.0
    %1005 = vmatpush1.msra.mxu0 0.0
    %1006 = vmatprep.subr.mxu0 0.0
    %1007 = vmatpush1.msra.mxu0 0.0
    %1008 = vmatprep.subr.mxu0 0.0
    %1009 = vmatpush1.msra.mxu0 0.0
    %1010 = vmatprep.subr.mxu0 0.0
    %1011 = vmatpush1.msra.mxu0 0.0
    %1012 = vmatprep.subr.mxu0 0.0
    %1013 = vmatpush1.msra.mxu0 0.0
    %1014 = vmatprep.subr.mxu0 0.0
    %1015 = vmatpush1.msra.mxu0 0.0
    %1016 = vmatprep.subr.mxu0 0.0
    %1017 = vmatpush1.msra.mxu0 0.0
    %1018 = vmatprep.subr.mxu0 0.0
    %1019 = vmatpush1.msra.mxu0 0.0
    %1020 = vmatprep.mubr.f32.mxu0 0.0
    %1021 = vmatmul.mubr.f32.gmra.mrb[0].mxu0 %v775
    %v1022 = vpop.f32.mrb[0].mxu0
    %v1023 = vadd.f32 0.0, %v1022
    %v1024 = vpop.f32.mrb[0].mxu0
    %1025 = vdwg.mxu0
    %v1028 = vunpack.c.l.s4 1966171168
    %v1029 = vunpack.c.0.s8 %v1028
    %v1030 = vlaneseq
    %v1031 = vshrl.u32 %v1030, 7
    %v1032 = vsub.s32 %v1029, %v1031
    %v1033 = vrot.slane %v1023, %v1032
    %v1034 = vcombine.high %v1033, %v1033
    %v1036 = vunpack.c.l.s4 1966171168
    %v1037 = vunpack.c.0.s8 %v1036
    %v1038 = vlaneseq
    %v1039 = vshrl.u32 %v1038, 7
    %v1040 = vsub.s32 %v1037, %v1039
    %v1041 = vrot.slane %v1033, %v1040
    %v1043 = vunpack.c.l.s4 1966171168
    %v1044 = vunpack.c.0.s8 %v1043
    %v1045 = vlaneseq
    %v1046 = vshrl.u32 %v1045, 7
    %v1047 = vsub.s32 %v1044, %v1046
    %v1048 = vrot.slane %v1034, %v1047
    %v1049 = vlaneseq
    %v1050 = vshrl.u32 %v1049, 7
    %v1051 = vsub.s32 0, %v1050
    %v1052 = vrot.slane %v1041, %v1051
    %v1053 = vlaneseq
    %v1054 = vshrl.u32 %v1053, 7
    %v1055 = vsub.s32 0, %v1054
    %v1056 = vrot.slane %v1048, %v1055
    %v1059 = vadd.f32 %v1052, %v250
    %v1060 = vadd.f32 %v1056, %v255
    %v1061 = vadd.f32 %v1059, %v154
    %v1062 = vadd.f32 %v1060, %v154
    %v1063 = vtanh.pop %v1061
    %v1064 = vtanh.pop %v1062
    %v1065 = vmul.f32 %v1063, %v161
    %v1066 = vmul.f32 %v1064, %v161
    %v1067 = vsel %vm277, %v1065, 0.0
    %1068 = vadd.xlane.f32.xlu0 %v1067
    %v1069 = vpop.xlane.xlu0 %1068
    %v1070 = vsel %vm277, %v1066, 0.0
    %1071 = vadd.xlane.f32.xlu0 %v1070
    %v1072 = vpop.xlane.xlu0 %1071
    %v1075 = vlaneseq
    %v1076 = vshrl.u32 %v1075, 7
    %v1077 = vsub.s32 %v88, %v1076
    %v1078 = vrot.slane %v1069, %v1077
    %v1079 = vlaneseq
    %v1080 = vshrl.u32 %v1079, 7
    %v1081 = vsub.s32 %v88, %v1080
    %v1082 = vrot.slane %v1072, %v1081
    %v1083 = vsel %vm408, %v1082, %v1078
    %v1085 = vsel %vm167, %v1083, -1e+10
    %v1086 = vsel %vm412, %v1085, -inf
    %1087 = vmax.xlane.f32.xlu0 %v1086
    %v1088 = vpop.xlane.xlu0 %1087
    %v1089 = vsub.f32 %v1085, %v1088
    %v1090 = vmul.f32 %v1089, 1.442695
    %v1091 = vpow.pop %v1090
    %v1092 = vsel %vm412, %v1091, 0.0
    %1093 = vadd.xlane.f32.xlu0 %v1092
    %v1094 = vpop.xlane.xlu0 %1093
    %v1095 = vrcp.pop %v1094
    %v1096 = vmul.f32 %v1091, %v1095
    %v1097 = vlaneseq
    %v1098 = vshrl.u32 %v1097, 7
    %v1099 = vsub.s32 0, %v1098
    %v1100 = vrot.slane %v1096, %v1099
    %1102 = vbcast.lane.b32.xlu0 %v1100, 256
    %v1103 = vpop.permute.xlu0 %1102
    %v1104 = vlaneseq
    %v1105 = vshrl.u32 %v1104, 7
    %v1106 = vsub.s32 1, %v1105
    %v1107 = vrot.slane %v1096, %v1106
    %1109 = vbcast.lane.b32.xlu0 %v1107, 256
    %v1110 = vpop.permute.xlu0 %1109
    %v1111 = vmul.f32 %v1103, %v90
    %v1112 = vmul.f32 %v1110, %v91
    %v1113 = vsel %vm176, %v1111, 0.0
    %v1114 = vrot.slane %v1113, 4
    %v1115 = vadd.f32 %v1113, %v1114
    %v1116 = vrot.slane %v1115, 2
    %v1117 = vadd.f32 %v1115, %v1116
    %v1118 = vrot.slane %v1117, 1
    %v1119 = vadd.f32 %v1117, %v1118
    %v1120 = vsel %vm176, %v1112, 0.0
    %v1121 = vrot.slane %v1120, 4
    %v1122 = vadd.f32 %v1120, %v1121
    %v1123 = vrot.slane %v1122, 2
    %v1124 = vadd.f32 %v1122, %v1123
    %v1125 = vrot.slane %v1124, 1
    %v1126 = vadd.f32 %v1124, %v1125
    %v1129 = vsel %vm408, %v1126, %v1119
    %v1130 = vsel %vm176, %v1129, 0
    %1132 = vmatprep.subr.mxu0 0.0
    %1133 = vmatpush1.msra.mxu0 %v100
    %1134 = vmatprep.subr.mxu0 0.0
    %1135 = vmatpush1.msra.mxu0 %v101
    %1136 = vmatprep.subr.mxu0 0.0
    %1137 = vmatpush1.msra.mxu0 %v102
    %1138 = vmatprep.subr.mxu0 0.0
    %1139 = vmatpush1.msra.mxu0 %v103
    %1140 = vmatprep.subr.mxu0 0.0
    %1141 = vmatpush1.msra.mxu0 %v104
    %1142 = vmatprep.subr.mxu0 0.0
    %1143 = vmatpush1.msra.mxu0 %v105
    %1144 = vmatprep.subr.mxu0 0.0
    %1145 = vmatpush1.msra.mxu0 %v106
    %1146 = vmatprep.subr.mxu0 0.0
    %1147 = vmatpush1.msra.mxu0 %v107
    %1148 = vmatprep.subr.mxu0 0.0
    %1149 = vmatpush1.msra.mxu0 0.0
    %1150 = vmatprep.subr.mxu0 0.0
    %1151 = vmatpush1.msra.mxu0 0.0
    %1152 = vmatprep.subr.mxu0 0.0
    %1153 = vmatpush1.msra.mxu0 0.0
    %1154 = vmatprep.subr.mxu0 0.0
    %1155 = vmatpush1.msra.mxu0 0.0
    %1156 = vmatprep.subr.mxu0 0.0
    %1157 = vmatpush1.msra.mxu0 0.0
    %1158 = vmatprep.subr.mxu0 0.0
    %1159 = vmatpush1.msra.mxu0 0.0
    %1160 = vmatprep.subr.mxu0 0.0
    %1161 = vmatpush1.msra.mxu0 0.0
    %1162 = vmatprep.subr.mxu0 0.0
    %1163 = vmatpush1.msra.mxu0 0.0
    %1164 = vmatprep.subr.mxu0 0.0
    %1165 = vmatpush1.msra.mxu0 0.0
    %1166 = vmatprep.subr.mxu0 0.0
    %1167 = vmatpush1.msra.mxu0 0.0
    %1168 = vmatprep.subr.mxu0 0.0
    %1169 = vmatpush1.msra.mxu0 0.0
    %1170 = vmatprep.subr.mxu0 0.0
    %1171 = vmatpush1.msra.mxu0 0.0
    %1172 = vmatprep.subr.mxu0 0.0
    %1173 = vmatpush1.msra.mxu0 0.0
    %1174 = vmatprep.subr.mxu0 0.0
    %1175 = vmatpush1.msra.mxu0 0.0
    %1176 = vmatprep.subr.mxu0 0.0
    %1177 = vmatpush1.msra.mxu0 0.0
    %1178 = vmatprep.subr.mxu0 0.0
    %1179 = vmatpush1.msra.mxu0 0.0
    %1180 = vmatprep.subr.mxu0 0.0
    %1181 = vmatpush1.msra.mxu0 0.0
    %1182 = vmatprep.subr.mxu0 0.0
    %1183 = vmatpush1.msra.mxu0 0.0
    %1184 = vmatprep.subr.mxu0 0.0
    %1185 = vmatpush1.msra.mxu0 0.0
    %1186 = vmatprep.subr.mxu0 0.0
    %1187 = vmatpush1.msra.mxu0 0.0
    %1188 = vmatprep.subr.mxu0 0.0
    %1189 = vmatpush1.msra.mxu0 0.0
    %1190 = vmatprep.subr.mxu0 0.0
    %1191 = vmatpush1.msra.mxu0 0.0
    %1192 = vmatprep.subr.mxu0 0.0
    %1193 = vmatpush1.msra.mxu0 0.0
    %1194 = vmatprep.subr.mxu0 0.0
    %1195 = vmatpush1.msra.mxu0 0.0
    %1196 = vmatprep.mubr.f32.mxu0 0.0
    %1197 = vmatmul.mubr.f32.gmra.mrb[0].mxu0 %v1130
    %v1198 = vpop.f32.mrb[0].mxu0
    %v1199 = vadd.f32 0.0, %v1198
    %v1200 = vpop.f32.mrb[0].mxu0
    %1201 = vdwg.mxu0
    %v1203 = vsel %vm277, %v955, 0
    %1205 = vmatprep.subr.mxu0 0.0
    %1206 = vmatpush1.msra.mxu0 %v96
    %1207 = vmatprep.subr.mxu0 0.0
    %1208 = vmatpush1.msra.mxu0 %v97
    %1209 = vmatprep.subr.mxu0 0.0
    %1210 = vmatpush1.msra.mxu0 %v98
    %1211 = vmatprep.subr.mxu0 0.0
    %1212 = vmatpush1.msra.mxu0 %v99
    %1213 = vmatprep.subr.mxu0 0.0
    %1214 = vmatpush1.msra.mxu0 0.0
    %1215 = vmatprep.subr.mxu0 0.0
    %1216 = vmatpush1.msra.mxu0 0.0
    %1217 = vmatprep.subr.mxu0 0.0
    %1218 = vmatpush1.msra.mxu0 0.0
    %1219 = vmatprep.subr.mxu0 0.0
    %1220 = vmatpush1.msra.mxu0 0.0
    %1221 = vmatprep.subr.mxu0 0.0
    %1222 = vmatpush1.msra.mxu0 0.0
    %1223 = vmatprep.subr.mxu0 0.0
    %1224 = vmatpush1.msra.mxu0 0.0
    %1225 = vmatprep.subr.mxu0 0.0
    %1226 = vmatpush1.msra.mxu0 0.0
    %1227 = vmatprep.subr.mxu0 0.0
    %1228 = vmatpush1.msra.mxu0 0.0
    %1229 = vmatprep.subr.mxu0 0.0
    %1230 = vmatpush1.msra.mxu0 0.0
    %1231 = vmatprep.subr.mxu0 0.0
    %1232 = vmatpush1.msra.mxu0 0.0
    %1233 = vmatprep.subr.mxu0 0.0
    %1234 = vmatpush1.msra.mxu0 0.0
    %1235 = vmatprep.subr.mxu0 0.0
    %1236 = vmatpush1.msra.mxu0 0.0
    %1237 = vmatprep.subr.mxu0 0.0
    %1238 = vmatpush1.msra.mxu0 0.0
    %1239 = vmatprep.subr.mxu0 0.0
    %1240 = vmatpush1.msra.mxu0 0.0
    %1241 = vmatprep.subr.mxu0 0.0
    %1242 = vmatpush1.msra.mxu0 0.0
    %1243 = vmatprep.subr.mxu0 0.0
    %1244 = vmatpush1.msra.mxu0 0.0
    %1245 = vmatprep.subr.mxu0 0.0
    %1246 = vmatpush1.msra.mxu0 0.0
    %1247 = vmatprep.subr.mxu0 0.0
    %1248 = vmatpush1.msra.mxu0 0.0
    %1249 = vmatprep.subr.mxu0 0.0
    %1250 = vmatpush1.msra.mxu0 0.0
    %1251 = vmatprep.subr.mxu0 0.0
    %1252 = vmatpush1.msra.mxu0 0.0
    %1253 = vmatprep.subr.mxu0 0.0
    %1254 = vmatpush1.msra.mxu0 0.0
    %1255 = vmatprep.subr.mxu0 0.0
    %1256 = vmatpush1.msra.mxu0 0.0
    %1257 = vmatprep.subr.mxu0 0.0
    %1258 = vmatpush1.msra.mxu0 0.0
    %1259 = vmatprep.subr.mxu0 0.0
    %1260 = vmatpush1.msra.mxu0 0.0
    %1261 = vmatprep.subr.mxu0 0.0
    %1262 = vmatpush1.msra.mxu0 0.0
    %1263 = vmatprep.subr.mxu0 0.0
    %1264 = vmatpush1.msra.mxu0 0.0
    %1265 = vmatprep.subr.mxu0 0.0
    %1266 = vmatpush1.msra.mxu0 0.0
    %1267 = vmatprep.subr.mxu0 0.0
    %1268 = vmatpush1.msra.mxu0 0.0
    %1269 = vmatprep.mubr.f32.mxu0 0.0
    %1270 = vmatmul.mubr.f32.gmra.mrb[0].mxu0 %v1203
    %v1271 = vpop.f32.mrb[0].mxu0
    %v1272 = vadd.f32 %v1199, %v1271
    %v1273 = vpop.f32.mrb[0].mxu0
    %1274 = vdwg.mxu0
    %v1275 = vadd.f32 %v1272, %v133
    %1276 = vmatprep.subr.mxu0 0.0
    %1277 = vmatpush1.msra.mxu0 %v108
    %1278 = vmatprep.subr.mxu0 0.0
    %1279 = vmatpush1.msra.mxu0 %v109
    %1280 = vmatprep.subr.mxu0 0.0
    %1281 = vmatpush1.msra.mxu0 %v110
    %1282 = vmatprep.subr.mxu0 0.0
    %1283 = vmatpush1.msra.mxu0 %v111
    %1284 = vmatprep.subr.mxu0 0.0
    %1285 = vmatpush1.msra.mxu0 0.0
    %1286 = vmatprep.subr.mxu0 0.0
    %1287 = vmatpush1.msra.mxu0 0.0
    %1288 = vmatprep.subr.mxu0 0.0
    %1289 = vmatpush1.msra.mxu0 0.0
    %1290 = vmatprep.subr.mxu0 0.0
    %1291 = vmatpush1.msra.mxu0 0.0
    %1292 = vmatprep.subr.mxu0 0.0
    %1293 = vmatpush1.msra.mxu0 0.0
    %1294 = vmatprep.subr.mxu0 0.0
    %1295 = vmatpush1.msra.mxu0 0.0
    %1296 = vmatprep.subr.mxu0 0.0
    %1297 = vmatpush1.msra.mxu0 0.0
    %1298 = vmatprep.subr.mxu0 0.0
    %1299 = vmatpush1.msra.mxu0 0.0
    %1300 = vmatprep.subr.mxu0 0.0
    %1301 = vmatpush1.msra.mxu0 0.0
    %1302 = vmatprep.subr.mxu0 0.0
    %1303 = vmatpush1.msra.mxu0 0.0
    %1304 = vmatprep.subr.mxu0 0.0
    %1305 = vmatpush1.msra.mxu0 0.0
    %1306 = vmatprep.subr.mxu0 0.0
    %1307 = vmatpush1.msra.mxu0 0.0
    %1308 = vmatprep.subr.mxu0 0.0
    %1309 = vmatpush1.msra.mxu0 0.0
    %1310 = vmatprep.subr.mxu0 0.0
    %1311 = vmatpush1.msra.mxu0 0.0
    %1312 = vmatprep.subr.mxu0 0.0
    %1313 = vmatpush1.msra.mxu0 0.0
    %1314 = vmatprep.subr.mxu0 0.0
    %1315 = vmatpush1.msra.mxu0 0.0
    %1316 = vmatprep.subr.mxu0 0.0
    %1317 = vmatpush1.msra.mxu0 0.0
    %1318 = vmatprep.subr.mxu0 0.0
    %1319 = vmatpush1.msra.mxu0 0.0
    %1320 = vmatprep.subr.mxu0 0.0
    %1321 = vmatpush1.msra.mxu0 0.0
    %1322 = vmatprep.subr.mxu0 0.0
    %1323 = vmatpush1.msra.mxu0 0.0
    %1324 = vmatprep.subr.mxu0 0.0
    %1325 = vmatpush1.msra.mxu0 0.0
    %1326 = vmatprep.subr.mxu0 0.0
    %1327 = vmatpush1.msra.mxu0 0.0
    %1328 = vmatprep.subr.mxu0 0.0
    %1329 = vmatpush1.msra.mxu0 0.0
    %1330 = vmatprep.subr.mxu0 0.0
    %1331 = vmatpush1.msra.mxu0 0.0
    %1332 = vmatprep.subr.mxu0 0.0
    %1333 = vmatpush1.msra.mxu0 0.0
    %1334 = vmatprep.subr.mxu0 0.0
    %1335 = vmatpush1.msra.mxu0 0.0
    %1336 = vmatprep.subr.mxu0 0.0
    %1337 = vmatpush1.msra.mxu0 0.0
    %1338 = vmatprep.subr.mxu0 0.0
    %1339 = vmatpush1.msra.mxu0 0.0
    %1340 = vmatprep.mubr.f32.mxu0 0.0
    %1341 = vmatmul.mubr.f32.gmra.mrb[0].mxu0 %v775
    %v1342 = vpop.f32.mrb[0].mxu0
    %v1343 = vadd.f32 %v140, %v1342
    %v1344 = vpop.f32.mrb[0].mxu0
    %1345 = vdwg.mxu0
    %v1346 = vadd.f32 %v1275, %v1343
    %v1347 = vxor.u32 %v1346, 2147483648
    %v1348 = vmul.f32 %v1347, 1.442695
    %v1349 = vpow.pop %v1348
    %v1350 = vadd.f32 %v1349, 1.0
    %v1351 = vrcp.pop %v1350
    %v1352 = vmul.f32 1.0, %v1351
    %1354 = vrot.lane.b32.xlu0 %v1343, 64
    %v1355 = vpop.permute.xlu0 %1354
    %v1357 = vmul.f32 %v1352, %v1355
    %1359 = vrot.lane.b32.xlu0 %v1357, 64
    %v1360 = vpop.permute.xlu0 %1359
    %v1362 = vadd.f32 %v1275, %v1360
    %v1363 = vtanh.pop %v1362
    %v1364 = vsub.f32 1.0, %v1352
    %1366 = vrot.lane.b32.xlu0 %v1363, 96
    %v1367 = vpop.permute.xlu0 %1366
    %v1369 = vmul.f32 %v1364, %v1367
    %v1370 = vmul.f32 %v1352, %v701
    %v1371 = vadd.f32 %v1369, %v1370
    %1372 = vmatprep.subr.mxu0 0.0
    %1373 = vmatpush1.msra.mxu0 %v116
    %1374 = vmatprep.subr.mxu0 0.0
    %1375 = vmatpush1.msra.mxu0 %v117
    %1376 = vmatprep.subr.mxu0 0.0
    %1377 = vmatpush1.msra.mxu0 %v118
    %1378 = vmatprep.subr.mxu0 0.0
    %1379 = vmatpush1.msra.mxu0 %v119
    %1380 = vmatprep.subr.mxu0 0.0
    %1381 = vmatpush1.msra.mxu0 %v120
    %1382 = vmatprep.subr.mxu0 0.0
    %1383 = vmatpush1.msra.mxu0 %v121
    %1384 = vmatprep.subr.mxu0 0.0
    %1385 = vmatpush1.msra.mxu0 %v122
    %1386 = vmatprep.subr.mxu0 0.0
    %1387 = vmatpush1.msra.mxu0 %v123
    %1388 = vmatprep.subr.mxu0 0.0
    %1389 = vmatpush1.msra.mxu0 0.0
    %1390 = vmatprep.subr.mxu0 0.0
    %1391 = vmatpush1.msra.mxu0 0.0
    %1392 = vmatprep.subr.mxu0 0.0
    %1393 = vmatpush1.msra.mxu0 0.0
    %1394 = vmatprep.subr.mxu0 0.0
    %1395 = vmatpush1.msra.mxu0 0.0
    %1396 = vmatprep.subr.mxu0 0.0
    %1397 = vmatpush1.msra.mxu0 0.0
    %1398 = vmatprep.subr.mxu0 0.0
    %1399 = vmatpush1.msra.mxu0 0.0
    %1400 = vmatprep.subr.mxu0 0.0
    %1401 = vmatpush1.msra.mxu0 0.0
    %1402 = vmatprep.subr.mxu0 0.0
    %1403 = vmatpush1.msra.mxu0 0.0
    %1404 = vmatprep.subr.mxu0 0.0
    %1405 = vmatpush1.msra.mxu0 0.0
    %1406 = vmatprep.subr.mxu0 0.0
    %1407 = vmatpush1.msra.mxu0 0.0
    %1408 = vmatprep.subr.mxu0 0.0
    %1409 = vmatpush1.msra.mxu0 0.0
    %1410 = vmatprep.subr.mxu0 0.0
    %1411 = vmatpush1.msra.mxu0 0.0
    %1412 = vmatprep.subr.mxu0 0.0
    %1413 = vmatpush1.msra.mxu0 0.0
    %1414 = vmatprep.subr.mxu0 0.0
    %1415 = vmatpush1.msra.mxu0 0.0
    %1416 = vmatprep.subr.mxu0 0.0
    %1417 = vmatpush1.msra.mxu0 0.0
    %1418 = vmatprep.subr.mxu0 0.0
    %1419 = vmatpush1.msra.mxu0 0.0
    %1420 = vmatprep.subr.mxu0 0.0
    %1421 = vmatpush1.msra.mxu0 0.0
    %1422 = vmatprep.subr.mxu0 0.0
    %1423 = vmatpush1.msra.mxu0 0.0
    %1424 = vmatprep.subr.mxu0 0.0
    %1425 = vmatpush1.msra.mxu0 0.0
    %1426 = vmatprep.subr.mxu0 0.0
    %1427 = vmatpush1.msra.mxu0 0.0
    %1428 = vmatprep.subr.mxu0 0.0
    %1429 = vmatpush1.msra.mxu0 0.0
    %1430 = vmatprep.subr.mxu0 0.0
    %1431 = vmatpush1.msra.mxu0 0.0
    %1432 = vmatprep.subr.mxu0 0.0
    %1433 = vmatpush1.msra.mxu0 0.0
    %1434 = vmatprep.subr.mxu0 0.0
    %1435 = vmatpush1.msra.mxu0 0.0
    %1436 = vmatprep.mubr.f32.mxu0 0.0
    %1437 = vmatmul.mubr.f32.gmra.mrb[0].mxu0 %v1130
    %v1438 = vpop.f32.mrb[0].mxu0
    %v1439 = vadd.f32 0.0, %v1438
    %v1440 = vpop.f32.mrb[0].mxu0
    %1441 = vdwg.mxu0
    %1443 = vrot.lane.b32.xlu0 %v1371, 96
    %v1444 = vpop.permute.xlu0 %1443
    %v1445 = vsel %vm277, %v1444, 0
    %1447 = vmatprep.subr.mxu0 0.0
    %1448 = vmatpush1.msra.mxu0 %v112
    %1449 = vmatprep.subr.mxu0 0.0
    %1450 = vmatpush1.msra.mxu0 %v113
    %1451 = vmatprep.subr.mxu0 0.0
    %1452 = vmatpush1.msra.mxu0 %v114
    %1453 = vmatprep.subr.mxu0 0.0
    %1454 = vmatpush1.msra.mxu0 %v115
    %1455 = vmatprep.subr.mxu0 0.0
    %1456 = vmatpush1.msra.mxu0 0.0
    %1457 = vmatprep.subr.mxu0 0.0
    %1458 = vmatpush1.msra.mxu0 0.0
    %1459 = vmatprep.subr.mxu0 0.0
    %1460 = vmatpush1.msra.mxu0 0.0
    %1461 = vmatprep.subr.mxu0 0.0
    %1462 = vmatpush1.msra.mxu0 0.0
    %1463 = vmatprep.subr.mxu0 0.0
    %1464 = vmatpush1.msra.mxu0 0.0
    %1465 = vmatprep.subr.mxu0 0.0
    %1466 = vmatpush1.msra.mxu0 0.0
    %1467 = vmatprep.subr.mxu0 0.0
    %1468 = vmatpush1.msra.mxu0 0.0
    %1469 = vmatprep.subr.mxu0 0.0
    %1470 = vmatpush1.msra.mxu0 0.0
    %1471 = vmatprep.subr.mxu0 0.0
    %1472 = vmatpush1.msra.mxu0 0.0
    %1473 = vmatprep.subr.mxu0 0.0
    %1474 = vmatpush1.msra.mxu0 0.0
    %1475 = vmatprep.subr.mxu0 0.0
    %1476 = vmatpush1.msra.mxu0 0.0
    %1477 = vmatprep.subr.mxu0 0.0
    %1478 = vmatpush1.msra.mxu0 0.0
    %1479 = vmatprep.subr.mxu0 0.0
    %1480 = vmatpush1.msra.mxu0 0.0
    %1481 = vmatprep.subr.mxu0 0.0
    %1482 = vmatpush1.msra.mxu0 0.0
    %1483 = vmatprep.subr.mxu0 0.0
    %1484 = vmatpush1.msra.mxu0 0.0
    %1485 = vmatprep.subr.mxu0 0.0
    %1486 = vmatpush1.msra.mxu0 0.0
    %1487 = vmatprep.subr.mxu0 0.0
    %1488 = vmatpush1.msra.mxu0 0.0
    %1489 = vmatprep.subr.mxu0 0.0
    %1490 = vmatpush1.msra.mxu0 0.0
    %1491 = vmatprep.subr.mxu0 0.0
    %1492 = vmatpush1.msra.mxu0 0.0
    %1493 = vmatprep.subr.mxu0 0.0
    %1494 = vmatpush1.msra.mxu0 0.0
    %1495 = vmatprep.subr.mxu0 0.0
    %1496 = vmatpush1.msra.mxu0 0.0
    %1497 = vmatprep.subr.mxu0 0.0
    %1498 = vmatpush1.msra.mxu0 0.0
    %1499 = vmatprep.subr.mxu0 0.0
    %1500 = vmatpush1.msra.mxu0 0.0
    %1501 = vmatprep.subr.mxu0 0.0
    %1502 = vmatpush1.msra.mxu0 0.0
    %1503 = vmatprep.subr.mxu0 0.0
    %1504 = vmatpush1.msra.mxu0 0.0
    %1505 = vmatprep.subr.mxu0 0.0
    %1506 = vmatpush1.msra.mxu0 0.0
    %1507 = vmatprep.subr.mxu0 0.0
    %1508 = vmatpush1.msra.mxu0 0.0
    %1509 = vmatprep.subr.mxu0 0.0
    %1510 = vmatpush1.msra.mxu0 0.0
    %1511 = vmatprep.mubr.f32.mxu0 0.0
    %1512 = vmatmul.mubr.f32.gmra.mrb[0].mxu0 %v1445
    %v1513 = vpop.f32.mrb[0].mxu0
    %v1514 = vadd.f32 %v1439, %v1513
    %v1515 = vpop.f32.mrb[0].mxu0
    %1516 = vdwg.mxu0
    %1517 = vmatprep.subr.mxu0 0.0
    %1518 = vmatpush1.msra.mxu0 %v124
    %1519 = vmatprep.subr.mxu0 0.0
    %1520 = vmatpush1.msra.mxu0 %v125
    %1521 = vmatprep.subr.mxu0 0.0
    %1522 = vmatpush1.msra.mxu0 %v126
    %1523 = vmatprep.subr.mxu0 0.0
    %1524 = vmatpush1.msra.mxu0 %v127
    %1525 = vmatprep.subr.mxu0 0.0
    %1526 = vmatpush1.msra.mxu0 0.0
    %1527 = vmatprep.subr.mxu0 0.0
    %1528 = vmatpush1.msra.mxu0 0.0
    %1529 = vmatprep.subr.mxu0 0.0
    %1530 = vmatpush1.msra.mxu0 0.0
    %1531 = vmatprep.subr.mxu0 0.0
    %1532 = vmatpush1.msra.mxu0 0.0
    %1533 = vmatprep.subr.mxu0 0.0
    %1534 = vmatpush1.msra.mxu0 0.0
    %1535 = vmatprep.subr.mxu0 0.0
    %1536 = vmatpush1.msra.mxu0 0.0
    %1537 = vmatprep.subr.mxu0 0.0
    %1538 = vmatpush1.msra.mxu0 0.0
    %1539 = vmatprep.subr.mxu0 0.0
    %1540 = vmatpush1.msra.mxu0 0.0
    %1541 = vmatprep.subr.mxu0 0.0
    %1542 = vmatpush1.msra.mxu0 0.0
    %1543 = vmatprep.subr.mxu0 0.0
    %1544 = vmatpush1.msra.mxu0 0.0
    %1545 = vmatprep.subr.mxu0 0.0
    %1546 = vmatpush1.msra.mxu0 0.0
    %1547 = vmatprep.subr.mxu0 0.0
    %1548 = vmatpush1.msra.mxu0 0.0
    %1549 = vmatprep.subr.mxu0 0.0
    %1550 = vmatpush1.msra.mxu0 0.0
    %1551 = vmatprep.subr.mxu0 0.0
    %1552 = vmatpush1.msra.mxu0 0.0
    %1553 = vmatprep.subr.mxu0 0.0
    %1554 = vmatpush1.msra.mxu0 0.0
    %1555 = vmatprep.subr.mxu0 0.0
    %1556 = vmatpush1.msra.mxu0 0.0
    %1557 = vmatprep.subr.mxu0 0.0
    %1558 = vmatpush1.msra.mxu0 0.0
    %1559 = vmatprep.subr.mxu0 0.0
    %1560 = vmatpush1.msra.mxu0 0.0
    %1561 = vmatprep.subr.mxu0 0.0
    %1562 = vmatpush1.msra.mxu0 0.0
    %1563 = vmatprep.subr.mxu0 0.0
    %1564 = vmatpush1.msra.mxu0 0.0
    %1565 = vmatprep.subr.mxu0 0.0
    %1566 = vmatpush1.msra.mxu0 0.0
    %1567 = vmatprep.subr.mxu0 0.0
    %1568 = vmatpush1.msra.mxu0 0.0
    %1569 = vmatprep.subr.mxu0 0.0
    %1570 = vmatpush1.msra.mxu0 0.0
    %1571 = vmatprep.subr.mxu0 0.0
    %1572 = vmatpush1.msra.mxu0 0.0
    %1573 = vmatprep.subr.mxu0 0.0
    %1574 = vmatpush1.msra.mxu0 0.0
    %1575 = vmatprep.subr.mxu0 0.0
    %1576 = vmatpush1.msra.mxu0 0.0
    %1577 = vmatprep.subr.mxu0 0.0
    %1578 = vmatpush1.msra.mxu0 0.0
    %1579 = vmatprep.subr.mxu0 0.0
    %1580 = vmatpush1.msra.mxu0 0.0
    %1581 = vmatprep.mubr.f32.mxu0 0.0
    %1582 = vmatmul.mubr.f32.gmra.mrb[0].mxu0 %v1203
    %v1583 = vpop.f32.mrb[0].mxu0
    %v1584 = vadd.f32 0.0, %v1583
    %v1585 = vpop.f32.mrb[0].mxu0
    %1586 = vdwg.mxu0
    %v1587 = vadd.f32 %v1514, %v1584
    %v1588 = vadd.f32 %v1587, %v147
    %s1589 = scalar_lea.vmem [#allocation7], 4
    %1590 = vst.msk [vmem:[%s1589] sm:$0x3] %vm275, %v1588
    %v1591 = vsel %vm275, %v1588, -inf
    %1592 = vmax.xlane.f32.xlu0 %v1591
    %v1593 = vpop.xlane.xlu0 %1592
    %vm1594 = vcmp.ge.f32.partialorder %v1588, %v1593
    %v1595 = vsel %vm1594, %v89, 32.0
    %v1596 = vsel %vm275, %v1595, inf
    %1597 = vmin.xlane.f32.xlu0 %v1596
    %v1598 = vpop.xlane.xlu0 %1597
    %vm1599 = vcmp.eq.f32.partialorder %v89, %v1598
    %v1600 = vsel %vm1599, 1, 0
    %v1601 = vcvt.s32.f32 %v1600
    %s1602 = sld [smem:[#allocation2 + $0x100]]
    %v1603 = vstv %s1602
    %vm1604 = vcmp.eq.s32.totalorder %v88, %v1603
    %vm1605 = vmand %vm260, %vm1604
    %v1606 = vsel %vm1605, 1, 0
    %v1607 = vcvt.s32.f32 %v1606
    %v1608 = vadd.f32 %v1607, 0.0
    %s1609 = sld [smem:[#allocation2 + $0x101]]
    %v1610 = vstv %s1609
    %vm1611 = vcmp.eq.s32.totalorder %v88, %v1610
    %vm1612 = vmand %vm268, %vm1611
    %v1613 = vsel %vm1612, 1, 0
    %v1614 = vcvt.s32.f32 %v1613
    %v1615 = vadd.f32 %v1608, %v1614
    %s1616 = sld [smem:[#allocation5 + $0x2]]
    %p1617 = scmp.gt.s32.totalorder %s1616, 0
    %s1618 = scalar_select %p1617, 1, 0
    %s1619 = scvt.s32.f32 %s1618
    %v1620 = vstv %s1619
    %v1621 = vmul.f32 %v1620, %v1615
    %s1622 = ssub.f32 1.0, %s1619
    %v1623 = vstv %s1622
    %v1624 = vmul.f32 %v1623, %v1601
    %v1625 = vadd.f32 %v1621, %v1624
    %1626 = vmatprep.subr.mxu0 0.0
    %1627 = vmatpush1.msra.mxu0 %v92
    %1628 = vmatprep.subr.mxu0 0.0
    %1629 = vmatpush1.msra.mxu0 %v93
    %1630 = vmatprep.subr.mxu0 0.0
    %1631 = vmatpush1.msra.mxu0 %v94
    %1632 = vmatprep.subr.mxu0 0.0
    %1633 = vmatpush1.msra.mxu0 %v95
    %1634 = vmatprep.subr.mxu0 0.0
    %1635 = vmatpush1.msra.mxu0 0.0
    %1636 = vmatprep.subr.mxu0 0.0
    %1637 = vmatpush1.msra.mxu0 0.0
    %1638 = vmatprep.subr.mxu0 0.0
    %1639 = vmatpush1.msra.mxu0 0.0
    %1640 = vmatprep.subr.mxu0 0.0
    %1641 = vmatpush1.msra.mxu0 0.0
    %1642 = vmatprep.subr.mxu0 0.0
    %1643 = vmatpush1.msra.mxu0 0.0
    %1644 = vmatprep.subr.mxu0 0.0
    %1645 = vmatpush1.msra.mxu0 0.0
    %1646 = vmatprep.subr.mxu0 0.0
    %1647 = vmatpush1.msra.mxu0 0.0
    %1648 = vmatprep.subr.mxu0 0.0
    %1649 = vmatpush1.msra.mxu0 0.0
    %1650 = vmatprep.subr.mxu0 0.0
    %1651 = vmatpush1.msra.mxu0 0.0
    %1652 = vmatprep.subr.mxu0 0.0
    %1653 = vmatpush1.msra.mxu0 0.0
    %1654 = vmatprep.subr.mxu0 0.0
    %1655 = vmatpush1.msra.mxu0 0.0
    %1656 = vmatprep.subr.mxu0 0.0
    %1657 = vmatpush1.msra.mxu0 0.0
    %1658 = vmatprep.subr.mxu0 0.0
    %1659 = vmatpush1.msra.mxu0 0.0
    %1660 = vmatprep.subr.mxu0 0.0
    %1661 = vmatpush1.msra.mxu0 0.0
    %1662 = vmatprep.subr.mxu0 0.0
    %1663 = vmatpush1.msra.mxu0 0.0
    %1664 = vmatprep.subr.mxu0 0.0
    %1665 = vmatpush1.msra.mxu0 0.0
    %1666 = vmatprep.subr.mxu0 0.0
    %1667 = vmatpush1.msra.mxu0 0.0
    %1668 = vmatprep.subr.mxu0 0.0
    %1669 = vmatpush1.msra.mxu0 0.0
    %1670 = vmatprep.subr.mxu0 0.0
    %1671 = vmatpush1.msra.mxu0 0.0
    %1672 = vmatprep.subr.mxu0 0.0
    %1673 = vmatpush1.msra.mxu0 0.0
    %1674 = vmatprep.subr.mxu0 0.0
    %1675 = vmatpush1.msra.mxu0 0.0
    %1676 = vmatprep.subr.mxu0 0.0
    %1677 = vmatpush1.msra.mxu0 0.0
    %1678 = vmatprep.subr.mxu0 0.0
    %1679 = vmatpush1.msra.mxu0 0.0
    %1680 = vmatprep.subr.mxu0 0.0
    %1681 = vmatpush1.msra.mxu0 0.0
    %1682 = vmatprep.subr.mxu0 0.0
    %1683 = vmatpush1.msra.mxu0 0.0
    %1684 = vmatprep.subr.mxu0 0.0
    %1685 = vmatpush1.msra.mxu0 0.0
    %1686 = vmatprep.subr.mxu0 0.0
    %1687 = vmatpush1.msra.mxu0 0.0
    %1688 = vmatprep.subr.mxu0 0.0
    %1689 = vmatpush1.msra.mxu0 0.0
    %1690 = vmatprep.mubr.f32.mxu0 0.0
    %1691 = vmatmul.mubr.f32.gmra.mrb[0].mxu0 %v1445
    %v1692 = vpop.f32.mrb[0].mxu0
    %v1693 = vadd.f32 0.0, %v1692
    %v1694 = vpop.f32.mrb[0].mxu0
    %1695 = vdwg.mxu0
    %v1698 = vunpack.c.l.s4 1966171168
    %v1699 = vunpack.c.0.s8 %v1698
    %v1700 = vlaneseq
    %v1701 = vshrl.u32 %v1700, 7
    %v1702 = vsub.s32 %v1699, %v1701
    %v1703 = vrot.slane %v1693, %v1702
    %v1704 = vcombine.high %v1703, %v1703
    %v1706 = vunpack.c.l.s4 1966171168
    %v1707 = vunpack.c.0.s8 %v1706
    %v1708 = vlaneseq
    %v1709 = vshrl.u32 %v1708, 7
    %v1710 = vsub.s32 %v1707, %v1709
    %v1711 = vrot.slane %v1703, %v1710
    %v1713 = vunpack.c.l.s4 1966171168
    %v1714 = vunpack.c.0.s8 %v1713
    %v1715 = vlaneseq
    %v1716 = vshrl.u32 %v1715, 7
    %v1717 = vsub.s32 %v1714, %v1716
    %v1718 = vrot.slane %v1704, %v1717
    %v1719 = vlaneseq
    %v1720 = vshrl.u32 %v1719, 7
    %v1721 = vsub.s32 0, %v1720
    %v1722 = vrot.slane %v1711, %v1721
    %v1723 = vlaneseq
    %v1724 = vshrl.u32 %v1723, 7
    %v1725 = vsub.s32 0, %v1724
    %v1726 = vrot.slane %v1718, %v1725
    %v1729 = vadd.f32 %v1722, %v250
    %v1730 = vadd.f32 %v1726, %v255
    %v1731 = vadd.f32 %v1729, %v154
    %v1732 = vadd.f32 %v1730, %v154
    %v1733 = vtanh.pop %v1731
    %v1734 = vtanh.pop %v1732
    %v1735 = vmul.f32 %v1733, %v161
    %v1736 = vmul.f32 %v1734, %v161
    %v1737 = vsel %vm277, %v1735, 0.0
    %1738 = vadd.xlane.f32.xlu0 %v1737
    %v1739 = vpop.xlane.xlu0 %1738
    %v1740 = vsel %vm277, %v1736, 0.0
    %1741 = vadd.xlane.f32.xlu0 %v1740
    %v1742 = vpop.xlane.xlu0 %1741
    %v1745 = vlaneseq
    %v1746 = vshrl.u32 %v1745, 7
    %v1747 = vsub.s32 %v88, %v1746
    %v1748 = vrot.slane %v1739, %v1747
    %v1749 = vlaneseq
    %v1750 = vshrl.u32 %v1749, 7
    %v1751 = vsub.s32 %v88, %v1750
    %v1752 = vrot.slane %v1742, %v1751
    %v1753 = vsel %vm408, %v1752, %v1748
    %v1755 = vsel %vm167, %v1753, -1e+10
    %v1756 = vsel %vm412, %v1755, -inf
    %1757 = vmax.xlane.f32.xlu0 %v1756
    %v1758 = vpop.xlane.xlu0 %1757
    %v1759 = vsub.f32 %v1755, %v1758
    %v1760 = vmul.f32 %v1759, 1.442695
    %v1761 = vpow.pop %v1760
    %v1762 = vsel %vm412, %v1761, 0.0
    %1763 = vadd.xlane.f32.xlu0 %v1762
    %v1764 = vpop.xlane.xlu0 %1763
    %v1765 = vrcp.pop %v1764
    %v1766 = vmul.f32 %v1761, %v1765
    %v1767 = vlaneseq
    %v1768 = vshrl.u32 %v1767, 7
    %v1769 = vsub.s32 0, %v1768
    %v1770 = vrot.slane %v1766, %v1769
    %1772 = vbcast.lane.b32.xlu0 %v1770, 256
    %v1773 = vpop.permute.xlu0 %1772
    %v1774 = vlaneseq
    %v1775 = vshrl.u32 %v1774, 7
    %v1776 = vsub.s32 1, %v1775
    %v1777 = vrot.slane %v1766, %v1776
    %1779 = vbcast.lane.b32.xlu0 %v1777, 256
    %v1780 = vpop.permute.xlu0 %1779
    %v1781 = vmul.f32 %v1773, %v90
    %v1782 = vmul.f32 %v1780, %v91
    %v1783 = vsel %vm176, %v1781, 0.0
    %v1784 = vrot.slane %v1783, 4
    %v1785 = vadd.f32 %v1783, %v1784
    %v1786 = vrot.slane %v1785, 2
    %v1787 = vadd.f32 %v1785, %v1786
    %v1788 = vrot.slane %v1787, 1
    %v1789 = vadd.f32 %v1787, %v1788
    %v1790 = vsel %vm176, %v1782, 0.0
    %v1791 = vrot.slane %v1790, 4
    %v1792 = vadd.f32 %v1790, %v1791
    %v1793 = vrot.slane %v1792, 2
    %v1794 = vadd.f32 %v1792, %v1793
    %v1795 = vrot.slane %v1794, 1
    %v1796 = vadd.f32 %v1794, %v1795
    %v1799 = vsel %vm408, %v1796, %v1789
    %v1800 = vsel %vm176, %v1799, 0
    %1802 = vmatprep.subr.mxu0 0.0
    %1803 = vmatpush1.msra.mxu0 %v100
    %1804 = vmatprep.subr.mxu0 0.0
    %1805 = vmatpush1.msra.mxu0 %v101
    %1806 = vmatprep.subr.mxu0 0.0
    %1807 = vmatpush1.msra.mxu0 %v102
    %1808 = vmatprep.subr.mxu0 0.0
    %1809 = vmatpush1.msra.mxu0 %v103
    %1810 = vmatprep.subr.mxu0 0.0
    %1811 = vmatpush1.msra.mxu0 %v104
    %1812 = vmatprep.subr.mxu0 0.0
    %1813 = vmatpush1.msra.mxu0 %v105
    %1814 = vmatprep.subr.mxu0 0.0
    %1815 = vmatpush1.msra.mxu0 %v106
    %1816 = vmatprep.subr.mxu0 0.0
    %1817 = vmatpush1.msra.mxu0 %v107
    %1818 = vmatprep.subr.mxu0 0.0
    %1819 = vmatpush1.msra.mxu0 0.0
    %1820 = vmatprep.subr.mxu0 0.0
    %1821 = vmatpush1.msra.mxu0 0.0
    %1822 = vmatprep.subr.mxu0 0.0
    %1823 = vmatpush1.msra.mxu0 0.0
    %1824 = vmatprep.subr.mxu0 0.0
    %1825 = vmatpush1.msra.mxu0 0.0
    %1826 = vmatprep.subr.mxu0 0.0
    %1827 = vmatpush1.msra.mxu0 0.0
    %1828 = vmatprep.subr.mxu0 0.0
    %1829 = vmatpush1.msra.mxu0 0.0
    %1830 = vmatprep.subr.mxu0 0.0
    %1831 = vmatpush1.msra.mxu0 0.0
    %1832 = vmatprep.subr.mxu0 0.0
    %1833 = vmatpush1.msra.mxu0 0.0
    %1834 = vmatprep.subr.mxu0 0.0
    %1835 = vmatpush1.msra.mxu0 0.0
    %1836 = vmatprep.subr.mxu0 0.0
    %1837 = vmatpush1.msra.mxu0 0.0
    %1838 = vmatprep.subr.mxu0 0.0
    %1839 = vmatpush1.msra.mxu0 0.0
    %1840 = vmatprep.subr.mxu0 0.0
    %1841 = vmatpush1.msra.mxu0 0.0
    %1842 = vmatprep.subr.mxu0 0.0
    %1843 = vmatpush1.msra.mxu0 0.0
    %1844 = vmatprep.subr.mxu0 0.0
    %1845 = vmatpush1.msra.mxu0 0.0
    %1846 = vmatprep.subr.mxu0 0.0
    %1847 = vmatpush1.msra.mxu0 0.0
    %1848 = vmatprep.subr.mxu0 0.0
    %1849 = vmatpush1.msra.mxu0 0.0
    %1850 = vmatprep.subr.mxu0 0.0
    %1851 = vmatpush1.msra.mxu0 0.0
    %1852 = vmatprep.subr.mxu0 0.0
    %1853 = vmatpush1.msra.mxu0 0.0
    %1854 = vmatprep.subr.mxu0 0.0
    %1855 = vmatpush1.msra.mxu0 0.0
    %1856 = vmatprep.subr.mxu0 0.0
    %1857 = vmatpush1.msra.mxu0 0.0
    %1858 = vmatprep.subr.mxu0 0.0
    %1859 = vmatpush1.msra.mxu0 0.0
    %1860 = vmatprep.subr.mxu0 0.0
    %1861 = vmatpush1.msra.mxu0 0.0
    %1862 = vmatprep.subr.mxu0 0.0
    %1863 = vmatpush1.msra.mxu0 0.0
    %1864 = vmatprep.subr.mxu0 0.0
    %1865 = vmatpush1.msra.mxu0 0.0
    %1866 = vmatprep.mubr.f32.mxu0 0.0
    %1867 = vmatmul.mubr.f32.gmra.mrb[0].mxu0 %v1800
    %v1868 = vpop.f32.mrb[0].mxu0
    %v1869 = vadd.f32 0.0, %v1868
    %v1870 = vpop.f32.mrb[0].mxu0
    %1871 = vdwg.mxu0
    %v1873 = vsel %vm277, %v1625, 0
    %1875 = vmatprep.subr.mxu0 0.0
    %1876 = vmatpush1.msra.mxu0 %v96
    %1877 = vmatprep.subr.mxu0 0.0
    %1878 = vmatpush1.msra.mxu0 %v97
    %1879 = vmatprep.subr.mxu0 0.0
    %1880 = vmatpush1.msra.mxu0 %v98
    %1881 = vmatprep.subr.mxu0 0.0
    %1882 = vmatpush1.msra.mxu0 %v99
    %1883 = vmatprep.subr.mxu0 0.0
    %1884 = vmatpush1.msra.mxu0 0.0
    %1885 = vmatprep.subr.mxu0 0.0
    %1886 = vmatpush1.msra.mxu0 0.0
    %1887 = vmatprep.subr.mxu0 0.0
    %1888 = vmatpush1.msra.mxu0 0.0
    %1889 = vmatprep.subr.mxu0 0.0
    %1890 = vmatpush1.msra.mxu0 0.0
    %1891 = vmatprep.subr.mxu0 0.0
    %1892 = vmatpush1.msra.mxu0 0.0
    %1893 = vmatprep.subr.mxu0 0.0
    %1894 = vmatpush1.msra.mxu0 0.0
    %1895 = vmatprep.subr.mxu0 0.0
    %1896 = vmatpush1.msra.mxu0 0.0
    %1897 = vmatprep.subr.mxu0 0.0
    %1898 = vmatpush1.msra.mxu0 0.0
    %1899 = vmatprep.subr.mxu0 0.0
    %1900 = vmatpush1.msra.mxu0 0.0
    %1901 = vmatprep.subr.mxu0 0.0
    %1902 = vmatpush1.msra.mxu0 0.0
    %1903 = vmatprep.subr.mxu0 0.0
    %1904 = vmatpush1.msra.mxu0 0.0
    %1905 = vmatprep.subr.mxu0 0.0
    %1906 = vmatpush1.msra.mxu0 0.0
    %1907 = vmatprep.subr.mxu0 0.0
    %1908 = vmatpush1.msra.mxu0 0.0
    %1909 = vmatprep.subr.mxu0 0.0
    %1910 = vmatpush1.msra.mxu0 0.0
    %1911 = vmatprep.subr.mxu0 0.0
    %1912 = vmatpush1.msra.mxu0 0.0
    %1913 = vmatprep.subr.mxu0 0.0
    %1914 = vmatpush1.msra.mxu0 0.0
    %1915 = vmatprep.subr.mxu0 0.0
    %1916 = vmatpush1.msra.mxu0 0.0
    %1917 = vmatprep.subr.mxu0 0.0
    %1918 = vmatpush1.msra.mxu0 0.0
    %1919 = vmatprep.subr.mxu0 0.0
    %1920 = vmatpush1.msra.mxu0 0.0
    %1921 = vmatprep.subr.mxu0 0.0
    %1922 = vmatpush1.msra.mxu0 0.0
    %1923 = vmatprep.subr.mxu0 0.0
    %1924 = vmatpush1.msra.mxu0 0.0
    %1925 = vmatprep.subr.mxu0 0.0
    %1926 = vmatpush1.msra.mxu0 0.0
    %1927 = vmatprep.subr.mxu0 0.0
    %1928 = vmatpush1.msra.mxu0 0.0
    %1929 = vmatprep.subr.mxu0 0.0
    %1930 = vmatpush1.msra.mxu0 0.0
    %1931 = vmatprep.subr.mxu0 0.0
    %1932 = vmatpush1.msra.mxu0 0.0
    %1933 = vmatprep.subr.mxu0 0.0
    %1934 = vmatpush1.msra.mxu0 0.0
    %1935 = vmatprep.subr.mxu0 0.0
    %1936 = vmatpush1.msra.mxu0 0.0
    %1937 = vmatprep.subr.mxu0 0.0
    %1938 = vmatpush1.msra.mxu0 0.0
    %1939 = vmatprep.mubr.f32.mxu0 0.0
    %1940 = vmatmul.mubr.f32.gmra.mrb[0].mxu0 %v1873
    %v1941 = vpop.f32.mrb[0].mxu0
    %v1942 = vadd.f32 %v1869, %v1941
    %v1943 = vpop.f32.mrb[0].mxu0
    %1944 = vdwg.mxu0
    %v1945 = vadd.f32 %v1942, %v133
    %1946 = vmatprep.subr.mxu0 0.0
    %1947 = vmatpush1.msra.mxu0 %v108
    %1948 = vmatprep.subr.mxu0 0.0
    %1949 = vmatpush1.msra.mxu0 %v109
    %1950 = vmatprep.subr.mxu0 0.0
    %1951 = vmatpush1.msra.mxu0 %v110
    %1952 = vmatprep.subr.mxu0 0.0
    %1953 = vmatpush1.msra.mxu0 %v111
    %1954 = vmatprep.subr.mxu0 0.0
    %1955 = vmatpush1.msra.mxu0 0.0
    %1956 = vmatprep.subr.mxu0 0.0
    %1957 = vmatpush1.msra.mxu0 0.0
    %1958 = vmatprep.subr.mxu0 0.0
    %1959 = vmatpush1.msra.mxu0 0.0
    %1960 = vmatprep.subr.mxu0 0.0
    %1961 = vmatpush1.msra.mxu0 0.0
    %1962 = vmatprep.subr.mxu0 0.0
    %1963 = vmatpush1.msra.mxu0 0.0
    %1964 = vmatprep.subr.mxu0 0.0
    %1965 = vmatpush1.msra.mxu0 0.0
    %1966 = vmatprep.subr.mxu0 0.0
    %1967 = vmatpush1.msra.mxu0 0.0
    %1968 = vmatprep.subr.mxu0 0.0
    %1969 = vmatpush1.msra.mxu0 0.0
    %1970 = vmatprep.subr.mxu0 0.0
    %1971 = vmatpush1.msra.mxu0 0.0
    %1972 = vmatprep.subr.mxu0 0.0
    %1973 = vmatpush1.msra.mxu0 0.0
    %1974 = vmatprep.subr.mxu0 0.0
    %1975 = vmatpush1.msra.mxu0 0.0
    %1976 = vmatprep.subr.mxu0 0.0
    %1977 = vmatpush1.msra.mxu0 0.0
    %1978 = vmatprep.subr.mxu0 0.0
    %1979 = vmatpush1.msra.mxu0 0.0
    %1980 = vmatprep.subr.mxu0 0.0
    %1981 = vmatpush1.msra.mxu0 0.0
    %1982 = vmatprep.subr.mxu0 0.0
    %1983 = vmatpush1.msra.mxu0 0.0
    %1984 = vmatprep.subr.mxu0 0.0
    %1985 = vmatpush1.msra.mxu0 0.0
    %1986 = vmatprep.subr.mxu0 0.0
    %1987 = vmatpush1.msra.mxu0 0.0
    %1988 = vmatprep.subr.mxu0 0.0
    %1989 = vmatpush1.msra.mxu0 0.0
    %1990 = vmatprep.subr.mxu0 0.0
    %1991 = vmatpush1.msra.mxu0 0.0
    %1992 = vmatprep.subr.mxu0 0.0
    %1993 = vmatpush1.msra.mxu0 0.0
    %1994 = vmatprep.subr.mxu0 0.0
    %1995 = vmatpush1.msra.mxu0 0.0
    %1996 = vmatprep.subr.mxu0 0.0
    %1997 = vmatpush1.msra.mxu0 0.0
    %1998 = vmatprep.subr.mxu0 0.0
    %1999 = vmatpush1.msra.mxu0 0.0
    %2000 = vmatprep.subr.mxu0 0.0
    %2001 = vmatpush1.msra.mxu0 0.0
    %2002 = vmatprep.subr.mxu0 0.0
    %2003 = vmatpush1.msra.mxu0 0.0
    %2004 = vmatprep.subr.mxu0 0.0
    %2005 = vmatpush1.msra.mxu0 0.0
    %2006 = vmatprep.subr.mxu0 0.0
    %2007 = vmatpush1.msra.mxu0 0.0
    %2008 = vmatprep.subr.mxu0 0.0
    %2009 = vmatpush1.msra.mxu0 0.0
    %2010 = vmatprep.mubr.f32.mxu0 0.0
    %2011 = vmatmul.mubr.f32.gmra.mrb[0].mxu0 %v1445
    %v2012 = vpop.f32.mrb[0].mxu0
    %v2013 = vadd.f32 %v140, %v2012
    %v2014 = vpop.f32.mrb[0].mxu0
    %2015 = vdwg.mxu0
    %v2016 = vadd.f32 %v1945, %v2013
    %v2017 = vxor.u32 %v2016, 2147483648
    %v2018 = vmul.f32 %v2017, 1.442695
    %v2019 = vpow.pop %v2018
    %v2020 = vadd.f32 %v2019, 1.0
    %v2021 = vrcp.pop %v2020
    %v2022 = vmul.f32 1.0, %v2021
    %2024 = vrot.lane.b32.xlu0 %v2013, 64
    %v2025 = vpop.permute.xlu0 %2024
    %v2027 = vmul.f32 %v2022, %v2025
    %2029 = vrot.lane.b32.xlu0 %v2027, 64
    %v2030 = vpop.permute.xlu0 %2029
    %v2032 = vadd.f32 %v1945, %v2030
    %v2033 = vtanh.pop %v2032
    %v2034 = vsub.f32 1.0, %v2022
    %2036 = vrot.lane.b32.xlu0 %v2033, 96
    %v2037 = vpop.permute.xlu0 %2036
    %v2039 = vmul.f32 %v2034, %v2037
    %v2040 = vmul.f32 %v2022, %v1371
    %v2041 = vadd.f32 %v2039, %v2040
    %2042 = vmatprep.subr.mxu0 0.0
    %2043 = vmatpush1.msra.mxu0 %v116
    %2044 = vmatprep.subr.mxu0 0.0
    %2045 = vmatpush1.msra.mxu0 %v117
    %2046 = vmatprep.subr.mxu0 0.0
    %2047 = vmatpush1.msra.mxu0 %v118
    %2048 = vmatprep.subr.mxu0 0.0
    %2049 = vmatpush1.msra.mxu0 %v119
    %2050 = vmatprep.subr.mxu0 0.0
    %2051 = vmatpush1.msra.mxu0 %v120
    %2052 = vmatprep.subr.mxu0 0.0
    %2053 = vmatpush1.msra.mxu0 %v121
    %2054 = vmatprep.subr.mxu0 0.0
    %2055 = vmatpush1.msra.mxu0 %v122
    %2056 = vmatprep.subr.mxu0 0.0
    %2057 = vmatpush1.msra.mxu0 %v123
    %2058 = vmatprep.subr.mxu0 0.0
    %2059 = vmatpush1.msra.mxu0 0.0
    %2060 = vmatprep.subr.mxu0 0.0
    %2061 = vmatpush1.msra.mxu0 0.0
    %2062 = vmatprep.subr.mxu0 0.0
    %2063 = vmatpush1.msra.mxu0 0.0
    %2064 = vmatprep.subr.mxu0 0.0
    %2065 = vmatpush1.msra.mxu0 0.0
    %2066 = vmatprep.subr.mxu0 0.0
    %2067 = vmatpush1.msra.mxu0 0.0
    %2068 = vmatprep.subr.mxu0 0.0
    %2069 = vmatpush1.msra.mxu0 0.0
    %2070 = vmatprep.subr.mxu0 0.0
    %2071 = vmatpush1.msra.mxu0 0.0
    %2072 = vmatprep.subr.mxu0 0.0
    %2073 = vmatpush1.msra.mxu0 0.0
    %2074 = vmatprep.subr.mxu0 0.0
    %2075 = vmatpush1.msra.mxu0 0.0
    %2076 = vmatprep.subr.mxu0 0.0
    %2077 = vmatpush1.msra.mxu0 0.0
    %2078 = vmatprep.subr.mxu0 0.0
    %2079 = vmatpush1.msra.mxu0 0.0
    %2080 = vmatprep.subr.mxu0 0.0
    %2081 = vmatpush1.msra.mxu0 0.0
    %2082 = vmatprep.subr.mxu0 0.0
    %2083 = vmatpush1.msra.mxu0 0.0
    %2084 = vmatprep.subr.mxu0 0.0
    %2085 = vmatpush1.msra.mxu0 0.0
    %2086 = vmatprep.subr.mxu0 0.0
    %2087 = vmatpush1.msra.mxu0 0.0
    %2088 = vmatprep.subr.mxu0 0.0
    %2089 = vmatpush1.msra.mxu0 0.0
    %2090 = vmatprep.subr.mxu0 0.0
    %2091 = vmatpush1.msra.mxu0 0.0
    %2092 = vmatprep.subr.mxu0 0.0
    %2093 = vmatpush1.msra.mxu0 0.0
    %2094 = vmatprep.subr.mxu0 0.0
    %2095 = vmatpush1.msra.mxu0 0.0
    %2096 = vmatprep.subr.mxu0 0.0
    %2097 = vmatpush1.msra.mxu0 0.0
    %2098 = vmatprep.subr.mxu0 0.0
    %2099 = vmatpush1.msra.mxu0 0.0
    %2100 = vmatprep.subr.mxu0 0.0
    %2101 = vmatpush1.msra.mxu0 0.0
    %2102 = vmatprep.subr.mxu0 0.0
    %2103 = vmatpush1.msra.mxu0 0.0
    %2104 = vmatprep.subr.mxu0 0.0
    %2105 = vmatpush1.msra.mxu0 0.0
    %2106 = vmatprep.mubr.f32.mxu0 0.0
    %2107 = vmatmul.mubr.f32.gmra.mrb[0].mxu0 %v1800
    %v2108 = vpop.f32.mrb[0].mxu0
    %v2109 = vadd.f32 0.0, %v2108
    %v2110 = vpop.f32.mrb[0].mxu0
    %2111 = vdwg.mxu0
    %2113 = vrot.lane.b32.xlu0 %v2041, 96
    %v2114 = vpop.permute.xlu0 %2113
    %v2115 = vsel %vm277, %v2114, 0
    %2117 = vmatprep.subr.mxu0 0.0
    %2118 = vmatpush1.msra.mxu0 %v112
    %2119 = vmatprep.subr.mxu0 0.0
    %2120 = vmatpush1.msra.mxu0 %v113
    %2121 = vmatprep.subr.mxu0 0.0
    %2122 = vmatpush1.msra.mxu0 %v114
    %2123 = vmatprep.subr.mxu0 0.0
    %2124 = vmatpush1.msra.mxu0 %v115
    %2125 = vmatprep.subr.mxu0 0.0
    %2126 = vmatpush1.msra.mxu0 0.0
    %2127 = vmatprep.subr.mxu0 0.0
    %2128 = vmatpush1.msra.mxu0 0.0
    %2129 = vmatprep.subr.mxu0 0.0
    %2130 = vmatpush1.msra.mxu0 0.0
    %2131 = vmatprep.subr.mxu0 0.0
    %2132 = vmatpush1.msra.mxu0 0.0
    %2133 = vmatprep.subr.mxu0 0.0
    %2134 = vmatpush1.msra.mxu0 0.0
    %2135 = vmatprep.subr.mxu0 0.0
    %2136 = vmatpush1.msra.mxu0 0.0
    %2137 = vmatprep.subr.mxu0 0.0
    %2138 = vmatpush1.msra.mxu0 0.0
    %2139 = vmatprep.subr.mxu0 0.0
    %2140 = vmatpush1.msra.mxu0 0.0
    %2141 = vmatprep.subr.mxu0 0.0
    %2142 = vmatpush1.msra.mxu0 0.0
    %2143 = vmatprep.subr.mxu0 0.0
    %2144 = vmatpush1.msra.mxu0 0.0
    %2145 = vmatprep.subr.mxu0 0.0
    %2146 = vmatpush1.msra.mxu0 0.0
    %2147 = vmatprep.subr.mxu0 0.0
    %2148 = vmatpush1.msra.mxu0 0.0
    %2149 = vmatprep.subr.mxu0 0.0
    %2150 = vmatpush1.msra.mxu0 0.0
    %2151 = vmatprep.subr.mxu0 0.0
    %2152 = vmatpush1.msra.mxu0 0.0
    %2153 = vmatprep.subr.mxu0 0.0
    %2154 = vmatpush1.msra.mxu0 0.0
    %2155 = vmatprep.subr.mxu0 0.0
    %2156 = vmatpush1.msra.mxu0 0.0
    %2157 = vmatprep.subr.mxu0 0.0
    %2158 = vmatpush1.msra.mxu0 0.0
    %2159 = vmatprep.subr.mxu0 0.0
    %2160 = vmatpush1.msra.mxu0 0.0
    %2161 = vmatprep.subr.mxu0 0.0
    %2162 = vmatpush1.msra.mxu0 0.0
    %2163 = vmatprep.subr.mxu0 0.0
    %2164 = vmatpush1.msra.mxu0 0.0
    %2165 = vmatprep.subr.mxu0 0.0
    %2166 = vmatpush1.msra.mxu0 0.0
    %2167 = vmatprep.subr.mxu0 0.0
    %2168 = vmatpush1.msra.mxu0 0.0
    %2169 = vmatprep.subr.mxu0 0.0
    %2170 = vmatpush1.msra.mxu0 0.0
    %2171 = vmatprep.subr.mxu0 0.0
    %2172 = vmatpush1.msra.mxu0 0.0
    %2173 = vmatprep.subr.mxu0 0.0
    %2174 = vmatpush1.msra.mxu0 0.0
    %2175 = vmatprep.subr.mxu0 0.0
    %2176 = vmatpush1.msra.mxu0 0.0
    %2177 = vmatprep.subr.mxu0 0.0
    %2178 = vmatpush1.msra.mxu0 0.0
    %2179 = vmatprep.subr.mxu0 0.0
    %2180 = vmatpush1.msra.mxu0 0.0
    %2181 = vmatprep.mubr.f32.mxu0 0.0
    %2182 = vmatmul.mubr.f32.gmra.mrb[0].mxu0 %v2115
    %v2183 = vpop.f32.mrb[0].mxu0
    %v2184 = vadd.f32 %v2109, %v2183
    %v2185 = vpop.f32.mrb[0].mxu0
    %2186 = vdwg.mxu0
    %2187 = vmatprep.subr.mxu0 0.0
    %2188 = vmatpush1.msra.mxu0 %v124
    %2189 = vmatprep.subr.mxu0 0.0
    %2190 = vmatpush1.msra.mxu0 %v125
    %2191 = vmatprep.subr.mxu0 0.0
    %2192 = vmatpush1.msra.mxu0 %v126
    %2193 = vmatprep.subr.mxu0 0.0
    %2194 = vmatpush1.msra.mxu0 %v127
    %2195 = vmatprep.subr.mxu0 0.0
    %2196 = vmatpush1.msra.mxu0 0.0
    %2197 = vmatprep.subr.mxu0 0.0
    %2198 = vmatpush1.msra.mxu0 0.0
    %2199 = vmatprep.subr.mxu0 0.0
    %2200 = vmatpush1.msra.mxu0 0.0
    %2201 = vmatprep.subr.mxu0 0.0
    %2202 = vmatpush1.msra.mxu0 0.0
    %2203 = vmatprep.subr.mxu0 0.0
    %2204 = vmatpush1.msra.mxu0 0.0
    %2205 = vmatprep.subr.mxu0 0.0
    %2206 = vmatpush1.msra.mxu0 0.0
    %2207 = vmatprep.subr.mxu0 0.0
    %2208 = vmatpush1.msra.mxu0 0.0
    %2209 = vmatprep.subr.mxu0 0.0
    %2210 = vmatpush1.msra.mxu0 0.0
    %2211 = vmatprep.subr.mxu0 0.0
    %2212 = vmatpush1.msra.mxu0 0.0
    %2213 = vmatprep.subr.mxu0 0.0
    %2214 = vmatpush1.msra.mxu0 0.0
    %2215 = vmatprep.subr.mxu0 0.0
    %2216 = vmatpush1.msra.mxu0 0.0
    %2217 = vmatprep.subr.mxu0 0.0
    %2218 = vmatpush1.msra.mxu0 0.0
    %2219 = vmatprep.subr.mxu0 0.0
    %2220 = vmatpush1.msra.mxu0 0.0
    %2221 = vmatprep.subr.mxu0 0.0
    %2222 = vmatpush1.msra.mxu0 0.0
    %2223 = vmatprep.subr.mxu0 0.0
    %2224 = vmatpush1.msra.mxu0 0.0
    %2225 = vmatprep.subr.mxu0 0.0
    %2226 = vmatpush1.msra.mxu0 0.0
    %2227 = vmatprep.subr.mxu0 0.0
    %2228 = vmatpush1.msra.mxu0 0.0
    %2229 = vmatprep.subr.mxu0 0.0
    %2230 = vmatpush1.msra.mxu0 0.0
    %2231 = vmatprep.subr.mxu0 0.0
    %2232 = vmatpush1.msra.mxu0 0.0
    %2233 = vmatprep.subr.mxu0 0.0
    %2234 = vmatpush1.msra.mxu0 0.0
    %2235 = vmatprep.subr.mxu0 0.0
    %2236 = vmatpush1.msra.mxu0 0.0
    %2237 = vmatprep.subr.mxu0 0.0
    %2238 = vmatpush1.msra.mxu0 0.0
    %2239 = vmatprep.subr.mxu0 0.0
    %2240 = vmatpush1.msra.mxu0 0.0
    %2241 = vmatprep.subr.mxu0 0.0
    %2242 = vmatpush1.msra.mxu0 0.0
    %2243 = vmatprep.subr.mxu0 0.0
    %2244 = vmatpush1.msra.mxu0 0.0
    %2245 = vmatprep.subr.mxu0 0.0
    %2246 = vmatpush1.msra.mxu0 0.0
    %2247 = vmatprep.subr.mxu0 0.0
    %2248 = vmatpush1.msra.mxu0 0.0
    %2249 = vmatprep.subr.mxu0 0.0
    %2250 = vmatpush1.msra.mxu0 0.0
    %2251 = vmatprep.mubr.f32.mxu0 0.0
    %2252 = vmatmul.mubr.f32.gmra.mrb[0].mxu0 %v1873
    %v2253 = vpop.f32.mrb[0].mxu0
    %v2254 = vadd.f32 0.0, %v2253
    %v2255 = vpop.f32.mrb[0].mxu0
    %2256 = vdwg.mxu0
    %v2257 = vadd.f32 %v2184, %v2254
    %v2258 = vadd.f32 %v2257, %v147
    %s2259 = scalar_lea.vmem [#allocation7], 6
    %2260 = vst.msk [vmem:[%s2259] sm:$0x3] %vm275, %v2258
    %v2261 = vsel %vm275, %v2258, -inf
    %2262 = vmax.xlane.f32.xlu0 %v2261
    %v2263 = vpop.xlane.xlu0 %2262
    %vm2264 = vcmp.ge.f32.partialorder %v2258, %v2263
    %v2265 = vsel %vm2264, %v89, 32.0
    %v2266 = vsel %vm275, %v2265, inf
    %2267 = vmin.xlane.f32.xlu0 %v2266
    %v2268 = vpop.xlane.xlu0 %2267
    %vm2269 = vcmp.eq.f32.partialorder %v89, %v2268
    %v2270 = vsel %vm2269, 1, 0
    %v2271 = vcvt.s32.f32 %v2270
    %s2272 = sld [smem:[#allocation2 + $0x180]]
    %v2273 = vstv %s2272
    %vm2274 = vcmp.eq.s32.totalorder %v88, %v2273
    %vm2275 = vmand %vm260, %vm2274
    %v2276 = vsel %vm2275, 1, 0
    %v2277 = vcvt.s32.f32 %v2276
    %v2278 = vadd.f32 %v2277, 0.0
    %s2279 = sld [smem:[#allocation2 + $0x181]]
    %v2280 = vstv %s2279
    %vm2281 = vcmp.eq.s32.totalorder %v88, %v2280
    %vm2282 = vmand %vm268, %vm2281
    %v2283 = vsel %vm2282, 1, 0
    %v2284 = vcvt.s32.f32 %v2283
    %v2285 = vadd.f32 %v2278, %v2284
    %s2286 = sld [smem:[#allocation5 + $0x3]]
    %p2287 = scmp.gt.s32.totalorder %s2286, 0
    %s2288 = scalar_select %p2287, 1, 0
    %s2289 = scvt.s32.f32 %s2288
    %v2290 = vstv %s2289
    %v2291 = vmul.f32 %v2290, %v2285
    %s2292 = ssub.f32 1.0, %s2289
    %v2293 = vstv %s2292
    %v2294 = vmul.f32 %v2293, %v2271
    %v2295 = vadd.f32 %v2291, %v2294
    %2296 = vmatprep.subr.mxu0 0.0
    %2297 = vmatpush1.msra.mxu0 %v92
    %2298 = vmatprep.subr.mxu0 0.0
    %2299 = vmatpush1.msra.mxu0 %v93
    %2300 = vmatprep.subr.mxu0 0.0
    %2301 = vmatpush1.msra.mxu0 %v94
    %2302 = vmatprep.subr.mxu0 0.0
    %2303 = vmatpush1.msra.mxu0 %v95
    %2304 = vmatprep.subr.mxu0 0.0
    %2305 = vmatpush1.msra.mxu0 0.0
    %2306 = vmatprep.subr.mxu0 0.0
    %2307 = vmatpush1.msra.mxu0 0.0
    %2308 = vmatprep.subr.mxu0 0.0
    %2309 = vmatpush1.msra.mxu0 0.0
    %2310 = vmatprep.subr.mxu0 0.0
    %2311 = vmatpush1.msra.mxu0 0.0
    %2312 = vmatprep.subr.mxu0 0.0
    %2313 = vmatpush1.msra.mxu0 0.0
    %2314 = vmatprep.subr.mxu0 0.0
    %2315 = vmatpush1.msra.mxu0 0.0
    %2316 = vmatprep.subr.mxu0 0.0
    %2317 = vmatpush1.msra.mxu0 0.0
    %2318 = vmatprep.subr.mxu0 0.0
    %2319 = vmatpush1.msra.mxu0 0.0
    %2320 = vmatprep.subr.mxu0 0.0
    %2321 = vmatpush1.msra.mxu0 0.0
    %2322 = vmatprep.subr.mxu0 0.0
    %2323 = vmatpush1.msra.mxu0 0.0
    %2324 = vmatprep.subr.mxu0 0.0
    %2325 = vmatpush1.msra.mxu0 0.0
    %2326 = vmatprep.subr.mxu0 0.0
    %2327 = vmatpush1.msra.mxu0 0.0
    %2328 = vmatprep.subr.mxu0 0.0
    %2329 = vmatpush1.msra.mxu0 0.0
    %2330 = vmatprep.subr.mxu0 0.0
    %2331 = vmatpush1.msra.mxu0 0.0
    %2332 = vmatprep.subr.mxu0 0.0
    %2333 = vmatpush1.msra.mxu0 0.0
    %2334 = vmatprep.subr.mxu0 0.0
    %2335 = vmatpush1.msra.mxu0 0.0
    %2336 = vmatprep.subr.mxu0 0.0
    %2337 = vmatpush1.msra.mxu0 0.0
    %2338 = vmatprep.subr.mxu0 0.0
    %2339 = vmatpush1.msra.mxu0 0.0
    %2340 = vmatprep.subr.mxu0 0.0
    %2341 = vmatpush1.msra.mxu0 0.0
    %2342 = vmatprep.subr.mxu0 0.0
    %2343 = vmatpush1.msra.mxu0 0.0
    %2344 = vmatprep.subr.mxu0 0.0
    %2345 = vmatpush1.msra.mxu0 0.0
    %2346 = vmatprep.subr.mxu0 0.0
    %2347 = vmatpush1.msra.mxu0 0.0
    %2348 = vmatprep.subr.mxu0 0.0
    %2349 = vmatpush1.msra.mxu0 0.0
    %2350 = vmatprep.subr.mxu0 0.0
    %2351 = vmatpush1.msra.mxu0 0.0
    %2352 = vmatprep.subr.mxu0 0.0
    %2353 = vmatpush1.msra.mxu0 0.0
    %2354 = vmatprep.subr.mxu0 0.0
    %2355 = vmatpush1.msra.mxu0 0.0
    %2356 = vmatprep.subr.mxu0 0.0
    %2357 = vmatpush1.msra.mxu0 0.0
    %2358 = vmatprep.subr.mxu0 0.0
    %2359 = vmatpush1.msra.mxu0 0.0
    %2360 = vmatprep.mubr.f32.mxu0 0.0
    %2361 = vmatmul.mubr.f32.gmra.mrb[0].mxu0 %v2115
    %v2362 = vpop.f32.mrb[0].mxu0
    %v2363 = vadd.f32 0.0, %v2362
    %v2364 = vpop.f32.mrb[0].mxu0
    %2365 = vdwg.mxu0
    %v2368 = vunpack.c.l.s4 1966171168
    %v2369 = vunpack.c.0.s8 %v2368
    %v2370 = vlaneseq
    %v2371 = vshrl.u32 %v2370, 7
    %v2372 = vsub.s32 %v2369, %v2371
    %v2373 = vrot.slane %v2363, %v2372
    %v2374 = vcombine.high %v2373, %v2373
    %v2376 = vunpack.c.l.s4 1966171168
    %v2377 = vunpack.c.0.s8 %v2376
    %v2378 = vlaneseq
    %v2379 = vshrl.u32 %v2378, 7
    %v2380 = vsub.s32 %v2377, %v2379
    %v2381 = vrot.slane %v2373, %v2380
    %v2383 = vunpack.c.l.s4 1966171168
    %v2384 = vunpack.c.0.s8 %v2383
    %v2385 = vlaneseq
    %v2386 = vshrl.u32 %v2385, 7
    %v2387 = vsub.s32 %v2384, %v2386
    %v2388 = vrot.slane %v2374, %v2387
    %v2389 = vlaneseq
    %v2390 = vshrl.u32 %v2389, 7
    %v2391 = vsub.s32 0, %v2390
    %v2392 = vrot.slane %v2381, %v2391
    %v2393 = vlaneseq
    %v2394 = vshrl.u32 %v2393, 7
    %v2395 = vsub.s32 0, %v2394
    %v2396 = vrot.slane %v2388, %v2395
    %v2399 = vadd.f32 %v2392, %v250
    %v2400 = vadd.f32 %v2396, %v255
    %v2401 = vadd.f32 %v2399, %v154
    %v2402 = vadd.f32 %v2400, %v154
    %v2403 = vtanh.pop %v2401
    %v2404 = vtanh.pop %v2402
    %v2405 = vmul.f32 %v2403, %v161
    %v2406 = vmul.f32 %v2404, %v161
    %v2407 = vsel %vm277, %v2405, 0.0
    %2408 = vadd.xlane.f32.xlu0 %v2407
    %v2409 = vpop.xlane.xlu0 %2408
    %v2410 = vsel %vm277, %v2406, 0.0
    %2411 = vadd.xlane.f32.xlu0 %v2410
    %v2412 = vpop.xlane.xlu0 %2411
    %v2415 = vlaneseq
    %v2416 = vshrl.u32 %v2415, 7
    %v2417 = vsub.s32 %v88, %v2416
    %v2418 = vrot.slane %v2409, %v2417
    %v2419 = vlaneseq
    %v2420 = vshrl.u32 %v2419, 7
    %v2421 = vsub.s32 %v88, %v2420
    %v2422 = vrot.slane %v2412, %v2421
    %v2423 = vsel %vm408, %v2422, %v2418
    %v2425 = vsel %vm167, %v2423, -1e+10
    %v2426 = vsel %vm412, %v2425, -inf
    %2427 = vmax.xlane.f32.xlu0 %v2426
    %v2428 = vpop.xlane.xlu0 %2427
    %v2429 = vsub.f32 %v2425, %v2428
    %v2430 = vmul.f32 %v2429, 1.442695
    %v2431 = vpow.pop %v2430
    %v2432 = vsel %vm412, %v2431, 0.0
    %2433 = vadd.xlane.f32.xlu0 %v2432
    %v2434 = vpop.xlane.xlu0 %2433
    %v2435 = vrcp.pop %v2434
    %v2436 = vmul.f32 %v2431, %v2435
    %v2437 = vlaneseq
    %v2438 = vshrl.u32 %v2437, 7
    %v2439 = vsub.s32 0, %v2438
    %v2440 = vrot.slane %v2436, %v2439
    %2442 = vbcast.lane.b32.xlu0 %v2440, 256
    %v2443 = vpop.permute.xlu0 %2442
    %v2444 = vlaneseq
    %v2445 = vshrl.u32 %v2444, 7
    %v2446 = vsub.s32 1, %v2445
    %v2447 = vrot.slane %v2436, %v2446
    %2449 = vbcast.lane.b32.xlu0 %v2447, 256
    %v2450 = vpop.permute.xlu0 %2449
    %v2451 = vmul.f32 %v2443, %v90
    %v2452 = vmul.f32 %v2450, %v91
    %v2453 = vsel %vm176, %v2451, 0.0
    %v2454 = vrot.slane %v2453, 4
    %v2455 = vadd.f32 %v2453, %v2454
    %v2456 = vrot.slane %v2455, 2
    %v2457 = vadd.f32 %v2455, %v2456
    %v2458 = vrot.slane %v2457, 1
    %v2459 = vadd.f32 %v2457, %v2458
    %v2460 = vsel %vm176, %v2452, 0.0
    %v2461 = vrot.slane %v2460, 4
    %v2462 = vadd.f32 %v2460, %v2461
    %v2463 = vrot.slane %v2462, 2
    %v2464 = vadd.f32 %v2462, %v2463
    %v2465 = vrot.slane %v2464, 1
    %v2466 = vadd.f32 %v2464, %v2465
    %v2469 = vsel %vm408, %v2466, %v2459
    %v2470 = vsel %vm176, %v2469, 0
    %2472 = vmatprep.subr.mxu0 0.0
    %2473 = vmatpush1.msra.mxu0 %v100
    %2474 = vmatprep.subr.mxu0 0.0
    %2475 = vmatpush1.msra.mxu0 %v101
    %2476 = vmatprep.subr.mxu0 0.0
    %2477 = vmatpush1.msra.mxu0 %v102
    %2478 = vmatprep.subr.mxu0 0.0
    %2479 = vmatpush1.msra.mxu0 %v103
    %2480 = vmatprep.subr.mxu0 0.0
    %2481 = vmatpush1.msra.mxu0 %v104
    %2482 = vmatprep.subr.mxu0 0.0
    %2483 = vmatpush1.msra.mxu0 %v105
    %2484 = vmatprep.subr.mxu0 0.0
    %2485 = vmatpush1.msra.mxu0 %v106
    %2486 = vmatprep.subr.mxu0 0.0
    %2487 = vmatpush1.msra.mxu0 %v107
    %2488 = vmatprep.subr.mxu0 0.0
    %2489 = vmatpush1.msra.mxu0 0.0
    %2490 = vmatprep.subr.mxu0 0.0
    %2491 = vmatpush1.msra.mxu0 0.0
    %2492 = vmatprep.subr.mxu0 0.0
    %2493 = vmatpush1.msra.mxu0 0.0
    %2494 = vmatprep.subr.mxu0 0.0
    %2495 = vmatpush1.msra.mxu0 0.0
    %2496 = vmatprep.subr.mxu0 0.0
    %2497 = vmatpush1.msra.mxu0 0.0
    %2498 = vmatprep.subr.mxu0 0.0
    %2499 = vmatpush1.msra.mxu0 0.0
    %2500 = vmatprep.subr.mxu0 0.0
    %2501 = vmatpush1.msra.mxu0 0.0
    %2502 = vmatprep.subr.mxu0 0.0
    %2503 = vmatpush1.msra.mxu0 0.0
    %2504 = vmatprep.subr.mxu0 0.0
    %2505 = vmatpush1.msra.mxu0 0.0
    %2506 = vmatprep.subr.mxu0 0.0
    %2507 = vmatpush1.msra.mxu0 0.0
    %2508 = vmatprep.subr.mxu0 0.0
    %2509 = vmatpush1.msra.mxu0 0.0
    %2510 = vmatprep.subr.mxu0 0.0
    %2511 = vmatpush1.msra.mxu0 0.0
    %2512 = vmatprep.subr.mxu0 0.0
    %2513 = vmatpush1.msra.mxu0 0.0
    %2514 = vmatprep.subr.mxu0 0.0
    %2515 = vmatpush1.msra.mxu0 0.0
    %2516 = vmatprep.subr.mxu0 0.0
    %2517 = vmatpush1.msra.mxu0 0.0
    %2518 = vmatprep.subr.mxu0 0.0
    %2519 = vmatpush1.msra.mxu0 0.0
    %2520 = vmatprep.subr.mxu0 0.0
    %2521 = vmatpush1.msra.mxu0 0.0
    %2522 = vmatprep.subr.mxu0 0.0
    %2523 = vmatpush1.msra.mxu0 0.0
    %2524 = vmatprep.subr.mxu0 0.0
    %2525 = vmatpush1.msra.mxu0 0.0
    %2526 = vmatprep.subr.mxu0 0.0
    %2527 = vmatpush1.msra.mxu0 0.0
    %2528 = vmatprep.subr.mxu0 0.0
    %2529 = vmatpush1.msra.mxu0 0.0
    %2530 = vmatprep.subr.mxu0 0.0
    %2531 = vmatpush1.msra.mxu0 0.0
    %2532 = vmatprep.subr.mxu0 0.0
    %2533 = vmatpush1.msra.mxu0 0.0
    %2534 = vmatprep.subr.mxu0 0.0
    %2535 = vmatpush1.msra.mxu0 0.0
    %2536 = vmatprep.mubr.f32.mxu0 0.0
    %2537 = vmatmul.mubr.f32.gmra.mrb[0].mxu0 %v2470
    %v2538 = vpop.f32.mrb[0].mxu0
    %v2539 = vadd.f32 0.0, %v2538
    %v2540 = vpop.f32.mrb[0].mxu0
    %2541 = vdwg.mxu0
    %v2543 = vsel %vm277, %v2295, 0
    %2545 = vmatprep.subr.mxu0 0.0
    %2546 = vmatpush1.msra.mxu0 %v96
    %2547 = vmatprep.subr.mxu0 0.0
    %2548 = vmatpush1.msra.mxu0 %v97
    %2549 = vmatprep.subr.mxu0 0.0
    %2550 = vmatpush1.msra.mxu0 %v98
    %2551 = vmatprep.subr.mxu0 0.0
    %2552 = vmatpush1.msra.mxu0 %v99
    %2553 = vmatprep.subr.mxu0 0.0
    %2554 = vmatpush1.msra.mxu0 0.0
    %2555 = vmatprep.subr.mxu0 0.0
    %2556 = vmatpush1.msra.mxu0 0.0
    %2557 = vmatprep.subr.mxu0 0.0
    %2558 = vmatpush1.msra.mxu0 0.0
    %2559 = vmatprep.subr.mxu0 0.0
    %2560 = vmatpush1.msra.mxu0 0.0
    %2561 = vmatprep.subr.mxu0 0.0
    %2562 = vmatpush1.msra.mxu0 0.0
    %2563 = vmatprep.subr.mxu0 0.0
    %2564 = vmatpush1.msra.mxu0 0.0
    %2565 = vmatprep.subr.mxu0 0.0
    %2566 = vmatpush1.msra.mxu0 0.0
    %2567 = vmatprep.subr.mxu0 0.0
    %2568 = vmatpush1.msra.mxu0 0.0
    %2569 = vmatprep.subr.mxu0 0.0
    %2570 = vmatpush1.msra.mxu0 0.0
    %2571 = vmatprep.subr.mxu0 0.0
    %2572 = vmatpush1.msra.mxu0 0.0
    %2573 = vmatprep.subr.mxu0 0.0
    %2574 = vmatpush1.msra.mxu0 0.0
    %2575 = vmatprep.subr.mxu0 0.0
    %2576 = vmatpush1.msra.mxu0 0.0
    %2577 = vmatprep.subr.mxu0 0.0
    %2578 = vmatpush1.msra.mxu0 0.0
    %2579 = vmatprep.subr.mxu0 0.0
    %2580 = vmatpush1.msra.mxu0 0.0
    %2581 = vmatprep.subr.mxu0 0.0
    %2582 = vmatpush1.msra.mxu0 0.0
    %2583 = vmatprep.subr.mxu0 0.0
    %2584 = vmatpush1.msra.mxu0 0.0
    %2585 = vmatprep.subr.mxu0 0.0
    %2586 = vmatpush1.msra.mxu0 0.0
    %2587 = vmatprep.subr.mxu0 0.0
    %2588 = vmatpush1.msra.mxu0 0.0
    %2589 = vmatprep.subr.mxu0 0.0
    %2590 = vmatpush1.msra.mxu0 0.0
    %2591 = vmatprep.subr.mxu0 0.0
    %2592 = vmatpush1.msra.mxu0 0.0
    %2593 = vmatprep.subr.mxu0 0.0
    %2594 = vmatpush1.msra.mxu0 0.0
    %2595 = vmatprep.subr.mxu0 0.0
    %2596 = vmatpush1.msra.mxu0 0.0
    %2597 = vmatprep.subr.mxu0 0.0
    %2598 = vmatpush1.msra.mxu0 0.0
    %2599 = vmatprep.subr.mxu0 0.0
    %2600 = vmatpush1.msra.mxu0 0.0
    %2601 = vmatprep.subr.mxu0 0.0
    %2602 = vmatpush1.msra.mxu0 0.0
    %2603 = vmatprep.subr.mxu0 0.0
    %2604 = vmatpush1.msra.mxu0 0.0
    %2605 = vmatprep.subr.mxu0 0.0
    %2606 = vmatpush1.msra.mxu0 0.0
    %2607 = vmatprep.subr.mxu0 0.0
    %2608 = vmatpush1.msra.mxu0 0.0
    %2609 = vmatprep.mubr.f32.mxu0 0.0
    %2610 = vmatmul.mubr.f32.gmra.mrb[0].mxu0 %v2543
    %v2611 = vpop.f32.mrb[0].mxu0
    %v2612 = vadd.f32 %v2539, %v2611
    %v2613 = vpop.f32.mrb[0].mxu0
    %2614 = vdwg.mxu0
    %v2615 = vadd.f32 %v2612, %v133
    %2616 = vmatprep.subr.mxu0 0.0
    %2617 = vmatpush1.msra.mxu0 %v108
    %2618 = vmatprep.subr.mxu0 0.0
    %2619 = vmatpush1.msra.mxu0 %v109
    %2620 = vmatprep.subr.mxu0 0.0
    %2621 = vmatpush1.msra.mxu0 %v110
    %2622 = vmatprep.subr.mxu0 0.0
    %2623 = vmatpush1.msra.mxu0 %v111
    %2624 = vmatprep.subr.mxu0 0.0
    %2625 = vmatpush1.msra.mxu0 0.0
    %2626 = vmatprep.subr.mxu0 0.0
    %2627 = vmatpush1.msra.mxu0 0.0
    %2628 = vmatprep.subr.mxu0 0.0
    %2629 = vmatpush1.msra.mxu0 0.0
    %2630 = vmatprep.subr.mxu0 0.0
    %2631 = vmatpush1.msra.mxu0 0.0
    %2632 = vmatprep.subr.mxu0 0.0
    %2633 = vmatpush1.msra.mxu0 0.0
    %2634 = vmatprep.subr.mxu0 0.0
    %2635 = vmatpush1.msra.mxu0 0.0
    %2636 = vmatprep.subr.mxu0 0.0
    %2637 = vmatpush1.msra.mxu0 0.0
    %2638 = vmatprep.subr.mxu0 0.0
    %2639 = vmatpush1.msra.mxu0 0.0
    %2640 = vmatprep.subr.mxu0 0.0
    %2641 = vmatpush1.msra.mxu0 0.0
    %2642 = vmatprep.subr.mxu0 0.0
    %2643 = vmatpush1.msra.mxu0 0.0
    %2644 = vmatprep.subr.mxu0 0.0
    %2645 = vmatpush1.msra.mxu0 0.0
    %2646 = vmatprep.subr.mxu0 0.0
    %2647 = vmatpush1.msra.mxu0 0.0
    %2648 = vmatprep.subr.mxu0 0.0
    %2649 = vmatpush1.msra.mxu0 0.0
    %2650 = vmatprep.subr.mxu0 0.0
    %2651 = vmatpush1.msra.mxu0 0.0
    %2652 = vmatprep.subr.mxu0 0.0
    %2653 = vmatpush1.msra.mxu0 0.0
    %2654 = vmatprep.subr.mxu0 0.0
    %2655 = vmatpush1.msra.mxu0 0.0
    %2656 = vmatprep.subr.mxu0 0.0
    %2657 = vmatpush1.msra.mxu0 0.0
    %2658 = vmatprep.subr.mxu0 0.0
    %2659 = vmatpush1.msra.mxu0 0.0
    %2660 = vmatprep.subr.mxu0 0.0
    %2661 = vmatpush1.msra.mxu0 0.0
    %2662 = vmatprep.subr.mxu0 0.0
    %2663 = vmatpush1.msra.mxu0 0.0
    %2664 = vmatprep.subr.mxu0 0.0
    %2665 = vmatpush1.msra.mxu0 0.0
    %2666 = vmatprep.subr.mxu0 0.0
    %2667 = vmatpush1.msra.mxu0 0.0
    %2668 = vmatprep.subr.mxu0 0.0
    %2669 = vmatpush1.msra.mxu0 0.0
    %2670 = vmatprep.subr.mxu0 0.0
    %2671 = vmatpush1.msra.mxu0 0.0
    %2672 = vmatprep.subr.mxu0 0.0
    %2673 = vmatpush1.msra.mxu0 0.0
    %2674 = vmatprep.subr.mxu0 0.0
    %2675 = vmatpush1.msra.mxu0 0.0
    %2676 = vmatprep.subr.mxu0 0.0
    %2677 = vmatpush1.msra.mxu0 0.0
    %2678 = vmatprep.subr.mxu0 0.0
    %2679 = vmatpush1.msra.mxu0 0.0
    %2680 = vmatprep.mubr.f32.mxu0 0.0
    %2681 = vmatmul.mubr.f32.gmra.mrb[0].mxu0 %v2115
    %v2682 = vpop.f32.mrb[0].mxu0
    %v2683 = vadd.f32 %v140, %v2682
    %v2684 = vpop.f32.mrb[0].mxu0
    %2685 = vdwg.mxu0
    %v2686 = vadd.f32 %v2615, %v2683
    %v2687 = vxor.u32 %v2686, 2147483648
    %v2688 = vmul.f32 %v2687, 1.442695
    %v2689 = vpow.pop %v2688
    %v2690 = vadd.f32 %v2689, 1.0
    %v2691 = vrcp.pop %v2690
    %v2692 = vmul.f32 1.0, %v2691
    %2694 = vrot.lane.b32.xlu0 %v2683, 64
    %v2695 = vpop.permute.xlu0 %2694
    %v2697 = vmul.f32 %v2692, %v2695
    %2699 = vrot.lane.b32.xlu0 %v2697, 64
    %v2700 = vpop.permute.xlu0 %2699
    %v2702 = vadd.f32 %v2615, %v2700
    %v2703 = vtanh.pop %v2702
    %v2704 = vsub.f32 1.0, %v2692
    %2706 = vrot.lane.b32.xlu0 %v2703, 96
    %v2707 = vpop.permute.xlu0 %2706
    %v2709 = vmul.f32 %v2704, %v2707
    %v2710 = vmul.f32 %v2692, %v2041
    %v2711 = vadd.f32 %v2709, %v2710
    %2712 = vmatprep.subr.mxu0 0.0
    %2713 = vmatpush1.msra.mxu0 %v116
    %2714 = vmatprep.subr.mxu0 0.0
    %2715 = vmatpush1.msra.mxu0 %v117
    %2716 = vmatprep.subr.mxu0 0.0
    %2717 = vmatpush1.msra.mxu0 %v118
    %2718 = vmatprep.subr.mxu0 0.0
    %2719 = vmatpush1.msra.mxu0 %v119
    %2720 = vmatprep.subr.mxu0 0.0
    %2721 = vmatpush1.msra.mxu0 %v120
    %2722 = vmatprep.subr.mxu0 0.0
    %2723 = vmatpush1.msra.mxu0 %v121
    %2724 = vmatprep.subr.mxu0 0.0
    %2725 = vmatpush1.msra.mxu0 %v122
    %2726 = vmatprep.subr.mxu0 0.0
    %2727 = vmatpush1.msra.mxu0 %v123
    %2728 = vmatprep.subr.mxu0 0.0
    %2729 = vmatpush1.msra.mxu0 0.0
    %2730 = vmatprep.subr.mxu0 0.0
    %2731 = vmatpush1.msra.mxu0 0.0
    %2732 = vmatprep.subr.mxu0 0.0
    %2733 = vmatpush1.msra.mxu0 0.0
    %2734 = vmatprep.subr.mxu0 0.0
    %2735 = vmatpush1.msra.mxu0 0.0
    %2736 = vmatprep.subr.mxu0 0.0
    %2737 = vmatpush1.msra.mxu0 0.0
    %2738 = vmatprep.subr.mxu0 0.0
    %2739 = vmatpush1.msra.mxu0 0.0
    %2740 = vmatprep.subr.mxu0 0.0
    %2741 = vmatpush1.msra.mxu0 0.0
    %2742 = vmatprep.subr.mxu0 0.0
    %2743 = vmatpush1.msra.mxu0 0.0
    %2744 = vmatprep.subr.mxu0 0.0
    %2745 = vmatpush1.msra.mxu0 0.0
    %2746 = vmatprep.subr.mxu0 0.0
    %2747 = vmatpush1.msra.mxu0 0.0
    %2748 = vmatprep.subr.mxu0 0.0
    %2749 = vmatpush1.msra.mxu0 0.0
    %2750 = vmatprep.subr.mxu0 0.0
    %2751 = vmatpush1.msra.mxu0 0.0
    %2752 = vmatprep.subr.mxu0 0.0
    %2753 = vmatpush1.msra.mxu0 0.0
    %2754 = vmatprep.subr.mxu0 0.0
    %2755 = vmatpush1.msra.mxu0 0.0
    %2756 = vmatprep.subr.mxu0 0.0
    %2757 = vmatpush1.msra.mxu0 0.0
    %2758 = vmatprep.subr.mxu0 0.0
    %2759 = vmatpush1.msra.mxu0 0.0
    %2760 = vmatprep.subr.mxu0 0.0
    %2761 = vmatpush1.msra.mxu0 0.0
    %2762 = vmatprep.subr.mxu0 0.0
    %2763 = vmatpush1.msra.mxu0 0.0
    %2764 = vmatprep.subr.mxu0 0.0
    %2765 = vmatpush1.msra.mxu0 0.0
    %2766 = vmatprep.subr.mxu0 0.0
    %2767 = vmatpush1.msra.mxu0 0.0
    %2768 = vmatprep.subr.mxu0 0.0
    %2769 = vmatpush1.msra.mxu0 0.0
    %2770 = vmatprep.subr.mxu0 0.0
    %2771 = vmatpush1.msra.mxu0 0.0
    %2772 = vmatprep.subr.mxu0 0.0
    %2773 = vmatpush1.msra.mxu0 0.0
    %2774 = vmatprep.subr.mxu0 0.0
    %2775 = vmatpush1.msra.mxu0 0.0
    %2776 = vmatprep.mubr.f32.mxu0 0.0
    %2777 = vmatmul.mubr.f32.gmra.mrb[0].mxu0 %v2470
    %v2778 = vpop.f32.mrb[0].mxu0
    %v2779 = vadd.f32 0.0, %v2778
    %v2780 = vpop.f32.mrb[0].mxu0
    %2781 = vdwg.mxu0
    %2783 = vrot.lane.b32.xlu0 %v2711, 96
    %v2784 = vpop.permute.xlu0 %2783
    %v2785 = vsel %vm277, %v2784, 0
    %2787 = vmatprep.subr.mxu0 0.0
    %2788 = vmatpush1.msra.mxu0 %v112
    %2789 = vmatprep.subr.mxu0 0.0
    %2790 = vmatpush1.msra.mxu0 %v113
    %2791 = vmatprep.subr.mxu0 0.0
    %2792 = vmatpush1.msra.mxu0 %v114
    %2793 = vmatprep.subr.mxu0 0.0
    %2794 = vmatpush1.msra.mxu0 %v115
    %2795 = vmatprep.subr.mxu0 0.0
    %2796 = vmatpush1.msra.mxu0 0.0
    %2797 = vmatprep.subr.mxu0 0.0
    %2798 = vmatpush1.msra.mxu0 0.0
    %2799 = vmatprep.subr.mxu0 0.0
    %2800 = vmatpush1.msra.mxu0 0.0
    %2801 = vmatprep.subr.mxu0 0.0
    %2802 = vmatpush1.msra.mxu0 0.0
    %2803 = vmatprep.subr.mxu0 0.0
    %2804 = vmatpush1.msra.mxu0 0.0
    %2805 = vmatprep.subr.mxu0 0.0
    %2806 = vmatpush1.msra.mxu0 0.0
    %2807 = vmatprep.subr.mxu0 0.0
    %2808 = vmatpush1.msra.mxu0 0.0
    %2809 = vmatprep.subr.mxu0 0.0
    %2810 = vmatpush1.msra.mxu0 0.0
    %2811 = vmatprep.subr.mxu0 0.0
    %2812 = vmatpush1.msra.mxu0 0.0
    %2813 = vmatprep.subr.mxu0 0.0
    %2814 = vmatpush1.msra.mxu0 0.0
    %2815 = vmatprep.subr.mxu0 0.0
    %2816 = vmatpush1.msra.mxu0 0.0
    %2817 = vmatprep.subr.mxu0 0.0
    %2818 = vmatpush1.msra.mxu0 0.0
    %2819 = vmatprep.subr.mxu0 0.0
    %2820 = vmatpush1.msra.mxu0 0.0
    %2821 = vmatprep.subr.mxu0 0.0
    %2822 = vmatpush1.msra.mxu0 0.0
    %2823 = vmatprep.subr.mxu0 0.0
    %2824 = vmatpush1.msra.mxu0 0.0
    %2825 = vmatprep.subr.mxu0 0.0
    %2826 = vmatpush1.msra.mxu0 0.0
    %2827 = vmatprep.subr.mxu0 0.0
    %2828 = vmatpush1.msra.mxu0 0.0
    %2829 = vmatprep.subr.mxu0 0.0
    %2830 = vmatpush1.msra.mxu0 0.0
    %2831 = vmatprep.subr.mxu0 0.0
    %2832 = vmatpush1.msra.mxu0 0.0
    %2833 = vmatprep.subr.mxu0 0.0
    %2834 = vmatpush1.msra.mxu0 0.0
    %2835 = vmatprep.subr.mxu0 0.0
    %2836 = vmatpush1.msra.mxu0 0.0
    %2837 = vmatprep.subr.mxu0 0.0
    %2838 = vmatpush1.msra.mxu0 0.0
    %2839 = vmatprep.subr.mxu0 0.0
    %2840 = vmatpush1.msra.mxu0 0.0
    %2841 = vmatprep.subr.mxu0 0.0
    %2842 = vmatpush1.msra.mxu0 0.0
    %2843 = vmatprep.subr.mxu0 0.0
    %2844 = vmatpush1.msra.mxu0 0.0
    %2845 = vmatprep.subr.mxu0 0.0
    %2846 = vmatpush1.msra.mxu0 0.0
    %2847 = vmatprep.subr.mxu0 0.0
    %2848 = vmatpush1.msra.mxu0 0.0
    %2849 = vmatprep.subr.mxu0 0.0
    %2850 = vmatpush1.msra.mxu0 0.0
    %2851 = vmatprep.mubr.f32.mxu0 0.0
    %2852 = vmatmul.mubr.f32.gmra.mrb[0].mxu0 %v2785
    %v2853 = vpop.f32.mrb[0].mxu0
    %v2854 = vadd.f32 %v2779, %v2853
    %v2855 = vpop.f32.mrb[0].mxu0
    %2856 = vdwg.mxu0
    %2857 = vmatprep.subr.mxu0 0.0
    %2858 = vmatpush1.msra.mxu0 %v124
    %2859 = vmatprep.subr.mxu0 0.0
    %2860 = vmatpush1.msra.mxu0 %v125
    %2861 = vmatprep.subr.mxu0 0.0
    %2862 = vmatpush1.msra.mxu0 %v126
    %2863 = vmatprep.subr.mxu0 0.0
    %2864 = vmatpush1.msra.mxu0 %v127
    %2865 = vmatprep.subr.mxu0 0.0
    %2866 = vmatpush1.msra.mxu0 0.0
    %2867 = vmatprep.subr.mxu0 0.0
    %2868 = vmatpush1.msra.mxu0 0.0
    %2869 = vmatprep.subr.mxu0 0.0
    %2870 = vmatpush1.msra.mxu0 0.0
    %2871 = vmatprep.subr.mxu0 0.0
    %2872 = vmatpush1.msra.mxu0 0.0
    %2873 = vmatprep.subr.mxu0 0.0
    %2874 = vmatpush1.msra.mxu0 0.0
    %2875 = vmatprep.subr.mxu0 0.0
    %2876 = vmatpush1.msra.mxu0 0.0
    %2877 = vmatprep.subr.mxu0 0.0
    %2878 = vmatpush1.msra.mxu0 0.0
    %2879 = vmatprep.subr.mxu0 0.0
    %2880 = vmatpush1.msra.mxu0 0.0
    %2881 = vmatprep.subr.mxu0 0.0
    %2882 = vmatpush1.msra.mxu0 0.0
    %2883 = vmatprep.subr.mxu0 0.0
    %2884 = vmatpush1.msra.mxu0 0.0
    %2885 = vmatprep.subr.mxu0 0.0
    %2886 = vmatpush1.msra.mxu0 0.0
    %2887 = vmatprep.subr.mxu0 0.0
    %2888 = vmatpush1.msra.mxu0 0.0
    %2889 = vmatprep.subr.mxu0 0.0
    %2890 = vmatpush1.msra.mxu0 0.0
    %2891 = vmatprep.subr.mxu0 0.0
    %2892 = vmatpush1.msra.mxu0 0.0
    %2893 = vmatprep.subr.mxu0 0.0
    %2894 = vmatpush1.msra.mxu0 0.0
    %2895 = vmatprep.subr.mxu0 0.0
    %2896 = vmatpush1.msra.mxu0 0.0
    %2897 = vmatprep.subr.mxu0 0.0
    %2898 = vmatpush1.msra.mxu0 0.0
    %2899 = vmatprep.subr.mxu0 0.0
    %2900 = vmatpush1.msra.mxu0 0.0
    %2901 = vmatprep.subr.mxu0 0.0
    %2902 = vmatpush1.msra.mxu0 0.0
    %2903 = vmatprep.subr.mxu0 0.0
    %2904 = vmatpush1.msra.mxu0 0.0
    %2905 = vmatprep.subr.mxu0 0.0
    %2906 = vmatpush1.msra.mxu0 0.0
    %2907 = vmatprep.subr.mxu0 0.0
    %2908 = vmatpush1.msra.mxu0 0.0
    %2909 = vmatprep.subr.mxu0 0.0
    %2910 = vmatpush1.msra.mxu0 0.0
    %2911 = vmatprep.subr.mxu0 0.0
    %2912 = vmatpush1.msra.mxu0 0.0
    %2913 = vmatprep.subr.mxu0 0.0
    %2914 = vmatpush1.msra.mxu0 0.0
    %2915 = vmatprep.subr.mxu0 0.0
    %2916 = vmatpush1.msra.mxu0 0.0
    %2917 = vmatprep.subr.mxu0 0.0
    %2918 = vmatpush1.msra.mxu0 0.0
    %2919 = vmatprep.subr.mxu0 0.0
    %2920 = vmatpush1.msra.mxu0 0.0
    %2921 = vmatprep.mubr.f32.mxu0 0.0
    %2922 = vmatmul.mubr.f32.gmra.mrb[0].mxu0 %v2543
    %v2923 = vpop.f32.mrb[0].mxu0
    %v2924 = vadd.f32 0.0, %v2923
    %v2925 = vpop.f32.mrb[0].mxu0
    %2926 = vdwg.mxu0
    %v2927 = vadd.f32 %v2854, %v2924
    %v2928 = vadd.f32 %v2927, %v147
    %s2929 = scalar_lea.vmem [#allocation7], 8
    %2930 = vst.msk [vmem:[%s2929] sm:$0x3] %vm275, %v2928
    %v2931 = vsel %vm275, %v2928, -inf
    %2932 = vmax.xlane.f32.xlu0 %v2931
    %v2933 = vpop.xlane.xlu0 %2932
    %vm2934 = vcmp.ge.f32.partialorder %v2928, %v2933
    %v2935 = vsel %vm2934, %v89, 32.0
    %v2936 = vsel %vm275, %v2935, inf
    %2937 = vmin.xlane.f32.xlu0 %v2936
    %v2938 = vpop.xlane.xlu0 %2937
    %vm2939 = vcmp.eq.f32.partialorder %v89, %v2938
    %v2940 = vsel %vm2939, 1, 0
    %v2941 = vcvt.s32.f32 %v2940
    %s2942 = sld [smem:[#allocation2 + $0x200]]
    %v2943 = vstv %s2942
    %vm2944 = vcmp.eq.s32.totalorder %v88, %v2943
    %vm2945 = vmand %vm260, %vm2944
    %v2946 = vsel %vm2945, 1, 0
    %v2947 = vcvt.s32.f32 %v2946
    %v2948 = vadd.f32 %v2947, 0.0
    %s2949 = sld [smem:[#allocation2 + $0x201]]
    %v2950 = vstv %s2949
    %vm2951 = vcmp.eq.s32.totalorder %v88, %v2950
    %vm2952 = vmand %vm268, %vm2951
    %v2953 = vsel %vm2952, 1, 0
    %v2954 = vcvt.s32.f32 %v2953
    %v2955 = vadd.f32 %v2948, %v2954
    %s2956 = sld [smem:[#allocation5 + $0x4]]
    %p2957 = scmp.gt.s32.totalorder %s2956, 0
    %s2958 = scalar_select %p2957, 1, 0
    %s2959 = scvt.s32.f32 %s2958
    %v2960 = vstv %s2959
    %v2961 = vmul.f32 %v2960, %v2955
    %s2962 = ssub.f32 1.0, %s2959
    %v2963 = vstv %s2962
    %v2964 = vmul.f32 %v2963, %v2941
    %v2965 = vadd.f32 %v2961, %v2964
    %2966 = vmatprep.subr.mxu0 0.0
    %2967 = vmatpush1.msra.mxu0 %v92
    %2968 = vmatprep.subr.mxu0 0.0
    %2969 = vmatpush1.msra.mxu0 %v93
    %2970 = vmatprep.subr.mxu0 0.0
    %2971 = vmatpush1.msra.mxu0 %v94
    %2972 = vmatprep.subr.mxu0 0.0
    %2973 = vmatpush1.msra.mxu0 %v95
    %2974 = vmatprep.subr.mxu0 0.0
    %2975 = vmatpush1.msra.mxu0 0.0
    %2976 = vmatprep.subr.mxu0 0.0
    %2977 = vmatpush1.msra.mxu0 0.0
    %2978 = vmatprep.subr.mxu0 0.0
    %2979 = vmatpush1.msra.mxu0 0.0
    %2980 = vmatprep.subr.mxu0 0.0
    %2981 = vmatpush1.msra.mxu0 0.0
    %2982 = vmatprep.subr.mxu0 0.0
    %2983 = vmatpush1.msra.mxu0 0.0
    %2984 = vmatprep.subr.mxu0 0.0
    %2985 = vmatpush1.msra.mxu0 0.0
    %2986 = vmatprep.subr.mxu0 0.0
    %2987 = vmatpush1.msra.mxu0 0.0
    %2988 = vmatprep.subr.mxu0 0.0
    %2989 = vmatpush1.msra.mxu0 0.0
    %2990 = vmatprep.subr.mxu0 0.0
    %2991 = vmatpush1.msra.mxu0 0.0
    %2992 = vmatprep.subr.mxu0 0.0
    %2993 = vmatpush1.msra.mxu0 0.0
    %2994 = vmatprep.subr.mxu0 0.0
    %2995 = vmatpush1.msra.mxu0 0.0
    %2996 = vmatprep.subr.mxu0 0.0
    %2997 = vmatpush1.msra.mxu0 0.0
    %2998 = vmatprep.subr.mxu0 0.0
    %2999 = vmatpush1.msra.mxu0 0.0
    %3000 = vmatprep.subr.mxu0 0.0
    %3001 = vmatpush1.msra.mxu0 0.0
    %3002 = vmatprep.subr.mxu0 0.0
    %3003 = vmatpush1.msra.mxu0 0.0
    %3004 = vmatprep.subr.mxu0 0.0
    %3005 = vmatpush1.msra.mxu0 0.0
    %3006 = vmatprep.subr.mxu0 0.0
    %3007 = vmatpush1.msra.mxu0 0.0
    %3008 = vmatprep.subr.mxu0 0.0
    %3009 = vmatpush1.msra.mxu0 0.0
    %3010 = vmatprep.subr.mxu0 0.0
    %3011 = vmatpush1.msra.mxu0 0.0
    %3012 = vmatprep.subr.mxu0 0.0
    %3013 = vmatpush1.msra.mxu0 0.0
    %3014 = vmatprep.subr.mxu0 0.0
    %3015 = vmatpush1.msra.mxu0 0.0
    %3016 = vmatprep.subr.mxu0 0.0
    %3017 = vmatpush1.msra.mxu0 0.0
    %3018 = vmatprep.subr.mxu0 0.0
    %3019 = vmatpush1.msra.mxu0 0.0
    %3020 = vmatprep.subr.mxu0 0.0
    %3021 = vmatpush1.msra.mxu0 0.0
    %3022 = vmatprep.subr.mxu0 0.0
    %3023 = vmatpush1.msra.mxu0 0.0
    %3024 = vmatprep.subr.mxu0 0.0
    %3025 = vmatpush1.msra.mxu0 0.0
    %3026 = vmatprep.subr.mxu0 0.0
    %3027 = vmatpush1.msra.mxu0 0.0
    %3028 = vmatprep.subr.mxu0 0.0
    %3029 = vmatpush1.msra.mxu0 0.0
    %3030 = vmatprep.mubr.f32.mxu0 0.0
    %3031 = vmatmul.mubr.f32.gmra.mrb[0].mxu0 %v2785
    %v3032 = vpop.f32.mrb[0].mxu0
    %v3033 = vadd.f32 0.0, %v3032
    %v3034 = vpop.f32.mrb[0].mxu0
    %3035 = vdwg.mxu0
    %v3038 = vunpack.c.l.s4 1966171168
    %v3039 = vunpack.c.0.s8 %v3038
    %v3040 = vlaneseq
    %v3041 = vshrl.u32 %v3040, 7
    %v3042 = vsub.s32 %v3039, %v3041
    %v3043 = vrot.slane %v3033, %v3042
    %v3044 = vcombine.high %v3043, %v3043
    %v3046 = vunpack.c.l.s4 1966171168
    %v3047 = vunpack.c.0.s8 %v3046
    %v3048 = vlaneseq
    %v3049 = vshrl.u32 %v3048, 7
    %v3050 = vsub.s32 %v3047, %v3049
    %v3051 = vrot.slane %v3043, %v3050
    %v3053 = vunpack.c.l.s4 1966171168
    %v3054 = vunpack.c.0.s8 %v3053
    %v3055 = vlaneseq
    %v3056 = vshrl.u32 %v3055, 7
    %v3057 = vsub.s32 %v3054, %v3056
    %v3058 = vrot.slane %v3044, %v3057
    %v3059 = vlaneseq
    %v3060 = vshrl.u32 %v3059, 7
    %v3061 = vsub.s32 0, %v3060
    %v3062 = vrot.slane %v3051, %v3061
    %v3063 = vlaneseq
    %v3064 = vshrl.u32 %v3063, 7
    %v3065 = vsub.s32 0, %v3064
    %v3066 = vrot.slane %v3058, %v3065
    %v3069 = vadd.f32 %v3062, %v250
    %v3070 = vadd.f32 %v3066, %v255
    %v3071 = vadd.f32 %v3069, %v154
    %v3072 = vadd.f32 %v3070, %v154
    %v3073 = vtanh.pop %v3071
    %v3074 = vtanh.pop %v3072
    %v3075 = vmul.f32 %v3073, %v161
    %v3076 = vmul.f32 %v3074, %v161
    %v3077 = vsel %vm277, %v3075, 0.0
    %3078 = vadd.xlane.f32.xlu0 %v3077
    %v3079 = vpop.xlane.xlu0 %3078
    %v3080 = vsel %vm277, %v3076, 0.0
    %3081 = vadd.xlane.f32.xlu0 %v3080
    %v3082 = vpop.xlane.xlu0 %3081
    %v3085 = vlaneseq
    %v3086 = vshrl.u32 %v3085, 7
    %v3087 = vsub.s32 %v88, %v3086
    %v3088 = vrot.slane %v3079, %v3087
    %v3089 = vlaneseq
    %v3090 = vshrl.u32 %v3089, 7
    %v3091 = vsub.s32 %v88, %v3090
    %v3092 = vrot.slane %v3082, %v3091
    %v3093 = vsel %vm408, %v3092, %v3088
    %v3095 = vsel %vm167, %v3093, -1e+10
    %v3096 = vsel %vm412, %v3095, -inf
    %3097 = vmax.xlane.f32.xlu0 %v3096
    %v3098 = vpop.xlane.xlu0 %3097
    %v3099 = vsub.f32 %v3095, %v3098
    %v3100 = vmul.f32 %v3099, 1.442695
    %v3101 = vpow.pop %v3100
    %v3102 = vsel %vm412, %v3101, 0.0
    %3103 = vadd.xlane.f32.xlu0 %v3102
    %v3104 = vpop.xlane.xlu0 %3103
    %v3105 = vrcp.pop %v3104
    %v3106 = vmul.f32 %v3101, %v3105
    %v3107 = vlaneseq
    %v3108 = vshrl.u32 %v3107, 7
    %v3109 = vsub.s32 0, %v3108
    %v3110 = vrot.slane %v3106, %v3109
    %3112 = vbcast.lane.b32.xlu0 %v3110, 256
    %v3113 = vpop.permute.xlu0 %3112
    %v3114 = vlaneseq
    %v3115 = vshrl.u32 %v3114, 7
    %v3116 = vsub.s32 1, %v3115
    %v3117 = vrot.slane %v3106, %v3116
    %3119 = vbcast.lane.b32.xlu0 %v3117, 256
    %v3120 = vpop.permute.xlu0 %3119
    %v3121 = vmul.f32 %v3113, %v90
    %v3122 = vmul.f32 %v3120, %v91
    %v3123 = vsel %vm176, %v3121, 0.0
    %v3124 = vrot.slane %v3123, 4
    %v3125 = vadd.f32 %v3123, %v3124
    %v3126 = vrot.slane %v3125, 2
    %v3127 = vadd.f32 %v3125, %v3126
    %v3128 = vrot.slane %v3127, 1
    %v3129 = vadd.f32 %v3127, %v3128
    %v3130 = vsel %vm176, %v3122, 0.0
    %v3131 = vrot.slane %v3130, 4
    %v3132 = vadd.f32 %v3130, %v3131
    %v3133 = vrot.slane %v3132, 2
    %v3134 = vadd.f32 %v3132, %v3133
    %v3135 = vrot.slane %v3134, 1
    %v3136 = vadd.f32 %v3134, %v3135
    %v3139 = vsel %vm408, %v3136, %v3129
    %v3140 = vsel %vm176, %v3139, 0
    %3142 = vmatprep.subr.mxu0 0.0
    %3143 = vmatpush1.msra.mxu0 %v100
    %3144 = vmatprep.subr.mxu0 0.0
    %3145 = vmatpush1.msra.mxu0 %v101
    %3146 = vmatprep.subr.mxu0 0.0
    %3147 = vmatpush1.msra.mxu0 %v102
    %3148 = vmatprep.subr.mxu0 0.0
    %3149 = vmatpush1.msra.mxu0 %v103
    %3150 = vmatprep.subr.mxu0 0.0
    %3151 = vmatpush1.msra.mxu0 %v104
    %3152 = vmatprep.subr.mxu0 0.0
    %3153 = vmatpush1.msra.mxu0 %v105
    %3154 = vmatprep.subr.mxu0 0.0
    %3155 = vmatpush1.msra.mxu0 %v106
    %3156 = vmatprep.subr.mxu0 0.0
    %3157 = vmatpush1.msra.mxu0 %v107
    %3158 = vmatprep.subr.mxu0 0.0
    %3159 = vmatpush1.msra.mxu0 0.0
    %3160 = vmatprep.subr.mxu0 0.0
    %3161 = vmatpush1.msra.mxu0 0.0
    %3162 = vmatprep.subr.mxu0 0.0
    %3163 = vmatpush1.msra.mxu0 0.0
    %3164 = vmatprep.subr.mxu0 0.0
    %3165 = vmatpush1.msra.mxu0 0.0
    %3166 = vmatprep.subr.mxu0 0.0
    %3167 = vmatpush1.msra.mxu0 0.0
    %3168 = vmatprep.subr.mxu0 0.0
    %3169 = vmatpush1.msra.mxu0 0.0
    %3170 = vmatprep.subr.mxu0 0.0
    %3171 = vmatpush1.msra.mxu0 0.0
    %3172 = vmatprep.subr.mxu0 0.0
    %3173 = vmatpush1.msra.mxu0 0.0
    %3174 = vmatprep.subr.mxu0 0.0
    %3175 = vmatpush1.msra.mxu0 0.0
    %3176 = vmatprep.subr.mxu0 0.0
    %3177 = vmatpush1.msra.mxu0 0.0
    %3178 = vmatprep.subr.mxu0 0.0
    %3179 = vmatpush1.msra.mxu0 0.0
    %3180 = vmatprep.subr.mxu0 0.0
    %3181 = vmatpush1.msra.mxu0 0.0
    %3182 = vmatprep.subr.mxu0 0.0
    %3183 = vmatpush1.msra.mxu0 0.0
    %3184 = vmatprep.subr.mxu0 0.0
    %3185 = vmatpush1.msra.mxu0 0.0
    %3186 = vmatprep.subr.mxu0 0.0
    %3187 = vmatpush1.msra.mxu0 0.0
    %3188 = vmatprep.subr.mxu0 0.0
    %3189 = vmatpush1.msra.mxu0 0.0
    %3190 = vmatprep.subr.mxu0 0.0
    %3191 = vmatpush1.msra.mxu0 0.0
    %3192 = vmatprep.subr.mxu0 0.0
    %3193 = vmatpush1.msra.mxu0 0.0
    %3194 = vmatprep.subr.mxu0 0.0
    %3195 = vmatpush1.msra.mxu0 0.0
    %3196 = vmatprep.subr.mxu0 0.0
    %3197 = vmatpush1.msra.mxu0 0.0
    %3198 = vmatprep.subr.mxu0 0.0
    %3199 = vmatpush1.msra.mxu0 0.0
    %3200 = vmatprep.subr.mxu0 0.0
    %3201 = vmatpush1.msra.mxu0 0.0
    %3202 = vmatprep.subr.mxu0 0.0
    %3203 = vmatpush1.msra.mxu0 0.0
    %3204 = vmatprep.subr.mxu0 0.0
    %3205 = vmatpush1.msra.mxu0 0.0
    %3206 = vmatprep.mubr.f32.mxu0 0.0
    %3207 = vmatmul.mubr.f32.gmra.mrb[0].mxu0 %v3140
    %v3208 = vpop.f32.mrb[0].mxu0
    %v3209 = vadd.f32 0.0, %v3208
    %v3210 = vpop.f32.mrb[0].mxu0
    %3211 = vdwg.mxu0
    %v3213 = vsel %vm277, %v2965, 0
    %3215 = vmatprep.subr.mxu0 0.0
    %3216 = vmatpush1.msra.mxu0 %v96
    %3217 = vmatprep.subr.mxu0 0.0
    %3218 = vmatpush1.msra.mxu0 %v97
    %3219 = vmatprep.subr.mxu0 0.0
    %3220 = vmatpush1.msra.mxu0 %v98
    %3221 = vmatprep.subr.mxu0 0.0
    %3222 = vmatpush1.msra.mxu0 %v99
    %3223 = vmatprep.subr.mxu0 0.0
    %3224 = vmatpush1.msra.mxu0 0.0
    %3225 = vmatprep.subr.mxu0 0.0
    %3226 = vmatpush1.msra.mxu0 0.0
    %3227 = vmatprep.subr.mxu0 0.0
    %3228 = vmatpush1.msra.mxu0 0.0
    %3229 = vmatprep.subr.mxu0 0.0
    %3230 = vmatpush1.msra.mxu0 0.0
    %3231 = vmatprep.subr.mxu0 0.0
    %3232 = vmatpush1.msra.mxu0 0.0
    %3233 = vmatprep.subr.mxu0 0.0
    %3234 = vmatpush1.msra.mxu0 0.0
    %3235 = vmatprep.subr.mxu0 0.0
    %3236 = vmatpush1.msra.mxu0 0.0
    %3237 = vmatprep.subr.mxu0 0.0
    %3238 = vmatpush1.msra.mxu0 0.0
    %3239 = vmatprep.subr.mxu0 0.0
    %3240 = vmatpush1.msra.mxu0 0.0
    %3241 = vmatprep.subr.mxu0 0.0
    %3242 = vmatpush1.msra.mxu0 0.0
    %3243 = vmatprep.subr.mxu0 0.0
    %3244 = vmatpush1.msra.mxu0 0.0
    %3245 = vmatprep.subr.mxu0 0.0
    %3246 = vmatpush1.msra.mxu0 0.0
    %3247 = vmatprep.subr.mxu0 0.0
    %3248 = vmatpush1.msra.mxu0 0.0
    %3249 = vmatprep.subr.mxu0 0.0
    %3250 = vmatpush1.msra.mxu0 0.0
    %3251 = vmatprep.subr.mxu0 0.0
    %3252 = vmatpush1.msra.mxu0 0.0
    %3253 = vmatprep.subr.mxu0 0.0
    %3254 = vmatpush1.msra.mxu0 0.0
    %3255 = vmatprep.subr.mxu0 0.0
    %3256 = vmatpush1.msra.mxu0 0.0
    %3257 = vmatprep.subr.mxu0 0.0
    %3258 = vmatpush1.msra.mxu0 0.0
    %3259 = vmatprep.subr.mxu0 0.0
    %3260 = vmatpush1.msra.mxu0 0.0
    %3261 = vmatprep.subr.mxu0 0.0
    %3262 = vmatpush1.msra.mxu0 0.0
    %3263 = vmatprep.subr.mxu0 0.0
    %3264 = vmatpush1.msra.mxu0 0.0
    %3265 = vmatprep.subr.mxu0 0.0
    %3266 = vmatpush1.msra.mxu0 0.0
    %3267 = vmatprep.subr.mxu0 0.0
    %3268 = vmatpush1.msra.mxu0 0.0
    %3269 = vmatprep.subr.mxu0 0.0
    %3270 = vmatpush1.msra.mxu0 0.0
    %3271 = vmatprep.subr.mxu0 0.0
    %3272 = vmatpush1.msra.mxu0 0.0
    %3273 = vmatprep.subr.mxu0 0.0
    %3274 = vmatpush1.msra.mxu0 0.0
    %3275 = vmatprep.subr.mxu0 0.0
    %3276 = vmatpush1.msra.mxu0 0.0
    %3277 = vmatprep.subr.mxu0 0.0
    %3278 = vmatpush1.msra.mxu0 0.0
    %3279 = vmatprep.mubr.f32.mxu0 0.0
    %3280 = vmatmul.mubr.f32.gmra.mrb[0].mxu0 %v3213
    %v3281 = vpop.f32.mrb[0].mxu0
    %v3282 = vadd.f32 %v3209, %v3281
    %v3283 = vpop.f32.mrb[0].mxu0
    %3284 = vdwg.mxu0
    %v3285 = vadd.f32 %v3282, %v133
    %3286 = vmatprep.subr.mxu0 0.0
    %3287 = vmatpush1.msra.mxu0 %v108
    %3288 = vmatprep.subr.mxu0 0.0
    %3289 = vmatpush1.msra.mxu0 %v109
    %3290 = vmatprep.subr.mxu0 0.0
    %3291 = vmatpush1.msra.mxu0 %v110
    %3292 = vmatprep.subr.mxu0 0.0
    %3293 = vmatpush1.msra.mxu0 %v111
    %3294 = vmatprep.subr.mxu0 0.0
    %3295 = vmatpush1.msra.mxu0 0.0
    %3296 = vmatprep.subr.mxu0 0.0
    %3297 = vmatpush1.msra.mxu0 0.0
    %3298 = vmatprep.subr.mxu0 0.0
    %3299 = vmatpush1.msra.mxu0 0.0
    %3300 = vmatprep.subr.mxu0 0.0
    %3301 = vmatpush1.msra.mxu0 0.0
    %3302 = vmatprep.subr.mxu0 0.0
    %3303 = vmatpush1.msra.mxu0 0.0
    %3304 = vmatprep.subr.mxu0 0.0
    %3305 = vmatpush1.msra.mxu0 0.0
    %3306 = vmatprep.subr.mxu0 0.0
    %3307 = vmatpush1.msra.mxu0 0.0
    %3308 = vmatprep.subr.mxu0 0.0
    %3309 = vmatpush1.msra.mxu0 0.0
    %3310 = vmatprep.subr.mxu0 0.0
    %3311 = vmatpush1.msra.mxu0 0.0
    %3312 = vmatprep.subr.mxu0 0.0
    %3313 = vmatpush1.msra.mxu0 0.0
    %3314 = vmatprep.subr.mxu0 0.0
    %3315 = vmatpush1.msra.mxu0 0.0
    %3316 = vmatprep.subr.mxu0 0.0
    %3317 = vmatpush1.msra.mxu0 0.0
    %3318 = vmatprep.subr.mxu0 0.0
    %3319 = vmatpush1.msra.mxu0 0.0
    %3320 = vmatprep.subr.mxu0 0.0
    %3321 = vmatpush1.msra.mxu0 0.0
    %3322 = vmatprep.subr.mxu0 0.0
    %3323 = vmatpush1.msra.mxu0 0.0
    %3324 = vmatprep.subr.mxu0 0.0
    %3325 = vmatpush1.msra.mxu0 0.0
    %3326 = vmatprep.subr.mxu0 0.0
    %3327 = vmatpush1.msra.mxu0 0.0
    %3328 = vmatprep.subr.mxu0 0.0
    %3329 = vmatpush1.msra.mxu0 0.0
    %3330 = vmatprep.subr.mxu0 0.0
    %3331 = vmatpush1.msra.mxu0 0.0
    %3332 = vmatprep.subr.mxu0 0.0
    %3333 = vmatpush1.msra.mxu0 0.0
    %3334 = vmatprep.subr.mxu0 0.0
    %3335 = vmatpush1.msra.mxu0 0.0
    %3336 = vmatprep.subr.mxu0 0.0
    %3337 = vmatpush1.msra.mxu0 0.0
    %3338 = vmatprep.subr.mxu0 0.0
    %3339 = vmatpush1.msra.mxu0 0.0
    %3340 = vmatprep.subr.mxu0 0.0
    %3341 = vmatpush1.msra.mxu0 0.0
    %3342 = vmatprep.subr.mxu0 0.0
    %3343 = vmatpush1.msra.mxu0 0.0
    %3344 = vmatprep.subr.mxu0 0.0
    %3345 = vmatpush1.msra.mxu0 0.0
    %3346 = vmatprep.subr.mxu0 0.0
    %3347 = vmatpush1.msra.mxu0 0.0
    %3348 = vmatprep.subr.mxu0 0.0
    %3349 = vmatpush1.msra.mxu0 0.0
    %3350 = vmatprep.mubr.f32.mxu0 0.0
    %3351 = vmatmul.mubr.f32.gmra.mrb[0].mxu0 %v2785
    %v3352 = vpop.f32.mrb[0].mxu0
    %v3353 = vadd.f32 %v140, %v3352
    %v3354 = vpop.f32.mrb[0].mxu0
    %3355 = vdwg.mxu0
    %v3356 = vadd.f32 %v3285, %v3353
    %v3357 = vxor.u32 %v3356, 2147483648
    %v3358 = vmul.f32 %v3357, 1.442695
    %v3359 = vpow.pop %v3358
    %v3360 = vadd.f32 %v3359, 1.0
    %v3361 = vrcp.pop %v3360
    %v3362 = vmul.f32 1.0, %v3361
    %3364 = vrot.lane.b32.xlu0 %v3353, 64
    %v3365 = vpop.permute.xlu0 %3364
    %v3367 = vmul.f32 %v3362, %v3365
    %3369 = vrot.lane.b32.xlu0 %v3367, 64
    %v3370 = vpop.permute.xlu0 %3369
    %v3372 = vadd.f32 %v3285, %v3370
    %v3373 = vtanh.pop %v3372
    %v3374 = vsub.f32 1.0, %v3362
    %3376 = vrot.lane.b32.xlu0 %v3373, 96
    %v3377 = vpop.permute.xlu0 %3376
    %v3379 = vmul.f32 %v3374, %v3377
    %v3380 = vmul.f32 %v3362, %v2711
    %v3381 = vadd.f32 %v3379, %v3380
    %3382 = vmatprep.subr.mxu0 0.0
    %3383 = vmatpush1.msra.mxu0 %v116
    %3384 = vmatprep.subr.mxu0 0.0
    %3385 = vmatpush1.msra.mxu0 %v117
    %3386 = vmatprep.subr.mxu0 0.0
    %3387 = vmatpush1.msra.mxu0 %v118
    %3388 = vmatprep.subr.mxu0 0.0
    %3389 = vmatpush1.msra.mxu0 %v119
    %3390 = vmatprep.subr.mxu0 0.0
    %3391 = vmatpush1.msra.mxu0 %v120
    %3392 = vmatprep.subr.mxu0 0.0
    %3393 = vmatpush1.msra.mxu0 %v121
    %3394 = vmatprep.subr.mxu0 0.0
    %3395 = vmatpush1.msra.mxu0 %v122
    %3396 = vmatprep.subr.mxu0 0.0
    %3397 = vmatpush1.msra.mxu0 %v123
    %3398 = vmatprep.subr.mxu0 0.0
    %3399 = vmatpush1.msra.mxu0 0.0
    %3400 = vmatprep.subr.mxu0 0.0
    %3401 = vmatpush1.msra.mxu0 0.0
    %3402 = vmatprep.subr.mxu0 0.0
    %3403 = vmatpush1.msra.mxu0 0.0
    %3404 = vmatprep.subr.mxu0 0.0
    %3405 = vmatpush1.msra.mxu0 0.0
    %3406 = vmatprep.subr.mxu0 0.0
    %3407 = vmatpush1.msra.mxu0 0.0
    %3408 = vmatprep.subr.mxu0 0.0
    %3409 = vmatpush1.msra.mxu0 0.0
    %3410 = vmatprep.subr.mxu0 0.0
    %3411 = vmatpush1.msra.mxu0 0.0
    %3412 = vmatprep.subr.mxu0 0.0
    %3413 = vmatpush1.msra.mxu0 0.0
    %3414 = vmatprep.subr.mxu0 0.0
    %3415 = vmatpush1.msra.mxu0 0.0
    %3416 = vmatprep.subr.mxu0 0.0
    %3417 = vmatpush1.msra.mxu0 0.0
    %3418 = vmatprep.subr.mxu0 0.0
    %3419 = vmatpush1.msra.mxu0 0.0
    %3420 = vmatprep.subr.mxu0 0.0
    %3421 = vmatpush1.msra.mxu0 0.0
    %3422 = vmatprep.subr.mxu0 0.0
    %3423 = vmatpush1.msra.mxu0 0.0
    %3424 = vmatprep.subr.mxu0 0.0
    %3425 = vmatpush1.msra.mxu0 0.0
    %3426 = vmatprep.subr.mxu0 0.0
    %3427 = vmatpush1.msra.mxu0 0.0
    %3428 = vmatprep.subr.mxu0 0.0
    %3429 = vmatpush1.msra.mxu0 0.0
    %3430 = vmatprep.subr.mxu0 0.0
    %3431 = vmatpush1.msra.mxu0 0.0
    %3432 = vmatprep.subr.mxu0 0.0
    %3433 = vmatpush1.msra.mxu0 0.0
    %3434 = vmatprep.subr.mxu0 0.0
    %3435 = vmatpush1.msra.mxu0 0.0
    %3436 = vmatprep.subr.mxu0 0.0
    %3437 = vmatpush1.msra.mxu0 0.0
    %3438 = vmatprep.subr.mxu0 0.0
    %3439 = vmatpush1.msra.mxu0 0.0
    %3440 = vmatprep.subr.mxu0 0.0
    %3441 = vmatpush1.msra.mxu0 0.0
    %3442 = vmatprep.subr.mxu0 0.0
    %3443 = vmatpush1.msra.mxu0 0.0
    %3444 = vmatprep.subr.mxu0 0.0
    %3445 = vmatpush1.msra.mxu0 0.0
    %3446 = vmatprep.mubr.f32.mxu0 0.0
    %3447 = vmatmul.mubr.f32.gmra.mrb[0].mxu0 %v3140
    %v3448 = vpop.f32.mrb[0].mxu0
    %v3449 = vadd.f32 0.0, %v3448
    %v3450 = vpop.f32.mrb[0].mxu0
    %3451 = vdwg.mxu0
    %3453 = vrot.lane.b32.xlu0 %v3381, 96
    %v3454 = vpop.permute.xlu0 %3453
    %v3455 = vsel %vm277, %v3454, 0
    %3457 = vmatprep.subr.mxu0 0.0
    %3458 = vmatpush1.msra.mxu0 %v112
    %3459 = vmatprep.subr.mxu0 0.0
    %3460 = vmatpush1.msra.mxu0 %v113
    %3461 = vmatprep.subr.mxu0 0.0
    %3462 = vmatpush1.msra.mxu0 %v114
    %3463 = vmatprep.subr.mxu0 0.0
    %3464 = vmatpush1.msra.mxu0 %v115
    %3465 = vmatprep.subr.mxu0 0.0
    %3466 = vmatpush1.msra.mxu0 0.0
    %3467 = vmatprep.subr.mxu0 0.0
    %3468 = vmatpush1.msra.mxu0 0.0
    %3469 = vmatprep.subr.mxu0 0.0
    %3470 = vmatpush1.msra.mxu0 0.0
    %3471 = vmatprep.subr.mxu0 0.0
    %3472 = vmatpush1.msra.mxu0 0.0
    %3473 = vmatprep.subr.mxu0 0.0
    %3474 = vmatpush1.msra.mxu0 0.0
    %3475 = vmatprep.subr.mxu0 0.0
    %3476 = vmatpush1.msra.mxu0 0.0
    %3477 = vmatprep.subr.mxu0 0.0
    %3478 = vmatpush1.msra.mxu0 0.0
    %3479 = vmatprep.subr.mxu0 0.0
    %3480 = vmatpush1.msra.mxu0 0.0
    %3481 = vmatprep.subr.mxu0 0.0
    %3482 = vmatpush1.msra.mxu0 0.0
    %3483 = vmatprep.subr.mxu0 0.0
    %3484 = vmatpush1.msra.mxu0 0.0
    %3485 = vmatprep.subr.mxu0 0.0
    %3486 = vmatpush1.msra.mxu0 0.0
    %3487 = vmatprep.subr.mxu0 0.0
    %3488 = vmatpush1.msra.mxu0 0.0
    %3489 = vmatprep.subr.mxu0 0.0
    %3490 = vmatpush1.msra.mxu0 0.0
    %3491 = vmatprep.subr.mxu0 0.0
    %3492 = vmatpush1.msra.mxu0 0.0
    %3493 = vmatprep.subr.mxu0 0.0
    %3494 = vmatpush1.msra.mxu0 0.0
    %3495 = vmatprep.subr.mxu0 0.0
    %3496 = vmatpush1.msra.mxu0 0.0
    %3497 = vmatprep.subr.mxu0 0.0
    %3498 = vmatpush1.msra.mxu0 0.0
    %3499 = vmatprep.subr.mxu0 0.0
    %3500 = vmatpush1.msra.mxu0 0.0
    %3501 = vmatprep.subr.mxu0 0.0
    %3502 = vmatpush1.msra.mxu0 0.0
    %3503 = vmatprep.subr.mxu0 0.0
    %3504 = vmatpush1.msra.mxu0 0.0
    %3505 = vmatprep.subr.mxu0 0.0
    %3506 = vmatpush1.msra.mxu0 0.0
    %3507 = vmatprep.subr.mxu0 0.0
    %3508 = vmatpush1.msra.mxu0 0.0
    %3509 = vmatprep.subr.mxu0 0.0
    %3510 = vmatpush1.msra.mxu0 0.0
    %3511 = vmatprep.subr.mxu0 0.0
    %3512 = vmatpush1.msra.mxu0 0.0
    %3513 = vmatprep.subr.mxu0 0.0
    %3514 = vmatpush1.msra.mxu0 0.0
    %3515 = vmatprep.subr.mxu0 0.0
    %3516 = vmatpush1.msra.mxu0 0.0
    %3517 = vmatprep.subr.mxu0 0.0
    %3518 = vmatpush1.msra.mxu0 0.0
    %3519 = vmatprep.subr.mxu0 0.0
    %3520 = vmatpush1.msra.mxu0 0.0
    %3521 = vmatprep.mubr.f32.mxu0 0.0
    %3522 = vmatmul.mubr.f32.gmra.mrb[0].mxu0 %v3455
    %v3523 = vpop.f32.mrb[0].mxu0
    %v3524 = vadd.f32 %v3449, %v3523
    %v3525 = vpop.f32.mrb[0].mxu0
    %3526 = vdwg.mxu0
    %3527 = vmatprep.subr.mxu0 0.0
    %3528 = vmatpush1.msra.mxu0 %v124
    %3529 = vmatprep.subr.mxu0 0.0
    %3530 = vmatpush1.msra.mxu0 %v125
    %3531 = vmatprep.subr.mxu0 0.0
    %3532 = vmatpush1.msra.mxu0 %v126
    %3533 = vmatprep.subr.mxu0 0.0
    %3534 = vmatpush1.msra.mxu0 %v127
    %3535 = vmatprep.subr.mxu0 0.0
    %3536 = vmatpush1.msra.mxu0 0.0
    %3537 = vmatprep.subr.mxu0 0.0
    %3538 = vmatpush1.msra.mxu0 0.0
    %3539 = vmatprep.subr.mxu0 0.0
    %3540 = vmatpush1.msra.mxu0 0.0
    %3541 = vmatprep.subr.mxu0 0.0
    %3542 = vmatpush1.msra.mxu0 0.0
    %3543 = vmatprep.subr.mxu0 0.0
    %3544 = vmatpush1.msra.mxu0 0.0
    %3545 = vmatprep.subr.mxu0 0.0
    %3546 = vmatpush1.msra.mxu0 0.0
    %3547 = vmatprep.subr.mxu0 0.0
    %3548 = vmatpush1.msra.mxu0 0.0
    %3549 = vmatprep.subr.mxu0 0.0
    %3550 = vmatpush1.msra.mxu0 0.0
    %3551 = vmatprep.subr.mxu0 0.0
    %3552 = vmatpush1.msra.mxu0 0.0
    %3553 = vmatprep.subr.mxu0 0.0
    %3554 = vmatpush1.msra.mxu0 0.0
    %3555 = vmatprep.subr.mxu0 0.0
    %3556 = vmatpush1.msra.mxu0 0.0
    %3557 = vmatprep.subr.mxu0 0.0
    %3558 = vmatpush1.msra.mxu0 0.0
    %3559 = vmatprep.subr.mxu0 0.0
    %3560 = vmatpush1.msra.mxu0 0.0
    %3561 = vmatprep.subr.mxu0 0.0
    %3562 = vmatpush1.msra.mxu0 0.0
    %3563 = vmatprep.subr.mxu0 0.0
    %3564 = vmatpush1.msra.mxu0 0.0
    %3565 = vmatprep.subr.mxu0 0.0
    %3566 = vmatpush1.msra.mxu0 0.0
    %3567 = vmatprep.subr.mxu0 0.0
    %3568 = vmatpush1.msra.mxu0 0.0
    %3569 = vmatprep.subr.mxu0 0.0
    %3570 = vmatpush1.msra.mxu0 0.0
    %3571 = vmatprep.subr.mxu0 0.0
    %3572 = vmatpush1.msra.mxu0 0.0
    %3573 = vmatprep.subr.mxu0 0.0
    %3574 = vmatpush1.msra.mxu0 0.0
    %3575 = vmatprep.subr.mxu0 0.0
    %3576 = vmatpush1.msra.mxu0 0.0
    %3577 = vmatprep.subr.mxu0 0.0
    %3578 = vmatpush1.msra.mxu0 0.0
    %3579 = vmatprep.subr.mxu0 0.0
    %3580 = vmatpush1.msra.mxu0 0.0
    %3581 = vmatprep.subr.mxu0 0.0
    %3582 = vmatpush1.msra.mxu0 0.0
    %3583 = vmatprep.subr.mxu0 0.0
    %3584 = vmatpush1.msra.mxu0 0.0
    %3585 = vmatprep.subr.mxu0 0.0
    %3586 = vmatpush1.msra.mxu0 0.0
    %3587 = vmatprep.subr.mxu0 0.0
    %3588 = vmatpush1.msra.mxu0 0.0
    %3589 = vmatprep.subr.mxu0 0.0
    %3590 = vmatpush1.msra.mxu0 0.0
    %3591 = vmatprep.mubr.f32.mxu0 0.0
    %3592 = vmatmul.mubr.f32.gmra.mrb[0].mxu0 %v3213
    %v3593 = vpop.f32.mrb[0].mxu0
    %v3594 = vadd.f32 0.0, %v3593
    %v3595 = vpop.f32.mrb[0].mxu0
    %3596 = vdwg.mxu0
    %v3597 = vadd.f32 %v3524, %v3594
    %v3598 = vadd.f32 %v3597, %v147
    %s3599 = scalar_lea.vmem [#allocation7], 10
    %3600 = vst.msk [vmem:[%s3599] sm:$0x3] %vm275, %v3598
    // Predicated region
    $region82: #{seq2seq_forward.3} parent=1 // pred_check
      _
    $region83: #{seq2seq_forward.3} parent=1 // pred_check_branch
      %3602 = sbr.rel (0) target = $region85
    $region84: #{seq2seq_forward.3} parent=1 // pred_region
      %s3604 = ssub.s32 192, 192
      %3605 = vsyncadd [#allocation3], %s3604
      %s3606 = sshll.u32 [#allocation7], 4
      %s3607 = int_to_ptr.vmem [resolvable:$true] %s3606
      %3612 = dma.vmem_to_hbm [thread:$0]  %s3607, 192, %s18, [#allocation3], 32, 32, 2
    $region85: #{seq2seq_forward.3} parent=1 // pred_fallthru
      _
    // Predicated region
    $region86: #{seq2seq_forward.3} parent=1 // pred_check
      _
    $region87: #{seq2seq_forward.3} parent=1 // pred_check_branch
      %3614 = sbr.rel (0) target = $region89
    $region88: #{seq2seq_forward.3} parent=1 // pred_region
      %3615 = dma.done [#allocation3], 192
    $region89: #{seq2seq_forward.3} parent=1 // pred_fallthru
      _
    %3616 = vsyncpa [#allocation3], 1
    %3617 = vsyncpa [#allocation4], 1
    %3618 = vsyncpa [#allocation6], 1

// kernel: seq2seq_forward.2
$region0: #{seq2seq_forward.2}
  #allocation0 [shape = 'u32[]', space=smem, size = 0x4, offset = 0x4, fixed_abs, tag = 'smem constant byte address 0x4 - core index']
  #allocation1 [shape = 'u32[144,128]{1,0:T(1,128)}', space=vmem, size = 0x12000, scoped, tag = 'internal scratch']
  %s0 = inlined_call_operand.vmem [shape: s32[8,2], index: 0, kind: input, shape index: {}]
  %s1 = inlined_call_operand.vmem [shape: s32[2,1], index: 1, kind: input, shape index: {}]
  %s2 = inlined_call_operand.vmem [shape: f32[32,192], index: 2, kind: input, shape index: {}]
  %s3 = inlined_call_operand.hbm [shape: f32[1,192], index: 3, kind: input, shape index: {}]
  %s4 = inlined_call_operand.hbm [shape: f32[32,96], index: 4, kind: input, shape index: {}]
  %s5 = inlined_call_operand.vmem [shape: f32[1,96], index: 5, kind: input, shape index: {}]
  %s6 = inlined_call_operand.hbm [shape: f32[32,96], index: 6, kind: input, shape index: {}]
  %s7 = inlined_call_operand.hbm [shape: f32[1,96], index: 7, kind: input, shape index: {}]
  %s8 = inlined_call_operand.vmem [shape: f32[32,32], index: 8, kind: input, shape index: {}]
  %s9 = inlined_call_operand.hbm [shape: f32[32,32], index: 9, kind: input, shape index: {}]
  %s10 = inlined_call_operand.vmem [shape: f32[1,32], index: 10, kind: input, shape index: {}]
  %s11 = inlined_call_operand.vmem [shape: f32[2,8,64], index: 11, kind: output, shape index: {0}]
  %s12 = inlined_call_operand.vmem [shape: f32[2,32], index: 12, kind: output, shape index: {1}]
  %13 = xla_tuple %s11, %s12
  %s14 = sld [smem:[#allocation0]]
  $region86: #{seq2seq_forward.2} parent=0
    _
  %s16 = ssub.s32 1, %s14
  %s17 = scalar_select 0, %s16, %s14
  $region1: #{seq2seq_forward.2} parent=0
    #allocation2 [shape = 'u8[4096]{0}', space=smem, size = 0x1000, scoped, tag = 'input window, operand 0, single buffered']
    #allocation3 [shape = 's32[1]{0}', space=sflag, size = 0x4, scoped, tag = 'scoped memory for seq2seq_forward.2']
    #allocation4 [shape = 's32[1]{0}', space=sflag, size = 0x4, scoped, tag = 'scoped memory for seq2seq_forward.2']
    #allocation5 [shape = 'u8[1024]{0}', space=vmem, size = 0x400, scoped, tag = 'input window, operand 3, single buffered']
    #allocation6 [shape = 'u8[16384]{0}', space=vmem, size = 0x4000, scoped, tag = 'input window, operand 4, single buffered']
    #allocation7 [shape = 's32[1]{0}', space=sflag, size = 0x4, scoped, tag = 'scoped memory for seq2seq_forward.2']
    #allocation8 [shape = 'u8[16384]{0}', space=vmem, size = 0x4000, scoped, tag = 'input window, operand 6, single buffered']
    #allocation9 [shape = 'u8[512]{0}', space=vmem, size = 0x400, scoped, tag = 'input window, operand 7, single buffered']
    #allocation10 [shape = 's32[1]{0}', space=sflag, size = 0x4, scoped, tag = 'scoped memory for seq2seq_forward.2']
    #allocation11 [shape = 'u8[16384]{0}', space=vmem, size = 0x4000, scoped, tag = 'input window, operand 9, single buffered']
    %18 = vsyncpa [#allocation4], 0
    %19 = vsyncpa [#allocation3], 0
    %20 = vsyncpa [#allocation7], 0
    %21 = vsyncpa [#allocation10], 0
    // Predicated region
    $region2: #{seq2seq_forward.2} parent=1 // pred_check
      _
    $region3: #{seq2seq_forward.2} parent=1 // pred_check_branch
      %23 = sbr.rel (0) target = $region5
    $region4: #{seq2seq_forward.2} parent=1 // pred_region
      %s25 = ssub.s32 128, 128
      %26 = vsyncadd [#allocation4], %s25
      %s28 = sshll.u32 %s0, 4
      %s29 = int_to_ptr.vmem [resolvable:$true] %s28
      %31 = dma.vmem_to_smem %s29, 128, [#allocation2], [#allocation4]
    $region5: #{seq2seq_forward.2} parent=1 // pred_fallthru
      _
    // Predicated region
    $region6: #{seq2seq_forward.2} parent=1 // pred_check
      _
    $region7: #{seq2seq_forward.2} parent=1 // pred_check_branch
      %33 = sbr.rel (0) target = $region9
    $region8: #{seq2seq_forward.2} parent=1 // pred_region
      _
    $region9: #{seq2seq_forward.2} parent=1 // pred_fallthru
      _
    // Predicated region
    $region10: #{seq2seq_forward.2} parent=1 // pred_check
      _
    $region11: #{seq2seq_forward.2} parent=1 // pred_check_branch
      %35 = sbr.rel (0) target = $region13
    $region12: #{seq2seq_forward.2} parent=1 // pred_region
      _
    $region13: #{seq2seq_forward.2} parent=1 // pred_fallthru
      _
    // Predicated region
    $region14: #{seq2seq_forward.2} parent=1 // pred_check
      _
    $region15: #{seq2seq_forward.2} parent=1 // pred_check_branch
      %37 = sbr.rel (0) target = $region17
    $region16: #{seq2seq_forward.2} parent=1 // pred_region
      %s39 = ssub.s32 32, 32
      %40 = vsyncadd [#allocation3], %s39
      %s42 = sshll.u32 [#allocation5], 4
      %s43 = int_to_ptr.vmem [resolvable:$true] %s42
      %45 = dma.hbm_to_vmem [thread:$0]  %s3, 32, %s43, [#allocation3]
    $region17: #{seq2seq_forward.2} parent=1 // pred_fallthru
      _
    // Predicated region
    $region18: #{seq2seq_forward.2} parent=1 // pred_check
      _
    $region19: #{seq2seq_forward.2} parent=1 // pred_check_branch
      %47 = sbr.rel (0) target = $region21
    $region20: #{seq2seq_forward.2} parent=1 // pred_region
      %s49 = ssub.s32 512, 512
      %50 = vsyncadd [#allocation7], %s49
      %s51 = sshll.u32 [#allocation6], 4
      %s52 = int_to_ptr.vmem [resolvable:$true] %s51
      %57 = dma.hbm_to_vmem [thread:$0]  %s4, 512, %s52, [#allocation7], 128, 128, 8
    $region21: #{seq2seq_forward.2} parent=1 // pred_fallthru
      _
    // Predicated region
    $region22: #{seq2seq_forward.2} parent=1 // pred_check
      _
    $region23: #{seq2seq_forward.2} parent=1 // pred_check_branch
      %59 = sbr.rel (0) target = $region25
    $region24: #{seq2seq_forward.2} parent=1 // pred_region
      _
    $region25: #{seq2seq_forward.2} parent=1 // pred_fallthru
      _
    // Predicated region
    $region26: #{seq2seq_forward.2} parent=1 // pred_check
      _
    $region27: #{seq2seq_forward.2} parent=1 // pred_check_branch
      %61 = sbr.rel (0) target = $region29
    $region28: #{seq2seq_forward.2} parent=1 // pred_region
      %s63 = ssub.s32 512, 512
      %64 = vsyncadd [#allocation7], %s63
      %s65 = sshll.u32 [#allocation8], 4
      %s66 = int_to_ptr.vmem [resolvable:$true] %s65
      %71 = dma.hbm_to_vmem [thread:$0]  %s6, 512, %s66, [#allocation7], 128, 128, 8
    $region29: #{seq2seq_forward.2} parent=1 // pred_fallthru
      _
    // Predicated region
    $region30: #{seq2seq_forward.2} parent=1 // pred_check
      _
    $region31: #{seq2seq_forward.2} parent=1 // pred_check_branch
      %73 = sbr.rel (0) target = $region33
    $region32: #{seq2seq_forward.2} parent=1 // pred_region
      %s75 = ssub.s32 16, 16
      %76 = vsyncadd [#allocation10], %s75
      %s78 = sshll.u32 [#allocation9], 4
      %s79 = int_to_ptr.vmem [resolvable:$true] %s78
      %81 = dma.hbm_to_vmem [thread:$0]  %s7, 16, %s79, [#allocation10]
    $region33: #{seq2seq_forward.2} parent=1 // pred_fallthru
      _
    // Predicated region
    $region34: #{seq2seq_forward.2} parent=1 // pred_check
      _
    $region35: #{seq2seq_forward.2} parent=1 // pred_check_branch
      %83 = sbr.rel (0) target = $region37
    $region36: #{seq2seq_forward.2} parent=1 // pred_region
      _
    $region37: #{seq2seq_forward.2} parent=1 // pred_fallthru
      _
    // Predicated region
    $region38: #{seq2seq_forward.2} parent=1 // pred_check
      _
    $region39: #{seq2seq_forward.2} parent=1 // pred_check_branch
      %85 = sbr.rel (0) target = $region41
    $region40: #{seq2seq_forward.2} parent=1 // pred_region
      %s87 = ssub.s32 512, 512
      %88 = vsyncadd [#allocation10], %s87
      %s89 = sshll.u32 [#allocation11], 4
      %s90 = int_to_ptr.vmem [resolvable:$true] %s89
      %95 = dma.hbm_to_vmem [thread:$0]  %s9, 512, %s90, [#allocation10], 128, 128, 8
    $region41: #{seq2seq_forward.2} parent=1 // pred_fallthru
      _
    // Predicated region
    $region42: #{seq2seq_forward.2} parent=1 // pred_check
      _
    $region43: #{seq2seq_forward.2} parent=1 // pred_check_branch
      %97 = sbr.rel (0) target = $region45
    $region44: #{seq2seq_forward.2} parent=1 // pred_region
      _
    $region45: #{seq2seq_forward.2} parent=1 // pred_fallthru
      _
    // Predicated region
    $region46: #{seq2seq_forward.2} parent=1 // pred_check
      _
    $region47: #{seq2seq_forward.2} parent=1 // pred_check_branch
      %99 = sbr.rel (0) target = $region49
    $region48: #{seq2seq_forward.2} parent=1 // pred_region
      %100 = dma.done [#allocation4], 128
    $region49: #{seq2seq_forward.2} parent=1 // pred_fallthru
      _
    // Predicated region
    $region50: #{seq2seq_forward.2} parent=1 // pred_check
      _
    $region51: #{seq2seq_forward.2} parent=1 // pred_check_branch
      %102 = sbr.rel (0) target = $region53
    $region52: #{seq2seq_forward.2} parent=1 // pred_region
      %103 = dma.done [#allocation3], 32
    $region53: #{seq2seq_forward.2} parent=1 // pred_fallthru
      _
    // Predicated region
    $region54: #{seq2seq_forward.2} parent=1 // pred_check
      _
    $region55: #{seq2seq_forward.2} parent=1 // pred_check_branch
      %105 = sbr.rel (0) target = $region57
    $region56: #{seq2seq_forward.2} parent=1 // pred_region
      %106 = dma.done [#allocation7], 512
    $region57: #{seq2seq_forward.2} parent=1 // pred_fallthru
      _
    // Predicated region
    $region58: #{seq2seq_forward.2} parent=1 // pred_check
      _
    $region59: #{seq2seq_forward.2} parent=1 // pred_check_branch
      %108 = sbr.rel (0) target = $region61
    $region60: #{seq2seq_forward.2} parent=1 // pred_region
      %109 = dma.done [#allocation7], 512
    $region61: #{seq2seq_forward.2} parent=1 // pred_fallthru
      _
    // Predicated region
    $region62: #{seq2seq_forward.2} parent=1 // pred_check
      _
    $region63: #{seq2seq_forward.2} parent=1 // pred_check_branch
      %111 = sbr.rel (0) target = $region65
    $region64: #{seq2seq_forward.2} parent=1 // pred_region
      %112 = dma.done [#allocation10], 16
    $region65: #{seq2seq_forward.2} parent=1 // pred_fallthru
      _
    // Predicated region
    $region66: #{seq2seq_forward.2} parent=1 // pred_check
      _
    $region67: #{seq2seq_forward.2} parent=1 // pred_check_branch
      %114 = sbr.rel (0) target = $region69
    $region68: #{seq2seq_forward.2} parent=1 // pred_region
      %115 = dma.done [#allocation10], 512
    $region69: #{seq2seq_forward.2} parent=1 // pred_fallthru
      _
    %116 = sfence
    %v117 = vlaneseq
    %v118 = vshrl.u32 %v117, 7
    %v119 = vadd.s32 %v118, 8
    %v120 = vlaneseq
    %v121 = vand.u32 %v120, 127
    %s122 = sld [smem:[#allocation2]]
    %vm123 = vcmp.eq.s32.totalorder %v118, 0
    %vm124 = vcmp.eq.s32.totalorder %v119, 0
    %v125 = vstv %s122
    %vm126 = vcmp.eq.s32.totalorder %v121, %v125
    %vm127 = vmand %vm123, %vm126
    %vm128 = vmand %vm124, %vm126
    %v129 = vsel %vm127, 1, 0
    %v130 = vsel %vm128, 1, 0
    %v131 = vcvt.s32.f32 %v129
    %v132 = vcvt.s32.f32 %v130
    %v133 = vadd.f32 %v131, 0.0
    %v134 = vadd.f32 %v132, 0.0
    %s135 = sld [smem:[#allocation2 + $0x1]]
    %vm136 = vcmp.eq.s32.totalorder %v118, 1
    %vm137 = vcmp.eq.s32.totalorder %v119, 1
    %v138 = vstv %s135
    %vm139 = vcmp.eq.s32.totalorder %v121, %v138
    %vm140 = vmand %vm136, %vm139
    %vm141 = vmand %vm137, %vm139
    %v142 = vsel %vm140, 1, 0
    %v143 = vsel %vm141, 1, 0
    %v144 = vcvt.s32.f32 %v142
    %v145 = vcvt.s32.f32 %v143
    %v146 = vadd.f32 %v133, %v144
    %v147 = vadd.f32 %v134, %v145
    %s148 = sld [smem:[#allocation2 + $0x80]]
    %vm149 = vcmp.eq.s32.totalorder %v118, 2
    %vm150 = vcmp.eq.s32.totalorder %v119, 2
    %v151 = vstv %s148
    %vm152 = vcmp.eq.s32.totalorder %v121, %v151
    %vm153 = vmand %vm149, %vm152
    %vm154 = vmand %vm150, %vm152
    %v155 = vsel %vm153, 1, 0
    %v156 = vsel %vm154, 1, 0
    %v157 = vcvt.s32.f32 %v155
    %v158 = vcvt.s32.f32 %v156
    %v159 = vadd.f32 %v146, %v157
    %v160 = vadd.f32 %v147, %v158
    %s161 = sld [smem:[#allocation2 + $0x81]]
    %vm162 = vcmp.eq.s32.totalorder %v118, 3
    %vm163 = vcmp.eq.s32.totalorder %v119, 3
    %v164 = vstv %s161
    %vm165 = vcmp.eq.s32.totalorder %v121, %v164
    %vm166 = vmand %vm162, %vm165
    %vm167 = vmand %vm163, %vm165
    %v168 = vsel %vm166, 1, 0
    %v169 = vsel %vm167, 1, 0
    %v170 = vcvt.s32.f32 %v168
    %v171 = vcvt.s32.f32 %v169
    %v172 = vadd.f32 %v159, %v170
    %v173 = vadd.f32 %v160, %v171
    %s174 = sld [smem:[#allocation2 + $0x100]]
    %vm175 = vcmp.eq.s32.totalorder %v118, 4
    %vm176 = vcmp.eq.s32.totalorder %v119, 4
    %v177 = vstv %s174
    %vm178 = vcmp.eq.s32.totalorder %v121, %v177
    %vm179 = vmand %vm175, %vm178
    %vm180 = vmand %vm176, %vm178
    %v181 = vsel %vm179, 1, 0
    %v182 = vsel %vm180, 1, 0
    %v183 = vcvt.s32.f32 %v181
    %v184 = vcvt.s32.f32 %v182
    %v185 = vadd.f32 %v172, %v183
    %v186 = vadd.f32 %v173, %v184
    %s187 = sld [smem:[#allocation2 + $0x101]]
    %vm188 = vcmp.eq.s32.totalorder %v118, 5
    %vm189 = vcmp.eq.s32.totalorder %v119, 5
    %v190 = vstv %s187
    %vm191 = vcmp.eq.s32.totalorder %v121, %v190
    %vm192 = vmand %vm188, %vm191
    %vm193 = vmand %vm189, %vm191
    %v194 = vsel %vm192, 1, 0
    %v195 = vsel %vm193, 1, 0
    %v196 = vcvt.s32.f32 %v194
    %v197 = vcvt.s32.f32 %v195
    %v198 = vadd.f32 %v185, %v196
    %v199 = vadd.f32 %v186, %v197
    %s200 = sld [smem:[#allocation2 + $0x180]]
    %vm201 = vcmp.eq.s32.totalorder %v118, 6
    %vm202 = vcmp.eq.s32.totalorder %v119, 6
    %v203 = vstv %s200
    %vm204 = vcmp.eq.s32.totalorder %v121, %v203
    %vm205 = vmand %vm201, %vm204
    %vm206 = vmand %vm202, %vm204
    %v207 = vsel %vm205, 1, 0
    %v208 = vsel %vm206, 1, 0
    %v209 = vcvt.s32.f32 %v207
    %v210 = vcvt.s32.f32 %v208
    %v211 = vadd.f32 %v198, %v209
    %v212 = vadd.f32 %v199, %v210
    %s213 = sld [smem:[#allocation2 + $0x181]]
    %vm214 = vcmp.eq.s32.totalorder %v118, 7
    %vm215 = vcmp.eq.s32.totalorder %v119, 7
    %v216 = vstv %s213
    %vm217 = vcmp.eq.s32.totalorder %v121, %v216
    %vm218 = vmand %vm214, %vm217
    %vm219 = vmand %vm215, %vm217
    %v220 = vsel %vm218, 1, 0
    %v221 = vsel %vm219, 1, 0
    %v222 = vcvt.s32.f32 %v220
    %v223 = vcvt.s32.f32 %v221
    %v224 = vadd.f32 %v211, %v222
    %v225 = vadd.f32 %v212, %v223
    %s226 = sld [smem:[#allocation2 + $0x200]]
    %vm227 = vcmp.eq.s32.totalorder %v118, 8
    %vm228 = vcmp.eq.s32.totalorder %v119, 8
    %v229 = vstv %s226
    %vm230 = vcmp.eq.s32.totalorder %v121, %v229
    %vm231 = vmand %vm227, %vm230
    %vm232 = vmand %vm228, %vm230
    %v233 = vsel %vm231, 1, 0
    %v234 = vsel %vm232, 1, 0
    %v235 = vcvt.s32.f32 %v233
    %v236 = vcvt.s32.f32 %v234
    %v237 = vadd.f32 %v224, %v235
    %v238 = vadd.f32 %v225, %v236
    %s239 = sld [smem:[#allocation2 + $0x201]]
    %vm240 = vcmp.eq.s32.totalorder %v118, 9
    %vm241 = vcmp.eq.s32.totalorder %v119, 9
    %v242 = vstv %s239
    %vm243 = vcmp.eq.s32.totalorder %v121, %v242
    %vm244 = vmand %vm240, %vm243
    %vm245 = vmand %vm241, %vm243
    %v246 = vsel %vm244, 1, 0
    %v247 = vsel %vm245, 1, 0
    %v248 = vcvt.s32.f32 %v246
    %v249 = vcvt.s32.f32 %v247
    %v250 = vadd.f32 %v237, %v248
    %v251 = vadd.f32 %v238, %v249
    %s252 = sld [smem:[#allocation2 + $0x280]]
    %vm253 = vcmp.eq.s32.totalorder %v118, 10
    %vm254 = vcmp.eq.s32.totalorder %v119, 10
    %v255 = vstv %s252
    %vm256 = vcmp.eq.s32.totalorder %v121, %v255
    %vm257 = vmand %vm253, %vm256
    %vm258 = vmand %vm254, %vm256
    %v259 = vsel %vm257, 1, 0
    %v260 = vsel %vm258, 1, 0
    %v261 = vcvt.s32.f32 %v259
    %v262 = vcvt.s32.f32 %v260
    %v263 = vadd.f32 %v250, %v261
    %v264 = vadd.f32 %v251, %v262
    %s265 = sld [smem:[#allocation2 + $0x281]]
    %vm266 = vcmp.eq.s32.totalorder %v118, 11
    %vm267 = vcmp.eq.s32.totalorder %v119, 11
    %v268 = vstv %s265
    %vm269 = vcmp.eq.s32.totalorder %v121, %v268
    %vm270 = vmand %vm266, %vm269
    %vm271 = vmand %vm267, %vm269
    %v272 = vsel %vm270, 1, 0
    %v273 = vsel %vm271, 1, 0
    %v274 = vcvt.s32.f32 %v272
    %v275 = vcvt.s32.f32 %v273
    %v276 = vadd.f32 %v263, %v274
    %v277 = vadd.f32 %v264, %v275
    %s278 = sld [smem:[#allocation2 + $0x300]]
    %vm279 = vcmp.eq.s32.totalorder %v118, 12
    %vm280 = vcmp.eq.s32.totalorder %v119, 12
    %v281 = vstv %s278
    %vm282 = vcmp.eq.s32.totalorder %v121, %v281
    %vm283 = vmand %vm279, %vm282
    %vm284 = vmand %vm280, %vm282
    %v285 = vsel %vm283, 1, 0
    %v286 = vsel %vm284, 1, 0
    %v287 = vcvt.s32.f32 %v285
    %v288 = vcvt.s32.f32 %v286
    %v289 = vadd.f32 %v276, %v287
    %v290 = vadd.f32 %v277, %v288
    %s291 = sld [smem:[#allocation2 + $0x301]]
    %vm292 = vcmp.eq.s32.totalorder %v118, 13
    %vm293 = vcmp.eq.s32.totalorder %v119, 13
    %v294 = vstv %s291
    %vm295 = vcmp.eq.s32.totalorder %v121, %v294
    %vm296 = vmand %vm292, %vm295
    %vm297 = vmand %vm293, %vm295
    %v298 = vsel %vm296, 1, 0
    %v299 = vsel %vm297, 1, 0
    %v300 = vcvt.s32.f32 %v298
    %v301 = vcvt.s32.f32 %v299
    %v302 = vadd.f32 %v289, %v300
    %v303 = vadd.f32 %v290, %v301
    %s304 = sld [smem:[#allocation2 + $0x380]]
    %vm305 = vcmp.eq.s32.totalorder %v118, 14
    %vm306 = vcmp.eq.s32.totalorder %v119, 14
    %v307 = vstv %s304
    %vm308 = vcmp.eq.s32.totalorder %v121, %v307
    %vm309 = vmand %vm305, %vm308
    %vm310 = vmand %vm306, %vm308
    %v311 = vsel %vm309, 1, 0
    %v312 = vsel %vm310, 1, 0
    %v313 = vcvt.s32.f32 %v311
    %v314 = vcvt.s32.f32 %v312
    %v315 = vadd.f32 %v302, %v313
    %v316 = vadd.f32 %v303, %v314
    %s317 = sld [smem:[#allocation2 + $0x381]]
    %vm318 = vcmp.eq.s32.totalorder %v118, 15
    %vm319 = vcmp.eq.s32.totalorder %v119, 15
    %v320 = vstv %s317
    %vm321 = vcmp.eq.s32.totalorder %v121, %v320
    %vm322 = vmand %vm318, %vm321
    %vm323 = vmand %vm319, %vm321
    %v324 = vsel %vm322, 1, 0
    %v325 = vsel %vm323, 1, 0
    %v326 = vcvt.s32.f32 %v324
    %v327 = vcvt.s32.f32 %v325
    %v328 = vadd.f32 %v315, %v326
    %v329 = vadd.f32 %v316, %v327
    %v330 = vld [vmem:[%s2] sm:$0xff]
    %v331 = vld [vmem:[%s2 + $0x8] sm:$0xff]
    %v332 = vld [vmem:[%s2 + $0x10] sm:$0xff]
    %v333 = vld [vmem:[%s2 + $0x18] sm:$0xff]
    %v334 = vld [vmem:[%s2 + $0x20] sm:$0xff]
    %v335 = vld [vmem:[%s2 + $0x28] sm:$0xff]
    %v336 = vld [vmem:[%s2 + $0x30] sm:$0xff]
    %v337 = vld [vmem:[%s2 + $0x38] sm:$0xff]
    %v338 = vld [vmem:[#allocation5] sm:$0x3]
    %v340 = vlaneseq
    %v341 = vshrl.u32 %v340, 7
    %v342 = vsub.s32 0, %v341
    %v343 = vrot.slane %v338, %v342
    %v344 = vlaneseq
    %v345 = vshrl.u32 %v344, 7
    %v346 = vsub.s32 1, %v345
    %v347 = vrot.slane %v338, %v346
    %vm350 = vcmask 261120
    %v352 = vsel %vm350, %v328, 0
    %v355 = vsel %vm350, %v329, 0
    %357 = vmatprep.subr.mxu0 %v331
    %358 = vmatpush1.msra.mxu0 %v330
    %359 = vmatprep.subr.mxu0 %v333
    %360 = vmatpush1.msra.mxu0 %v332
    %361 = vmatprep.subr.mxu0 %v335
    %362 = vmatpush1.msra.mxu0 %v334
    %363 = vmatprep.subr.mxu0 %v337
    %364 = vmatpush1.msra.mxu0 %v336
    %365 = vmatprep.subr.mxu0 0.0
    %366 = vmatpush1.msra.mxu0 0.0
    %367 = vmatprep.subr.mxu0 0.0
    %368 = vmatpush1.msra.mxu0 0.0
    %369 = vmatprep.subr.mxu0 0.0
    %370 = vmatpush1.msra.mxu0 0.0
    %371 = vmatprep.subr.mxu0 0.0
    %372 = vmatpush1.msra.mxu0 0.0
    %373 = vmatprep.subr.mxu0 0.0
    %374 = vmatpush1.msra.mxu0 0.0
    %375 = vmatprep.subr.mxu0 0.0
    %376 = vmatpush1.msra.mxu0 0.0
    %377 = vmatprep.subr.mxu0 0.0
    %378 = vmatpush1.msra.mxu0 0.0
    %379 = vmatprep.subr.mxu0 0.0
    %380 = vmatpush1.msra.mxu0 0.0
    %381 = vmatprep.subr.mxu0 0.0
    %382 = vmatpush1.msra.mxu0 0.0
    %383 = vmatprep.subr.mxu0 0.0
    %384 = vmatpush1.msra.mxu0 0.0
    %385 = vmatprep.subr.mxu0 0.0
    %386 = vmatpush1.msra.mxu0 0.0
    %387 = vmatprep.subr.mxu0 0.0
    %388 = vmatpush1.msra.mxu0 0.0
    %389 = vmatprep.subr.mxu0 0.0
    %390 = vmatpush1.msra.mxu0 0.0
    %391 = vmatprep.subr.mxu0 0.0
    %392 = vmatpush1.msra.mxu0 0.0
    %393 = vmatprep.subr.mxu0 0.0
    %394 = vmatpush1.msra.mxu0 0.0
    %395 = vmatprep.subr.mxu0 0.0
    %396 = vmatpush1.msra.mxu0 0.0
    %397 = vmatprep.subr.mxu0 0.0
    %398 = vmatpush1.msra.mxu0 0.0
    %399 = vmatprep.subr.mxu0 0.0
    %400 = vmatpush1.msra.mxu0 0.0
    %401 = vmatprep.subr.mxu0 0.0
    %402 = vmatpush1.msra.mxu0 0.0
    %403 = vmatprep.subr.mxu0 0.0
    %404 = vmatpush1.msra.mxu0 0.0
    %405 = vmatprep.subr.mxu0 0.0
    %406 = vmatpush1.msra.mxu0 0.0
    %407 = vmatprep.subr.mxu0 0.0
    %408 = vmatpush1.msra.mxu0 0.0
    %409 = vmatprep.subr.mxu0 0.0
    %410 = vmatpush1.msra.mxu0 0.0
    %411 = vmatprep.subr.mxu0 0.0
    %412 = vmatpush1.msra.mxu0 0.0
    %413 = vmatprep.subr.mxu0 0.0
    %414 = vmatpush1.msra.mxu0 0.0
    %415 = vmatprep.subr.mxu0 0.0
    %416 = vmatpush1.msra.mxu0 0.0
    %417 = vmatprep.subr.mxu0 0.0
    %418 = vmatpush1.msra.mxu0 0.0
    %419 = vmatprep.subr.mxu0 0.0
    %420 = vmatpush1.msra.mxu0 0.0
    %421 = vmatprep.mubr.f32.mxu0 0.0
    %422 = vmatmul.mubr.f32.gmra.mrb[0].mxu0 %v352
    %v423 = vpop.f32.mrb[0].mxu0
    %v424 = vadd.f32 %v343, %v423
    %v425 = vpop.f32.mrb[0].mxu0
    %v426 = vadd.f32 %v347, %v425
    %427 = vmatprep.mubr.f32.mxu0 0.0
    %428 = vmatmul.mubr.f32.gmra.mrb[0].mxu0 %v355
    %v429 = vpop.f32.mrb[0].mxu0
    %v430 = vadd.f32 %v343, %v429
    %v431 = vpop.f32.mrb[0].mxu0
    %v432 = vadd.f32 %v347, %v431
    %433 = vdwg.mxu0
    %v434 = vld [vmem:[%s1] sm:$0x3]
    %435 = vset.pattern.permute.xlu0 0
    %436 = vperm.xlu0 %435, %v434
    %v437 = vpop.permute.xlu0 %436
    %vm438 = vcmp.lt.s32.totalorder %v121, %v437
    %v439 = vsel %vm438, 1, 0
    %v440 = vcvt.s32.f32 %v439
    %v441 = vld [vmem:[#allocation6] sm:$0xff]
    %v442 = vld [vmem:[#allocation6 + $0x8] sm:$0xff]
    %v443 = vld [vmem:[#allocation6 + $0x10] sm:$0xff]
    %v444 = vld [vmem:[#allocation6 + $0x18] sm:$0xff]
    %v445 = vld [vmem:[#allocation8] sm:$0xff]
    %v446 = vld [vmem:[#allocation8 + $0x8] sm:$0xff]
    %v447 = vld [vmem:[#allocation8 + $0x10] sm:$0xff]
    %v448 = vld [vmem:[#allocation8 + $0x18] sm:$0xff]
    %v449 = vld [vmem:[%s5] sm:$0x1]
    %v451 = vlaneseq
    %v452 = vshrl.u32 %v451, 7
    %v453 = vsub.s32 0, %v452
    %v454 = vrot.slane %v449, %v453
    %v456 = vld [vmem:[#allocation9] sm:$0x1]
    %v458 = vlaneseq
    %v459 = vshrl.u32 %v458, 7
    %v460 = vsub.s32 0, %v459
    %v461 = vrot.slane %v456, %v460
    %v464 = vsel %vm350, 0.0, 0
    %466 = vmatprep.subr.mxu0 0.0
    %467 = vmatpush1.msra.mxu0 %v441
    %468 = vmatprep.subr.mxu0 0.0
    %469 = vmatpush1.msra.mxu0 %v442
    %470 = vmatprep.subr.mxu0 0.0
    %471 = vmatpush1.msra.mxu0 %v443
    %472 = vmatprep.subr.mxu0 0.0
    %473 = vmatpush1.msra.mxu0 %v444
    %474 = vmatprep.subr.mxu0 0.0
    %475 = vmatpush1.msra.mxu0 0.0
    %476 = vmatprep.subr.mxu0 0.0
    %477 = vmatpush1.msra.mxu0 0.0
    %478 = vmatprep.subr.mxu0 0.0
    %479 = vmatpush1.msra.mxu0 0.0
    %480 = vmatprep.subr.mxu0 0.0
    %481 = vmatpush1.msra.mxu0 0.0
    %482 = vmatprep.subr.mxu0 0.0
    %483 = vmatpush1.msra.mxu0 0.0
    %484 = vmatprep.subr.mxu0 0.0
    %485 = vmatpush1.msra.mxu0 0.0
    %486 = vmatprep.subr.mxu0 0.0
    %487 = vmatpush1.msra.mxu0 0.0
    %488 = vmatprep.subr.mxu0 0.0
    %489 = vmatpush1.msra.mxu0 0.0
    %490 = vmatprep.subr.mxu0 0.0
    %491 = vmatpush1.msra.mxu0 0.0
    %492 = vmatprep.subr.mxu0 0.0
    %493 = vmatpush1.msra.mxu0 0.0
    %494 = vmatprep.subr.mxu0 0.0
    %495 = vmatpush1.msra.mxu0 0.0
    %496 = vmatprep.subr.mxu0 0.0
    %497 = vmatpush1.msra.mxu0 0.0
    %498 = vmatprep.subr.mxu0 0.0
    %499 = vmatpush1.msra.mxu0 0.0
    %500 = vmatprep.subr.mxu0 0.0
    %501 = vmatpush1.msra.mxu0 0.0
    %502 = vmatprep.subr.mxu0 0.0
    %503 = vmatpush1.msra.mxu0 0.0
    %504 = vmatprep.subr.mxu0 0.0
    %505 = vmatpush1.msra.mxu0 0.0
    %506 = vmatprep.subr.mxu0 0.0
    %507 = vmatpush1.msra.mxu0 0.0
    %508 = vmatprep.subr.mxu0 0.0
    %509 = vmatpush1.msra.mxu0 0.0
    %510 = vmatprep.subr.mxu0 0.0
    %511 = vmatpush1.msra.mxu0 0.0
    %512 = vmatprep.subr.mxu0 0.0
    %513 = vmatpush1.msra.mxu0 0.0
    %514 = vmatprep.subr.mxu0 0.0
    %515 = vmatpush1.msra.mxu0 0.0
    %516 = vmatprep.subr.mxu0 0.0
    %517 = vmatpush1.msra.mxu0 0.0
    %518 = vmatprep.subr.mxu0 0.0
    %519 = vmatpush1.msra.mxu0 0.0
    %520 = vmatprep.subr.mxu0 0.0
    %521 = vmatpush1.msra.mxu0 0.0
    %522 = vmatprep.subr.mxu0 0.0
    %523 = vmatpush1.msra.mxu0 0.0
    %524 = vmatprep.subr.mxu0 0.0
    %525 = vmatpush1.msra.mxu0 0.0
    %526 = vmatprep.subr.mxu0 0.0
    %527 = vmatpush1.msra.mxu0 0.0
    %528 = vmatprep.subr.mxu0 0.0
    %529 = vmatpush1.msra.mxu0 0.0
    %530 = vmatprep.mubr.f32.mxu0 0.0
    %531 = vmatmul.mubr.f32.gmra.mrb[0].mxu0 %v464
    %v532 = vpop.f32.mrb[0].mxu0
    %v533 = vadd.f32 %v454, %v532
    %v534 = vpop.f32.mrb[0].mxu0
    %535 = vdwg.mxu0
    %v536 = vadd.f32 %v424, %v533
    %v537 = vxor.u32 %v536, 2147483648
    %v538 = vmul.f32 %v537, 1.442695
    %v539 = vpow.pop %v538
    %v540 = vadd.f32 %v539, 1.0
    %v541 = vrcp.pop %v540
    %v542 = vmul.f32 1.0, %v541
    %544 = vrot.lane.b32.xlu0 %v533, 64
    %v545 = vpop.permute.xlu0 %544
    %v547 = vmul.f32 %v542, %v545
    %549 = vrot.lane.b32.xlu0 %v547, 64
    %v550 = vpop.permute.xlu0 %549
    %v552 = vadd.f32 %v424, %v550
    %v553 = vtanh.pop %v552
    %v554 = vsub.f32 1.0, %v542
    %556 = vrot.lane.b32.xlu0 %v553, 96
    %v557 = vpop.permute.xlu0 %556
    %v559 = vmul.f32 %v554, %v557
    %v560 = vmul.f32 %v542, 0.0
    %v561 = vadd.f32 %v559, %v560
    %563 = vset.pattern.permute.xlu0 0
    %564 = vperm.xlu0 %563, %v440
    %v565 = vpop.permute.xlu0 %564
    %v567 = vmul.f32 %v565, %v561
    %v568 = vsub.f32 1.0, %v440
    %570 = vset.pattern.permute.xlu0 0
    %571 = vperm.xlu0 %570, %v568
    %v572 = vpop.permute.xlu0 %571
    %v574 = vmul.f32 %v572, 0.0
    %v575 = vadd.f32 %v567, %v574
    %v576 = vmul.f32 %v565, %v575
    %v579 = vunpack.c.l.s4 1966171168
    %v580 = vunpack.c.0.s8 %v579
    %v581 = vlaneseq
    %v582 = vshrl.u32 %v581, 7
    %v583 = vsub.s32 %v580, %v582
    %v584 = vrot.slane %v576, %v583
    %v585 = vcombine.high %v584, %v584
    %v587 = vunpack.c.l.s4 1966171168
    %v588 = vunpack.c.0.s8 %v587
    %v589 = vlaneseq
    %v590 = vshrl.u32 %v589, 7
    %v591 = vsub.s32 %v588, %v590
    %v592 = vrot.slane %v584, %v591
    %v594 = vunpack.c.l.s4 1966171168
    %v595 = vunpack.c.0.s8 %v594
    %v596 = vlaneseq
    %v597 = vshrl.u32 %v596, 7
    %v598 = vsub.s32 %v595, %v597
    %v599 = vrot.slane %v585, %v598
    %v600 = vlaneseq
    %v601 = vshrl.u32 %v600, 7
    %v602 = vsub.s32 0, %v601
    %v603 = vrot.slane %v592, %v602
    %v604 = vlaneseq
    %v605 = vshrl.u32 %v604, 7
    %v606 = vsub.s32 0, %v605
    %v607 = vrot.slane %v599, %v606
    %608 = vrot.lane.b32.xlu0 %v603, 96
    %v609 = vpop.permute.xlu0 %608
    %610 = vrot.lane.b32.xlu0 %v607, 96
    %v611 = vpop.permute.xlu0 %610
    %vm614 = vcmask 253952
    %615 = vst.msk [vmem:[%s11] sm:$0x1] %vm614, %v609
    %616 = vst.msk [vmem:[%s11 + $0x8] sm:$0x1] %vm614, %v611
    %617 = vmatprep.subr.mxu0 0.0
    %618 = vmatpush1.msra.mxu0 %v445
    %619 = vmatprep.subr.mxu0 0.0
    %620 = vmatpush1.msra.mxu0 %v446
    %621 = vmatprep.subr.mxu0 0.0
    %622 = vmatpush1.msra.mxu0 %v447
    %623 = vmatprep.subr.mxu0 0.0
    %624 = vmatpush1.msra.mxu0 %v448
    %625 = vmatprep.subr.mxu0 0.0
    %626 = vmatpush1.msra.mxu0 0.0
    %627 = vmatprep.subr.mxu0 0.0
    %628 = vmatpush1.msra.mxu0 0.0
    %629 = vmatprep.subr.mxu0 0.0
    %630 = vmatpush1.msra.mxu0 0.0
    %631 = vmatprep.subr.mxu0 0.0
    %632 = vmatpush1.msra.mxu0 0.0
    %633 = vmatprep.subr.mxu0 0.0
    %634 = vmatpush1.msra.mxu0 0.0
    %635 = vmatprep.subr.mxu0 0.0
    %636 = vmatpush1.msra.mxu0 0.0
    %637 = vmatprep.subr.mxu0 0.0
    %638 = vmatpush1.msra.mxu0 0.0
    %639 = vmatprep.subr.mxu0 0.0
    %640 = vmatpush1.msra.mxu0 0.0
    %641 = vmatprep.subr.mxu0 0.0
    %642 = vmatpush1.msra.mxu0 0.0
    %643 = vmatprep.subr.mxu0 0.0
    %644 = vmatpush1.msra.mxu0 0.0
    %645 = vmatprep.subr.mxu0 0.0
    %646 = vmatpush1.msra.mxu0 0.0
    %647 = vmatprep.subr.mxu0 0.0
    %648 = vmatpush1.msra.mxu0 0.0
    %649 = vmatprep.subr.mxu0 0.0
    %650 = vmatpush1.msra.mxu0 0.0
    %651 = vmatprep.subr.mxu0 0.0
    %652 = vmatpush1.msra.mxu0 0.0
    %653 = vmatprep.subr.mxu0 0.0
    %654 = vmatpush1.msra.mxu0 0.0
    %655 = vmatprep.subr.mxu0 0.0
    %656 = vmatpush1.msra.mxu0 0.0
    %657 = vmatprep.subr.mxu0 0.0
    %658 = vmatpush1.msra.mxu0 0.0
    %659 = vmatprep.subr.mxu0 0.0
    %660 = vmatpush1.msra.mxu0 0.0
    %661 = vmatprep.subr.mxu0 0.0
    %662 = vmatpush1.msra.mxu0 0.0
    %663 = vmatprep.subr.mxu0 0.0
    %664 = vmatpush1.msra.mxu0 0.0
    %665 = vmatprep.subr.mxu0 0.0
    %666 = vmatpush1.msra.mxu0 0.0
    %667 = vmatprep.subr.mxu0 0.0
    %668 = vmatpush1.msra.mxu0 0.0
    %669 = vmatprep.subr.mxu0 0.0
    %670 = vmatpush1.msra.mxu0 0.0
    %671 = vmatprep.subr.mxu0 0.0
    %672 = vmatpush1.msra.mxu0 0.0
    %673 = vmatprep.subr.mxu0 0.0
    %674 = vmatpush1.msra.mxu0 0.0
    %675 = vmatprep.subr.mxu0 0.0
    %676 = vmatpush1.msra.mxu0 0.0
    %677 = vmatprep.subr.mxu0 0.0
    %678 = vmatpush1.msra.mxu0 0.0
    %679 = vmatprep.subr.mxu0 0.0
    %680 = vmatpush1.msra.mxu0 0.0
    %681 = vmatprep.mubr.f32.mxu0 0.0
    %682 = vmatmul.mubr.f32.gmra.mrb[0].mxu0 %v464
    %v683 = vpop.f32.mrb[0].mxu0
    %v684 = vadd.f32 %v461, %v683
    %v685 = vpop.f32.mrb[0].mxu0
    %686 = vdwg.mxu0
    %v688 = vrot.slane %v684, 2
    %689 = vrot.lane.b32.xlu0 %v688, 96
    %v690 = vpop.permute.xlu0 %689
    %v692 = vadd.f32 %v430, %v690
    %v693 = vxor.u32 %v692, 2147483648
    %v694 = vmul.f32 %v693, 1.442695
    %v695 = vpow.pop %v694
    %v696 = vadd.f32 %v695, 1.0
    %v697 = vrcp.pop %v696
    %v698 = vmul.f32 1.0, %v697
    %v699 = vadd.f32 %v432, %v690
    %v700 = vxor.u32 %v699, 2147483648
    %v701 = vmul.f32 %v700, 1.442695
    %v702 = vpow.pop %v701
    %v703 = vadd.f32 %v702, 1.0
    %v704 = vrcp.pop %v703
    %v705 = vmul.f32 1.0, %v704
    %706 = vrot.lane.b32.xlu0 %v688, 32
    %v707 = vpop.permute.xlu0 %706
    %v709 = vmul.f32 %v698, %v707
    %711 = vrot.lane.b32.xlu0 %v709, 64
    %v712 = vpop.permute.xlu0 %711
    %v714 = vadd.f32 %v432, %v712
    %v715 = vtanh.pop %v714
    %v716 = vsub.f32 1.0, %v705
    %718 = vrot.lane.b32.xlu0 %v715, 96
    %v719 = vpop.permute.xlu0 %718
    %v721 = vmul.f32 %v716, %v719
    %v722 = vmul.f32 %v705, 0.0
    %v723 = vadd.f32 %v721, %v722
    %724 = vset.pattern.permute.xlu0 7
    %725 = vperm.xlu0 %724, %v440
    %v726 = vpop.permute.xlu0 %725
    %v729 = vrot.slane %v723, 6
    %v731 = vmul.f32 %v726, %v729
    %732 = vset.pattern.permute.xlu0 7
    %733 = vperm.xlu0 %732, %v568
    %v734 = vpop.permute.xlu0 %733
    %v736 = vmul.f32 %v734, 0.0
    %v737 = vadd.f32 %v731, %v736
    %v738 = vmul.f32 %v726, %v737
    %v741 = vunpack.c.l.s4 1966171168
    %v742 = vunpack.c.0.s8 %v741
    %v743 = vlaneseq
    %v744 = vshrl.u32 %v743, 7
    %v745 = vsub.s32 %v742, %v744
    %v746 = vrot.slane %v738, %v745
    %v747 = vcombine.high %v746, %v746
    %v749 = vunpack.c.l.s4 1966171168
    %v750 = vunpack.c.0.s8 %v749
    %v751 = vlaneseq
    %v752 = vshrl.u32 %v751, 7
    %v753 = vsub.s32 %v750, %v752
    %v754 = vrot.slane %v746, %v753
    %v756 = vunpack.c.l.s4 1966171168
    %v757 = vunpack.c.0.s8 %v756
    %v758 = vlaneseq
    %v759 = vshrl.u32 %v758, 7
    %v760 = vsub.s32 %v757, %v759
    %v761 = vrot.slane %v747, %v760
    %v762 = vlaneseq
    %v763 = vshrl.u32 %v762, 7
    %v764 = vsub.s32 0, %v763
    %v765 = vrot.slane %v754, %v764
    %v766 = vlaneseq
    %v767 = vshrl.u32 %v766, 7
    %v768 = vsub.s32 0, %v767
    %v769 = vrot.slane %v761, %v768
    %770 = vrot.lane.b32.xlu0 %v765, 32
    %v771 = vpop.permute.xlu0 %770
    %772 = vrot.lane.b32.xlu0 %v769, 32
    %v773 = vpop.permute.xlu0 %772
    %vm776 = vcmask 516352
    %777 = vst.msk [vmem:[%s11 + $0x7] sm:$0x1] %vm776, %v771
    %778 = vst.msk [vmem:[%s11 + $0xf] sm:$0x1] %vm776, %v773
    %780 = vrot.lane.b32.xlu0 %v575, 96
    %v781 = vpop.permute.xlu0 %780
    %v782 = vsel %vm350, %v781, 0
    %784 = vmatprep.subr.mxu0 0.0
    %785 = vmatpush1.msra.mxu0 %v441
    %786 = vmatprep.subr.mxu0 0.0
    %787 = vmatpush1.msra.mxu0 %v442
    %788 = vmatprep.subr.mxu0 0.0
    %789 = vmatpush1.msra.mxu0 %v443
    %790 = vmatprep.subr.mxu0 0.0
    %791 = vmatpush1.msra.mxu0 %v444
    %792 = vmatprep.subr.mxu0 0.0
    %793 = vmatpush1.msra.mxu0 0.0
    %794 = vmatprep.subr.mxu0 0.0
    %795 = vmatpush1.msra.mxu0 0.0
    %796 = vmatprep.subr.mxu0 0.0
    %797 = vmatpush1.msra.mxu0 0.0
    %798 = vmatprep.subr.mxu0 0.0
    %799 = vmatpush1.msra.mxu0 0.0
    %800 = vmatprep.subr.mxu0 0.0
    %801 = vmatpush1.msra.mxu0 0.0
    %802 = vmatprep.subr.mxu0 0.0
    %803 = vmatpush1.msra.mxu0 0.0
    %804 = vmatprep.subr.mxu0 0.0
    %805 = vmatpush1.msra.mxu0 0.0
    %806 = vmatprep.subr.mxu0 0.0
    %807 = vmatpush1.msra.mxu0 0.0
    %808 = vmatprep.subr.mxu0 0.0
    %809 = vmatpush1.msra.mxu0 0.0
    %810 = vmatprep.subr.mxu0 0.0
    %811 = vmatpush1.msra.mxu0 0.0
    %812 = vmatprep.subr.mxu0 0.0
    %813 = vmatpush1.msra.mxu0 0.0
    %814 = vmatprep.subr.mxu0 0.0
    %815 = vmatpush1.msra.mxu0 0.0
    %816 = vmatprep.subr.mxu0 0.0
    %817 = vmatpush1.msra.mxu0 0.0
    %818 = vmatprep.subr.mxu0 0.0
    %819 = vmatpush1.msra.mxu0 0.0
    %820 = vmatprep.subr.mxu0 0.0
    %821 = vmatpush1.msra.mxu0 0.0
    %822 = vmatprep.subr.mxu0 0.0
    %823 = vmatpush1.msra.mxu0 0.0
    %824 = vmatprep.subr.mxu0 0.0
    %825 = vmatpush1.msra.mxu0 0.0
    %826 = vmatprep.subr.mxu0 0.0
    %827 = vmatpush1.msra.mxu0 0.0
    %828 = vmatprep.subr.mxu0 0.0
    %829 = vmatpush1.msra.mxu0 0.0
    %830 = vmatprep.subr.mxu0 0.0
    %831 = vmatpush1.msra.mxu0 0.0
    %832 = vmatprep.subr.mxu0 0.0
    %833 = vmatpush1.msra.mxu0 0.0
    %834 = vmatprep.subr.mxu0 0.0
    %835 = vmatpush1.msra.mxu0 0.0
    %836 = vmatprep.subr.mxu0 0.0
    %837 = vmatpush1.msra.mxu0 0.0
    %838 = vmatprep.subr.mxu0 0.0
    %839 = vmatpush1.msra.mxu0 0.0
    %840 = vmatprep.subr.mxu0 0.0
    %841 = vmatpush1.msra.mxu0 0.0
    %842 = vmatprep.subr.mxu0 0.0
    %843 = vmatpush1.msra.mxu0 0.0
    %844 = vmatprep.subr.mxu0 0.0
    %845 = vmatpush1.msra.mxu0 0.0
    %846 = vmatprep.subr.mxu0 0.0
    %847 = vmatpush1.msra.mxu0 0.0
    %848 = vmatprep.mubr.f32.mxu0 0.0
    %849 = vmatmul.mubr.f32.gmra.mrb[0].mxu0 %v782
    %v850 = vpop.f32.mrb[0].mxu0
    %v851 = vadd.f32 %v454, %v850
    %v852 = vpop.f32.mrb[0].mxu0
    %853 = vdwg.mxu0
    %v855 = vrot.slane %v851, 6
    %v857 = vadd.f32 %v424, %v855
    %v858 = vxor.u32 %v857, 2147483648
    %v859 = vmul.f32 %v858, 1.442695
    %v860 = vpow.pop %v859
    %v861 = vadd.f32 %v860, 1.0
    %v862 = vrcp.pop %v861
    %v863 = vmul.f32 1.0, %v862
    %864 = vrot.lane.b32.xlu0 %v855, 64
    %v865 = vpop.permute.xlu0 %864
    %v867 = vmul.f32 %v863, %v865
    %869 = vrot.lane.b32.xlu0 %v867, 64
    %v870 = vpop.permute.xlu0 %869
    %v872 = vadd.f32 %v424, %v870
    %v873 = vtanh.pop %v872
    %v874 = vsub.f32 1.0, %v863
    %876 = vrot.lane.b32.xlu0 %v873, 96
    %v877 = vpop.permute.xlu0 %876
    %v879 = vmul.f32 %v874, %v877
    %v880 = vrot.slane %v575, 6
    %v882 = vmul.f32 %v863, %v880
    %v883 = vadd.f32 %v879, %v882
    %884 = vset.pattern.permute.xlu0 1
    %885 = vperm.xlu0 %884, %v440
    %v886 = vpop.permute.xlu0 %885
    %v889 = vrot.slane %v883, 2
    %890 = vrot.lane.b32.xlu0 %v889, 96
    %v891 = vpop.permute.xlu0 %890
    %v893 = vmul.f32 %v886, %v891
    %894 = vset.pattern.permute.xlu0 1
    %895 = vperm.xlu0 %894, %v568
    %v896 = vpop.permute.xlu0 %895
    %v898 = vmul.f32 %v896, %v575
    %900 = vrot.lane.b32.xlu0 %v898, 96
    %v901 = vpop.permute.xlu0 %900
    %v903 = vadd.f32 %v893, %v901
    %v904 = vmul.f32 %v886, %v903
    %v907 = vunpack.c.l.s4 1966171168
    %v908 = vunpack.c.0.s8 %v907
    %v909 = vlaneseq
    %v910 = vshrl.u32 %v909, 7
    %v911 = vsub.s32 %v908, %v910
    %v912 = vrot.slane %v904, %v911
    %v913 = vcombine.high %v912, %v912
    %v915 = vunpack.c.l.s4 1966171168
    %v916 = vunpack.c.0.s8 %v915
    %v917 = vlaneseq
    %v918 = vshrl.u32 %v917, 7
    %v919 = vsub.s32 %v916, %v918
    %v920 = vrot.slane %v912, %v919
    %v922 = vunpack.c.l.s4 1966171168
    %v923 = vunpack.c.0.s8 %v922
    %v924 = vlaneseq
    %v925 = vshrl.u32 %v924, 7
    %v926 = vsub.s32 %v923, %v925
    %v927 = vrot.slane %v913, %v926
    %930 = vst.msk [vmem:[%s11 + $0x1] sm:$0x1] %vm614, %v920
    %931 = vst.msk [vmem:[%s11 + $0x9] sm:$0x1] %vm614, %v927
    %v933 = vsel %vm350, %v737, 0
    %935 = vmatprep.subr.mxu0 0.0
    %936 = vmatpush1.msra.mxu0 %v445
    %937 = vmatprep.subr.mxu0 0.0
    %938 = vmatpush1.msra.mxu0 %v446
    %939 = vmatprep.subr.mxu0 0.0
    %940 = vmatpush1.msra.mxu0 %v447
    %941 = vmatprep.subr.mxu0 0.0
    %942 = vmatpush1.msra.mxu0 %v448
    %943 = vmatprep.subr.mxu0 0.0
    %944 = vmatpush1.msra.mxu0 0.0
    %945 = vmatprep.subr.mxu0 0.0
    %946 = vmatpush1.msra.mxu0 0.0
    %947 = vmatprep.subr.mxu0 0.0
    %948 = vmatpush1.msra.mxu0 0.0
    %949 = vmatprep.subr.mxu0 0.0
    %950 = vmatpush1.msra.mxu0 0.0
    %951 = vmatprep.subr.mxu0 0.0
    %952 = vmatpush1.msra.mxu0 0.0
    %953 = vmatprep.subr.mxu0 0.0
    %954 = vmatpush1.msra.mxu0 0.0
    %955 = vmatprep.subr.mxu0 0.0
    %956 = vmatpush1.msra.mxu0 0.0
    %957 = vmatprep.subr.mxu0 0.0
    %958 = vmatpush1.msra.mxu0 0.0
    %959 = vmatprep.subr.mxu0 0.0
    %960 = vmatpush1.msra.mxu0 0.0
    %961 = vmatprep.subr.mxu0 0.0
    %962 = vmatpush1.msra.mxu0 0.0
    %963 = vmatprep.subr.mxu0 0.0
    %964 = vmatpush1.msra.mxu0 0.0
    %965 = vmatprep.subr.mxu0 0.0
    %966 = vmatpush1.msra.mxu0 0.0
    %967 = vmatprep.subr.mxu0 0.0
    %968 = vmatpush1.msra.mxu0 0.0
    %969 = vmatprep.subr.mxu0 0.0
    %970 = vmatpush1.msra.mxu0 0.0
    %971 = vmatprep.subr.mxu0 0.0
    %972 = vmatpush1.msra.mxu0 0.0
    %973 = vmatprep.subr.mxu0 0.0
    %974 = vmatpush1.msra.mxu0 0.0
    %975 = vmatprep.subr.mxu0 0.0
    %976 = vmatpush1.msra.mxu0 0.0
    %977 = vmatprep.subr.mxu0 0.0
    %978 = vmatpush1.msra.mxu0 0.0
    %979 = vmatprep.subr.mxu0 0.0
    %980 = vmatpush1.msra.mxu0 0.0
    %981 = vmatprep.subr.mxu0 0.0
    %982 = vmatpush1.msra.mxu0 0.0
    %983 = vmatprep.subr.mxu0 0.0
    %984 = vmatpush1.msra.mxu0 0.0
    %985 = vmatprep.subr.mxu0 0.0
    %986 = vmatpush1.msra.mxu0 0.0
    %987 = vmatprep.subr.mxu0 0.0
    %988 = vmatpush1.msra.mxu0 0.0
    %989 = vmatprep.subr.mxu0 0.0
    %990 = vmatpush1.msra.mxu0 0.0
    %991 = vmatprep.subr.mxu0 0.0
    %992 = vmatpush1.msra.mxu0 0.0
    %993 = vmatprep.subr.mxu0 0.0
    %994 = vmatpush1.msra.mxu0 0.0
    %995 = vmatprep.subr.mxu0 0.0
    %996 = vmatpush1.msra.mxu0 0.0
    %997 = vmatprep.subr.mxu0 0.0
    %998 = vmatpush1.msra.mxu0 0.0
    %999 = vmatprep.mubr.f32.mxu0 0.0
    %1000 = vmatmul.mubr.f32.gmra.mrb[0].mxu0 %v933
    %v1001 = vpop.f32.mrb[0].mxu0
    %v1002 = vadd.f32 %v461, %v1001
    %v1003 = vpop.f32.mrb[0].mxu0
    %1004 = vdwg.mxu0
    %v1006 = vrot.slane %v1002, 4
    %1007 = vrot.lane.b32.xlu0 %v1006, 96
    %v1008 = vpop.permute.xlu0 %1007
    %v1010 = vadd.f32 %v430, %v1008
    %v1011 = vxor.u32 %v1010, 2147483648
    %v1012 = vmul.f32 %v1011, 1.442695
    %v1013 = vpow.pop %v1012
    %v1014 = vadd.f32 %v1013, 1.0
    %v1015 = vrcp.pop %v1014
    %v1016 = vmul.f32 1.0, %v1015
    %v1017 = vadd.f32 %v432, %v1008
    %v1018 = vxor.u32 %v1017, 2147483648
    %v1019 = vmul.f32 %v1018, 1.442695
    %v1020 = vpow.pop %v1019
    %v1021 = vadd.f32 %v1020, 1.0
    %v1022 = vrcp.pop %v1021
    %v1023 = vmul.f32 1.0, %v1022
    %1024 = vrot.lane.b32.xlu0 %v1006, 32
    %v1025 = vpop.permute.xlu0 %1024
    %v1027 = vmul.f32 %v1016, %v1025
    %1029 = vrot.lane.b32.xlu0 %v1027, 64
    %v1030 = vpop.permute.xlu0 %1029
    %v1032 = vadd.f32 %v432, %v1030
    %v1033 = vtanh.pop %v1032
    %v1034 = vsub.f32 1.0, %v1023
    %1036 = vrot.lane.b32.xlu0 %v1033, 96
    %v1037 = vpop.permute.xlu0 %1036
    %v1039 = vmul.f32 %v1034, %v1037
    %v1040 = vrot.slane %v737, 4
    %v1042 = vmul.f32 %v1023, %v1040
    %v1043 = vadd.f32 %v1039, %v1042
    %1044 = vset.pattern.permute.xlu0 6
    %1045 = vperm.xlu0 %1044, %v440
    %v1046 = vpop.permute.xlu0 %1045
    %v1049 = vrot.slane %v1043, 4
    %v1051 = vmul.f32 %v1046, %v1049
    %1052 = vset.pattern.permute.xlu0 6
    %1053 = vperm.xlu0 %1052, %v568
    %v1054 = vpop.permute.xlu0 %1053
    %v1056 = vmul.f32 %v1054, %v737
    %v1057 = vadd.f32 %v1051, %v1056
    %v1058 = vmul.f32 %v1046, %v1057
    %v1061 = vunpack.c.l.s4 1966171168
    %v1062 = vunpack.c.0.s8 %v1061
    %v1063 = vlaneseq
    %v1064 = vshrl.u32 %v1063, 7
    %v1065 = vsub.s32 %v1062, %v1064
    %v1066 = vrot.slane %v1058, %v1065
    %v1067 = vcombine.high %v1066, %v1066
    %v1069 = vunpack.c.l.s4 1966171168
    %v1070 = vunpack.c.0.s8 %v1069
    %v1071 = vlaneseq
    %v1072 = vshrl.u32 %v1071, 7
    %v1073 = vsub.s32 %v1070, %v1072
    %v1074 = vrot.slane %v1066, %v1073
    %v1076 = vunpack.c.l.s4 1966171168
    %v1077 = vunpack.c.0.s8 %v1076
    %v1078 = vlaneseq
    %v1079 = vshrl.u32 %v1078, 7
    %v1080 = vsub.s32 %v1077, %v1079
    %v1081 = vrot.slane %v1067, %v1080
    %v1082 = vlaneseq
    %v1083 = vshrl.u32 %v1082, 7
    %v1084 = vsub.s32 0, %v1083
    %v1085 = vrot.slane %v1074, %v1084
    %v1086 = vlaneseq
    %v1087 = vshrl.u32 %v1086, 7
    %v1088 = vsub.s32 0, %v1087
    %v1089 = vrot.slane %v1081, %v1088
    %1090 = vrot.lane.b32.xlu0 %v1085, 32
    %v1091 = vpop.permute.xlu0 %1090
    %1092 = vrot.lane.b32.xlu0 %v1089, 32
    %v1093 = vpop.permute.xlu0 %1092
    %1096 = vst.msk [vmem:[%s11 + $0x6] sm:$0x1] %vm776, %v1091
    %1097 = vst.msk [vmem:[%s11 + $0xe] sm:$0x1] %vm776, %v1093
    %v1099 = vsel %vm350, %v903, 0
    %1101 = vmatprep.subr.mxu0 0.0
    %1102 = vmatpush1.msra.mxu0 %v441
    %1103 = vmatprep.subr.mxu0 0.0
    %1104 = vmatpush1.msra.mxu0 %v442
    %1105 = vmatprep.subr.mxu0 0.0
    %1106 = vmatpush1.msra.mxu0 %v443
    %1107 = vmatprep.subr.mxu0 0.0
    %1108 = vmatpush1.msra.mxu0 %v444
    %1109 = vmatprep.subr.mxu0 0.0
    %1110 = vmatpush1.msra.mxu0 0.0
    %1111 = vmatprep.subr.mxu0 0.0
    %1112 = vmatpush1.msra.mxu0 0.0
    %1113 = vmatprep.subr.mxu0 0.0
    %1114 = vmatpush1.msra.mxu0 0.0
    %1115 = vmatprep.subr.mxu0 0.0
    %1116 = vmatpush1.msra.mxu0 0.0
    %1117 = vmatprep.subr.mxu0 0.0
    %1118 = vmatpush1.msra.mxu0 0.0
    %1119 = vmatprep.subr.mxu0 0.0
    %1120 = vmatpush1.msra.mxu0 0.0
    %1121 = vmatprep.subr.mxu0 0.0
    %1122 = vmatpush1.msra.mxu0 0.0
    %1123 = vmatprep.subr.mxu0 0.0
    %1124 = vmatpush1.msra.mxu0 0.0
    %1125 = vmatprep.subr.mxu0 0.0
    %1126 = vmatpush1.msra.mxu0 0.0
    %1127 = vmatprep.subr.mxu0 0.0
    %1128 = vmatpush1.msra.mxu0 0.0
    %1129 = vmatprep.subr.mxu0 0.0
    %1130 = vmatpush1.msra.mxu0 0.0
    %1131 = vmatprep.subr.mxu0 0.0
    %1132 = vmatpush1.msra.mxu0 0.0
    %1133 = vmatprep.subr.mxu0 0.0
    %1134 = vmatpush1.msra.mxu0 0.0
    %1135 = vmatprep.subr.mxu0 0.0
    %1136 = vmatpush1.msra.mxu0 0.0
    %1137 = vmatprep.subr.mxu0 0.0
    %1138 = vmatpush1.msra.mxu0 0.0
    %1139 = vmatprep.subr.mxu0 0.0
    %1140 = vmatpush1.msra.mxu0 0.0
    %1141 = vmatprep.subr.mxu0 0.0
    %1142 = vmatpush1.msra.mxu0 0.0
    %1143 = vmatprep.subr.mxu0 0.0
    %1144 = vmatpush1.msra.mxu0 0.0
    %1145 = vmatprep.subr.mxu0 0.0
    %1146 = vmatpush1.msra.mxu0 0.0
    %1147 = vmatprep.subr.mxu0 0.0
    %1148 = vmatpush1.msra.mxu0 0.0
    %1149 = vmatprep.subr.mxu0 0.0
    %1150 = vmatpush1.msra.mxu0 0.0
    %1151 = vmatprep.subr.mxu0 0.0
    %1152 = vmatpush1.msra.mxu0 0.0
    %1153 = vmatprep.subr.mxu0 0.0
    %1154 = vmatpush1.msra.mxu0 0.0
    %1155 = vmatprep.subr.mxu0 0.0
    %1156 = vmatpush1.msra.mxu0 0.0
    %1157 = vmatprep.subr.mxu0 0.0
    %1158 = vmatpush1.msra.mxu0 0.0
    %1159 = vmatprep.subr.mxu0 0.0
    %1160 = vmatpush1.msra.mxu0 0.0
    %1161 = vmatprep.subr.mxu0 0.0
    %1162 = vmatpush1.msra.mxu0 0.0
    %1163 = vmatprep.subr.mxu0 0.0
    %1164 = vmatpush1.msra.mxu0 0.0
    %1165 = vmatprep.mubr.f32.mxu0 0.0
    %1166 = vmatmul.mubr.f32.gmra.mrb[0].mxu0 %v1099
    %v1167 = vpop.f32.mrb[0].mxu0
    %v1168 = vadd.f32 %v454, %v1167
    %v1169 = vpop.f32.mrb[0].mxu0
    %1170 = vdwg.mxu0
    %v1172 = vrot.slane %v1168, 4
    %v1174 = vadd.f32 %v424, %v1172
    %v1175 = vxor.u32 %v1174, 2147483648
    %v1176 = vmul.f32 %v1175, 1.442695
    %v1177 = vpow.pop %v1176
    %v1178 = vadd.f32 %v1177, 1.0
    %v1179 = vrcp.pop %v1178
    %v1180 = vmul.f32 1.0, %v1179
    %1181 = vrot.lane.b32.xlu0 %v1172, 64
    %v1182 = vpop.permute.xlu0 %1181
    %v1184 = vmul.f32 %v1180, %v1182
    %1186 = vrot.lane.b32.xlu0 %v1184, 64
    %v1187 = vpop.permute.xlu0 %1186
    %v1189 = vadd.f32 %v424, %v1187
    %v1190 = vtanh.pop %v1189
    %v1191 = vsub.f32 1.0, %v1180
    %1193 = vrot.lane.b32.xlu0 %v1190, 96
    %v1194 = vpop.permute.xlu0 %1193
    %v1196 = vmul.f32 %v1191, %v1194
    %v1197 = vrot.slane %v903, 4
    %1198 = vrot.lane.b32.xlu0 %v1197, 32
    %v1199 = vpop.permute.xlu0 %1198
    %v1201 = vmul.f32 %v1180, %v1199
    %v1202 = vadd.f32 %v1196, %v1201
    %1203 = vset.pattern.permute.xlu0 2
    %1204 = vperm.xlu0 %1203, %v440
    %v1205 = vpop.permute.xlu0 %1204
    %v1208 = vrot.slane %v1202, 4
    %1209 = vrot.lane.b32.xlu0 %v1208, 96
    %v1210 = vpop.permute.xlu0 %1209
    %v1212 = vmul.f32 %v1205, %v1210
    %1213 = vset.pattern.permute.xlu0 2
    %1214 = vperm.xlu0 %1213, %v568
    %v1215 = vpop.permute.xlu0 %1214
    %v1217 = vmul.f32 %v1215, %v903
    %v1218 = vadd.f32 %v1212, %v1217
    %v1219 = vmul.f32 %v1205, %v1218
    %v1222 = vunpack.c.l.s4 1966171168
    %v1223 = vunpack.c.0.s8 %v1222
    %v1224 = vlaneseq
    %v1225 = vshrl.u32 %v1224, 7
    %v1226 = vsub.s32 %v1223, %v1225
    %v1227 = vrot.slane %v1219, %v1226
    %v1228 = vcombine.high %v1227, %v1227
    %v1230 = vunpack.c.l.s4 1966171168
    %v1231 = vunpack.c.0.s8 %v1230
    %v1232 = vlaneseq
    %v1233 = vshrl.u32 %v1232, 7
    %v1234 = vsub.s32 %v1231, %v1233
    %v1235 = vrot.slane %v1227, %v1234
    %v1237 = vunpack.c.l.s4 1966171168
    %v1238 = vunpack.c.0.s8 %v1237
    %v1239 = vlaneseq
    %v1240 = vshrl.u32 %v1239, 7
    %v1241 = vsub.s32 %v1238, %v1240
    %v1242 = vrot.slane %v1228, %v1241
    %1245 = vst.msk [vmem:[%s11 + $0x2] sm:$0x1] %vm614, %v1235
    %1246 = vst.msk [vmem:[%s11 + $0xa] sm:$0x1] %vm614, %v1242
    %v1248 = vsel %vm350, %v1057, 0
    %1250 = vmatprep.subr.mxu0 0.0
    %1251 = vmatpush1.msra.mxu0 %v445
    %1252 = vmatprep.subr.mxu0 0.0
    %1253 = vmatpush1.msra.mxu0 %v446
    %1254 = vmatprep.subr.mxu0 0.0
    %1255 = vmatpush1.msra.mxu0 %v447
    %1256 = vmatprep.subr.mxu0 0.0
    %1257 = vmatpush1.msra.mxu0 %v448
    %1258 = vmatprep.subr.mxu0 0.0
    %1259 = vmatpush1.msra.mxu0 0.0
    %1260 = vmatprep.subr.mxu0 0.0
    %1261 = vmatpush1.msra.mxu0 0.0
    %1262 = vmatprep.subr.mxu0 0.0
    %1263 = vmatpush1.msra.mxu0 0.0
    %1264 = vmatprep.subr.mxu0 0.0
    %1265 = vmatpush1.msra.mxu0 0.0
    %1266 = vmatprep.subr.mxu0 0.0
    %1267 = vmatpush1.msra.mxu0 0.0
    %1268 = vmatprep.subr.mxu0 0.0
    %1269 = vmatpush1.msra.mxu0 0.0
    %1270 = vmatprep.subr.mxu0 0.0
    %1271 = vmatpush1.msra.mxu0 0.0
    %1272 = vmatprep.subr.mxu0 0.0
    %1273 = vmatpush1.msra.mxu0 0.0
    %1274 = vmatprep.subr.mxu0 0.0
    %1275 = vmatpush1.msra.mxu0 0.0
    %1276 = vmatprep.subr.mxu0 0.0
    %1277 = vmatpush1.msra.mxu0 0.0
    %1278 = vmatprep.subr.mxu0 0.0
    %1279 = vmatpush1.msra.mxu0 0.0
    %1280 = vmatprep.subr.mxu0 0.0
    %1281 = vmatpush1.msra.mxu0 0.0
    %1282 = vmatprep.subr.mxu0 0.0
    %1283 = vmatpush1.msra.mxu0 0.0
    %1284 = vmatprep.subr.mxu0 0.0
    %1285 = vmatpush1.msra.mxu0 0.0
    %1286 = vmatprep.subr.mxu0 0.0
    %1287 = vmatpush1.msra.mxu0 0.0
    %1288 = vmatprep.subr.mxu0 0.0
    %1289 = vmatpush1.msra.mxu0 0.0
    %1290 = vmatprep.subr.mxu0 0.0
    %1291 = vmatpush1.msra.mxu0 0.0
    %1292 = vmatprep.subr.mxu0 0.0
    %1293 = vmatpush1.msra.mxu0 0.0
    %1294 = vmatprep.subr.mxu0 0.0
    %1295 = vmatpush1.msra.mxu0 0.0
    %1296 = vmatprep.subr.mxu0 0.0
    %1297 = vmatpush1.msra.mxu0 0.0
    %1298 = vmatprep.subr.mxu0 0.0
    %1299 = vmatpush1.msra.mxu0 0.0
    %1300 = vmatprep.subr.mxu0 0.0
    %1301 = vmatpush1.msra.mxu0 0.0
    %1302 = vmatprep.subr.mxu0 0.0
    %1303 = vmatpush1.msra.mxu0 0.0
    %1304 = vmatprep.subr.mxu0 0.0
    %1305 = vmatpush1.msra.mxu0 0.0
    %1306 = vmatprep.subr.mxu0 0.0
    %1307 = vmatpush1.msra.mxu0 0.0
    %1308 = vmatprep.subr.mxu0 0.0
    %1309 = vmatpush1.msra.mxu0 0.0
    %1310 = vmatprep.subr.mxu0 0.0
    %1311 = vmatpush1.msra.mxu0 0.0
    %1312 = vmatprep.subr.mxu0 0.0
    %1313 = vmatpush1.msra.mxu0 0.0
    %1314 = vmatprep.mubr.f32.mxu0 0.0
    %1315 = vmatmul.mubr.f32.gmra.mrb[0].mxu0 %v1248
    %v1316 = vpop.f32.mrb[0].mxu0
    %v1317 = vadd.f32 %v461, %v1316
    %v1318 = vpop.f32.mrb[0].mxu0
    %1319 = vdwg.mxu0
    %v1321 = vrot.slane %v1317, 6
    %1322 = vrot.lane.b32.xlu0 %v1321, 96
    %v1323 = vpop.permute.xlu0 %1322
    %v1325 = vadd.f32 %v430, %v1323
    %v1326 = vxor.u32 %v1325, 2147483648
    %v1327 = vmul.f32 %v1326, 1.442695
    %v1328 = vpow.pop %v1327
    %v1329 = vadd.f32 %v1328, 1.0
    %v1330 = vrcp.pop %v1329
    %v1331 = vmul.f32 1.0, %v1330
    %v1332 = vadd.f32 %v432, %v1323
    %v1333 = vxor.u32 %v1332, 2147483648
    %v1334 = vmul.f32 %v1333, 1.442695
    %v1335 = vpow.pop %v1334
    %v1336 = vadd.f32 %v1335, 1.0
    %v1337 = vrcp.pop %v1336
    %v1338 = vmul.f32 1.0, %v1337
    %1339 = vrot.lane.b32.xlu0 %v1321, 32
    %v1340 = vpop.permute.xlu0 %1339
    %v1342 = vmul.f32 %v1331, %v1340
    %1344 = vrot.lane.b32.xlu0 %v1342, 64
    %v1345 = vpop.permute.xlu0 %1344
    %v1347 = vadd.f32 %v432, %v1345
    %v1348 = vtanh.pop %v1347
    %v1349 = vsub.f32 1.0, %v1338
    %1351 = vrot.lane.b32.xlu0 %v1348, 96
    %v1352 = vpop.permute.xlu0 %1351
    %v1354 = vmul.f32 %v1349, %v1352
    %v1355 = vrot.slane %v1057, 6
    %v1357 = vmul.f32 %v1338, %v1355
    %v1358 = vadd.f32 %v1354, %v1357
    %1359 = vset.pattern.permute.xlu0 5
    %1360 = vperm.xlu0 %1359, %v440
    %v1361 = vpop.permute.xlu0 %1360
    %v1364 = vrot.slane %v1358, 2
    %v1366 = vmul.f32 %v1361, %v1364
    %1367 = vset.pattern.permute.xlu0 5
    %1368 = vperm.xlu0 %1367, %v568
    %v1369 = vpop.permute.xlu0 %1368
    %v1371 = vmul.f32 %v1369, %v1057
    %v1372 = vadd.f32 %v1366, %v1371
    %v1373 = vmul.f32 %v1361, %v1372
    %v1376 = vunpack.c.l.s4 1966171168
    %v1377 = vunpack.c.0.s8 %v1376
    %v1378 = vlaneseq
    %v1379 = vshrl.u32 %v1378, 7
    %v1380 = vsub.s32 %v1377, %v1379
    %v1381 = vrot.slane %v1373, %v1380
    %v1382 = vcombine.high %v1381, %v1381
    %v1384 = vunpack.c.l.s4 1966171168
    %v1385 = vunpack.c.0.s8 %v1384
    %v1386 = vlaneseq
    %v1387 = vshrl.u32 %v1386, 7
    %v1388 = vsub.s32 %v1385, %v1387
    %v1389 = vrot.slane %v1381, %v1388
    %v1391 = vunpack.c.l.s4 1966171168
    %v1392 = vunpack.c.0.s8 %v1391
    %v1393 = vlaneseq
    %v1394 = vshrl.u32 %v1393, 7
    %v1395 = vsub.s32 %v1392, %v1394
    %v1396 = vrot.slane %v1382, %v1395
    %v1397 = vlaneseq
    %v1398 = vshrl.u32 %v1397, 7
    %v1399 = vsub.s32 0, %v1398
    %v1400 = vrot.slane %v1389, %v1399
    %v1401 = vlaneseq
    %v1402 = vshrl.u32 %v1401, 7
    %v1403 = vsub.s32 0, %v1402
    %v1404 = vrot.slane %v1396, %v1403
    %1405 = vrot.lane.b32.xlu0 %v1400, 32
    %v1406 = vpop.permute.xlu0 %1405
    %1407 = vrot.lane.b32.xlu0 %v1404, 32
    %v1408 = vpop.permute.xlu0 %1407
    %1411 = vst.msk [vmem:[%s11 + $0x5] sm:$0x1] %vm776, %v1406
    %1412 = vst.msk [vmem:[%s11 + $0xd] sm:$0x1] %vm776, %v1408
    %v1414 = vsel %vm350, %v1218, 0
    %1416 = vmatprep.subr.mxu0 0.0
    %1417 = vmatpush1.msra.mxu0 %v441
    %1418 = vmatprep.subr.mxu0 0.0
    %1419 = vmatpush1.msra.mxu0 %v442
    %1420 = vmatprep.subr.mxu0 0.0
    %1421 = vmatpush1.msra.mxu0 %v443
    %1422 = vmatprep.subr.mxu0 0.0
    %1423 = vmatpush1.msra.mxu0 %v444
    %1424 = vmatprep.subr.mxu0 0.0
    %1425 = vmatpush1.msra.mxu0 0.0
    %1426 = vmatprep.subr.mxu0 0.0
    %1427 = vmatpush1.msra.mxu0 0.0
    %1428 = vmatprep.subr.mxu0 0.0
    %1429 = vmatpush1.msra.mxu0 0.0
    %1430 = vmatprep.subr.mxu0 0.0
    %1431 = vmatpush1.msra.mxu0 0.0
    %1432 = vmatprep.subr.mxu0 0.0
    %1433 = vmatpush1.msra.mxu0 0.0
    %1434 = vmatprep.subr.mxu0 0.0
    %1435 = vmatpush1.msra.mxu0 0.0
    %1436 = vmatprep.subr.mxu0 0.0
    %1437 = vmatpush1.msra.mxu0 0.0
    %1438 = vmatprep.subr.mxu0 0.0
    %1439 = vmatpush1.msra.mxu0 0.0
    %1440 = vmatprep.subr.mxu0 0.0
    %1441 = vmatpush1.msra.mxu0 0.0
    %1442 = vmatprep.subr.mxu0 0.0
    %1443 = vmatpush1.msra.mxu0 0.0
    %1444 = vmatprep.subr.mxu0 0.0
    %1445 = vmatpush1.msra.mxu0 0.0
    %1446 = vmatprep.subr.mxu0 0.0
    %1447 = vmatpush1.msra.mxu0 0.0
    %1448 = vmatprep.subr.mxu0 0.0
    %1449 = vmatpush1.msra.mxu0 0.0
    %1450 = vmatprep.subr.mxu0 0.0
    %1451 = vmatpush1.msra.mxu0 0.0
    %1452 = vmatprep.subr.mxu0 0.0
    %1453 = vmatpush1.msra.mxu0 0.0
    %1454 = vmatprep.subr.mxu0 0.0
    %1455 = vmatpush1.msra.mxu0 0.0
    %1456 = vmatprep.subr.mxu0 0.0
    %1457 = vmatpush1.msra.mxu0 0.0
    %1458 = vmatprep.subr.mxu0 0.0
    %1459 = vmatpush1.msra.mxu0 0.0
    %1460 = vmatprep.subr.mxu0 0.0
    %1461 = vmatpush1.msra.mxu0 0.0
    %1462 = vmatprep.subr.mxu0 0.0
    %1463 = vmatpush1.msra.mxu0 0.0
    %1464 = vmatprep.subr.mxu0 0.0
    %1465 = vmatpush1.msra.mxu0 0.0
    %1466 = vmatprep.subr.mxu0 0.0
    %1467 = vmatpush1.msra.mxu0 0.0
    %1468 = vmatprep.subr.mxu0 0.0
    %1469 = vmatpush1.msra.mxu0 0.0
    %1470 = vmatprep.subr.mxu0 0.0
    %1471 = vmatpush1.msra.mxu0 0.0
    %1472 = vmatprep.subr.mxu0 0.0
    %1473 = vmatpush1.msra.mxu0 0.0
    %1474 = vmatprep.subr.mxu0 0.0
    %1475 = vmatpush1.msra.mxu0 0.0
    %1476 = vmatprep.subr.mxu0 0.0
    %1477 = vmatpush1.msra.mxu0 0.0
    %1478 = vmatprep.subr.mxu0 0.0
    %1479 = vmatpush1.msra.mxu0 0.0
    %1480 = vmatprep.mubr.f32.mxu0 0.0
    %1481 = vmatmul.mubr.f32.gmra.mrb[0].mxu0 %v1414
    %v1482 = vpop.f32.mrb[0].mxu0
    %v1483 = vadd.f32 %v454, %v1482
    %v1484 = vpop.f32.mrb[0].mxu0
    %1485 = vdwg.mxu0
    %v1487 = vrot.slane %v1483, 2
    %v1489 = vadd.f32 %v424, %v1487
    %v1490 = vxor.u32 %v1489, 2147483648
    %v1491 = vmul.f32 %v1490, 1.442695
    %v1492 = vpow.pop %v1491
    %v1493 = vadd.f32 %v1492, 1.0
    %v1494 = vrcp.pop %v1493
    %v1495 = vmul.f32 1.0, %v1494
    %1496 = vrot.lane.b32.xlu0 %v1487, 64
    %v1497 = vpop.permute.xlu0 %1496
    %v1499 = vmul.f32 %v1495, %v1497
    %1501 = vrot.lane.b32.xlu0 %v1499, 64
    %v1502 = vpop.permute.xlu0 %1501
    %v1504 = vadd.f32 %v424, %v1502
    %v1505 = vtanh.pop %v1504
    %v1506 = vsub.f32 1.0, %v1495
    %1508 = vrot.lane.b32.xlu0 %v1505, 96
    %v1509 = vpop.permute.xlu0 %1508
    %v1511 = vmul.f32 %v1506, %v1509
    %v1512 = vrot.slane %v1218, 2
    %1513 = vrot.lane.b32.xlu0 %v1512, 32
    %v1514 = vpop.permute.xlu0 %1513
    %v1516 = vmul.f32 %v1495, %v1514
    %v1517 = vadd.f32 %v1511, %v1516
    %1518 = vset.pattern.permute.xlu0 3
    %1519 = vperm.xlu0 %1518, %v440
    %v1520 = vpop.permute.xlu0 %1519
    %v1523 = vrot.slane %v1517, 6
    %1524 = vrot.lane.b32.xlu0 %v1523, 96
    %v1525 = vpop.permute.xlu0 %1524
    %v1527 = vmul.f32 %v1520, %v1525
    %1528 = vset.pattern.permute.xlu0 3
    %1529 = vperm.xlu0 %1528, %v568
    %v1530 = vpop.permute.xlu0 %1529
    %v1532 = vmul.f32 %v1530, %v1218
    %v1533 = vadd.f32 %v1527, %v1532
    %v1534 = vmul.f32 %v1520, %v1533
    %v1537 = vunpack.c.l.s4 1966171168
    %v1538 = vunpack.c.0.s8 %v1537
    %v1539 = vlaneseq
    %v1540 = vshrl.u32 %v1539, 7
    %v1541 = vsub.s32 %v1538, %v1540
    %v1542 = vrot.slane %v1534, %v1541
    %v1543 = vcombine.high %v1542, %v1542
    %v1545 = vunpack.c.l.s4 1966171168
    %v1546 = vunpack.c.0.s8 %v1545
    %v1547 = vlaneseq
    %v1548 = vshrl.u32 %v1547, 7
    %v1549 = vsub.s32 %v1546, %v1548
    %v1550 = vrot.slane %v1542, %v1549
    %v1552 = vunpack.c.l.s4 1966171168
    %v1553 = vunpack.c.0.s8 %v1552
    %v1554 = vlaneseq
    %v1555 = vshrl.u32 %v1554, 7
    %v1556 = vsub.s32 %v1553, %v1555
    %v1557 = vrot.slane %v1543, %v1556
    %1560 = vst.msk [vmem:[%s11 + $0x3] sm:$0x1] %vm614, %v1550
    %1561 = vst.msk [vmem:[%s11 + $0xb] sm:$0x1] %vm614, %v1557
    %v1563 = vsel %vm350, %v1372, 0
    %1565 = vmatprep.subr.mxu0 0.0
    %1566 = vmatpush1.msra.mxu0 %v445
    %1567 = vmatprep.subr.mxu0 0.0
    %1568 = vmatpush1.msra.mxu0 %v446
    %1569 = vmatprep.subr.mxu0 0.0
    %1570 = vmatpush1.msra.mxu0 %v447
    %1571 = vmatprep.subr.mxu0 0.0
    %1572 = vmatpush1.msra.mxu0 %v448
    %1573 = vmatprep.subr.mxu0 0.0
    %1574 = vmatpush1.msra.mxu0 0.0
    %1575 = vmatprep.subr.mxu0 0.0
    %1576 = vmatpush1.msra.mxu0 0.0
    %1577 = vmatprep.subr.mxu0 0.0
    %1578 = vmatpush1.msra.mxu0 0.0
    %1579 = vmatprep.subr.mxu0 0.0
    %1580 = vmatpush1.msra.mxu0 0.0
    %1581 = vmatprep.subr.mxu0 0.0
    %1582 = vmatpush1.msra.mxu0 0.0
    %1583 = vmatprep.subr.mxu0 0.0
    %1584 = vmatpush1.msra.mxu0 0.0
    %1585 = vmatprep.subr.mxu0 0.0
    %1586 = vmatpush1.msra.mxu0 0.0
    %1587 = vmatprep.subr.mxu0 0.0
    %1588 = vmatpush1.msra.mxu0 0.0
    %1589 = vmatprep.subr.mxu0 0.0
    %1590 = vmatpush1.msra.mxu0 0.0
    %1591 = vmatprep.subr.mxu0 0.0
    %1592 = vmatpush1.msra.mxu0 0.0
    %1593 = vmatprep.subr.mxu0 0.0
    %1594 = vmatpush1.msra.mxu0 0.0
    %1595 = vmatprep.subr.mxu0 0.0
    %1596 = vmatpush1.msra.mxu0 0.0
    %1597 = vmatprep.subr.mxu0 0.0
    %1598 = vmatpush1.msra.mxu0 0.0
    %1599 = vmatprep.subr.mxu0 0.0
    %1600 = vmatpush1.msra.mxu0 0.0
    %1601 = vmatprep.subr.mxu0 0.0
    %1602 = vmatpush1.msra.mxu0 0.0
    %1603 = vmatprep.subr.mxu0 0.0
    %1604 = vmatpush1.msra.mxu0 0.0
    %1605 = vmatprep.subr.mxu0 0.0
    %1606 = vmatpush1.msra.mxu0 0.0
    %1607 = vmatprep.subr.mxu0 0.0
    %1608 = vmatpush1.msra.mxu0 0.0
    %1609 = vmatprep.subr.mxu0 0.0
    %1610 = vmatpush1.msra.mxu0 0.0
    %1611 = vmatprep.subr.mxu0 0.0
    %1612 = vmatpush1.msra.mxu0 0.0
    %1613 = vmatprep.subr.mxu0 0.0
    %1614 = vmatpush1.msra.mxu0 0.0
    %1615 = vmatprep.subr.mxu0 0.0
    %1616 = vmatpush1.msra.mxu0 0.0
    %1617 = vmatprep.subr.mxu0 0.0
    %1618 = vmatpush1.msra.mxu0 0.0
    %1619 = vmatprep.subr.mxu0 0.0
    %1620 = vmatpush1.msra.mxu0 0.0
    %1621 = vmatprep.subr.mxu0 0.0
    %1622 = vmatpush1.msra.mxu0 0.0
    %1623 = vmatprep.subr.mxu0 0.0
    %1624 = vmatpush1.msra.mxu0 0.0
    %1625 = vmatprep.subr.mxu0 0.0
    %1626 = vmatpush1.msra.mxu0 0.0
    %1627 = vmatprep.subr.mxu0 0.0
    %1628 = vmatpush1.msra.mxu0 0.0
    %1629 = vmatprep.mubr.f32.mxu0 0.0
    %1630 = vmatmul.mubr.f32.gmra.mrb[0].mxu0 %v1563
    %v1631 = vpop.f32.mrb[0].mxu0
    %v1632 = vadd.f32 %v461, %v1631
    %v1633 = vpop.f32.mrb[0].mxu0
    %1634 = vdwg.mxu0
    %1636 = vrot.lane.b32.xlu0 %v1632, 96
    %v1637 = vpop.permute.xlu0 %1636
    %v1639 = vadd.f32 %v430, %v1637
    %v1640 = vxor.u32 %v1639, 2147483648
    %v1641 = vmul.f32 %v1640, 1.442695
    %v1642 = vpow.pop %v1641
    %v1643 = vadd.f32 %v1642, 1.0
    %v1644 = vrcp.pop %v1643
    %v1645 = vmul.f32 1.0, %v1644
    %v1646 = vadd.f32 %v432, %v1637
    %v1647 = vxor.u32 %v1646, 2147483648
    %v1648 = vmul.f32 %v1647, 1.442695
    %v1649 = vpow.pop %v1648
    %v1650 = vadd.f32 %v1649, 1.0
    %v1651 = vrcp.pop %v1650
    %v1652 = vmul.f32 1.0, %v1651
    %1653 = vrot.lane.b32.xlu0 %v1632, 32
    %v1654 = vpop.permute.xlu0 %1653
    %v1656 = vmul.f32 %v1645, %v1654
    %1658 = vrot.lane.b32.xlu0 %v1656, 64
    %v1659 = vpop.permute.xlu0 %1658
    %v1661 = vadd.f32 %v432, %v1659
    %v1662 = vtanh.pop %v1661
    %v1663 = vsub.f32 1.0, %v1652
    %1665 = vrot.lane.b32.xlu0 %v1662, 96
    %v1666 = vpop.permute.xlu0 %1665
    %v1668 = vmul.f32 %v1663, %v1666
    %v1669 = vmul.f32 %v1652, %v1372
    %v1670 = vadd.f32 %v1668, %v1669
    %1671 = vset.pattern.permute.xlu0 4
    %1672 = vperm.xlu0 %1671, %v440
    %v1673 = vpop.permute.xlu0 %1672
    %v1675 = vmul.f32 %v1673, %v1670
    %1676 = vset.pattern.permute.xlu0 4
    %1677 = vperm.xlu0 %1676, %v568
    %v1678 = vpop.permute.xlu0 %1677
    %v1680 = vmul.f32 %v1678, %v1372
    %v1681 = vadd.f32 %v1675, %v1680
    %v1682 = vmul.f32 %v1673, %v1681
    %v1685 = vunpack.c.l.s4 1966171168
    %v1686 = vunpack.c.0.s8 %v1685
    %v1687 = vlaneseq
    %v1688 = vshrl.u32 %v1687, 7
    %v1689 = vsub.s32 %v1686, %v1688
    %v1690 = vrot.slane %v1682, %v1689
    %v1691 = vcombine.high %v1690, %v1690
    %v1693 = vunpack.c.l.s4 1966171168
    %v1694 = vunpack.c.0.s8 %v1693
    %v1695 = vlaneseq
    %v1696 = vshrl.u32 %v1695, 7
    %v1697 = vsub.s32 %v1694, %v1696
    %v1698 = vrot.slane %v1690, %v1697
    %v1700 = vunpack.c.l.s4 1966171168
    %v1701 = vunpack.c.0.s8 %v1700
    %v1702 = vlaneseq
    %v1703 = vshrl.u32 %v1702, 7
    %v1704 = vsub.s32 %v1701, %v1703
    %v1705 = vrot.slane %v1691, %v1704
    %v1706 = vlaneseq
    %v1707 = vshrl.u32 %v1706, 7
    %v1708 = vsub.s32 0, %v1707
    %v1709 = vrot.slane %v1698, %v1708
    %v1710 = vlaneseq
    %v1711 = vshrl.u32 %v1710, 7
    %v1712 = vsub.s32 0, %v1711
    %v1713 = vrot.slane %v1705, %v1712
    %1714 = vrot.lane.b32.xlu0 %v1709, 32
    %v1715 = vpop.permute.xlu0 %1714
    %1716 = vrot.lane.b32.xlu0 %v1713, 32
    %v1717 = vpop.permute.xlu0 %1716
    %1720 = vst.msk [vmem:[%s11 + $0x4] sm:$0x1] %vm776, %v1715
    %1721 = vst.msk [vmem:[%s11 + $0xc] sm:$0x1] %vm776, %v1717
    %v1723 = vsel %vm350, %v1533, 0
    %1725 = vmatprep.subr.mxu0 0.0
    %1726 = vmatpush1.msra.mxu0 %v441
    %1727 = vmatprep.subr.mxu0 0.0
    %1728 = vmatpush1.msra.mxu0 %v442
    %1729 = vmatprep.subr.mxu0 0.0
    %1730 = vmatpush1.msra.mxu0 %v443
    %1731 = vmatprep.subr.mxu0 0.0
    %1732 = vmatpush1.msra.mxu0 %v444
    %1733 = vmatprep.subr.mxu0 0.0
    %1734 = vmatpush1.msra.mxu0 0.0
    %1735 = vmatprep.subr.mxu0 0.0
    %1736 = vmatpush1.msra.mxu0 0.0
    %1737 = vmatprep.subr.mxu0 0.0
    %1738 = vmatpush1.msra.mxu0 0.0
    %1739 = vmatprep.subr.mxu0 0.0
    %1740 = vmatpush1.msra.mxu0 0.0
    %1741 = vmatprep.subr.mxu0 0.0
    %1742 = vmatpush1.msra.mxu0 0.0
    %1743 = vmatprep.subr.mxu0 0.0
    %1744 = vmatpush1.msra.mxu0 0.0
    %1745 = vmatprep.subr.mxu0 0.0
    %1746 = vmatpush1.msra.mxu0 0.0
    %1747 = vmatprep.subr.mxu0 0.0
    %1748 = vmatpush1.msra.mxu0 0.0
    %1749 = vmatprep.subr.mxu0 0.0
    %1750 = vmatpush1.msra.mxu0 0.0
    %1751 = vmatprep.subr.mxu0 0.0
    %1752 = vmatpush1.msra.mxu0 0.0
    %1753 = vmatprep.subr.mxu0 0.0
    %1754 = vmatpush1.msra.mxu0 0.0
    %1755 = vmatprep.subr.mxu0 0.0
    %1756 = vmatpush1.msra.mxu0 0.0
    %1757 = vmatprep.subr.mxu0 0.0
    %1758 = vmatpush1.msra.mxu0 0.0
    %1759 = vmatprep.subr.mxu0 0.0
    %1760 = vmatpush1.msra.mxu0 0.0
    %1761 = vmatprep.subr.mxu0 0.0
    %1762 = vmatpush1.msra.mxu0 0.0
    %1763 = vmatprep.subr.mxu0 0.0
    %1764 = vmatpush1.msra.mxu0 0.0
    %1765 = vmatprep.subr.mxu0 0.0
    %1766 = vmatpush1.msra.mxu0 0.0
    %1767 = vmatprep.subr.mxu0 0.0
    %1768 = vmatpush1.msra.mxu0 0.0
    %1769 = vmatprep.subr.mxu0 0.0
    %1770 = vmatpush1.msra.mxu0 0.0
    %1771 = vmatprep.subr.mxu0 0.0
    %1772 = vmatpush1.msra.mxu0 0.0
    %1773 = vmatprep.subr.mxu0 0.0
    %1774 = vmatpush1.msra.mxu0 0.0
    %1775 = vmatprep.subr.mxu0 0.0
    %1776 = vmatpush1.msra.mxu0 0.0
    %1777 = vmatprep.subr.mxu0 0.0
    %1778 = vmatpush1.msra.mxu0 0.0
    %1779 = vmatprep.subr.mxu0 0.0
    %1780 = vmatpush1.msra.mxu0 0.0
    %1781 = vmatprep.subr.mxu0 0.0
    %1782 = vmatpush1.msra.mxu0 0.0
    %1783 = vmatprep.subr.mxu0 0.0
    %1784 = vmatpush1.msra.mxu0 0.0
    %1785 = vmatprep.subr.mxu0 0.0
    %1786 = vmatpush1.msra.mxu0 0.0
    %1787 = vmatprep.subr.mxu0 0.0
    %1788 = vmatpush1.msra.mxu0 0.0
    %1789 = vmatprep.mubr.f32.mxu0 0.0
    %1790 = vmatmul.mubr.f32.gmra.mrb[0].mxu0 %v1723
    %v1791 = vpop.f32.mrb[0].mxu0
    %v1792 = vadd.f32 %v454, %v1791
    %v1793 = vpop.f32.mrb[0].mxu0
    %1794 = vdwg.mxu0
    %v1795 = vadd.f32 %v430, %v1792
    %v1796 = vxor.u32 %v1795, 2147483648
    %v1797 = vmul.f32 %v1796, 1.442695
    %v1798 = vpow.pop %v1797
    %v1799 = vadd.f32 %v1798, 1.0
    %v1800 = vrcp.pop %v1799
    %v1801 = vmul.f32 1.0, %v1800
    %1803 = vrot.lane.b32.xlu0 %v1792, 64
    %v1804 = vpop.permute.xlu0 %1803
    %v1806 = vmul.f32 %v1801, %v1804
    %1808 = vrot.lane.b32.xlu0 %v1806, 64
    %v1809 = vpop.permute.xlu0 %1808
    %v1811 = vadd.f32 %v430, %v1809
    %v1812 = vtanh.pop %v1811
    %v1813 = vsub.f32 1.0, %v1801
    %1815 = vrot.lane.b32.xlu0 %v1812, 96
    %v1816 = vpop.permute.xlu0 %1815
    %v1818 = vmul.f32 %v1813, %v1816
    %1819 = vrot.lane.b32.xlu0 %v1533, 32
    %v1820 = vpop.permute.xlu0 %1819
    %v1822 = vmul.f32 %v1801, %v1820
    %v1823 = vadd.f32 %v1818, %v1822
    %v1824 = vmul.f32 %v1673, %v1823
    %v1825 = vmul.f32 %v1678, %v1533
    %1827 = vrot.lane.b32.xlu0 %v1825, 32
    %v1828 = vpop.permute.xlu0 %1827
    %v1830 = vadd.f32 %v1824, %v1828
    %v1831 = vmul.f32 %v1673, %v1830
    %v1834 = vunpack.c.l.s4 1966171168
    %v1835 = vunpack.c.0.s8 %v1834
    %v1836 = vlaneseq
    %v1837 = vshrl.u32 %v1836, 7
    %v1838 = vsub.s32 %v1835, %v1837
    %v1839 = vrot.slane %v1831, %v1838
    %v1840 = vcombine.high %v1839, %v1839
    %v1842 = vunpack.c.l.s4 1966171168
    %v1843 = vunpack.c.0.s8 %v1842
    %v1844 = vlaneseq
    %v1845 = vshrl.u32 %v1844, 7
    %v1846 = vsub.s32 %v1843, %v1845
    %v1847 = vrot.slane %v1839, %v1846
    %v1849 = vunpack.c.l.s4 1966171168
    %v1850 = vunpack.c.0.s8 %v1849
    %v1851 = vlaneseq
    %v1852 = vshrl.u32 %v1851, 7
    %v1853 = vsub.s32 %v1850, %v1852
    %v1854 = vrot.slane %v1840, %v1853
    %v1855 = vlaneseq
    %v1856 = vshrl.u32 %v1855, 7
    %v1857 = vsub.s32 0, %v1856
    %v1858 = vrot.slane %v1847, %v1857
    %v1859 = vlaneseq
    %v1860 = vshrl.u32 %v1859, 7
    %v1861 = vsub.s32 0, %v1860
    %v1862 = vrot.slane %v1854, %v1861
    %1863 = vrot.lane.b32.xlu0 %v1858, 96
    %v1864 = vpop.permute.xlu0 %1863
    %1865 = vrot.lane.b32.xlu0 %v1862, 96
    %v1866 = vpop.permute.xlu0 %1865
    %1869 = vst.msk [vmem:[%s11 + $0x4] sm:$0x1] %vm614, %v1864
    %1870 = vst.msk [vmem:[%s11 + $0xc] sm:$0x1] %vm614, %v1866
    %v1872 = vsel %vm350, %v1681, 0
    %1874 = vmatprep.subr.mxu0 0.0
    %1875 = vmatpush1.msra.mxu0 %v445
    %1876 = vmatprep.subr.mxu0 0.0
    %1877 = vmatpush1.msra.mxu0 %v446
    %1878 = vmatprep.subr.mxu0 0.0
    %1879 = vmatpush1.msra.mxu0 %v447
    %1880 = vmatprep.subr.mxu0 0.0
    %1881 = vmatpush1.msra.mxu0 %v448
    %1882 = vmatprep.subr.mxu0 0.0
    %1883 = vmatpush1.msra.mxu0 0.0
    %1884 = vmatprep.subr.mxu0 0.0
    %1885 = vmatpush1.msra.mxu0 0.0
    %1886 = vmatprep.subr.mxu0 0.0
    %1887 = vmatpush1.msra.mxu0 0.0
    %1888 = vmatprep.subr.mxu0 0.0
    %1889 = vmatpush1.msra.mxu0 0.0
    %1890 = vmatprep.subr.mxu0 0.0
    %1891 = vmatpush1.msra.mxu0 0.0
    %1892 = vmatprep.subr.mxu0 0.0
    %1893 = vmatpush1.msra.mxu0 0.0
    %1894 = vmatprep.subr.mxu0 0.0
    %1895 = vmatpush1.msra.mxu0 0.0
    %1896 = vmatprep.subr.mxu0 0.0
    %1897 = vmatpush1.msra.mxu0 0.0
    %1898 = vmatprep.subr.mxu0 0.0
    %1899 = vmatpush1.msra.mxu0 0.0
    %1900 = vmatprep.subr.mxu0 0.0
    %1901 = vmatpush1.msra.mxu0 0.0
    %1902 = vmatprep.subr.mxu0 0.0
    %1903 = vmatpush1.msra.mxu0 0.0
    %1904 = vmatprep.subr.mxu0 0.0
    %1905 = vmatpush1.msra.mxu0 0.0
    %1906 = vmatprep.subr.mxu0 0.0
    %1907 = vmatpush1.msra.mxu0 0.0
    %1908 = vmatprep.subr.mxu0 0.0
    %1909 = vmatpush1.msra.mxu0 0.0
    %1910 = vmatprep.subr.mxu0 0.0
    %1911 = vmatpush1.msra.mxu0 0.0
    %1912 = vmatprep.subr.mxu0 0.0
    %1913 = vmatpush1.msra.mxu0 0.0
    %1914 = vmatprep.subr.mxu0 0.0
    %1915 = vmatpush1.msra.mxu0 0.0
    %1916 = vmatprep.subr.mxu0 0.0
    %1917 = vmatpush1.msra.mxu0 0.0
    %1918 = vmatprep.subr.mxu0 0.0
    %1919 = vmatpush1.msra.mxu0 0.0
    %1920 = vmatprep.subr.mxu0 0.0
    %1921 = vmatpush1.msra.mxu0 0.0
    %1922 = vmatprep.subr.mxu0 0.0
    %1923 = vmatpush1.msra.mxu0 0.0
    %1924 = vmatprep.subr.mxu0 0.0
    %1925 = vmatpush1.msra.mxu0 0.0
    %1926 = vmatprep.subr.mxu0 0.0
    %1927 = vmatpush1.msra.mxu0 0.0
    %1928 = vmatprep.subr.mxu0 0.0
    %1929 = vmatpush1.msra.mxu0 0.0
    %1930 = vmatprep.subr.mxu0 0.0
    %1931 = vmatpush1.msra.mxu0 0.0
    %1932 = vmatprep.subr.mxu0 0.0
    %1933 = vmatpush1.msra.mxu0 0.0
    %1934 = vmatprep.subr.mxu0 0.0
    %1935 = vmatpush1.msra.mxu0 0.0
    %1936 = vmatprep.subr.mxu0 0.0
    %1937 = vmatpush1.msra.mxu0 0.0
    %1938 = vmatprep.mubr.f32.mxu0 0.0
    %1939 = vmatmul.mubr.f32.gmra.mrb[0].mxu0 %v1872
    %v1940 = vpop.f32.mrb[0].mxu0
    %v1941 = vadd.f32 %v461, %v1940
    %v1942 = vpop.f32.mrb[0].mxu0
    %1943 = vdwg.mxu0
    %v1945 = vrot.slane %v1941, 2
    %1946 = vrot.lane.b32.xlu0 %v1945, 96
    %v1947 = vpop.permute.xlu0 %1946
    %v1949 = vadd.f32 %v424, %v1947
    %v1950 = vxor.u32 %v1949, 2147483648
    %v1951 = vmul.f32 %v1950, 1.442695
    %v1952 = vpow.pop %v1951
    %v1953 = vadd.f32 %v1952, 1.0
    %v1954 = vrcp.pop %v1953
    %v1955 = vmul.f32 1.0, %v1954
    %v1956 = vadd.f32 %v426, %v1947
    %v1957 = vxor.u32 %v1956, 2147483648
    %v1958 = vmul.f32 %v1957, 1.442695
    %v1959 = vpow.pop %v1958
    %v1960 = vadd.f32 %v1959, 1.0
    %v1961 = vrcp.pop %v1960
    %v1962 = vmul.f32 1.0, %v1961
    %1963 = vrot.lane.b32.xlu0 %v1945, 32
    %v1964 = vpop.permute.xlu0 %1963
    %v1966 = vmul.f32 %v1955, %v1964
    %1968 = vrot.lane.b32.xlu0 %v1966, 64
    %v1969 = vpop.permute.xlu0 %1968
    %v1971 = vadd.f32 %v426, %v1969
    %v1972 = vtanh.pop %v1971
    %v1973 = vsub.f32 1.0, %v1962
    %1975 = vrot.lane.b32.xlu0 %v1972, 96
    %v1976 = vpop.permute.xlu0 %1975
    %v1978 = vmul.f32 %v1973, %v1976
    %v1979 = vrot.slane %v1681, 2
    %v1981 = vmul.f32 %v1962, %v1979
    %v1982 = vadd.f32 %v1978, %v1981
    %v1984 = vrot.slane %v1982, 6
    %v1986 = vmul.f32 %v1520, %v1984
    %v1987 = vmul.f32 %v1530, %v1681
    %v1988 = vadd.f32 %v1986, %v1987
    %v1989 = vmul.f32 %v1520, %v1988
    %v1992 = vunpack.c.l.s4 1966171168
    %v1993 = vunpack.c.0.s8 %v1992
    %v1994 = vlaneseq
    %v1995 = vshrl.u32 %v1994, 7
    %v1996 = vsub.s32 %v1993, %v1995
    %v1997 = vrot.slane %v1989, %v1996
    %v1998 = vcombine.high %v1997, %v1997
    %v2000 = vunpack.c.l.s4 1966171168
    %v2001 = vunpack.c.0.s8 %v2000
    %v2002 = vlaneseq
    %v2003 = vshrl.u32 %v2002, 7
    %v2004 = vsub.s32 %v2001, %v2003
    %v2005 = vrot.slane %v1997, %v2004
    %v2007 = vunpack.c.l.s4 1966171168
    %v2008 = vunpack.c.0.s8 %v2007
    %v2009 = vlaneseq
    %v2010 = vshrl.u32 %v2009, 7
    %v2011 = vsub.s32 %v2008, %v2010
    %v2012 = vrot.slane %v1998, %v2011
    %v2013 = vlaneseq
    %v2014 = vshrl.u32 %v2013, 7
    %v2015 = vsub.s32 0, %v2014
    %v2016 = vrot.slane %v2005, %v2015
    %v2017 = vlaneseq
    %v2018 = vshrl.u32 %v2017, 7
    %v2019 = vsub.s32 0, %v2018
    %v2020 = vrot.slane %v2012, %v2019
    %2021 = vrot.lane.b32.xlu0 %v2016, 32
    %v2022 = vpop.permute.xlu0 %2021
    %2023 = vrot.lane.b32.xlu0 %v2020, 32
    %v2024 = vpop.permute.xlu0 %2023
    %2027 = vst.msk [vmem:[%s11 + $0x3] sm:$0x1] %vm776, %v2022
    %2028 = vst.msk [vmem:[%s11 + $0xb] sm:$0x1] %vm776, %v2024
    %2030 = vrot.lane.b32.xlu0 %v1830, 96
    %v2031 = vpop.permute.xlu0 %2030
    %v2032 = vsel %vm350, %v2031, 0
    %2034 = vmatprep.subr.mxu0 0.0
    %2035 = vmatpush1.msra.mxu0 %v441
    %2036 = vmatprep.subr.mxu0 0.0
    %2037 = vmatpush1.msra.mxu0 %v442
    %2038 = vmatprep.subr.mxu0 0.0
    %2039 = vmatpush1.msra.mxu0 %v443
    %2040 = vmatprep.subr.mxu0 0.0
    %2041 = vmatpush1.msra.mxu0 %v444
    %2042 = vmatprep.subr.mxu0 0.0
    %2043 = vmatpush1.msra.mxu0 0.0
    %2044 = vmatprep.subr.mxu0 0.0
    %2045 = vmatpush1.msra.mxu0 0.0
    %2046 = vmatprep.subr.mxu0 0.0
    %2047 = vmatpush1.msra.mxu0 0.0
    %2048 = vmatprep.subr.mxu0 0.0
    %2049 = vmatpush1.msra.mxu0 0.0
    %2050 = vmatprep.subr.mxu0 0.0
    %2051 = vmatpush1.msra.mxu0 0.0
    %2052 = vmatprep.subr.mxu0 0.0
    %2053 = vmatpush1.msra.mxu0 0.0
    %2054 = vmatprep.subr.mxu0 0.0
    %2055 = vmatpush1.msra.mxu0 0.0
    %2056 = vmatprep.subr.mxu0 0.0
    %2057 = vmatpush1.msra.mxu0 0.0
    %2058 = vmatprep.subr.mxu0 0.0
    %2059 = vmatpush1.msra.mxu0 0.0
    %2060 = vmatprep.subr.mxu0 0.0
    %2061 = vmatpush1.msra.mxu0 0.0
    %2062 = vmatprep.subr.mxu0 0.0
    %2063 = vmatpush1.msra.mxu0 0.0
    %2064 = vmatprep.subr.mxu0 0.0
    %2065 = vmatpush1.msra.mxu0 0.0
    %2066 = vmatprep.subr.mxu0 0.0
    %2067 = vmatpush1.msra.mxu0 0.0
    %2068 = vmatprep.subr.mxu0 0.0
    %2069 = vmatpush1.msra.mxu0 0.0
    %2070 = vmatprep.subr.mxu0 0.0
    %2071 = vmatpush1.msra.mxu0 0.0
    %2072 = vmatprep.subr.mxu0 0.0
    %2073 = vmatpush1.msra.mxu0 0.0
    %2074 = vmatprep.subr.mxu0 0.0
    %2075 = vmatpush1.msra.mxu0 0.0
    %2076 = vmatprep.subr.mxu0 0.0
    %2077 = vmatpush1.msra.mxu0 0.0
    %2078 = vmatprep.subr.mxu0 0.0
    %2079 = vmatpush1.msra.mxu0 0.0
    %2080 = vmatprep.subr.mxu0 0.0
    %2081 = vmatpush1.msra.mxu0 0.0
    %2082 = vmatprep.subr.mxu0 0.0
    %2083 = vmatpush1.msra.mxu0 0.0
    %2084 = vmatprep.subr.mxu0 0.0
    %2085 = vmatpush1.msra.mxu0 0.0
    %2086 = vmatprep.subr.mxu0 0.0
    %2087 = vmatpush1.msra.mxu0 0.0
    %2088 = vmatprep.subr.mxu0 0.0
    %2089 = vmatpush1.msra.mxu0 0.0
    %2090 = vmatprep.subr.mxu0 0.0
    %2091 = vmatpush1.msra.mxu0 0.0
    %2092 = vmatprep.subr.mxu0 0.0
    %2093 = vmatpush1.msra.mxu0 0.0
    %2094 = vmatprep.subr.mxu0 0.0
    %2095 = vmatpush1.msra.mxu0 0.0
    %2096 = vmatprep.subr.mxu0 0.0
    %2097 = vmatpush1.msra.mxu0 0.0
    %2098 = vmatprep.mubr.f32.mxu0 0.0
    %2099 = vmatmul.mubr.f32.gmra.mrb[0].mxu0 %v2032
    %v2100 = vpop.f32.mrb[0].mxu0
    %v2101 = vadd.f32 %v454, %v2100
    %v2102 = vpop.f32.mrb[0].mxu0
    %2103 = vdwg.mxu0
    %v2105 = vrot.slane %v2101, 6
    %v2107 = vadd.f32 %v430, %v2105
    %v2108 = vxor.u32 %v2107, 2147483648
    %v2109 = vmul.f32 %v2108, 1.442695
    %v2110 = vpow.pop %v2109
    %v2111 = vadd.f32 %v2110, 1.0
    %v2112 = vrcp.pop %v2111
    %v2113 = vmul.f32 1.0, %v2112
    %2114 = vrot.lane.b32.xlu0 %v2105, 64
    %v2115 = vpop.permute.xlu0 %2114
    %v2117 = vmul.f32 %v2113, %v2115
    %2119 = vrot.lane.b32.xlu0 %v2117, 64
    %v2120 = vpop.permute.xlu0 %2119
    %v2122 = vadd.f32 %v430, %v2120
    %v2123 = vtanh.pop %v2122
    %v2124 = vsub.f32 1.0, %v2113
    %2126 = vrot.lane.b32.xlu0 %v2123, 96
    %v2127 = vpop.permute.xlu0 %2126
    %v2129 = vmul.f32 %v2124, %v2127
    %v2130 = vrot.slane %v1830, 6
    %v2132 = vmul.f32 %v2113, %v2130
    %v2133 = vadd.f32 %v2129, %v2132
    %v2135 = vrot.slane %v2133, 2
    %2136 = vrot.lane.b32.xlu0 %v2135, 96
    %v2137 = vpop.permute.xlu0 %2136
    %v2139 = vmul.f32 %v1361, %v2137
    %v2140 = vmul.f32 %v1369, %v1830
    %2142 = vrot.lane.b32.xlu0 %v2140, 96
    %v2143 = vpop.permute.xlu0 %2142
    %v2145 = vadd.f32 %v2139, %v2143
    %v2146 = vmul.f32 %v1361, %v2145
    %v2149 = vunpack.c.l.s4 1966171168
    %v2150 = vunpack.c.0.s8 %v2149
    %v2151 = vlaneseq
    %v2152 = vshrl.u32 %v2151, 7
    %v2153 = vsub.s32 %v2150, %v2152
    %v2154 = vrot.slane %v2146, %v2153
    %v2155 = vcombine.high %v2154, %v2154
    %v2157 = vunpack.c.l.s4 1966171168
    %v2158 = vunpack.c.0.s8 %v2157
    %v2159 = vlaneseq
    %v2160 = vshrl.u32 %v2159, 7
    %v2161 = vsub.s32 %v2158, %v2160
    %v2162 = vrot.slane %v2154, %v2161
    %v2164 = vunpack.c.l.s4 1966171168
    %v2165 = vunpack.c.0.s8 %v2164
    %v2166 = vlaneseq
    %v2167 = vshrl.u32 %v2166, 7
    %v2168 = vsub.s32 %v2165, %v2167
    %v2169 = vrot.slane %v2155, %v2168
    %2172 = vst.msk [vmem:[%s11 + $0x5] sm:$0x1] %vm614, %v2162
    %2173 = vst.msk [vmem:[%s11 + $0xd] sm:$0x1] %vm614, %v2169
    %v2175 = vsel %vm350, %v1988, 0
    %2177 = vmatprep.subr.mxu0 0.0
    %2178 = vmatpush1.msra.mxu0 %v445
    %2179 = vmatprep.subr.mxu0 0.0
    %2180 = vmatpush1.msra.mxu0 %v446
    %2181 = vmatprep.subr.mxu0 0.0
    %2182 = vmatpush1.msra.mxu0 %v447
    %2183 = vmatprep.subr.mxu0 0.0
    %2184 = vmatpush1.msra.mxu0 %v448
    %2185 = vmatprep.subr.mxu0 0.0
    %2186 = vmatpush1.msra.mxu0 0.0
    %2187 = vmatprep.subr.mxu0 0.0
    %2188 = vmatpush1.msra.mxu0 0.0
    %2189 = vmatprep.subr.mxu0 0.0
    %2190 = vmatpush1.msra.mxu0 0.0
    %2191 = vmatprep.subr.mxu0 0.0
    %2192 = vmatpush1.msra.mxu0 0.0
    %2193 = vmatprep.subr.mxu0 0.0
    %2194 = vmatpush1.msra.mxu0 0.0
    %2195 = vmatprep.subr.mxu0 0.0
    %2196 = vmatpush1.msra.mxu0 0.0
    %2197 = vmatprep.subr.mxu0 0.0
    %2198 = vmatpush1.msra.mxu0 0.0
    %2199 = vmatprep.subr.mxu0 0.0
    %2200 = vmatpush1.msra.mxu0 0.0
    %2201 = vmatprep.subr.mxu0 0.0
    %2202 = vmatpush1.msra.mxu0 0.0
    %2203 = vmatprep.subr.mxu0 0.0
    %2204 = vmatpush1.msra.mxu0 0.0
    %2205 = vmatprep.subr.mxu0 0.0
    %2206 = vmatpush1.msra.mxu0 0.0
    %2207 = vmatprep.subr.mxu0 0.0
    %2208 = vmatpush1.msra.mxu0 0.0
    %2209 = vmatprep.subr.mxu0 0.0
    %2210 = vmatpush1.msra.mxu0 0.0
    %2211 = vmatprep.subr.mxu0 0.0
    %2212 = vmatpush1.msra.mxu0 0.0
    %2213 = vmatprep.subr.mxu0 0.0
    %2214 = vmatpush1.msra.mxu0 0.0
    %2215 = vmatprep.subr.mxu0 0.0
    %2216 = vmatpush1.msra.mxu0 0.0
    %2217 = vmatprep.subr.mxu0 0.0
    %2218 = vmatpush1.msra.mxu0 0.0
    %2219 = vmatprep.subr.mxu0 0.0
    %2220 = vmatpush1.msra.mxu0 0.0
    %2221 = vmatprep.subr.mxu0 0.0
    %2222 = vmatpush1.msra.mxu0 0.0
    %2223 = vmatprep.subr.mxu0 0.0
    %2224 = vmatpush1.msra.mxu0 0.0
    %2225 = vmatprep.subr.mxu0 0.0
    %2226 = vmatpush1.msra.mxu0 0.0
    %2227 = vmatprep.subr.mxu0 0.0
    %2228 = vmatpush1.msra.mxu0 0.0
    %2229 = vmatprep.subr.mxu0 0.0
    %2230 = vmatpush1.msra.mxu0 0.0
    %2231 = vmatprep.subr.mxu0 0.0
    %2232 = vmatpush1.msra.mxu0 0.0
    %2233 = vmatprep.subr.mxu0 0.0
    %2234 = vmatpush1.msra.mxu0 0.0
    %2235 = vmatprep.subr.mxu0 0.0
    %2236 = vmatpush1.msra.mxu0 0.0
    %2237 = vmatprep.subr.mxu0 0.0
    %2238 = vmatpush1.msra.mxu0 0.0
    %2239 = vmatprep.subr.mxu0 0.0
    %2240 = vmatpush1.msra.mxu0 0.0
    %2241 = vmatprep.mubr.f32.mxu0 0.0
    %2242 = vmatmul.mubr.f32.gmra.mrb[0].mxu0 %v2175
    %v2243 = vpop.f32.mrb[0].mxu0
    %v2244 = vadd.f32 %v461, %v2243
    %v2245 = vpop.f32.mrb[0].mxu0
    %2246 = vdwg.mxu0
    %v2248 = vrot.slane %v2244, 4
    %2249 = vrot.lane.b32.xlu0 %v2248, 96
    %v2250 = vpop.permute.xlu0 %2249
    %v2252 = vadd.f32 %v424, %v2250
    %v2253 = vxor.u32 %v2252, 2147483648
    %v2254 = vmul.f32 %v2253, 1.442695
    %v2255 = vpow.pop %v2254
    %v2256 = vadd.f32 %v2255, 1.0
    %v2257 = vrcp.pop %v2256
    %v2258 = vmul.f32 1.0, %v2257
    %v2259 = vadd.f32 %v426, %v2250
    %v2260 = vxor.u32 %v2259, 2147483648
    %v2261 = vmul.f32 %v2260, 1.442695
    %v2262 = vpow.pop %v2261
    %v2263 = vadd.f32 %v2262, 1.0
    %v2264 = vrcp.pop %v2263
    %v2265 = vmul.f32 1.0, %v2264
    %2266 = vrot.lane.b32.xlu0 %v2248, 32
    %v2267 = vpop.permute.xlu0 %2266
    %v2269 = vmul.f32 %v2258, %v2267
    %2271 = vrot.lane.b32.xlu0 %v2269, 64
    %v2272 = vpop.permute.xlu0 %2271
    %v2274 = vadd.f32 %v426, %v2272
    %v2275 = vtanh.pop %v2274
    %v2276 = vsub.f32 1.0, %v2265
    %2278 = vrot.lane.b32.xlu0 %v2275, 96
    %v2279 = vpop.permute.xlu0 %2278
    %v2281 = vmul.f32 %v2276, %v2279
    %v2282 = vrot.slane %v1988, 4
    %v2284 = vmul.f32 %v2265, %v2282
    %v2285 = vadd.f32 %v2281, %v2284
    %v2287 = vrot.slane %v2285, 4
    %v2289 = vmul.f32 %v1205, %v2287
    %v2290 = vmul.f32 %v1215, %v1988
    %v2291 = vadd.f32 %v2289, %v2290
    %v2292 = vmul.f32 %v1205, %v2291
    %v2295 = vunpack.c.l.s4 1966171168
    %v2296 = vunpack.c.0.s8 %v2295
    %v2297 = vlaneseq
    %v2298 = vshrl.u32 %v2297, 7
    %v2299 = vsub.s32 %v2296, %v2298
    %v2300 = vrot.slane %v2292, %v2299
    %v2301 = vcombine.high %v2300, %v2300
    %v2303 = vunpack.c.l.s4 1966171168
    %v2304 = vunpack.c.0.s8 %v2303
    %v2305 = vlaneseq
    %v2306 = vshrl.u32 %v2305, 7
    %v2307 = vsub.s32 %v2304, %v2306
    %v2308 = vrot.slane %v2300, %v2307
    %v2310 = vunpack.c.l.s4 1966171168
    %v2311 = vunpack.c.0.s8 %v2310
    %v2312 = vlaneseq
    %v2313 = vshrl.u32 %v2312, 7
    %v2314 = vsub.s32 %v2311, %v2313
    %v2315 = vrot.slane %v2301, %v2314
    %v2316 = vlaneseq
    %v2317 = vshrl.u32 %v2316, 7
    %v2318 = vsub.s32 0, %v2317
    %v2319 = vrot.slane %v2308, %v2318
    %v2320 = vlaneseq
    %v2321 = vshrl.u32 %v2320, 7
    %v2322 = vsub.s32 0, %v2321
    %v2323 = vrot.slane %v2315, %v2322
    %2324 = vrot.lane.b32.xlu0 %v2319, 32
    %v2325 = vpop.permute.xlu0 %2324
    %2326 = vrot.lane.b32.xlu0 %v2323, 32
    %v2327 = vpop.permute.xlu0 %2326
    %2330 = vst.msk [vmem:[%s11 + $0x2] sm:$0x1] %vm776, %v2325
    %2331 = vst.msk [vmem:[%s11 + $0xa] sm:$0x1] %vm776, %v2327
    %v2333 = vsel %vm350, %v2145, 0
    %2335 = vmatprep.subr.mxu0 0.0
    %2336 = vmatpush1.msra.mxu0 %v441
    %2337 = vmatprep.subr.mxu0 0.0
    %2338 = vmatpush1.msra.mxu0 %v442
    %2339 = vmatprep.subr.mxu0 0.0
    %2340 = vmatpush1.msra.mxu0 %v443
    %2341 = vmatprep.subr.mxu0 0.0
    %2342 = vmatpush1.msra.mxu0 %v444
    %2343 = vmatprep.subr.mxu0 0.0
    %2344 = vmatpush1.msra.mxu0 0.0
    %2345 = vmatprep.subr.mxu0 0.0
    %2346 = vmatpush1.msra.mxu0 0.0
    %2347 = vmatprep.subr.mxu0 0.0
    %2348 = vmatpush1.msra.mxu0 0.0
    %2349 = vmatprep.subr.mxu0 0.0
    %2350 = vmatpush1.msra.mxu0 0.0
    %2351 = vmatprep.subr.mxu0 0.0
    %2352 = vmatpush1.msra.mxu0 0.0
    %2353 = vmatprep.subr.mxu0 0.0
    %2354 = vmatpush1.msra.mxu0 0.0
    %2355 = vmatprep.subr.mxu0 0.0
    %2356 = vmatpush1.msra.mxu0 0.0
    %2357 = vmatprep.subr.mxu0 0.0
    %2358 = vmatpush1.msra.mxu0 0.0
    %2359 = vmatprep.subr.mxu0 0.0
    %2360 = vmatpush1.msra.mxu0 0.0
    %2361 = vmatprep.subr.mxu0 0.0
    %2362 = vmatpush1.msra.mxu0 0.0
    %2363 = vmatprep.subr.mxu0 0.0
    %2364 = vmatpush1.msra.mxu0 0.0
    %2365 = vmatprep.subr.mxu0 0.0
    %2366 = vmatpush1.msra.mxu0 0.0
    %2367 = vmatprep.subr.mxu0 0.0
    %2368 = vmatpush1.msra.mxu0 0.0
    %2369 = vmatprep.subr.mxu0 0.0
    %2370 = vmatpush1.msra.mxu0 0.0
    %2371 = vmatprep.subr.mxu0 0.0
    %2372 = vmatpush1.msra.mxu0 0.0
    %2373 = vmatprep.subr.mxu0 0.0
    %2374 = vmatpush1.msra.mxu0 0.0
    %2375 = vmatprep.subr.mxu0 0.0
    %2376 = vmatpush1.msra.mxu0 0.0
    %2377 = vmatprep.subr.mxu0 0.0
    %2378 = vmatpush1.msra.mxu0 0.0
    %2379 = vmatprep.subr.mxu0 0.0
    %2380 = vmatpush1.msra.mxu0 0.0
    %2381 = vmatprep.subr.mxu0 0.0
    %2382 = vmatpush1.msra.mxu0 0.0
    %2383 = vmatprep.subr.mxu0 0.0
    %2384 = vmatpush1.msra.mxu0 0.0
    %2385 = vmatprep.subr.mxu0 0.0
    %2386 = vmatpush1.msra.mxu0 0.0
    %2387 = vmatprep.subr.mxu0 0.0
    %2388 = vmatpush1.msra.mxu0 0.0
    %2389 = vmatprep.subr.mxu0 0.0
    %2390 = vmatpush1.msra.mxu0 0.0
    %2391 = vmatprep.subr.mxu0 0.0
    %2392 = vmatpush1.msra.mxu0 0.0
    %2393 = vmatprep.subr.mxu0 0.0
    %2394 = vmatpush1.msra.mxu0 0.0
    %2395 = vmatprep.subr.mxu0 0.0
    %2396 = vmatpush1.msra.mxu0 0.0
    %2397 = vmatprep.subr.mxu0 0.0
    %2398 = vmatpush1.msra.mxu0 0.0
    %2399 = vmatprep.mubr.f32.mxu0 0.0
    %2400 = vmatmul.mubr.f32.gmra.mrb[0].mxu0 %v2333
    %v2401 = vpop.f32.mrb[0].mxu0
    %v2402 = vadd.f32 %v454, %v2401
    %v2403 = vpop.f32.mrb[0].mxu0
    %2404 = vdwg.mxu0
    %v2406 = vrot.slane %v2402, 4
    %v2408 = vadd.f32 %v430, %v2406
    %v2409 = vxor.u32 %v2408, 2147483648
    %v2410 = vmul.f32 %v2409, 1.442695
    %v2411 = vpow.pop %v2410
    %v2412 = vadd.f32 %v2411, 1.0
    %v2413 = vrcp.pop %v2412
    %v2414 = vmul.f32 1.0, %v2413
    %2415 = vrot.lane.b32.xlu0 %v2406, 64
    %v2416 = vpop.permute.xlu0 %2415
    %v2418 = vmul.f32 %v2414, %v2416
    %2420 = vrot.lane.b32.xlu0 %v2418, 64
    %v2421 = vpop.permute.xlu0 %2420
    %v2423 = vadd.f32 %v430, %v2421
    %v2424 = vtanh.pop %v2423
    %v2425 = vsub.f32 1.0, %v2414
    %2427 = vrot.lane.b32.xlu0 %v2424, 96
    %v2428 = vpop.permute.xlu0 %2427
    %v2430 = vmul.f32 %v2425, %v2428
    %v2431 = vrot.slane %v2145, 4
    %2432 = vrot.lane.b32.xlu0 %v2431, 32
    %v2433 = vpop.permute.xlu0 %2432
    %v2435 = vmul.f32 %v2414, %v2433
    %v2436 = vadd.f32 %v2430, %v2435
    %v2438 = vrot.slane %v2436, 4
    %2439 = vrot.lane.b32.xlu0 %v2438, 96
    %v2440 = vpop.permute.xlu0 %2439
    %v2442 = vmul.f32 %v1046, %v2440
    %v2443 = vmul.f32 %v1054, %v2145
    %v2444 = vadd.f32 %v2442, %v2443
    %v2445 = vmul.f32 %v1046, %v2444
    %v2448 = vunpack.c.l.s4 1966171168
    %v2449 = vunpack.c.0.s8 %v2448
    %v2450 = vlaneseq
    %v2451 = vshrl.u32 %v2450, 7
    %v2452 = vsub.s32 %v2449, %v2451
    %v2453 = vrot.slane %v2445, %v2452
    %v2454 = vcombine.high %v2453, %v2453
    %v2456 = vunpack.c.l.s4 1966171168
    %v2457 = vunpack.c.0.s8 %v2456
    %v2458 = vlaneseq
    %v2459 = vshrl.u32 %v2458, 7
    %v2460 = vsub.s32 %v2457, %v2459
    %v2461 = vrot.slane %v2453, %v2460
    %v2463 = vunpack.c.l.s4 1966171168
    %v2464 = vunpack.c.0.s8 %v2463
    %v2465 = vlaneseq
    %v2466 = vshrl.u32 %v2465, 7
    %v2467 = vsub.s32 %v2464, %v2466
    %v2468 = vrot.slane %v2454, %v2467
    %2471 = vst.msk [vmem:[%s11 + $0x6] sm:$0x1] %vm614, %v2461
    %2472 = vst.msk [vmem:[%s11 + $0xe] sm:$0x1] %vm614, %v2468
    %v2474 = vsel %vm350, %v2291, 0
    %2476 = vmatprep.subr.mxu0 0.0
    %2477 = vmatpush1.msra.mxu0 %v445
    %2478 = vmatprep.subr.mxu0 0.0
    %2479 = vmatpush1.msra.mxu0 %v446
    %2480 = vmatprep.subr.mxu0 0.0
    %2481 = vmatpush1.msra.mxu0 %v447
    %2482 = vmatprep.subr.mxu0 0.0
    %2483 = vmatpush1.msra.mxu0 %v448
    %2484 = vmatprep.subr.mxu0 0.0
    %2485 = vmatpush1.msra.mxu0 0.0
    %2486 = vmatprep.subr.mxu0 0.0
    %2487 = vmatpush1.msra.mxu0 0.0
    %2488 = vmatprep.subr.mxu0 0.0
    %2489 = vmatpush1.msra.mxu0 0.0
    %2490 = vmatprep.subr.mxu0 0.0
    %2491 = vmatpush1.msra.mxu0 0.0
    %2492 = vmatprep.subr.mxu0 0.0
    %2493 = vmatpush1.msra.mxu0 0.0
    %2494 = vmatprep.subr.mxu0 0.0
    %2495 = vmatpush1.msra.mxu0 0.0
    %2496 = vmatprep.subr.mxu0 0.0
    %2497 = vmatpush1.msra.mxu0 0.0
    %2498 = vmatprep.subr.mxu0 0.0
    %2499 = vmatpush1.msra.mxu0 0.0
    %2500 = vmatprep.subr.mxu0 0.0
    %2501 = vmatpush1.msra.mxu0 0.0
    %2502 = vmatprep.subr.mxu0 0.0
    %2503 = vmatpush1.msra.mxu0 0.0
    %2504 = vmatprep.subr.mxu0 0.0
    %2505 = vmatpush1.msra.mxu0 0.0
    %2506 = vmatprep.subr.mxu0 0.0
    %2507 = vmatpush1.msra.mxu0 0.0
    %2508 = vmatprep.subr.mxu0 0.0
    %2509 = vmatpush1.msra.mxu0 0.0
    %2510 = vmatprep.subr.mxu0 0.0
    %2511 = vmatpush1.msra.mxu0 0.0
    %2512 = vmatprep.subr.mxu0 0.0
    %2513 = vmatpush1.msra.mxu0 0.0
    %2514 = vmatprep.subr.mxu0 0.0
    %2515 = vmatpush1.msra.mxu0 0.0
    %2516 = vmatprep.subr.mxu0 0.0
    %2517 = vmatpush1.msra.mxu0 0.0
    %2518 = vmatprep.subr.mxu0 0.0
    %2519 = vmatpush1.msra.mxu0 0.0
    %2520 = vmatprep.subr.mxu0 0.0
    %2521 = vmatpush1.msra.mxu0 0.0
    %2522 = vmatprep.subr.mxu0 0.0
    %2523 = vmatpush1.msra.mxu0 0.0
    %2524 = vmatprep.subr.mxu0 0.0
    %2525 = vmatpush1.msra.mxu0 0.0
    %2526 = vmatprep.subr.mxu0 0.0
    %2527 = vmatpush1.msra.mxu0 0.0
    %2528 = vmatprep.subr.mxu0 0.0
    %2529 = vmatpush1.msra.mxu0 0.0
    %2530 = vmatprep.subr.mxu0 0.0
    %2531 = vmatpush1.msra.mxu0 0.0
    %2532 = vmatprep.subr.mxu0 0.0
    %2533 = vmatpush1.msra.mxu0 0.0
    %2534 = vmatprep.subr.mxu0 0.0
    %2535 = vmatpush1.msra.mxu0 0.0
    %2536 = vmatprep.subr.mxu0 0.0
    %2537 = vmatpush1.msra.mxu0 0.0
    %2538 = vmatprep.subr.mxu0 0.0
    %2539 = vmatpush1.msra.mxu0 0.0
    %2540 = vmatprep.mubr.f32.mxu0 0.0
    %2541 = vmatmul.mubr.f32.gmra.mrb[0].mxu0 %v2474
    %v2542 = vpop.f32.mrb[0].mxu0
    %v2543 = vadd.f32 %v461, %v2542
    %v2544 = vpop.f32.mrb[0].mxu0
    %2545 = vdwg.mxu0
    %v2547 = vrot.slane %v2543, 6
    %2548 = vrot.lane.b32.xlu0 %v2547, 96
    %v2549 = vpop.permute.xlu0 %2548
    %v2551 = vadd.f32 %v424, %v2549
    %v2552 = vxor.u32 %v2551, 2147483648
    %v2553 = vmul.f32 %v2552, 1.442695
    %v2554 = vpow.pop %v2553
    %v2555 = vadd.f32 %v2554, 1.0
    %v2556 = vrcp.pop %v2555
    %v2557 = vmul.f32 1.0, %v2556
    %v2558 = vadd.f32 %v426, %v2549
    %v2559 = vxor.u32 %v2558, 2147483648
    %v2560 = vmul.f32 %v2559, 1.442695
    %v2561 = vpow.pop %v2560
    %v2562 = vadd.f32 %v2561, 1.0
    %v2563 = vrcp.pop %v2562
    %v2564 = vmul.f32 1.0, %v2563
    %2565 = vrot.lane.b32.xlu0 %v2547, 32
    %v2566 = vpop.permute.xlu0 %2565
    %v2568 = vmul.f32 %v2557, %v2566
    %2570 = vrot.lane.b32.xlu0 %v2568, 64
    %v2571 = vpop.permute.xlu0 %2570
    %v2573 = vadd.f32 %v426, %v2571
    %v2574 = vtanh.pop %v2573
    %v2575 = vsub.f32 1.0, %v2564
    %2577 = vrot.lane.b32.xlu0 %v2574, 96
    %v2578 = vpop.permute.xlu0 %2577
    %v2580 = vmul.f32 %v2575, %v2578
    %v2581 = vrot.slane %v2291, 6
    %v2583 = vmul.f32 %v2564, %v2581
    %v2584 = vadd.f32 %v2580, %v2583
    %v2586 = vrot.slane %v2584, 2
    %v2588 = vmul.f32 %v886, %v2586
    %v2589 = vmul.f32 %v896, %v2291
    %v2590 = vadd.f32 %v2588, %v2589
    %v2591 = vmul.f32 %v886, %v2590
    %v2594 = vunpack.c.l.s4 1966171168
    %v2595 = vunpack.c.0.s8 %v2594
    %v2596 = vlaneseq
    %v2597 = vshrl.u32 %v2596, 7
    %v2598 = vsub.s32 %v2595, %v2597
    %v2599 = vrot.slane %v2591, %v2598
    %v2600 = vcombine.high %v2599, %v2599
    %v2602 = vunpack.c.l.s4 1966171168
    %v2603 = vunpack.c.0.s8 %v2602
    %v2604 = vlaneseq
    %v2605 = vshrl.u32 %v2604, 7
    %v2606 = vsub.s32 %v2603, %v2605
    %v2607 = vrot.slane %v2599, %v2606
    %v2609 = vunpack.c.l.s4 1966171168
    %v2610 = vunpack.c.0.s8 %v2609
    %v2611 = vlaneseq
    %v2612 = vshrl.u32 %v2611, 7
    %v2613 = vsub.s32 %v2610, %v2612
    %v2614 = vrot.slane %v2600, %v2613
    %v2615 = vlaneseq
    %v2616 = vshrl.u32 %v2615, 7
    %v2617 = vsub.s32 0, %v2616
    %v2618 = vrot.slane %v2607, %v2617
    %v2619 = vlaneseq
    %v2620 = vshrl.u32 %v2619, 7
    %v2621 = vsub.s32 0, %v2620
    %v2622 = vrot.slane %v2614, %v2621
    %2623 = vrot.lane.b32.xlu0 %v2618, 32
    %v2624 = vpop.permute.xlu0 %2623
    %2625 = vrot.lane.b32.xlu0 %v2622, 32
    %v2626 = vpop.permute.xlu0 %2625
    %2629 = vst.msk [vmem:[%s11 + $0x1] sm:$0x1] %vm776, %v2624
    %2630 = vst.msk [vmem:[%s11 + $0x9] sm:$0x1] %vm776, %v2626
    %v2632 = vsel %vm350, %v2444, 0
    %2634 = vmatprep.subr.mxu0 0.0
    %2635 = vmatpush1.msra.mxu0 %v441
    %2636 = vmatprep.subr.mxu0 0.0
    %2637 = vmatpush1.msra.mxu0 %v442
    %2638 = vmatprep.subr.mxu0 0.0
    %2639 = vmatpush1.msra.mxu0 %v443
    %2640 = vmatprep.subr.mxu0 0.0
    %2641 = vmatpush1.msra.mxu0 %v444
    %2642 = vmatprep.subr.mxu0 0.0
    %2643 = vmatpush1.msra.mxu0 0.0
    %2644 = vmatprep.subr.mxu0 0.0
    %2645 = vmatpush1.msra.mxu0 0.0
    %2646 = vmatprep.subr.mxu0 0.0
    %2647 = vmatpush1.msra.mxu0 0.0
    %2648 = vmatprep.subr.mxu0 0.0
    %2649 = vmatpush1.msra.mxu0 0.0
    %2650 = vmatprep.subr.mxu0 0.0
    %2651 = vmatpush1.msra.mxu0 0.0
    %2652 = vmatprep.subr.mxu0 0.0
    %2653 = vmatpush1.msra.mxu0 0.0
    %2654 = vmatprep.subr.mxu0 0.0
    %2655 = vmatpush1.msra.mxu0 0.0
    %2656 = vmatprep.subr.mxu0 0.0
    %2657 = vmatpush1.msra.mxu0 0.0
    %2658 = vmatprep.subr.mxu0 0.0
    %2659 = vmatpush1.msra.mxu0 0.0
    %2660 = vmatprep.subr.mxu0 0.0
    %2661 = vmatpush1.msra.mxu0 0.0
    %2662 = vmatprep.subr.mxu0 0.0
    %2663 = vmatpush1.msra.mxu0 0.0
    %2664 = vmatprep.subr.mxu0 0.0
    %2665 = vmatpush1.msra.mxu0 0.0
    %2666 = vmatprep.subr.mxu0 0.0
    %2667 = vmatpush1.msra.mxu0 0.0
    %2668 = vmatprep.subr.mxu0 0.0
    %2669 = vmatpush1.msra.mxu0 0.0
    %2670 = vmatprep.subr.mxu0 0.0
    %2671 = vmatpush1.msra.mxu0 0.0
    %2672 = vmatprep.subr.mxu0 0.0
    %2673 = vmatpush1.msra.mxu0 0.0
    %2674 = vmatprep.subr.mxu0 0.0
    %2675 = vmatpush1.msra.mxu0 0.0
    %2676 = vmatprep.subr.mxu0 0.0
    %2677 = vmatpush1.msra.mxu0 0.0
    %2678 = vmatprep.subr.mxu0 0.0
    %2679 = vmatpush1.msra.mxu0 0.0
    %2680 = vmatprep.subr.mxu0 0.0
    %2681 = vmatpush1.msra.mxu0 0.0
    %2682 = vmatprep.subr.mxu0 0.0
    %2683 = vmatpush1.msra.mxu0 0.0
    %2684 = vmatprep.subr.mxu0 0.0
    %2685 = vmatpush1.msra.mxu0 0.0
    %2686 = vmatprep.subr.mxu0 0.0
    %2687 = vmatpush1.msra.mxu0 0.0
    %2688 = vmatprep.subr.mxu0 0.0
    %2689 = vmatpush1.msra.mxu0 0.0
    %2690 = vmatprep.subr.mxu0 0.0
    %2691 = vmatpush1.msra.mxu0 0.0
    %2692 = vmatprep.subr.mxu0 0.0
    %2693 = vmatpush1.msra.mxu0 0.0
    %2694 = vmatprep.subr.mxu0 0.0
    %2695 = vmatpush1.msra.mxu0 0.0
    %2696 = vmatprep.subr.mxu0 0.0
    %2697 = vmatpush1.msra.mxu0 0.0
    %2698 = vmatprep.mubr.f32.mxu0 0.0
    %2699 = vmatmul.mubr.f32.gmra.mrb[0].mxu0 %v2632
    %v2700 = vpop.f32.mrb[0].mxu0
    %v2701 = vadd.f32 %v454, %v2700
    %v2702 = vpop.f32.mrb[0].mxu0
    %2703 = vdwg.mxu0
    %v2705 = vrot.slane %v2701, 2
    %v2707 = vadd.f32 %v430, %v2705
    %v2708 = vxor.u32 %v2707, 2147483648
    %v2709 = vmul.f32 %v2708, 1.442695
    %v2710 = vpow.pop %v2709
    %v2711 = vadd.f32 %v2710, 1.0
    %v2712 = vrcp.pop %v2711
    %v2713 = vmul.f32 1.0, %v2712
    %2714 = vrot.lane.b32.xlu0 %v2705, 64
    %v2715 = vpop.permute.xlu0 %2714
    %v2717 = vmul.f32 %v2713, %v2715
    %2719 = vrot.lane.b32.xlu0 %v2717, 64
    %v2720 = vpop.permute.xlu0 %2719
    %v2722 = vadd.f32 %v430, %v2720
    %v2723 = vtanh.pop %v2722
    %v2724 = vsub.f32 1.0, %v2713
    %2726 = vrot.lane.b32.xlu0 %v2723, 96
    %v2727 = vpop.permute.xlu0 %2726
    %v2729 = vmul.f32 %v2724, %v2727
    %v2730 = vrot.slane %v2444, 2
    %2731 = vrot.lane.b32.xlu0 %v2730, 32
    %v2732 = vpop.permute.xlu0 %2731
    %v2734 = vmul.f32 %v2713, %v2732
    %v2735 = vadd.f32 %v2729, %v2734
    %v2737 = vrot.slane %v2735, 6
    %2738 = vrot.lane.b32.xlu0 %v2737, 96
    %v2739 = vpop.permute.xlu0 %2738
    %v2741 = vmul.f32 %v726, %v2739
    %v2742 = vmul.f32 %v734, %v2444
    %v2743 = vadd.f32 %v2741, %v2742
    %v2744 = vmul.f32 %v726, %v2743
    %v2747 = vunpack.c.l.s4 1966171168
    %v2748 = vunpack.c.0.s8 %v2747
    %v2749 = vlaneseq
    %v2750 = vshrl.u32 %v2749, 7
    %v2751 = vsub.s32 %v2748, %v2750
    %v2752 = vrot.slane %v2744, %v2751
    %v2753 = vcombine.high %v2752, %v2752
    %v2755 = vunpack.c.l.s4 1966171168
    %v2756 = vunpack.c.0.s8 %v2755
    %v2757 = vlaneseq
    %v2758 = vshrl.u32 %v2757, 7
    %v2759 = vsub.s32 %v2756, %v2758
    %v2760 = vrot.slane %v2752, %v2759
    %v2762 = vunpack.c.l.s4 1966171168
    %v2763 = vunpack.c.0.s8 %v2762
    %v2764 = vlaneseq
    %v2765 = vshrl.u32 %v2764, 7
    %v2766 = vsub.s32 %v2763, %v2765
    %v2767 = vrot.slane %v2753, %v2766
    %2770 = vst.msk [vmem:[%s11 + $0x7] sm:$0x1] %vm614, %v2760
    %2771 = vst.msk [vmem:[%s11 + $0xf] sm:$0x1] %vm614, %v2767
    %v2773 = vsel %vm350, %v2590, 0
    %2775 = vmatprep.subr.mxu0 0.0
    %2776 = vmatpush1.msra.mxu0 %v445
    %2777 = vmatprep.subr.mxu0 0.0
    %2778 = vmatpush1.msra.mxu0 %v446
    %2779 = vmatprep.subr.mxu0 0.0
    %2780 = vmatpush1.msra.mxu0 %v447
    %2781 = vmatprep.subr.mxu0 0.0
    %2782 = vmatpush1.msra.mxu0 %v448
    %2783 = vmatprep.subr.mxu0 0.0
    %2784 = vmatpush1.msra.mxu0 0.0
    %2785 = vmatprep.subr.mxu0 0.0
    %2786 = vmatpush1.msra.mxu0 0.0
    %2787 = vmatprep.subr.mxu0 0.0
    %2788 = vmatpush1.msra.mxu0 0.0
    %2789 = vmatprep.subr.mxu0 0.0
    %2790 = vmatpush1.msra.mxu0 0.0
    %2791 = vmatprep.subr.mxu0 0.0
    %2792 = vmatpush1.msra.mxu0 0.0
    %2793 = vmatprep.subr.mxu0 0.0
    %2794 = vmatpush1.msra.mxu0 0.0
    %2795 = vmatprep.subr.mxu0 0.0
    %2796 = vmatpush1.msra.mxu0 0.0
    %2797 = vmatprep.subr.mxu0 0.0
    %2798 = vmatpush1.msra.mxu0 0.0
    %2799 = vmatprep.subr.mxu0 0.0
    %2800 = vmatpush1.msra.mxu0 0.0
    %2801 = vmatprep.subr.mxu0 0.0
    %2802 = vmatpush1.msra.mxu0 0.0
    %2803 = vmatprep.subr.mxu0 0.0
    %2804 = vmatpush1.msra.mxu0 0.0
    %2805 = vmatprep.subr.mxu0 0.0
    %2806 = vmatpush1.msra.mxu0 0.0
    %2807 = vmatprep.subr.mxu0 0.0
    %2808 = vmatpush1.msra.mxu0 0.0
    %2809 = vmatprep.subr.mxu0 0.0
    %2810 = vmatpush1.msra.mxu0 0.0
    %2811 = vmatprep.subr.mxu0 0.0
    %2812 = vmatpush1.msra.mxu0 0.0
    %2813 = vmatprep.subr.mxu0 0.0
    %2814 = vmatpush1.msra.mxu0 0.0
    %2815 = vmatprep.subr.mxu0 0.0
    %2816 = vmatpush1.msra.mxu0 0.0
    %2817 = vmatprep.subr.mxu0 0.0
    %2818 = vmatpush1.msra.mxu0 0.0
    %2819 = vmatprep.subr.mxu0 0.0
    %2820 = vmatpush1.msra.mxu0 0.0
    %2821 = vmatprep.subr.mxu0 0.0
    %2822 = vmatpush1.msra.mxu0 0.0
    %2823 = vmatprep.subr.mxu0 0.0
    %2824 = vmatpush1.msra.mxu0 0.0
    %2825 = vmatprep.subr.mxu0 0.0
    %2826 = vmatpush1.msra.mxu0 0.0
    %2827 = vmatprep.subr.mxu0 0.0
    %2828 = vmatpush1.msra.mxu0 0.0
    %2829 = vmatprep.subr.mxu0 0.0
    %2830 = vmatpush1.msra.mxu0 0.0
    %2831 = vmatprep.subr.mxu0 0.0
    %2832 = vmatpush1.msra.mxu0 0.0
    %2833 = vmatprep.subr.mxu0 0.0
    %2834 = vmatpush1.msra.mxu0 0.0
    %2835 = vmatprep.subr.mxu0 0.0
    %2836 = vmatpush1.msra.mxu0 0.0
    %2837 = vmatprep.subr.mxu0 0.0
    %2838 = vmatpush1.msra.mxu0 0.0
    %2839 = vmatprep.mubr.f32.mxu0 0.0
    %2840 = vmatmul.mubr.f32.gmra.mrb[0].mxu0 %v2773
    %v2841 = vpop.f32.mrb[0].mxu0
    %v2842 = vadd.f32 %v461, %v2841
    %v2843 = vpop.f32.mrb[0].mxu0
    %2844 = vdwg.mxu0
    %2846 = vrot.lane.b32.xlu0 %v2842, 96
    %v2847 = vpop.permute.xlu0 %2846
    %v2849 = vadd.f32 %v424, %v2847
    %v2850 = vxor.u32 %v2849, 2147483648
    %v2851 = vmul.f32 %v2850, 1.442695
    %v2852 = vpow.pop %v2851
    %v2853 = vadd.f32 %v2852, 1.0
    %v2854 = vrcp.pop %v2853
    %v2855 = vmul.f32 1.0, %v2854
    %v2856 = vadd.f32 %v426, %v2847
    %v2857 = vxor.u32 %v2856, 2147483648
    %v2858 = vmul.f32 %v2857, 1.442695
    %v2859 = vpow.pop %v2858
    %v2860 = vadd.f32 %v2859, 1.0
    %v2861 = vrcp.pop %v2860
    %v2862 = vmul.f32 1.0, %v2861
    %2863 = vrot.lane.b32.xlu0 %v2842, 32
    %v2864 = vpop.permute.xlu0 %2863
    %v2866 = vmul.f32 %v2855, %v2864
    %2868 = vrot.lane.b32.xlu0 %v2866, 64
    %v2869 = vpop.permute.xlu0 %2868
    %v2871 = vadd.f32 %v426, %v2869
    %v2872 = vtanh.pop %v2871
    %v2873 = vsub.f32 1.0, %v2862
    %2875 = vrot.lane.b32.xlu0 %v2872, 96
    %v2876 = vpop.permute.xlu0 %2875
    %v2878 = vmul.f32 %v2873, %v2876
    %v2879 = vmul.f32 %v2862, %v2590
    %v2880 = vadd.f32 %v2878, %v2879
    %v2881 = vmul.f32 %v565, %v2880
    %v2882 = vmul.f32 %v572, %v2590
    %v2883 = vadd.f32 %v2881, %v2882
    %v2884 = vmul.f32 %v565, %v2883
    %v2887 = vunpack.c.l.s4 1966171168
    %v2888 = vunpack.c.0.s8 %v2887
    %v2889 = vlaneseq
    %v2890 = vshrl.u32 %v2889, 7
    %v2891 = vsub.s32 %v2888, %v2890
    %v2892 = vrot.slane %v2884, %v2891
    %v2893 = vcombine.high %v2892, %v2892
    %v2895 = vunpack.c.l.s4 1966171168
    %v2896 = vunpack.c.0.s8 %v2895
    %v2897 = vlaneseq
    %v2898 = vshrl.u32 %v2897, 7
    %v2899 = vsub.s32 %v2896, %v2898
    %v2900 = vrot.slane %v2892, %v2899
    %v2902 = vunpack.c.l.s4 1966171168
    %v2903 = vunpack.c.0.s8 %v2902
    %v2904 = vlaneseq
    %v2905 = vshrl.u32 %v2904, 7
    %v2906 = vsub.s32 %v2903, %v2905
    %v2907 = vrot.slane %v2893, %v2906
    %v2908 = vlaneseq
    %v2909 = vshrl.u32 %v2908, 7
    %v2910 = vsub.s32 0, %v2909
    %v2911 = vrot.slane %v2900, %v2910
    %v2912 = vlaneseq
    %v2913 = vshrl.u32 %v2912, 7
    %v2914 = vsub.s32 0, %v2913
    %v2915 = vrot.slane %v2907, %v2914
    %2916 = vrot.lane.b32.xlu0 %v2911, 32
    %v2917 = vpop.permute.xlu0 %2916
    %2918 = vrot.lane.b32.xlu0 %v2915, 32
    %v2919 = vpop.permute.xlu0 %2918
    %2922 = vst.msk [vmem:[%s11] sm:$0x1] %vm776, %v2917
    %2923 = vst.msk [vmem:[%s11 + $0x8] sm:$0x1] %vm776, %v2919
    %v2924 = vld [vmem:[%s8] sm:$0xff]
    %v2925 = vld [vmem:[%s8 + $0x8] sm:$0xff]
    %v2926 = vld [vmem:[%s8 + $0x10] sm:$0xff]
    %v2927 = vld [vmem:[%s8 + $0x18] sm:$0xff]
    %v2928 = vld [vmem:[#allocation11] sm:$0xff]
    %v2929 = vld [vmem:[#allocation11 + $0x8] sm:$0xff]
    %v2930 = vld [vmem:[#allocation11 + $0x10] sm:$0xff]
    %v2931 = vld [vmem:[#allocation11 + $0x18] sm:$0xff]
    %v2933 = vsel %vm350, %v2883, 0
    %2935 = vmatprep.subr.mxu0 0.0
    %2936 = vmatpush1.msra.mxu0 %v2928
    %2937 = vmatprep.subr.mxu0 0.0
    %2938 = vmatpush1.msra.mxu0 %v2929
    %2939 = vmatprep.subr.mxu0 0.0
    %2940 = vmatpush1.msra.mxu0 %v2930
    %2941 = vmatprep.subr.mxu0 0.0
    %2942 = vmatpush1.msra.mxu0 %v2931
    %2943 = vmatprep.subr.mxu0 0.0
    %2944 = vmatpush1.msra.mxu0 0.0
    %2945 = vmatprep.subr.mxu0 0.0
    %2946 = vmatpush1.msra.mxu0 0.0
    %2947 = vmatprep.subr.mxu0 0.0
    %2948 = vmatpush1.msra.mxu0 0.0
    %2949 = vmatprep.subr.mxu0 0.0
    %2950 = vmatpush1.msra.mxu0 0.0
    %2951 = vmatprep.subr.mxu0 0.0
    %2952 = vmatpush1.msra.mxu0 0.0
    %2953 = vmatprep.subr.mxu0 0.0
    %2954 = vmatpush1.msra.mxu0 0.0
    %2955 = vmatprep.subr.mxu0 0.0
    %2956 = vmatpush1.msra.mxu0 0.0
    %2957 = vmatprep.subr.mxu0 0.0
    %2958 = vmatpush1.msra.mxu0 0.0
    %2959 = vmatprep.subr.mxu0 0.0
    %2960 = vmatpush1.msra.mxu0 0.0
    %2961 = vmatprep.subr.mxu0 0.0
    %2962 = vmatpush1.msra.mxu0 0.0
    %2963 = vmatprep.subr.mxu0 0.0
    %2964 = vmatpush1.msra.mxu0 0.0
    %2965 = vmatprep.subr.mxu0 0.0
    %2966 = vmatpush1.msra.mxu0 0.0
    %2967 = vmatprep.subr.mxu0 0.0
    %2968 = vmatpush1.msra.mxu0 0.0
    %2969 = vmatprep.subr.mxu0 0.0
    %2970 = vmatpush1.msra.mxu0 0.0
    %2971 = vmatprep.subr.mxu0 0.0
    %2972 = vmatpush1.msra.mxu0 0.0
    %2973 = vmatprep.subr.mxu0 0.0
    %2974 = vmatpush1.msra.mxu0 0.0
    %2975 = vmatprep.subr.mxu0 0.0
    %2976 = vmatpush1.msra.mxu0 0.0
    %2977 = vmatprep.subr.mxu0 0.0
    %2978 = vmatpush1.msra.mxu0 0.0
    %2979 = vmatprep.subr.mxu0 0.0
    %2980 = vmatpush1.msra.mxu0 0.0
    %2981 = vmatprep.subr.mxu0 0.0
    %2982 = vmatpush1.msra.mxu0 0.0
    %2983 = vmatprep.subr.mxu0 0.0
    %2984 = vmatpush1.msra.mxu0 0.0
    %2985 = vmatprep.subr.mxu0 0.0
    %2986 = vmatpush1.msra.mxu0 0.0
    %2987 = vmatprep.subr.mxu0 0.0
    %2988 = vmatpush1.msra.mxu0 0.0
    %2989 = vmatprep.subr.mxu0 0.0
    %2990 = vmatpush1.msra.mxu0 0.0
    %2991 = vmatprep.subr.mxu0 0.0
    %2992 = vmatpush1.msra.mxu0 0.0
    %2993 = vmatprep.subr.mxu0 0.0
    %2994 = vmatpush1.msra.mxu0 0.0
    %2995 = vmatprep.subr.mxu0 0.0
    %2996 = vmatpush1.msra.mxu0 0.0
    %2997 = vmatprep.subr.mxu0 0.0
    %2998 = vmatpush1.msra.mxu0 0.0
    %2999 = vmatprep.mubr.f32.mxu0 0.0
    %3000 = vmatmul.mubr.f32.gmra.mrb[0].mxu0 %v2933
    %v3001 = vpop.f32.mrb[0].mxu0
    %v3002 = vadd.f32 0.0, %v3001
    %v3003 = vpop.f32.mrb[0].mxu0
    %3004 = vdwg.mxu0
    %v3006 = vsel %vm350, %v2743, 0
    %3008 = vmatprep.subr.mxu0 0.0
    %3009 = vmatpush1.msra.mxu0 %v2924
    %3010 = vmatprep.subr.mxu0 0.0
    %3011 = vmatpush1.msra.mxu0 %v2925
    %3012 = vmatprep.subr.mxu0 0.0
    %3013 = vmatpush1.msra.mxu0 %v2926
    %3014 = vmatprep.subr.mxu0 0.0
    %3015 = vmatpush1.msra.mxu0 %v2927
    %3016 = vmatprep.subr.mxu0 0.0
    %3017 = vmatpush1.msra.mxu0 0.0
    %3018 = vmatprep.subr.mxu0 0.0
    %3019 = vmatpush1.msra.mxu0 0.0
    %3020 = vmatprep.subr.mxu0 0.0
    %3021 = vmatpush1.msra.mxu0 0.0
    %3022 = vmatprep.subr.mxu0 0.0
    %3023 = vmatpush1.msra.mxu0 0.0
    %3024 = vmatprep.subr.mxu0 0.0
    %3025 = vmatpush1.msra.mxu0 0.0
    %3026 = vmatprep.subr.mxu0 0.0
    %3027 = vmatpush1.msra.mxu0 0.0
    %3028 = vmatprep.subr.mxu0 0.0
    %3029 = vmatpush1.msra.mxu0 0.0
    %3030 = vmatprep.subr.mxu0 0.0
    %3031 = vmatpush1.msra.mxu0 0.0
    %3032 = vmatprep.subr.mxu0 0.0
    %3033 = vmatpush1.msra.mxu0 0.0
    %3034 = vmatprep.subr.mxu0 0.0
    %3035 = vmatpush1.msra.mxu0 0.0
    %3036 = vmatprep.subr.mxu0 0.0
    %3037 = vmatpush1.msra.mxu0 0.0
    %3038 = vmatprep.subr.mxu0 0.0
    %3039 = vmatpush1.msra.mxu0 0.0
    %3040 = vmatprep.subr.mxu0 0.0
    %3041 = vmatpush1.msra.mxu0 0.0
    %3042 = vmatprep.subr.mxu0 0.0
    %3043 = vmatpush1.msra.mxu0 0.0
    %3044 = vmatprep.subr.mxu0 0.0
    %3045 = vmatpush1.msra.mxu0 0.0
    %3046 = vmatprep.subr.mxu0 0.0
    %3047 = vmatpush1.msra.mxu0 0.0
    %3048 = vmatprep.subr.mxu0 0.0
    %3049 = vmatpush1.msra.mxu0 0.0
    %3050 = vmatprep.subr.mxu0 0.0
    %3051 = vmatpush1.msra.mxu0 0.0
    %3052 = vmatprep.subr.mxu0 0.0
    %3053 = vmatpush1.msra.mxu0 0.0
    %3054 = vmatprep.subr.mxu0 0.0
    %3055 = vmatpush1.msra.mxu0 0.0
    %3056 = vmatprep.subr.mxu0 0.0
    %3057 = vmatpush1.msra.mxu0 0.0
    %3058 = vmatprep.subr.mxu0 0.0
    %3059 = vmatpush1.msra.mxu0 0.0
    %3060 = vmatprep.subr.mxu0 0.0
    %3061 = vmatpush1.msra.mxu0 0.0
    %3062 = vmatprep.subr.mxu0 0.0
    %3063 = vmatpush1.msra.mxu0 0.0
    %3064 = vmatprep.subr.mxu0 0.0
    %3065 = vmatpush1.msra.mxu0 0.0
    %3066 = vmatprep.subr.mxu0 0.0
    %3067 = vmatpush1.msra.mxu0 0.0
    %3068 = vmatprep.subr.mxu0 0.0
    %3069 = vmatpush1.msra.mxu0 0.0
    %3070 = vmatprep.subr.mxu0 0.0
    %3071 = vmatpush1.msra.mxu0 0.0
    %3072 = vmatprep.mubr.f32.mxu0 0.0
    %3073 = vmatmul.mubr.f32.gmra.mrb[0].mxu0 %v3006
    %v3074 = vpop.f32.mrb[0].mxu0
    %v3075 = vadd.f32 %v3002, %v3074
    %v3076 = vpop.f32.mrb[0].mxu0
    %3077 = vdwg.mxu0
    %v3078 = vld [vmem:[%s10] sm:$0x1]
    %v3080 = vlaneseq
    %v3081 = vshrl.u32 %v3080, 7
    %v3082 = vsub.s32 0, %v3081
    %v3083 = vrot.slane %v3078, %v3082
    %v3085 = vadd.f32 %v3075, %v3083
    %v3086 = vtanh.pop %v3085
    %vm3087 = vcmask 254976
    %3088 = vst.msk [vmem:[%s12] sm:$0x3] %vm3087, %v3086
    // Predicated region
    $region70: #{seq2seq_forward.2} parent=1 // pred_check
      _
    $region71: #{seq2seq_forward.2} parent=1 // pred_check_branch
      %3090 = sbr.rel (0) target = $region73
    $region72: #{seq2seq_forward.2} parent=1 // pred_region
      _
    $region73: #{seq2seq_forward.2} parent=1 // pred_fallthru
      _
    // Predicated region
    $region74: #{seq2seq_forward.2} parent=1 // pred_check
      _
    $region75: #{seq2seq_forward.2} parent=1 // pred_check_branch
      %3092 = sbr.rel (0) target = $region77
    $region76: #{seq2seq_forward.2} parent=1 // pred_region
      _
    $region77: #{seq2seq_forward.2} parent=1 // pred_fallthru
      _
    // Predicated region
    $region78: #{seq2seq_forward.2} parent=1 // pred_check
      _
    $region79: #{seq2seq_forward.2} parent=1 // pred_check_branch
      %3094 = sbr.rel (0) target = $region81
    $region80: #{seq2seq_forward.2} parent=1 // pred_region
      _
    $region81: #{seq2seq_forward.2} parent=1 // pred_fallthru
      _
    // Predicated region
    $region82: #{seq2seq_forward.2} parent=1 // pred_check
      _
    $region83: #{seq2seq_forward.2} parent=1 // pred_check_branch
      %3096 = sbr.rel (0) target = $region85
    $region84: #{seq2seq_forward.2} parent=1 // pred_region
      _
    $region85: #{seq2seq_forward.2} parent=1 // pred_fallthru
      _
    %3097 = vsyncpa [#allocation3], 1
    %3098 = vsyncpa [#allocation7], 1
    %3099 = vsyncpa [#allocation10], 1
    %3100 = vsyncpa [#allocation4], 1

</llo_original>
